<compile_context>
chip_gen: v6e
topology: v6e:2x2x1
jax: 0.10.0
libtpu: 0.0.40
codegen_flags: <defaults>
</compile_context>

<pallas_src>
import math

import jax
import jax.numpy as jnp
from jax import lax
from jax.experimental import pallas as pl
from jax.experimental.pallas import tpu as pltpu


# ------------------------------ Pallas kernel ------------------------------ #

def _fused_cnn_kernel(xc_ref, w1_ref, b1_ref, w2_ref, b2_ref, w3_ref, b3_ref,
                      w4_ref, b4_ref, w5_ref, b5_ref, o_ref,
                      ap2, ap3, ap4, x5, cols2, cols3, cols4,
                      yb1, yb2, yb3, yb4):
    """One batch tile (nb images) of the whole forward pass, VMEM-resident.

    xc_ref : (nb*256, 128) bf16  conv1 im2col (precomputed in the wrapper)
    w*_ref : packed (K, Cout_pad) bf16 weights (w5: (256, 512) centre tap)
    b*_ref : (1, Cout_pad) f32 biases
    o_ref  : (nb, 512) f32 output
    ap2/3/4: zero-padded bf16 activations feeding conv2/3/4
    x5     : (nb, 256) bf16 conv5 input (1x1 feature map)
    cols*  : per-layer bf16 im2col slabs
    yb*    : per-layer f32 conv outputs (pre-pool)
    """
    nb = ap2.shape[0]          # images handled by this grid step (static)

    # Zero the padded activation buffers: their 1-pixel borders implement the
    # 'same' zero padding of conv2/3/4; interiors are fully overwritten below.
    # bf16 buffers -> only a handful of vreg stores.
    ap2[...] = jnp.zeros_like(ap2)
    ap3[...] = jnp.zeros_like(ap3)
    ap4[...] = jnp.zeros_like(ap4)

    def pool2x2(yb, H, W, store_row):
        """Fused 2x2/2 max-pool of yb ((nb*H*W, F), NHWC row order).

        Per pooled row: 4 stride-2 sublane loads, 3 maxima, one (W/2, F) store.
        All loops are static and fully unrolled."""
        H2, W2 = H // 2, W // 2

        def row(start):
            if W2 == 1:
                return yb[pl.ds(start, 1), :]
            return yb[pl.ds(start, W2, stride=2), :]

        for n in range(nb):
            for i in range(H2):
                r0 = (n * H + 2 * i) * W          # even source row
                r1 = r0 + W                       # odd  source row
                p = jnp.maximum(jnp.maximum(row(r0), row(r0 + 1)),
                                jnp.maximum(row(r1), row(r1 + 1)))
                store_row(n, i, p)                # p: (W2, F) float32

    def im2col(ap, cols, H, W, C):
        """(nb, H+2, W+2, C) padded activation -> (nb, H, W, 9*C) im2col slab.

        9 slab copies per image (one per 3x3 tap); every destination store is
        a lane-aligned, full-128-lane store."""
        for n in range(nb):
            for dy in range(3):
                for dx in range(3):
                    t = dy * 3 + dx
                    cols[n, :, :, t * C:(t + 1) * C] = ap[n, dy:dy + H, dx:dx + W, :]

    def conv(lhs, w_ref, b_ref, yb):
        """3x3 'same' conv as ONE MXU matmul over the full K, bias + ReLU."""
        acc = jnp.dot(lhs, w_ref[...], preferred_element_type=jnp.float32)
        yb[...] = jnp.maximum(acc + b_ref[...], 0.0)

    # Pooled rows land in the interior of the next layer's padded buffer.
    def st_ap2(n, i, p): ap2[n, 1 + i, 1:9, :] = p.astype(ap2.dtype)
    def st_ap3(n, i, p): ap3[n, 1 + i, 1:5, :] = p.astype(ap3.dtype)
    def st_ap4(n, i, p): ap4[n, 1 + i, 1:3, :] = p.astype(ap4.dtype)
    def st_x5(n, i, p):  x5[n:n + 1, :] = p.astype(x5.dtype)

    # conv1: im2col already in xc_ref -> a single (nb*256,128)x(128,128) matmul.
    conv(xc_ref[...], w1_ref, b1_ref, yb1)
    pool2x2(yb1, 16, 16, st_ap2)

    # conv2
    im2col(ap2, cols2, 8, 8, 128)
    conv(cols2[...].reshape(nb * 64, 9 * 128), w2_ref, b2_ref, yb2)
    pool2x2(yb2, 8, 8, st_ap3)

    # conv3
    im2col(ap3, cols3, 4, 4, 128)
    conv(cols3[...].reshape(nb * 16, 9 * 128), w3_ref, b3_ref, yb3)
    pool2x2(yb3, 4, 4, st_ap4)

    # conv4
    im2col(ap4, cols4, 2, 2, 128)
    conv(cols4[...].reshape(nb * 4, 9 * 128), w4_ref, b4_ref, yb4)
    pool2x2(yb4, 2, 2, st_x5)

    # conv5 on a 1x1 map: only the centre tap of w5 contributes, and the
    # adaptive average pool over 1x1 is the identity -> one (nb,256)x(256,512).
    acc5 = jnp.dot(x5[...], w5_ref[...], preferred_element_type=jnp.float32)
    o_ref[...] = jnp.maximum(acc5 + b5_ref[...], 0.0)


# ------------------------------- JAX wrapper -------------------------------- #

def _pack_w(w_hwio, cin_pad, cout_pad):
    """(3,3,Cin,Cout) -> (9*cin_pad, cout_pad) bf16, zero-padded channels."""
    _, _, cin, cout = w_hwio.shape
    w = jnp.pad(w_hwio, ((0, 0), (0, 0), (0, cin_pad - cin), (0, cout_pad - cout)))
    return w.reshape(9 * cin_pad, cout_pad).astype(jnp.bfloat16)


def _pack_b(b, cout_pad):
    return jnp.pad(b, (0, cout_pad - b.shape[0])).reshape(1, cout_pad).astype(jnp.float32)


def _conv1_im2col(x_nchw):
    """(N,1,16,16) -> (N*256, 128) bf16 lane-dense im2col (9 taps + zero pad)."""
    n = x_nchw.shape[0]
    x = jnp.transpose(x_nchw, (0, 2, 3, 1)).astype(jnp.float32)    # (N,16,16,1)
    xp = jnp.pad(x, ((0, 0), (1, 1), (1, 1), (0, 0)))              # (N,18,18,1)
    taps = [xp[:, dy:dy + 16, dx:dx + 16, 0]
            for dy in range(3) for dx in range(3)]                 # 9 x (N,16,16)
    xc = jnp.stack(taps, axis=-1)                                  # (N,16,16,9)
    xc = jnp.pad(xc, ((0, 0), (0, 0), (0, 0), (0, 128 - 9)))
    return xc.reshape(n * 256, 128).astype(jnp.bfloat16)


def five_layer_cnn_forward(x_nchw, params, images_per_step=None):
    """Pallas implementation of FiveLayerCNN_A_woClsHead.forward (1x16x16 inputs)."""
    n, cin, h, w = x_nchw.shape
    assert (cin, h, w) == (1, 16, 16), "kernel is specialized to 1x16x16 inputs"

    # Batch tile per grid step: keep the output block's sublane dim either a
    # multiple of 8 or the full batch (TPU (8,128) block constraint).
    if images_per_step is None:
        nb = 8 if (n % 8 == 0) else n
    else:
        nb = images_per_step
    assert n % nb == 0, (n, nb)
    grid = (n // nb,)

    xc = _conv1_im2col(x_nchw)                                     # (N*256, 128) bf16

    w1 = jnp.pad(_pack_w(params["w1"], 1, 128), ((0, 128 - 9), (0, 0)))  # (128, 128)
    w2 = _pack_w(params["w2"], 128, 128)
    w3 = _pack_w(params["w3"], 128, 128)
    w4 = _pack_w(params["w4"], 128, 256)
    w5 = params["w5"][1, 1].astype(jnp.bfloat16)                   # centre tap (256, 512)
    b1 = _pack_b(params["b1"], 128)
    b2 = _pack_b(params["b2"], 128)
    b3 = _pack_b(params["b3"], 128)
    b4 = _pack_b(params["b4"], 256)
    b5 = params["b5"].reshape(1, 512).astype(jnp.float32)

    const = lambda i: (0, 0)      # weights/biases stay VMEM-resident across steps

    return pl.pallas_call(
        _fused_cnn_kernel,
        out_shape=jax.ShapeDtypeStruct((n, 512), jnp.float32),
        grid_spec=pltpu.PrefetchScalarGridSpec(
            num_scalar_prefetch=0,
            grid=grid,
            in_specs=[
                pl.BlockSpec((nb * 256, 128), lambda i: (i, 0)),   # conv1 im2col
                pl.BlockSpec((128, 128), const),  pl.BlockSpec((1, 128), const),
                pl.BlockSpec((1152, 128), const), pl.BlockSpec((1, 128), const),
                pl.BlockSpec((1152, 128), const), pl.BlockSpec((1, 128), const),
                pl.BlockSpec((1152, 256), const), pl.BlockSpec((1, 256), const),
                pl.BlockSpec((256, 512), const),  pl.BlockSpec((1, 512), const),
            ],
            out_specs=pl.BlockSpec((nb, 512), lambda i: (i, 0)),
            scratch_shapes=[
                pltpu.VMEM((nb, 10, 10, 128), jnp.bfloat16),    # padded conv2 input
                pltpu.VMEM((nb, 6, 6, 128), jnp.bfloat16),      # padded conv3 input
                pltpu.VMEM((nb, 4, 4, 128), jnp.bfloat16),      # padded conv4 input
                pltpu.VMEM((nb, 256), jnp.bfloat16),            # conv5 input (1x1 map)
                pltpu.VMEM((nb, 8, 8, 9 * 128), jnp.bfloat16),  # conv2 im2col
                pltpu.VMEM((nb, 4, 4, 9 * 128), jnp.bfloat16),  # conv3 im2col
                pltpu.VMEM((nb, 2, 2, 9 * 128), jnp.bfloat16),  # conv4 im2col
                pltpu.VMEM((nb * 256, 128), jnp.float32),       # conv1 out (pre-pool)
                pltpu.VMEM((nb * 64, 128), jnp.float32),        # conv2 out
                pltpu.VMEM((nb * 16, 128), jnp.float32),        # conv3 out
                pltpu.VMEM((nb * 4, 256), jnp.float32),         # conv4 out
            ]),
        compiler_params=pltpu.CompilerParams(
            dimension_semantics=("parallel",)),
    )(xc, w1, b1, w2, b2, w3, b3, w4, b4, w5, b5)


# ------------------------- reference & parameters --------------------------- #

def reference_forward(x_nchw, params):
    """Pure-JAX f32 reference (lax.conv) for correctness checking."""
    x = jnp.transpose(x_nchw, (0, 2, 3, 1)).astype(jnp.float32)

    def conv(x, w, b):
        y = lax.conv_general_dilated(
            x, w, window_strides=(1, 1), padding="SAME",
            dimension_numbers=("NHWC", "HWIO", "NHWC"))
        return jax.nn.relu(y + b)

    def pool(x):
        n, h, w, c = x.shape
        return x.reshape(n, h // 2, 2, w // 2, 2, c).max(axis=(2, 4))

    x = pool(conv(x, params["w1"], params["b1"]))
    x = pool(conv(x, params["w2"], params["b2"]))
    x = pool(conv(x, params["w3"], params["b3"]))
    x = pool(conv(x, params["w4"], params["b4"]))
    x = conv(x, params["w5"], params["b5"])
    return jnp.mean(x, axis=(1, 2))


def init_params(key):
    """Deterministic He-normal init; weight layout HWIO (3,3,Cin,Cout)."""
    layer_dims = [(1, 32), (32, 64), (64, 128), (128, 256), (256, 512)]
    params = {}
    for i, (cin, cout) in enumerate(layer_dims, start=1):
        key, kw, kb = jax.random.split(key, 3)
        std = math.sqrt(2.0 / (cin * 9))
        params[f"w{i}"] = std * jax.random.normal(kw, (3, 3, cin, cout), jnp.float32)
        params[f"b{i}"] = 0.01 * jax.random.normal(kb, (cout,), jnp.float32)
    return params


# ---------------------------------- main ------------------------------------ #

if __name__ == "__main__":
    key = jax.random.PRNGKey(0)
    pkey, xkey = jax.random.split(key)
    params = init_params(pkey)

    # 1 input channel, 16x16 spatial so four 2x2 max-pools reach 1x1 at conv5.
    x = jax.random.normal(xkey, (2, 1, 16, 16), dtype=jnp.float32)  # NCHW

    fwd = jax.jit(five_layer_cnn_forward)
    out = jax.block_until_ready(fwd(x, params))

    ref = jax.block_until_ready(reference_forward(x, params))

    assert out.shape == (2, 512), out.shape
    assert bool(jnp.all(jnp.isfinite(out)))
    err = float(jnp.max(jnp.abs(out - ref)))
    scale = float(jnp.max(jnp.abs(ref))) + 1e-6
    # bf16 matmul operands (f32 accumulation) across 5 layers: allow ~5% of
    # the output dynamic range vs. the pure-f32 reference.
    assert err <= 5e-2 * scale, (err, scale)

    print("KERNEL_OK")
</pallas_src>

<mosaic_0001>
module attributes {stable_mosaic.version = 11 : i64} {
  func.func @_fused_cnn_kernel(%arg0: i32, %arg1: memref<512x128xbf16, #tpu.memory_space<vmem>>, %arg2: memref<128x128xbf16, #tpu.memory_space<vmem>>, %arg3: memref<1x128xf32, #tpu.memory_space<vmem>>, %arg4: memref<1152x128xbf16, #tpu.memory_space<vmem>>, %arg5: memref<1x128xf32, #tpu.memory_space<vmem>>, %arg6: memref<1152x128xbf16, #tpu.memory_space<vmem>>, %arg7: memref<1x128xf32, #tpu.memory_space<vmem>>, %arg8: memref<1152x256xbf16, #tpu.memory_space<vmem>>, %arg9: memref<1x256xf32, #tpu.memory_space<vmem>>, %arg10: memref<256x512xbf16, #tpu.memory_space<vmem>>, %arg11: memref<1x512xf32, #tpu.memory_space<vmem>>, %arg12: memref<2x512xf32, #tpu.memory_space<vmem>>, %arg13: memref<2x10x10x128xbf16, #tpu.memory_space<vmem>>, %arg14: memref<2x6x6x128xbf16, #tpu.memory_space<vmem>>, %arg15: memref<2x4x4x128xbf16, #tpu.memory_space<vmem>>, %arg16: memref<2x256xbf16, #tpu.memory_space<vmem>>, %arg17: memref<2x8x8x1152xbf16, #tpu.memory_space<vmem>>, %arg18: memref<2x4x4x1152xbf16, #tpu.memory_space<vmem>>, %arg19: memref<2x2x2x1152xbf16, #tpu.memory_space<vmem>>, %arg20: memref<512x128xf32, #tpu.memory_space<vmem>>, %arg21: memref<128x128xf32, #tpu.memory_space<vmem>>, %arg22: memref<32x128xf32, #tpu.memory_space<vmem>>, %arg23: memref<8x256xf32, #tpu.memory_space<vmem>>) attributes {dimension_semantics = [#tpu.dimension_semantics<parallel>], iteration_bounds = array<i64: 1>, scalar_prefetch = 0 : i64, scratch_operands = 11 : i64, tpu.core_type = #tpu.core_type<tc>, window_params = [{transform_indices = @transform_0, window_bounds = array<i64: 512, 128>}, {pipeline_mode = #tpu.pipeline_mode<synchronous>, transform_indices = @transform_1, window_bounds = array<i64: 128, 128>}, {pipeline_mode = #tpu.pipeline_mode<synchronous>, transform_indices = @transform_2, window_bounds = array<i64: 1, 128>}, {pipeline_mode = #tpu.pipeline_mode<synchronous>, transform_indices = @transform_3, window_bounds = array<i64: 1152, 128>}, {pipeline_mode = #tpu.pipeline_mode<synchronous>, transform_indices = @transform_4, window_bounds = array<i64: 1, 128>}, {pipeline_mode = #tpu.pipeline_mode<synchronous>, transform_indices = @transform_5, window_bounds = array<i64: 1152, 128>}, {pipeline_mode = #tpu.pipeline_mode<synchronous>, transform_indices = @transform_6, window_bounds = array<i64: 1, 128>}, {pipeline_mode = #tpu.pipeline_mode<synchronous>, transform_indices = @transform_7, window_bounds = array<i64: 1152, 256>}, {pipeline_mode = #tpu.pipeline_mode<synchronous>, transform_indices = @transform_8, window_bounds = array<i64: 1, 256>}, {pipeline_mode = #tpu.pipeline_mode<synchronous>, transform_indices = @transform_9, window_bounds = array<i64: 256, 512>}, {pipeline_mode = #tpu.pipeline_mode<synchronous>, transform_indices = @transform_10, window_bounds = array<i64: 1, 512>}, {transform_indices = @transform_11, window_bounds = array<i64: 2, 512>}]} {
    %cst = arith.constant 0.000000e+00 : bf16
    %0 = vector.broadcast %cst : bf16 to vector<2x10x10x128xbf16>
    %c0 = arith.constant 0 : index
    %c0_0 = arith.constant 0 : index
    %c0_1 = arith.constant 0 : index
    %c0_2 = arith.constant 0 : index
    %1 = vector.load %arg13[%c0, %c0_0, %c0_1, %c0_2] : memref<2x10x10x128xbf16, #tpu.memory_space<vmem>>, vector<2x10x10x128xbf16>
    tpu.vector_store %arg13[%c0, %c0_0, %c0_1, %c0_2], %0 {strides = array<i32>} : memref<2x10x10x128xbf16, #tpu.memory_space<vmem>>, vector<2x10x10x128xbf16>,
    %cst_3 = arith.constant 0.000000e+00 : bf16
    %2 = vector.broadcast %cst_3 : bf16 to vector<2x6x6x128xbf16>
    %c0_4 = arith.constant 0 : index
    %c0_5 = arith.constant 0 : index
    %c0_6 = arith.constant 0 : index
    %c0_7 = arith.constant 0 : index
    %3 = vector.load %arg14[%c0_4, %c0_5, %c0_6, %c0_7] : memref<2x6x6x128xbf16, #tpu.memory_space<vmem>>, vector<2x6x6x128xbf16>
    tpu.vector_store %arg14[%c0_4, %c0_5, %c0_6, %c0_7], %2 {strides = array<i32>} : memref<2x6x6x128xbf16, #tpu.memory_space<vmem>>, vector<2x6x6x128xbf16>,
    %cst_8 = arith.constant 0.000000e+00 : bf16
    %4 = vector.broadcast %cst_8 : bf16 to vector<2x4x4x128xbf16>
    %c0_9 = arith.constant 0 : index
    %c0_10 = arith.constant 0 : index
    %c0_11 = arith.constant 0 : index
    %c0_12 = arith.constant 0 : index
    %5 = vector.load %arg15[%c0_9, %c0_10, %c0_11, %c0_12] : memref<2x4x4x128xbf16, #tpu.memory_space<vmem>>, vector<2x4x4x128xbf16>
    tpu.vector_store %arg15[%c0_9, %c0_10, %c0_11, %c0_12], %4 {strides = array<i32>} : memref<2x4x4x128xbf16, #tpu.memory_space<vmem>>, vector<2x4x4x128xbf16>,
    %c0_13 = arith.constant 0 : index
    %c0_14 = arith.constant 0 : index
    %6 = vector.load %arg1[%c0_13, %c0_14] : memref<512x128xbf16, #tpu.memory_space<vmem>>, vector<512x128xbf16>
    %c0_15 = arith.constant 0 : index
    %c0_16 = arith.constant 0 : index
    %7 = vector.load %arg2[%c0_15, %c0_16] : memref<128x128xbf16, #tpu.memory_space<vmem>>, vector<128x128xbf16>
    %cst_17 = arith.constant dense<0.000000e+00> : vector<512x128xf32>
    %8 = tpu.matmul %6, %7, %cst_17 {dimension_numbers = #tpu.dot_dimension_numbers<[1], [0], [0], [1], [0, 0, 1, 1], [], []>} : vector<512x128xbf16>, vector<128x128xbf16>, vector<512x128xf32> -> vector<512x128xf32>
    %c0_18 = arith.constant 0 : index
    %c0_19 = arith.constant 0 : index
    %9 = vector.load %arg3[%c0_18, %c0_19] : memref<1x128xf32, #tpu.memory_space<vmem>>, vector<1x128xf32>
    %10 = vector.broadcast %9 : vector<1x128xf32> to vector<512x128xf32>
    %11 = arith.addf %8, %10 : vector<512x128xf32>
    %cst_20 = arith.constant 0.000000e+00 : f32
    %12 = vector.broadcast %cst_20 : f32 to vector<512x128xf32>
    %13 = arith.maximumf %11, %12 : vector<512x128xf32>
    %c0_21 = arith.constant 0 : index
    %c0_22 = arith.constant 0 : index
    %14 = vector.load %arg20[%c0_21, %c0_22] : memref<512x128xf32, #tpu.memory_space<vmem>>, vector<512x128xf32>
    tpu.vector_store %arg20[%c0_21, %c0_22], %13 {strides = array<i32>} : memref<512x128xf32, #tpu.memory_space<vmem>>, vector<512x128xf32>,
    %c0_23 = arith.constant 0 : index
    %c0_24 = arith.constant 0 : index
    %15 = tpu.strided_load %arg20[%c0_23, %c0_24] {strides = array<i32: 2, 1>} : memref<512x128xf32, #tpu.memory_space<vmem>>, vector<8x128xf32>
    %c1 = arith.constant 1 : index
    %c0_25 = arith.constant 0 : index
    %16 = tpu.strided_load %arg20[%c1, %c0_25] {strides = array<i32: 2, 1>} : memref<512x128xf32, #tpu.memory_space<vmem>>, vector<8x128xf32>
    %17 = arith.maximumf %15, %16 : vector<8x128xf32>
    %c16 = arith.constant 16 : index
    %c0_26 = arith.constant 0 : index
    %18 = tpu.strided_load %arg20[%c16, %c0_26] {strides = array<i32: 2, 1>} : memref<512x128xf32, #tpu.memory_space<vmem>>, vector<8x128xf32>
    %c17 = arith.constant 17 : index
    %c0_27 = arith.constant 0 : index
    %19 = tpu.strided_load %arg20[%c17, %c0_27] {strides = array<i32: 2, 1>} : memref<512x128xf32, #tpu.memory_space<vmem>>, vector<8x128xf32>
    %20 = arith.maximumf %18, %19 : vector<8x128xf32>
    %21 = arith.maximumf %17, %20 : vector<8x128xf32>
    %22 = arith.truncf %21 : vector<8x128xf32> to vector<8x128xbf16>
    %c0_28 = arith.constant 0 : index
    %c1_29 = arith.constant 1 : index
    %c1_30 = arith.constant 1 : index
    %c0_31 = arith.constant 0 : index
    %23 = vector.load %arg13[%c0_28, %c1_29, %c1_30, %c0_31] : memref<2x10x10x128xbf16, #tpu.memory_space<vmem>>, vector<1x1x8x128xbf16>
    %24 = vector.shape_cast %23 : vector<1x1x8x128xbf16> to vector<8x128xbf16>
    %25 = vector.shape_cast %22 : vector<8x128xbf16> to vector<1x1x8x128xbf16>
    tpu.vector_store %arg13[%c0_28, %c1_29, %c1_30, %c0_31], %25 {strides = array<i32>} : memref<2x10x10x128xbf16, #tpu.memory_space<vmem>>, vector<1x1x8x128xbf16>,
    %c32 = arith.constant 32 : index
    %c0_32 = arith.constant 0 : index
    %26 = tpu.strided_load %arg20[%c32, %c0_32] {strides = array<i32: 2, 1>} : memref<512x128xf32, #tpu.memory_space<vmem>>, vector<8x128xf32>
    %c33 = arith.constant 33 : index
    %c0_33 = arith.constant 0 : index
    %27 = tpu.strided_load %arg20[%c33, %c0_33] {strides = array<i32: 2, 1>} : memref<512x128xf32, #tpu.memory_space<vmem>>, vector<8x128xf32>
    %28 = arith.maximumf %26, %27 : vector<8x128xf32>
    %c48 = arith.constant 48 : index
    %c0_34 = arith.constant 0 : index
    %29 = tpu.strided_load %arg20[%c48, %c0_34] {strides = array<i32: 2, 1>} : memref<512x128xf32, #tpu.memory_space<vmem>>, vector<8x128xf32>
    %c49 = arith.constant 49 : index
    %c0_35 = arith.constant 0 : index
    %30 = tpu.strided_load %arg20[%c49, %c0_35] {strides = array<i32: 2, 1>} : memref<512x128xf32, #tpu.memory_space<vmem>>, vector<8x128xf32>
    %31 = arith.maximumf %29, %30 : vector<8x128xf32>
    %32 = arith.maximumf %28, %31 : vector<8x128xf32>
    %33 = arith.truncf %32 : vector<8x128xf32> to vector<8x128xbf16>
    %c0_36 = arith.constant 0 : index
    %c2 = arith.constant 2 : index
    %c1_37 = arith.constant 1 : index
    %c0_38 = arith.constant 0 : index
    %34 = vector.load %arg13[%c0_36, %c2, %c1_37, %c0_38] : memref<2x10x10x128xbf16, #tpu.memory_space<vmem>>, vector<1x1x8x128xbf16>
    %35 = vector.shape_cast %34 : vector<1x1x8x128xbf16> to vector<8x128xbf16>
    %36 = vector.shape_cast %33 : vector<8x128xbf16> to vector<1x1x8x128xbf16>
    tpu.vector_store %arg13[%c0_36, %c2, %c1_37, %c0_38], %36 {strides = array<i32>} : memref<2x10x10x128xbf16, #tpu.memory_space<vmem>>, vector<1x1x8x128xbf16>,
    %c64 = arith.constant 64 : index
    %c0_39 = arith.constant 0 : index
    %37 = tpu.strided_load %arg20[%c64, %c0_39] {strides = array<i32: 2, 1>} : memref<512x128xf32, #tpu.memory_space<vmem>>, vector<8x128xf32>
    %c65 = arith.constant 65 : index
    %c0_40 = arith.constant 0 : index
    %38 = tpu.strided_load %arg20[%c65, %c0_40] {strides = array<i32: 2, 1>} : memref<512x128xf32, #tpu.memory_space<vmem>>, vector<8x128xf32>
    %39 = arith.maximumf %37, %38 : vector<8x128xf32>
    %c80 = arith.constant 80 : index
    %c0_41 = arith.constant 0 : index
    %40 = tpu.strided_load %arg20[%c80, %c0_41] {strides = array<i32: 2, 1>} : memref<512x128xf32, #tpu.memory_space<vmem>>, vector<8x128xf32>
    %c81 = arith.constant 81 : index
    %c0_42 = arith.constant 0 : index
    %41 = tpu.strided_load %arg20[%c81, %c0_42] {strides = array<i32: 2, 1>} : memref<512x128xf32, #tpu.memory_space<vmem>>, vector<8x128xf32>
    %42 = arith.maximumf %40, %41 : vector<8x128xf32>
    %43 = arith.maximumf %39, %42 : vector<8x128xf32>
    %44 = arith.truncf %43 : vector<8x128xf32> to vector<8x128xbf16>
    %c0_43 = arith.constant 0 : index
    %c3 = arith.constant 3 : index
    %c1_44 = arith.constant 1 : index
    %c0_45 = arith.constant 0 : index
    %45 = vector.load %arg13[%c0_43, %c3, %c1_44, %c0_45] : memref<2x10x10x128xbf16, #tpu.memory_space<vmem>>, vector<1x1x8x128xbf16>
    %46 = vector.shape_cast %45 : vector<1x1x8x128xbf16> to vector<8x128xbf16>
    %47 = vector.shape_cast %44 : vector<8x128xbf16> to vector<1x1x8x128xbf16>
    tpu.vector_store %arg13[%c0_43, %c3, %c1_44, %c0_45], %47 {strides = array<i32>} : memref<2x10x10x128xbf16, #tpu.memory_space<vmem>>, vector<1x1x8x128xbf16>,
    %c96 = arith.constant 96 : index
    %c0_46 = arith.constant 0 : index
    %48 = tpu.strided_load %arg20[%c96, %c0_46] {strides = array<i32: 2, 1>} : memref<512x128xf32, #tpu.memory_space<vmem>>, vector<8x128xf32>
    %c97 = arith.constant 97 : index
    %c0_47 = arith.constant 0 : index
    %49 = tpu.strided_load %arg20[%c97, %c0_47] {strides = array<i32: 2, 1>} : memref<512x128xf32, #tpu.memory_space<vmem>>, vector<8x128xf32>
    %50 = arith.maximumf %48, %49 : vector<8x128xf32>
    %c112 = arith.constant 112 : index
    %c0_48 = arith.constant 0 : index
    %51 = tpu.strided_load %arg20[%c112, %c0_48] {strides = array<i32: 2, 1>} : memref<512x128xf32, #tpu.memory_space<vmem>>, vector<8x128xf32>
    %c113 = arith.constant 113 : index
    %c0_49 = arith.constant 0 : index
    %52 = tpu.strided_load %arg20[%c113, %c0_49] {strides = array<i32: 2, 1>} : memref<512x128xf32, #tpu.memory_space<vmem>>, vector<8x128xf32>
    %53 = arith.maximumf %51, %52 : vector<8x128xf32>
    %54 = arith.maximumf %50, %53 : vector<8x128xf32>
    %55 = arith.truncf %54 : vector<8x128xf32> to vector<8x128xbf16>
    %c0_50 = arith.constant 0 : index
    %c4 = arith.constant 4 : index
    %c1_51 = arith.constant 1 : index
    %c0_52 = arith.constant 0 : index
    %56 = vector.load %arg13[%c0_50, %c4, %c1_51, %c0_52] : memref<2x10x10x128xbf16, #tpu.memory_space<vmem>>, vector<1x1x8x128xbf16>
    %57 = vector.shape_cast %56 : vector<1x1x8x128xbf16> to vector<8x128xbf16>
    %58 = vector.shape_cast %55 : vector<8x128xbf16> to vector<1x1x8x128xbf16>
    tpu.vector_store %arg13[%c0_50, %c4, %c1_51, %c0_52], %58 {strides = array<i32>} : memref<2x10x10x128xbf16, #tpu.memory_space<vmem>>, vector<1x1x8x128xbf16>,
    %c128 = arith.constant 128 : index
    %c0_53 = arith.constant 0 : index
    %59 = tpu.strided_load %arg20[%c128, %c0_53] {strides = array<i32: 2, 1>} : memref<512x128xf32, #tpu.memory_space<vmem>>, vector<8x128xf32>
    %c129 = arith.constant 129 : index
    %c0_54 = arith.constant 0 : index
    %60 = tpu.strided_load %arg20[%c129, %c0_54] {strides = array<i32: 2, 1>} : memref<512x128xf32, #tpu.memory_space<vmem>>, vector<8x128xf32>
    %61 = arith.maximumf %59, %60 : vector<8x128xf32>
    %c144 = arith.constant 144 : index
    %c0_55 = arith.constant 0 : index
    %62 = tpu.strided_load %arg20[%c144, %c0_55] {strides = array<i32: 2, 1>} : memref<512x128xf32, #tpu.memory_space<vmem>>, vector<8x128xf32>
    %c145 = arith.constant 145 : index
    %c0_56 = arith.constant 0 : index
    %63 = tpu.strided_load %arg20[%c145, %c0_56] {strides = array<i32: 2, 1>} : memref<512x128xf32, #tpu.memory_space<vmem>>, vector<8x128xf32>
    %64 = arith.maximumf %62, %63 : vector<8x128xf32>
    %65 = arith.maximumf %61, %64 : vector<8x128xf32>
    %66 = arith.truncf %65 : vector<8x128xf32> to vector<8x128xbf16>
    %c0_57 = arith.constant 0 : index
    %c5 = arith.constant 5 : index
    %c1_58 = arith.constant 1 : index
    %c0_59 = arith.constant 0 : index
    %67 = vector.load %arg13[%c0_57, %c5, %c1_58, %c0_59] : memref<2x10x10x128xbf16, #tpu.memory_space<vmem>>, vector<1x1x8x128xbf16>
    %68 = vector.shape_cast %67 : vector<1x1x8x128xbf16> to vector<8x128xbf16>
    %69 = vector.shape_cast %66 : vector<8x128xbf16> to vector<1x1x8x128xbf16>
    tpu.vector_store %arg13[%c0_57, %c5, %c1_58, %c0_59], %69 {strides = array<i32>} : memref<2x10x10x128xbf16, #tpu.memory_space<vmem>>, vector<1x1x8x128xbf16>,
    %c160 = arith.constant 160 : index
    %c0_60 = arith.constant 0 : index
    %70 = tpu.strided_load %arg20[%c160, %c0_60] {strides = array<i32: 2, 1>} : memref<512x128xf32, #tpu.memory_space<vmem>>, vector<8x128xf32>
    %c161 = arith.constant 161 : index
    %c0_61 = arith.constant 0 : index
    %71 = tpu.strided_load %arg20[%c161, %c0_61] {strides = array<i32: 2, 1>} : memref<512x128xf32, #tpu.memory_space<vmem>>, vector<8x128xf32>
    %72 = arith.maximumf %70, %71 : vector<8x128xf32>
    %c176 = arith.constant 176 : index
    %c0_62 = arith.constant 0 : index
    %73 = tpu.strided_load %arg20[%c176, %c0_62] {strides = array<i32: 2, 1>} : memref<512x128xf32, #tpu.memory_space<vmem>>, vector<8x128xf32>
    %c177 = arith.constant 177 : index
    %c0_63 = arith.constant 0 : index
    %74 = tpu.strided_load %arg20[%c177, %c0_63] {strides = array<i32: 2, 1>} : memref<512x128xf32, #tpu.memory_space<vmem>>, vector<8x128xf32>
    %75 = arith.maximumf %73, %74 : vector<8x128xf32>
    %76 = arith.maximumf %72, %75 : vector<8x128xf32>
    %77 = arith.truncf %76 : vector<8x128xf32> to vector<8x128xbf16>
    %c0_64 = arith.constant 0 : index
    %c6 = arith.constant 6 : index
    %c1_65 = arith.constant 1 : index
    %c0_66 = arith.constant 0 : index
    %78 = vector.load %arg13[%c0_64, %c6, %c1_65, %c0_66] : memref<2x10x10x128xbf16, #tpu.memory_space<vmem>>, vector<1x1x8x128xbf16>
    %79 = vector.shape_cast %78 : vector<1x1x8x128xbf16> to vector<8x128xbf16>
    %80 = vector.shape_cast %77 : vector<8x128xbf16> to vector<1x1x8x128xbf16>
    tpu.vector_store %arg13[%c0_64, %c6, %c1_65, %c0_66], %80 {strides = array<i32>} : memref<2x10x10x128xbf16, #tpu.memory_space<vmem>>, vector<1x1x8x128xbf16>,
    %c192 = arith.constant 192 : index
    %c0_67 = arith.constant 0 : index
    %81 = tpu.strided_load %arg20[%c192, %c0_67] {strides = array<i32: 2, 1>} : memref<512x128xf32, #tpu.memory_space<vmem>>, vector<8x128xf32>
    %c193 = arith.constant 193 : index
    %c0_68 = arith.constant 0 : index
    %82 = tpu.strided_load %arg20[%c193, %c0_68] {strides = array<i32: 2, 1>} : memref<512x128xf32, #tpu.memory_space<vmem>>, vector<8x128xf32>
    %83 = arith.maximumf %81, %82 : vector<8x128xf32>
    %c208 = arith.constant 208 : index
    %c0_69 = arith.constant 0 : index
    %84 = tpu.strided_load %arg20[%c208, %c0_69] {strides = array<i32: 2, 1>} : memref<512x128xf32, #tpu.memory_space<vmem>>, vector<8x128xf32>
    %c209 = arith.constant 209 : index
    %c0_70 = arith.constant 0 : index
    %85 = tpu.strided_load %arg20[%c209, %c0_70] {strides = array<i32: 2, 1>} : memref<512x128xf32, #tpu.memory_space<vmem>>, vector<8x128xf32>
    %86 = arith.maximumf %84, %85 : vector<8x128xf32>
    %87 = arith.maximumf %83, %86 : vector<8x128xf32>
    %88 = arith.truncf %87 : vector<8x128xf32> to vector<8x128xbf16>
    %c0_71 = arith.constant 0 : index
    %c7 = arith.constant 7 : index
    %c1_72 = arith.constant 1 : index
    %c0_73 = arith.constant 0 : index
    %89 = vector.load %arg13[%c0_71, %c7, %c1_72, %c0_73] : memref<2x10x10x128xbf16, #tpu.memory_space<vmem>>, vector<1x1x8x128xbf16>
    %90 = vector.shape_cast %89 : vector<1x1x8x128xbf16> to vector<8x128xbf16>
    %91 = vector.shape_cast %88 : vector<8x128xbf16> to vector<1x1x8x128xbf16>
    tpu.vector_store %arg13[%c0_71, %c7, %c1_72, %c0_73], %91 {strides = array<i32>} : memref<2x10x10x128xbf16, #tpu.memory_space<vmem>>, vector<1x1x8x128xbf16>,
    %c224 = arith.constant 224 : index
    %c0_74 = arith.constant 0 : index
    %92 = tpu.strided_load %arg20[%c224, %c0_74] {strides = array<i32: 2, 1>} : memref<512x128xf32, #tpu.memory_space<vmem>>, vector<8x128xf32>
    %c225 = arith.constant 225 : index
    %c0_75 = arith.constant 0 : index
    %93 = tpu.strided_load %arg20[%c225, %c0_75] {strides = array<i32: 2, 1>} : memref<512x128xf32, #tpu.memory_space<vmem>>, vector<8x128xf32>
    %94 = arith.maximumf %92, %93 : vector<8x128xf32>
    %c240 = arith.constant 240 : index
    %c0_76 = arith.constant 0 : index
    %95 = tpu.strided_load %arg20[%c240, %c0_76] {strides = array<i32: 2, 1>} : memref<512x128xf32, #tpu.memory_space<vmem>>, vector<8x128xf32>
    %c241 = arith.constant 241 : index
    %c0_77 = arith.constant 0 : index
    %96 = tpu.strided_load %arg20[%c241, %c0_77] {strides = array<i32: 2, 1>} : memref<512x128xf32, #tpu.memory_space<vmem>>, vector<8x128xf32>
    %97 = arith.maximumf %95, %96 : vector<8x128xf32>
    %98 = arith.maximumf %94, %97 : vector<8x128xf32>
    %99 = arith.truncf %98 : vector<8x128xf32> to vector<8x128xbf16>
    %c0_78 = arith.constant 0 : index
    %c8 = arith.constant 8 : index
    %c1_79 = arith.constant 1 : index
    %c0_80 = arith.constant 0 : index
    %100 = vector.load %arg13[%c0_78, %c8, %c1_79, %c0_80] : memref<2x10x10x128xbf16, #tpu.memory_space<vmem>>, vector<1x1x8x128xbf16>
    %101 = vector.shape_cast %100 : vector<1x1x8x128xbf16> to vector<8x128xbf16>
    %102 = vector.shape_cast %99 : vector<8x128xbf16> to vector<1x1x8x128xbf16>
    tpu.vector_store %arg13[%c0_78, %c8, %c1_79, %c0_80], %102 {strides = array<i32>} : memref<2x10x10x128xbf16, #tpu.memory_space<vmem>>, vector<1x1x8x128xbf16>,
    %c256 = arith.constant 256 : index
    %c0_81 = arith.constant 0 : index
    %103 = tpu.strided_load %arg20[%c256, %c0_81] {strides = array<i32: 2, 1>} : memref<512x128xf32, #tpu.memory_space<vmem>>, vector<8x128xf32>
    %c257 = arith.constant 257 : index
    %c0_82 = arith.constant 0 : index
    %104 = tpu.strided_load %arg20[%c257, %c0_82] {strides = array<i32: 2, 1>} : memref<512x128xf32, #tpu.memory_space<vmem>>, vector<8x128xf32>
    %105 = arith.maximumf %103, %104 : vector<8x128xf32>
    %c272 = arith.constant 272 : index
    %c0_83 = arith.constant 0 : index
    %106 = tpu.strided_load %arg20[%c272, %c0_83] {strides = array<i32: 2, 1>} : memref<512x128xf32, #tpu.memory_space<vmem>>, vector<8x128xf32>
    %c273 = arith.constant 273 : index
    %c0_84 = arith.constant 0 : index
    %107 = tpu.strided_load %arg20[%c273, %c0_84] {strides = array<i32: 2, 1>} : memref<512x128xf32, #tpu.memory_space<vmem>>, vector<8x128xf32>
    %108 = arith.maximumf %106, %107 : vector<8x128xf32>
    %109 = arith.maximumf %105, %108 : vector<8x128xf32>
    %110 = arith.truncf %109 : vector<8x128xf32> to vector<8x128xbf16>
    %c1_85 = arith.constant 1 : index
    %c1_86 = arith.constant 1 : index
    %c1_87 = arith.constant 1 : index
    %c0_88 = arith.constant 0 : index
    %111 = vector.load %arg13[%c1_85, %c1_86, %c1_87, %c0_88] : memref<2x10x10x128xbf16, #tpu.memory_space<vmem>>, vector<1x1x8x128xbf16>
    %112 = vector.shape_cast %111 : vector<1x1x8x128xbf16> to vector<8x128xbf16>
    %113 = vector.shape_cast %110 : vector<8x128xbf16> to vector<1x1x8x128xbf16>
    tpu.vector_store %arg13[%c1_85, %c1_86, %c1_87, %c0_88], %113 {strides = array<i32>} : memref<2x10x10x128xbf16, #tpu.memory_space<vmem>>, vector<1x1x8x128xbf16>,
    %c288 = arith.constant 288 : index
    %c0_89 = arith.constant 0 : index
    %114 = tpu.strided_load %arg20[%c288, %c0_89] {strides = array<i32: 2, 1>} : memref<512x128xf32, #tpu.memory_space<vmem>>, vector<8x128xf32>
    %c289 = arith.constant 289 : index
    %c0_90 = arith.constant 0 : index
    %115 = tpu.strided_load %arg20[%c289, %c0_90] {strides = array<i32: 2, 1>} : memref<512x128xf32, #tpu.memory_space<vmem>>, vector<8x128xf32>
    %116 = arith.maximumf %114, %115 : vector<8x128xf32>
    %c304 = arith.constant 304 : index
    %c0_91 = arith.constant 0 : index
    %117 = tpu.strided_load %arg20[%c304, %c0_91] {strides = array<i32: 2, 1>} : memref<512x128xf32, #tpu.memory_space<vmem>>, vector<8x128xf32>
    %c305 = arith.constant 305 : index
    %c0_92 = arith.constant 0 : index
    %118 = tpu.strided_load %arg20[%c305, %c0_92] {strides = array<i32: 2, 1>} : memref<512x128xf32, #tpu.memory_space<vmem>>, vector<8x128xf32>
    %119 = arith.maximumf %117, %118 : vector<8x128xf32>
    %120 = arith.maximumf %116, %119 : vector<8x128xf32>
    %121 = arith.truncf %120 : vector<8x128xf32> to vector<8x128xbf16>
    %c1_93 = arith.constant 1 : index
    %c2_94 = arith.constant 2 : index
    %c1_95 = arith.constant 1 : index
    %c0_96 = arith.constant 0 : index
    %122 = vector.load %arg13[%c1_93, %c2_94, %c1_95, %c0_96] : memref<2x10x10x128xbf16, #tpu.memory_space<vmem>>, vector<1x1x8x128xbf16>
    %123 = vector.shape_cast %122 : vector<1x1x8x128xbf16> to vector<8x128xbf16>
    %124 = vector.shape_cast %121 : vector<8x128xbf16> to vector<1x1x8x128xbf16>
    tpu.vector_store %arg13[%c1_93, %c2_94, %c1_95, %c0_96], %124 {strides = array<i32>} : memref<2x10x10x128xbf16, #tpu.memory_space<vmem>>, vector<1x1x8x128xbf16>,
    %c320 = arith.constant 320 : index
    %c0_97 = arith.constant 0 : index
    %125 = tpu.strided_load %arg20[%c320, %c0_97] {strides = array<i32: 2, 1>} : memref<512x128xf32, #tpu.memory_space<vmem>>, vector<8x128xf32>
    %c321 = arith.constant 321 : index
    %c0_98 = arith.constant 0 : index
    %126 = tpu.strided_load %arg20[%c321, %c0_98] {strides = array<i32: 2, 1>} : memref<512x128xf32, #tpu.memory_space<vmem>>, vector<8x128xf32>
    %127 = arith.maximumf %125, %126 : vector<8x128xf32>
    %c336 = arith.constant 336 : index
    %c0_99 = arith.constant 0 : index
    %128 = tpu.strided_load %arg20[%c336, %c0_99] {strides = array<i32: 2, 1>} : memref<512x128xf32, #tpu.memory_space<vmem>>, vector<8x128xf32>
    %c337 = arith.constant 337 : index
    %c0_100 = arith.constant 0 : index
    %129 = tpu.strided_load %arg20[%c337, %c0_100] {strides = array<i32: 2, 1>} : memref<512x128xf32, #tpu.memory_space<vmem>>, vector<8x128xf32>
    %130 = arith.maximumf %128, %129 : vector<8x128xf32>
    %131 = arith.maximumf %127, %130 : vector<8x128xf32>
    %132 = arith.truncf %131 : vector<8x128xf32> to vector<8x128xbf16>
    %c1_101 = arith.constant 1 : index
    %c3_102 = arith.constant 3 : index
    %c1_103 = arith.constant 1 : index
    %c0_104 = arith.constant 0 : index
    %133 = vector.load %arg13[%c1_101, %c3_102, %c1_103, %c0_104] : memref<2x10x10x128xbf16, #tpu.memory_space<vmem>>, vector<1x1x8x128xbf16>
    %134 = vector.shape_cast %133 : vector<1x1x8x128xbf16> to vector<8x128xbf16>
    %135 = vector.shape_cast %132 : vector<8x128xbf16> to vector<1x1x8x128xbf16>
    tpu.vector_store %arg13[%c1_101, %c3_102, %c1_103, %c0_104], %135 {strides = array<i32>} : memref<2x10x10x128xbf16, #tpu.memory_space<vmem>>, vector<1x1x8x128xbf16>,
    %c352 = arith.constant 352 : index
    %c0_105 = arith.constant 0 : index
    %136 = tpu.strided_load %arg20[%c352, %c0_105] {strides = array<i32: 2, 1>} : memref<512x128xf32, #tpu.memory_space<vmem>>, vector<8x128xf32>
    %c353 = arith.constant 353 : index
    %c0_106 = arith.constant 0 : index
    %137 = tpu.strided_load %arg20[%c353, %c0_106] {strides = array<i32: 2, 1>} : memref<512x128xf32, #tpu.memory_space<vmem>>, vector<8x128xf32>
    %138 = arith.maximumf %136, %137 : vector<8x128xf32>
    %c368 = arith.constant 368 : index
    %c0_107 = arith.constant 0 : index
    %139 = tpu.strided_load %arg20[%c368, %c0_107] {strides = array<i32: 2, 1>} : memref<512x128xf32, #tpu.memory_space<vmem>>, vector<8x128xf32>
    %c369 = arith.constant 369 : index
    %c0_108 = arith.constant 0 : index
    %140 = tpu.strided_load %arg20[%c369, %c0_108] {strides = array<i32: 2, 1>} : memref<512x128xf32, #tpu.memory_space<vmem>>, vector<8x128xf32>
    %141 = arith.maximumf %139, %140 : vector<8x128xf32>
    %142 = arith.maximumf %138, %141 : vector<8x128xf32>
    %143 = arith.truncf %142 : vector<8x128xf32> to vector<8x128xbf16>
    %c1_109 = arith.constant 1 : index
    %c4_110 = arith.constant 4 : index
    %c1_111 = arith.constant 1 : index
    %c0_112 = arith.constant 0 : index
    %144 = vector.load %arg13[%c1_109, %c4_110, %c1_111, %c0_112] : memref<2x10x10x128xbf16, #tpu.memory_space<vmem>>, vector<1x1x8x128xbf16>
    %145 = vector.shape_cast %144 : vector<1x1x8x128xbf16> to vector<8x128xbf16>
    %146 = vector.shape_cast %143 : vector<8x128xbf16> to vector<1x1x8x128xbf16>
    tpu.vector_store %arg13[%c1_109, %c4_110, %c1_111, %c0_112], %146 {strides = array<i32>} : memref<2x10x10x128xbf16, #tpu.memory_space<vmem>>, vector<1x1x8x128xbf16>,
    %c384 = arith.constant 384 : index
    %c0_113 = arith.constant 0 : index
    %147 = tpu.strided_load %arg20[%c384, %c0_113] {strides = array<i32: 2, 1>} : memref<512x128xf32, #tpu.memory_space<vmem>>, vector<8x128xf32>
    %c385 = arith.constant 385 : index
    %c0_114 = arith.constant 0 : index
    %148 = tpu.strided_load %arg20[%c385, %c0_114] {strides = array<i32: 2, 1>} : memref<512x128xf32, #tpu.memory_space<vmem>>, vector<8x128xf32>
    %149 = arith.maximumf %147, %148 : vector<8x128xf32>
    %c400 = arith.constant 400 : index
    %c0_115 = arith.constant 0 : index
    %150 = tpu.strided_load %arg20[%c400, %c0_115] {strides = array<i32: 2, 1>} : memref<512x128xf32, #tpu.memory_space<vmem>>, vector<8x128xf32>
    %c401 = arith.constant 401 : index
    %c0_116 = arith.constant 0 : index
    %151 = tpu.strided_load %arg20[%c401, %c0_116] {strides = array<i32: 2, 1>} : memref<512x128xf32, #tpu.memory_space<vmem>>, vector<8x128xf32>
    %152 = arith.maximumf %150, %151 : vector<8x128xf32>
    %153 = arith.maximumf %149, %152 : vector<8x128xf32>
    %154 = arith.truncf %153 : vector<8x128xf32> to vector<8x128xbf16>
    %c1_117 = arith.constant 1 : index
    %c5_118 = arith.constant 5 : index
    %c1_119 = arith.constant 1 : index
    %c0_120 = arith.constant 0 : index
    %155 = vector.load %arg13[%c1_117, %c5_118, %c1_119, %c0_120] : memref<2x10x10x128xbf16, #tpu.memory_space<vmem>>, vector<1x1x8x128xbf16>
    %156 = vector.shape_cast %155 : vector<1x1x8x128xbf16> to vector<8x128xbf16>
    %157 = vector.shape_cast %154 : vector<8x128xbf16> to vector<1x1x8x128xbf16>
    tpu.vector_store %arg13[%c1_117, %c5_118, %c1_119, %c0_120], %157 {strides = array<i32>} : memref<2x10x10x128xbf16, #tpu.memory_space<vmem>>, vector<1x1x8x128xbf16>,
    %c416 = arith.constant 416 : index
    %c0_121 = arith.constant 0 : index
    %158 = tpu.strided_load %arg20[%c416, %c0_121] {strides = array<i32: 2, 1>} : memref<512x128xf32, #tpu.memory_space<vmem>>, vector<8x128xf32>
    %c417 = arith.constant 417 : index
    %c0_122 = arith.constant 0 : index
    %159 = tpu.strided_load %arg20[%c417, %c0_122] {strides = array<i32: 2, 1>} : memref<512x128xf32, #tpu.memory_space<vmem>>, vector<8x128xf32>
    %160 = arith.maximumf %158, %159 : vector<8x128xf32>
    %c432 = arith.constant 432 : index
    %c0_123 = arith.constant 0 : index
    %161 = tpu.strided_load %arg20[%c432, %c0_123] {strides = array<i32: 2, 1>} : memref<512x128xf32, #tpu.memory_space<vmem>>, vector<8x128xf32>
    %c433 = arith.constant 433 : index
    %c0_124 = arith.constant 0 : index
    %162 = tpu.strided_load %arg20[%c433, %c0_124] {strides = array<i32: 2, 1>} : memref<512x128xf32, #tpu.memory_space<vmem>>, vector<8x128xf32>
    %163 = arith.maximumf %161, %162 : vector<8x128xf32>
    %164 = arith.maximumf %160, %163 : vector<8x128xf32>
    %165 = arith.truncf %164 : vector<8x128xf32> to vector<8x128xbf16>
    %c1_125 = arith.constant 1 : index
    %c6_126 = arith.constant 6 : index
    %c1_127 = arith.constant 1 : index
    %c0_128 = arith.constant 0 : index
    %166 = vector.load %arg13[%c1_125, %c6_126, %c1_127, %c0_128] : memref<2x10x10x128xbf16, #tpu.memory_space<vmem>>, vector<1x1x8x128xbf16>
    %167 = vector.shape_cast %166 : vector<1x1x8x128xbf16> to vector<8x128xbf16>
    %168 = vector.shape_cast %165 : vector<8x128xbf16> to vector<1x1x8x128xbf16>
    tpu.vector_store %arg13[%c1_125, %c6_126, %c1_127, %c0_128], %168 {strides = array<i32>} : memref<2x10x10x128xbf16, #tpu.memory_space<vmem>>, vector<1x1x8x128xbf16>,
    %c448 = arith.constant 448 : index
    %c0_129 = arith.constant 0 : index
    %169 = tpu.strided_load %arg20[%c448, %c0_129] {strides = array<i32: 2, 1>} : memref<512x128xf32, #tpu.memory_space<vmem>>, vector<8x128xf32>
    %c449 = arith.constant 449 : index
    %c0_130 = arith.constant 0 : index
    %170 = tpu.strided_load %arg20[%c449, %c0_130] {strides = array<i32: 2, 1>} : memref<512x128xf32, #tpu.memory_space<vmem>>, vector<8x128xf32>
    %171 = arith.maximumf %169, %170 : vector<8x128xf32>
    %c464 = arith.constant 464 : index
    %c0_131 = arith.constant 0 : index
    %172 = tpu.strided_load %arg20[%c464, %c0_131] {strides = array<i32: 2, 1>} : memref<512x128xf32, #tpu.memory_space<vmem>>, vector<8x128xf32>
    %c465 = arith.constant 465 : index
    %c0_132 = arith.constant 0 : index
    %173 = tpu.strided_load %arg20[%c465, %c0_132] {strides = array<i32: 2, 1>} : memref<512x128xf32, #tpu.memory_space<vmem>>, vector<8x128xf32>
    %174 = arith.maximumf %172, %173 : vector<8x128xf32>
    %175 = arith.maximumf %171, %174 : vector<8x128xf32>
    %176 = arith.truncf %175 : vector<8x128xf32> to vector<8x128xbf16>
    %c1_133 = arith.constant 1 : index
    %c7_134 = arith.constant 7 : index
    %c1_135 = arith.constant 1 : index
    %c0_136 = arith.constant 0 : index
    %177 = vector.load %arg13[%c1_133, %c7_134, %c1_135, %c0_136] : memref<2x10x10x128xbf16, #tpu.memory_space<vmem>>, vector<1x1x8x128xbf16>
    %178 = vector.shape_cast %177 : vector<1x1x8x128xbf16> to vector<8x128xbf16>
    %179 = vector.shape_cast %176 : vector<8x128xbf16> to vector<1x1x8x128xbf16>
    tpu.vector_store %arg13[%c1_133, %c7_134, %c1_135, %c0_136], %179 {strides = array<i32>} : memref<2x10x10x128xbf16, #tpu.memory_space<vmem>>, vector<1x1x8x128xbf16>,
    %c480 = arith.constant 480 : index
    %c0_137 = arith.constant 0 : index
    %180 = tpu.strided_load %arg20[%c480, %c0_137] {strides = array<i32: 2, 1>} : memref<512x128xf32, #tpu.memory_space<vmem>>, vector<8x128xf32>
    %c481 = arith.constant 481 : index
    %c0_138 = arith.constant 0 : index
    %181 = tpu.strided_load %arg20[%c481, %c0_138] {strides = array<i32: 2, 1>} : memref<512x128xf32, #tpu.memory_space<vmem>>, vector<8x128xf32>
    %182 = arith.maximumf %180, %181 : vector<8x128xf32>
    %c496 = arith.constant 496 : index
    %c0_139 = arith.constant 0 : index
    %183 = tpu.strided_load %arg20[%c496, %c0_139] {strides = array<i32: 2, 1>} : memref<512x128xf32, #tpu.memory_space<vmem>>, vector<8x128xf32>
    %c497 = arith.constant 497 : index
    %c0_140 = arith.constant 0 : index
    %184 = tpu.strided_load %arg20[%c497, %c0_140] {strides = array<i32: 2, 1>} : memref<512x128xf32, #tpu.memory_space<vmem>>, vector<8x128xf32>
    %185 = arith.maximumf %183, %184 : vector<8x128xf32>
    %186 = arith.maximumf %182, %185 : vector<8x128xf32>
    %187 = arith.truncf %186 : vector<8x128xf32> to vector<8x128xbf16>
    %c1_141 = arith.constant 1 : index
    %c8_142 = arith.constant 8 : index
    %c1_143 = arith.constant 1 : index
    %c0_144 = arith.constant 0 : index
    %188 = vector.load %arg13[%c1_141, %c8_142, %c1_143, %c0_144] : memref<2x10x10x128xbf16, #tpu.memory_space<vmem>>, vector<1x1x8x128xbf16>
    %189 = vector.shape_cast %188 : vector<1x1x8x128xbf16> to vector<8x128xbf16>
    %190 = vector.shape_cast %187 : vector<8x128xbf16> to vector<1x1x8x128xbf16>
    tpu.vector_store %arg13[%c1_141, %c8_142, %c1_143, %c0_144], %190 {strides = array<i32>} : memref<2x10x10x128xbf16, #tpu.memory_space<vmem>>, vector<1x1x8x128xbf16>,
    %c0_145 = arith.constant 0 : index
    %c0_146 = arith.constant 0 : index
    %c0_147 = arith.constant 0 : index
    %c0_148 = arith.constant 0 : index
    %191 = vector.load %arg13[%c0_145, %c0_146, %c0_147, %c0_148] : memref<2x10x10x128xbf16, #tpu.memory_space<vmem>>, vector<1x8x8x128xbf16>
    %192 = vector.shape_cast %191 : vector<1x8x8x128xbf16> to vector<8x8x128xbf16>
    %c0_149 = arith.constant 0 : index
    %c0_150 = arith.constant 0 : index
    %c0_151 = arith.constant 0 : index
    %c0_152 = arith.constant 0 : index
    %193 = vector.load %arg17[%c0_149, %c0_150, %c0_151, %c0_152] : memref<2x8x8x1152xbf16, #tpu.memory_space<vmem>>, vector<1x8x8x128xbf16>
    %194 = vector.shape_cast %193 : vector<1x8x8x128xbf16> to vector<8x8x128xbf16>
    %195 = vector.shape_cast %192 : vector<8x8x128xbf16> to vector<1x8x8x128xbf16>
    tpu.vector_store %arg17[%c0_149, %c0_150, %c0_151, %c0_152], %195 {strides = array<i32>} : memref<2x8x8x1152xbf16, #tpu.memory_space<vmem>>, vector<1x8x8x128xbf16>,
    %c0_153 = arith.constant 0 : index
    %c0_154 = arith.constant 0 : index
    %c1_155 = arith.constant 1 : index
    %c0_156 = arith.constant 0 : index
    %196 = vector.load %arg13[%c0_153, %c0_154, %c1_155, %c0_156] : memref<2x10x10x128xbf16, #tpu.memory_space<vmem>>, vector<1x8x8x128xbf16>
    %197 = vector.shape_cast %196 : vector<1x8x8x128xbf16> to vector<8x8x128xbf16>
    %c0_157 = arith.constant 0 : index
    %c0_158 = arith.constant 0 : index
    %c0_159 = arith.constant 0 : index
    %c128_160 = arith.constant 128 : index
    %198 = vector.load %arg17[%c0_157, %c0_158, %c0_159, %c128_160] : memref<2x8x8x1152xbf16, #tpu.memory_space<vmem>>, vector<1x8x8x128xbf16>
    %199 = vector.shape_cast %198 : vector<1x8x8x128xbf16> to vector<8x8x128xbf16>
    %200 = vector.shape_cast %197 : vector<8x8x128xbf16> to vector<1x8x8x128xbf16>
    tpu.vector_store %arg17[%c0_157, %c0_158, %c0_159, %c128_160], %200 {strides = array<i32>} : memref<2x8x8x1152xbf16, #tpu.memory_space<vmem>>, vector<1x8x8x128xbf16>,
    %c0_161 = arith.constant 0 : index
    %c0_162 = arith.constant 0 : index
    %c2_163 = arith.constant 2 : index
    %c0_164 = arith.constant 0 : index
    %201 = vector.load %arg13[%c0_161, %c0_162, %c2_163, %c0_164] : memref<2x10x10x128xbf16, #tpu.memory_space<vmem>>, vector<1x8x8x128xbf16>
    %202 = vector.shape_cast %201 : vector<1x8x8x128xbf16> to vector<8x8x128xbf16>
    %c0_165 = arith.constant 0 : index
    %c0_166 = arith.constant 0 : index
    %c0_167 = arith.constant 0 : index
    %c256_168 = arith.constant 256 : index
    %203 = vector.load %arg17[%c0_165, %c0_166, %c0_167, %c256_168] : memref<2x8x8x1152xbf16, #tpu.memory_space<vmem>>, vector<1x8x8x128xbf16>
    %204 = vector.shape_cast %203 : vector<1x8x8x128xbf16> to vector<8x8x128xbf16>
    %205 = vector.shape_cast %202 : vector<8x8x128xbf16> to vector<1x8x8x128xbf16>
    tpu.vector_store %arg17[%c0_165, %c0_166, %c0_167, %c256_168], %205 {strides = array<i32>} : memref<2x8x8x1152xbf16, #tpu.memory_space<vmem>>, vector<1x8x8x128xbf16>,
    %c0_169 = arith.constant 0 : index
    %c1_170 = arith.constant 1 : index
    %c0_171 = arith.constant 0 : index
    %c0_172 = arith.constant 0 : index
    %206 = vector.load %arg13[%c0_169, %c1_170, %c0_171, %c0_172] : memref<2x10x10x128xbf16, #tpu.memory_space<vmem>>, vector<1x8x8x128xbf16>
    %207 = vector.shape_cast %206 : vector<1x8x8x128xbf16> to vector<8x8x128xbf16>
    %c0_173 = arith.constant 0 : index
    %c0_174 = arith.constant 0 : index
    %c0_175 = arith.constant 0 : index
    %c384_176 = arith.constant 384 : index
    %208 = vector.load %arg17[%c0_173, %c0_174, %c0_175, %c384_176] : memref<2x8x8x1152xbf16, #tpu.memory_space<vmem>>, vector<1x8x8x128xbf16>
    %209 = vector.shape_cast %208 : vector<1x8x8x128xbf16> to vector<8x8x128xbf16>
    %210 = vector.shape_cast %207 : vector<8x8x128xbf16> to vector<1x8x8x128xbf16>
    tpu.vector_store %arg17[%c0_173, %c0_174, %c0_175, %c384_176], %210 {strides = array<i32>} : memref<2x8x8x1152xbf16, #tpu.memory_space<vmem>>, vector<1x8x8x128xbf16>,
    %c0_177 = arith.constant 0 : index
    %c1_178 = arith.constant 1 : index
    %c1_179 = arith.constant 1 : index
    %c0_180 = arith.constant 0 : index
    %211 = vector.load %arg13[%c0_177, %c1_178, %c1_179, %c0_180] : memref<2x10x10x128xbf16, #tpu.memory_space<vmem>>, vector<1x8x8x128xbf16>
    %212 = vector.shape_cast %211 : vector<1x8x8x128xbf16> to vector<8x8x128xbf16>
    %c0_181 = arith.constant 0 : index
    %c0_182 = arith.constant 0 : index
    %c0_183 = arith.constant 0 : index
    %c512 = arith.constant 512 : index
    %213 = vector.load %arg17[%c0_181, %c0_182, %c0_183, %c512] : memref<2x8x8x1152xbf16, #tpu.memory_space<vmem>>, vector<1x8x8x128xbf16>
    %214 = vector.shape_cast %213 : vector<1x8x8x128xbf16> to vector<8x8x128xbf16>
    %215 = vector.shape_cast %212 : vector<8x8x128xbf16> to vector<1x8x8x128xbf16>
    tpu.vector_store %arg17[%c0_181, %c0_182, %c0_183, %c512], %215 {strides = array<i32>} : memref<2x8x8x1152xbf16, #tpu.memory_space<vmem>>, vector<1x8x8x128xbf16>,
    %c0_184 = arith.constant 0 : index
    %c1_185 = arith.constant 1 : index
    %c2_186 = arith.constant 2 : index
    %c0_187 = arith.constant 0 : index
    %216 = vector.load %arg13[%c0_184, %c1_185, %c2_186, %c0_187] : memref<2x10x10x128xbf16, #tpu.memory_space<vmem>>, vector<1x8x8x128xbf16>
    %217 = vector.shape_cast %216 : vector<1x8x8x128xbf16> to vector<8x8x128xbf16>
    %c0_188 = arith.constant 0 : index
    %c0_189 = arith.constant 0 : index
    %c0_190 = arith.constant 0 : index
    %c640 = arith.constant 640 : index
    %218 = vector.load %arg17[%c0_188, %c0_189, %c0_190, %c640] : memref<2x8x8x1152xbf16, #tpu.memory_space<vmem>>, vector<1x8x8x128xbf16>
    %219 = vector.shape_cast %218 : vector<1x8x8x128xbf16> to vector<8x8x128xbf16>
    %220 = vector.shape_cast %217 : vector<8x8x128xbf16> to vector<1x8x8x128xbf16>
    tpu.vector_store %arg17[%c0_188, %c0_189, %c0_190, %c640], %220 {strides = array<i32>} : memref<2x8x8x1152xbf16, #tpu.memory_space<vmem>>, vector<1x8x8x128xbf16>,
    %c0_191 = arith.constant 0 : index
    %c2_192 = arith.constant 2 : index
    %c0_193 = arith.constant 0 : index
    %c0_194 = arith.constant 0 : index
    %221 = vector.load %arg13[%c0_191, %c2_192, %c0_193, %c0_194] : memref<2x10x10x128xbf16, #tpu.memory_space<vmem>>, vector<1x8x8x128xbf16>
    %222 = vector.shape_cast %221 : vector<1x8x8x128xbf16> to vector<8x8x128xbf16>
    %c0_195 = arith.constant 0 : index
    %c0_196 = arith.constant 0 : index
    %c0_197 = arith.constant 0 : index
    %c768 = arith.constant 768 : index
    %223 = vector.load %arg17[%c0_195, %c0_196, %c0_197, %c768] : memref<2x8x8x1152xbf16, #tpu.memory_space<vmem>>, vector<1x8x8x128xbf16>
    %224 = vector.shape_cast %223 : vector<1x8x8x128xbf16> to vector<8x8x128xbf16>
    %225 = vector.shape_cast %222 : vector<8x8x128xbf16> to vector<1x8x8x128xbf16>
    tpu.vector_store %arg17[%c0_195, %c0_196, %c0_197, %c768], %225 {strides = array<i32>} : memref<2x8x8x1152xbf16, #tpu.memory_space<vmem>>, vector<1x8x8x128xbf16>,
    %c0_198 = arith.constant 0 : index
    %c2_199 = arith.constant 2 : index
    %c1_200 = arith.constant 1 : index
    %c0_201 = arith.constant 0 : index
    %226 = vector.load %arg13[%c0_198, %c2_199, %c1_200, %c0_201] : memref<2x10x10x128xbf16, #tpu.memory_space<vmem>>, vector<1x8x8x128xbf16>
    %227 = vector.shape_cast %226 : vector<1x8x8x128xbf16> to vector<8x8x128xbf16>
    %c0_202 = arith.constant 0 : index
    %c0_203 = arith.constant 0 : index
    %c0_204 = arith.constant 0 : index
    %c896 = arith.constant 896 : index
    %228 = vector.load %arg17[%c0_202, %c0_203, %c0_204, %c896] : memref<2x8x8x1152xbf16, #tpu.memory_space<vmem>>, vector<1x8x8x128xbf16>
    %229 = vector.shape_cast %228 : vector<1x8x8x128xbf16> to vector<8x8x128xbf16>
    %230 = vector.shape_cast %227 : vector<8x8x128xbf16> to vector<1x8x8x128xbf16>
    tpu.vector_store %arg17[%c0_202, %c0_203, %c0_204, %c896], %230 {strides = array<i32>} : memref<2x8x8x1152xbf16, #tpu.memory_space<vmem>>, vector<1x8x8x128xbf16>,
    %c0_205 = arith.constant 0 : index
    %c2_206 = arith.constant 2 : index
    %c2_207 = arith.constant 2 : index
    %c0_208 = arith.constant 0 : index
    %231 = vector.load %arg13[%c0_205, %c2_206, %c2_207, %c0_208] : memref<2x10x10x128xbf16, #tpu.memory_space<vmem>>, vector<1x8x8x128xbf16>
    %232 = vector.shape_cast %231 : vector<1x8x8x128xbf16> to vector<8x8x128xbf16>
    %c0_209 = arith.constant 0 : index
    %c0_210 = arith.constant 0 : index
    %c0_211 = arith.constant 0 : index
    %c1024 = arith.constant 1024 : index
    %233 = vector.load %arg17[%c0_209, %c0_210, %c0_211, %c1024] : memref<2x8x8x1152xbf16, #tpu.memory_space<vmem>>, vector<1x8x8x128xbf16>
    %234 = vector.shape_cast %233 : vector<1x8x8x128xbf16> to vector<8x8x128xbf16>
    %235 = vector.shape_cast %232 : vector<8x8x128xbf16> to vector<1x8x8x128xbf16>
    tpu.vector_store %arg17[%c0_209, %c0_210, %c0_211, %c1024], %235 {strides = array<i32>} : memref<2x8x8x1152xbf16, #tpu.memory_space<vmem>>, vector<1x8x8x128xbf16>,
    %c1_212 = arith.constant 1 : index
    %c0_213 = arith.constant 0 : index
    %c0_214 = arith.constant 0 : index
    %c0_215 = arith.constant 0 : index
    %236 = vector.load %arg13[%c1_212, %c0_213, %c0_214, %c0_215] : memref<2x10x10x128xbf16, #tpu.memory_space<vmem>>, vector<1x8x8x128xbf16>
    %237 = vector.shape_cast %236 : vector<1x8x8x128xbf16> to vector<8x8x128xbf16>
    %c1_216 = arith.constant 1 : index
    %c0_217 = arith.constant 0 : index
    %c0_218 = arith.constant 0 : index
    %c0_219 = arith.constant 0 : index
    %238 = vector.load %arg17[%c1_216, %c0_217, %c0_218, %c0_219] : memref<2x8x8x1152xbf16, #tpu.memory_space<vmem>>, vector<1x8x8x128xbf16>
    %239 = vector.shape_cast %238 : vector<1x8x8x128xbf16> to vector<8x8x128xbf16>
    %240 = vector.shape_cast %237 : vector<8x8x128xbf16> to vector<1x8x8x128xbf16>
    tpu.vector_store %arg17[%c1_216, %c0_217, %c0_218, %c0_219], %240 {strides = array<i32>} : memref<2x8x8x1152xbf16, #tpu.memory_space<vmem>>, vector<1x8x8x128xbf16>,
    %c1_220 = arith.constant 1 : index
    %c0_221 = arith.constant 0 : index
    %c1_222 = arith.constant 1 : index
    %c0_223 = arith.constant 0 : index
    %241 = vector.load %arg13[%c1_220, %c0_221, %c1_222, %c0_223] : memref<2x10x10x128xbf16, #tpu.memory_space<vmem>>, vector<1x8x8x128xbf16>
    %242 = vector.shape_cast %241 : vector<1x8x8x128xbf16> to vector<8x8x128xbf16>
    %c1_224 = arith.constant 1 : index
    %c0_225 = arith.constant 0 : index
    %c0_226 = arith.constant 0 : index
    %c128_227 = arith.constant 128 : index
    %243 = vector.load %arg17[%c1_224, %c0_225, %c0_226, %c128_227] : memref<2x8x8x1152xbf16, #tpu.memory_space<vmem>>, vector<1x8x8x128xbf16>
    %244 = vector.shape_cast %243 : vector<1x8x8x128xbf16> to vector<8x8x128xbf16>
    %245 = vector.shape_cast %242 : vector<8x8x128xbf16> to vector<1x8x8x128xbf16>
    tpu.vector_store %arg17[%c1_224, %c0_225, %c0_226, %c128_227], %245 {strides = array<i32>} : memref<2x8x8x1152xbf16, #tpu.memory_space<vmem>>, vector<1x8x8x128xbf16>,
    %c1_228 = arith.constant 1 : index
    %c0_229 = arith.constant 0 : index
    %c2_230 = arith.constant 2 : index
    %c0_231 = arith.constant 0 : index
    %246 = vector.load %arg13[%c1_228, %c0_229, %c2_230, %c0_231] : memref<2x10x10x128xbf16, #tpu.memory_space<vmem>>, vector<1x8x8x128xbf16>
    %247 = vector.shape_cast %246 : vector<1x8x8x128xbf16> to vector<8x8x128xbf16>
    %c1_232 = arith.constant 1 : index
    %c0_233 = arith.constant 0 : index
    %c0_234 = arith.constant 0 : index
    %c256_235 = arith.constant 256 : index
    %248 = vector.load %arg17[%c1_232, %c0_233, %c0_234, %c256_235] : memref<2x8x8x1152xbf16, #tpu.memory_space<vmem>>, vector<1x8x8x128xbf16>
    %249 = vector.shape_cast %248 : vector<1x8x8x128xbf16> to vector<8x8x128xbf16>
    %250 = vector.shape_cast %247 : vector<8x8x128xbf16> to vector<1x8x8x128xbf16>
    tpu.vector_store %arg17[%c1_232, %c0_233, %c0_234, %c256_235], %250 {strides = array<i32>} : memref<2x8x8x1152xbf16, #tpu.memory_space<vmem>>, vector<1x8x8x128xbf16>,
    %c1_236 = arith.constant 1 : index
    %c1_237 = arith.constant 1 : index
    %c0_238 = arith.constant 0 : index
    %c0_239 = arith.constant 0 : index
    %251 = vector.load %arg13[%c1_236, %c1_237, %c0_238, %c0_239] : memref<2x10x10x128xbf16, #tpu.memory_space<vmem>>, vector<1x8x8x128xbf16>
    %252 = vector.shape_cast %251 : vector<1x8x8x128xbf16> to vector<8x8x128xbf16>
    %c1_240 = arith.constant 1 : index
    %c0_241 = arith.constant 0 : index
    %c0_242 = arith.constant 0 : index
    %c384_243 = arith.constant 384 : index
    %253 = vector.load %arg17[%c1_240, %c0_241, %c0_242, %c384_243] : memref<2x8x8x1152xbf16, #tpu.memory_space<vmem>>, vector<1x8x8x128xbf16>
    %254 = vector.shape_cast %253 : vector<1x8x8x128xbf16> to vector<8x8x128xbf16>
    %255 = vector.shape_cast %252 : vector<8x8x128xbf16> to vector<1x8x8x128xbf16>
    tpu.vector_store %arg17[%c1_240, %c0_241, %c0_242, %c384_243], %255 {strides = array<i32>} : memref<2x8x8x1152xbf16, #tpu.memory_space<vmem>>, vector<1x8x8x128xbf16>,
    %c1_244 = arith.constant 1 : index
    %c1_245 = arith.constant 1 : index
    %c1_246 = arith.constant 1 : index
    %c0_247 = arith.constant 0 : index
    %256 = vector.load %arg13[%c1_244, %c1_245, %c1_246, %c0_247] : memref<2x10x10x128xbf16, #tpu.memory_space<vmem>>, vector<1x8x8x128xbf16>
    %257 = vector.shape_cast %256 : vector<1x8x8x128xbf16> to vector<8x8x128xbf16>
    %c1_248 = arith.constant 1 : index
    %c0_249 = arith.constant 0 : index
    %c0_250 = arith.constant 0 : index
    %c512_251 = arith.constant 512 : index
    %258 = vector.load %arg17[%c1_248, %c0_249, %c0_250, %c512_251] : memref<2x8x8x1152xbf16, #tpu.memory_space<vmem>>, vector<1x8x8x128xbf16>
    %259 = vector.shape_cast %258 : vector<1x8x8x128xbf16> to vector<8x8x128xbf16>
    %260 = vector.shape_cast %257 : vector<8x8x128xbf16> to vector<1x8x8x128xbf16>
    tpu.vector_store %arg17[%c1_248, %c0_249, %c0_250, %c512_251], %260 {strides = array<i32>} : memref<2x8x8x1152xbf16, #tpu.memory_space<vmem>>, vector<1x8x8x128xbf16>,
    %c1_252 = arith.constant 1 : index
    %c1_253 = arith.constant 1 : index
    %c2_254 = arith.constant 2 : index
    %c0_255 = arith.constant 0 : index
    %261 = vector.load %arg13[%c1_252, %c1_253, %c2_254, %c0_255] : memref<2x10x10x128xbf16, #tpu.memory_space<vmem>>, vector<1x8x8x128xbf16>
    %262 = vector.shape_cast %261 : vector<1x8x8x128xbf16> to vector<8x8x128xbf16>
    %c1_256 = arith.constant 1 : index
    %c0_257 = arith.constant 0 : index
    %c0_258 = arith.constant 0 : index
    %c640_259 = arith.constant 640 : index
    %263 = vector.load %arg17[%c1_256, %c0_257, %c0_258, %c640_259] : memref<2x8x8x1152xbf16, #tpu.memory_space<vmem>>, vector<1x8x8x128xbf16>
    %264 = vector.shape_cast %263 : vector<1x8x8x128xbf16> to vector<8x8x128xbf16>
    %265 = vector.shape_cast %262 : vector<8x8x128xbf16> to vector<1x8x8x128xbf16>
    tpu.vector_store %arg17[%c1_256, %c0_257, %c0_258, %c640_259], %265 {strides = array<i32>} : memref<2x8x8x1152xbf16, #tpu.memory_space<vmem>>, vector<1x8x8x128xbf16>,
    %c1_260 = arith.constant 1 : index
    %c2_261 = arith.constant 2 : index
    %c0_262 = arith.constant 0 : index
    %c0_263 = arith.constant 0 : index
    %266 = vector.load %arg13[%c1_260, %c2_261, %c0_262, %c0_263] : memref<2x10x10x128xbf16, #tpu.memory_space<vmem>>, vector<1x8x8x128xbf16>
    %267 = vector.shape_cast %266 : vector<1x8x8x128xbf16> to vector<8x8x128xbf16>
    %c1_264 = arith.constant 1 : index
    %c0_265 = arith.constant 0 : index
    %c0_266 = arith.constant 0 : index
    %c768_267 = arith.constant 768 : index
    %268 = vector.load %arg17[%c1_264, %c0_265, %c0_266, %c768_267] : memref<2x8x8x1152xbf16, #tpu.memory_space<vmem>>, vector<1x8x8x128xbf16>
    %269 = vector.shape_cast %268 : vector<1x8x8x128xbf16> to vector<8x8x128xbf16>
    %270 = vector.shape_cast %267 : vector<8x8x128xbf16> to vector<1x8x8x128xbf16>
    tpu.vector_store %arg17[%c1_264, %c0_265, %c0_266, %c768_267], %270 {strides = array<i32>} : memref<2x8x8x1152xbf16, #tpu.memory_space<vmem>>, vector<1x8x8x128xbf16>,
    %c1_268 = arith.constant 1 : index
    %c2_269 = arith.constant 2 : index
    %c1_270 = arith.constant 1 : index
    %c0_271 = arith.constant 0 : index
    %271 = vector.load %arg13[%c1_268, %c2_269, %c1_270, %c0_271] : memref<2x10x10x128xbf16, #tpu.memory_space<vmem>>, vector<1x8x8x128xbf16>
    %272 = vector.shape_cast %271 : vector<1x8x8x128xbf16> to vector<8x8x128xbf16>
    %c1_272 = arith.constant 1 : index
    %c0_273 = arith.constant 0 : index
    %c0_274 = arith.constant 0 : index
    %c896_275 = arith.constant 896 : index
    %273 = vector.load %arg17[%c1_272, %c0_273, %c0_274, %c896_275] : memref<2x8x8x1152xbf16, #tpu.memory_space<vmem>>, vector<1x8x8x128xbf16>
    %274 = vector.shape_cast %273 : vector<1x8x8x128xbf16> to vector<8x8x128xbf16>
    %275 = vector.shape_cast %272 : vector<8x8x128xbf16> to vector<1x8x8x128xbf16>
    tpu.vector_store %arg17[%c1_272, %c0_273, %c0_274, %c896_275], %275 {strides = array<i32>} : memref<2x8x8x1152xbf16, #tpu.memory_space<vmem>>, vector<1x8x8x128xbf16>,
    %c1_276 = arith.constant 1 : index
    %c2_277 = arith.constant 2 : index
    %c2_278 = arith.constant 2 : index
    %c0_279 = arith.constant 0 : index
    %276 = vector.load %arg13[%c1_276, %c2_277, %c2_278, %c0_279] : memref<2x10x10x128xbf16, #tpu.memory_space<vmem>>, vector<1x8x8x128xbf16>
    %277 = vector.shape_cast %276 : vector<1x8x8x128xbf16> to vector<8x8x128xbf16>
    %c1_280 = arith.constant 1 : index
    %c0_281 = arith.constant 0 : index
    %c0_282 = arith.constant 0 : index
    %c1024_283 = arith.constant 1024 : index
    %278 = vector.load %arg17[%c1_280, %c0_281, %c0_282, %c1024_283] : memref<2x8x8x1152xbf16, #tpu.memory_space<vmem>>, vector<1x8x8x128xbf16>
    %279 = vector.shape_cast %278 : vector<1x8x8x128xbf16> to vector<8x8x128xbf16>
    %280 = vector.shape_cast %277 : vector<8x8x128xbf16> to vector<1x8x8x128xbf16>
    tpu.vector_store %arg17[%c1_280, %c0_281, %c0_282, %c1024_283], %280 {strides = array<i32>} : memref<2x8x8x1152xbf16, #tpu.memory_space<vmem>>, vector<1x8x8x128xbf16>,
    %c0_284 = arith.constant 0 : index
    %c0_285 = arith.constant 0 : index
    %c0_286 = arith.constant 0 : index
    %c0_287 = arith.constant 0 : index
    %281 = vector.load %arg17[%c0_284, %c0_285, %c0_286, %c0_287] : memref<2x8x8x1152xbf16, #tpu.memory_space<vmem>>, vector<2x8x8x1152xbf16>
    %282 = vector.shape_cast %281 : vector<2x8x8x1152xbf16> to vector<128x1152xbf16>
    %c0_288 = arith.constant 0 : index
    %c0_289 = arith.constant 0 : index
    %283 = vector.load %arg4[%c0_288, %c0_289] : memref<1152x128xbf16, #tpu.memory_space<vmem>>, vector<1152x128xbf16>
    %cst_290 = arith.constant dense<0.000000e+00> : vector<128x128xf32>
    %284 = tpu.matmul %282, %283, %cst_290 {dimension_numbers = #tpu.dot_dimension_numbers<[1], [0], [0], [1], [0, 0, 1, 1], [], []>} : vector<128x1152xbf16>, vector<1152x128xbf16>, vector<128x128xf32> -> vector<128x128xf32>
    %c0_291 = arith.constant 0 : index
    %c0_292 = arith.constant 0 : index
    %285 = vector.load %arg5[%c0_291, %c0_292] : memref<1x128xf32, #tpu.memory_space<vmem>>, vector<1x128xf32>
    %286 = vector.broadcast %285 : vector<1x128xf32> to vector<128x128xf32>
    %287 = arith.addf %284, %286 : vector<128x128xf32>
    %cst_293 = arith.constant 0.000000e+00 : f32
    %288 = vector.broadcast %cst_293 : f32 to vector<128x128xf32>
    %289 = arith.maximumf %287, %288 : vector<128x128xf32>
    %c0_294 = arith.constant 0 : index
    %c0_295 = arith.constant 0 : index
    %290 = vector.load %arg21[%c0_294, %c0_295] : memref<128x128xf32, #tpu.memory_space<vmem>>, vector<128x128xf32>
    tpu.vector_store %arg21[%c0_294, %c0_295], %289 {strides = array<i32>} : memref<128x128xf32, #tpu.memory_space<vmem>>, vector<128x128xf32>,
    %c0_296 = arith.constant 0 : index
    %c0_297 = arith.constant 0 : index
    %291 = tpu.strided_load %arg21[%c0_296, %c0_297] {strides = array<i32: 2, 1>} : memref<128x128xf32, #tpu.memory_space<vmem>>, vector<4x128xf32>
    %c1_298 = arith.constant 1 : index
    %c0_299 = arith.constant 0 : index
    %292 = tpu.strided_load %arg21[%c1_298, %c0_299] {strides = array<i32: 2, 1>} : memref<128x128xf32, #tpu.memory_space<vmem>>, vector<4x128xf32>
    %293 = arith.maximumf %291, %292 : vector<4x128xf32>
    %c8_300 = arith.constant 8 : index
    %c0_301 = arith.constant 0 : index
    %294 = tpu.strided_load %arg21[%c8_300, %c0_301] {strides = array<i32: 2, 1>} : memref<128x128xf32, #tpu.memory_space<vmem>>, vector<4x128xf32>
    %c9 = arith.constant 9 : index
    %c0_302 = arith.constant 0 : index
    %295 = tpu.strided_load %arg21[%c9, %c0_302] {strides = array<i32: 2, 1>} : memref<128x128xf32, #tpu.memory_space<vmem>>, vector<4x128xf32>
    %296 = arith.maximumf %294, %295 : vector<4x128xf32>
    %297 = arith.maximumf %293, %296 : vector<4x128xf32>
    %298 = arith.truncf %297 : vector<4x128xf32> to vector<4x128xbf16>
    %c0_303 = arith.constant 0 : index
    %c1_304 = arith.constant 1 : index
    %c1_305 = arith.constant 1 : index
    %c0_306 = arith.constant 0 : index
    %299 = vector.load %arg14[%c0_303, %c1_304, %c1_305, %c0_306] : memref<2x6x6x128xbf16, #tpu.memory_space<vmem>>, vector<1x1x4x128xbf16>
    %300 = vector.shape_cast %299 : vector<1x1x4x128xbf16> to vector<4x128xbf16>
    %301 = vector.shape_cast %298 : vector<4x128xbf16> to vector<1x1x4x128xbf16>
    tpu.vector_store %arg14[%c0_303, %c1_304, %c1_305, %c0_306], %301 {strides = array<i32>} : memref<2x6x6x128xbf16, #tpu.memory_space<vmem>>, vector<1x1x4x128xbf16>,
    %c16_307 = arith.constant 16 : index
    %c0_308 = arith.constant 0 : index
    %302 = tpu.strided_load %arg21[%c16_307, %c0_308] {strides = array<i32: 2, 1>} : memref<128x128xf32, #tpu.memory_space<vmem>>, vector<4x128xf32>
    %c17_309 = arith.constant 17 : index
    %c0_310 = arith.constant 0 : index
    %303 = tpu.strided_load %arg21[%c17_309, %c0_310] {strides = array<i32: 2, 1>} : memref<128x128xf32, #tpu.memory_space<vmem>>, vector<4x128xf32>
    %304 = arith.maximumf %302, %303 : vector<4x128xf32>
    %c24 = arith.constant 24 : index
    %c0_311 = arith.constant 0 : index
    %305 = tpu.strided_load %arg21[%c24, %c0_311] {strides = array<i32: 2, 1>} : memref<128x128xf32, #tpu.memory_space<vmem>>, vector<4x128xf32>
    %c25 = arith.constant 25 : index
    %c0_312 = arith.constant 0 : index
    %306 = tpu.strided_load %arg21[%c25, %c0_312] {strides = array<i32: 2, 1>} : memref<128x128xf32, #tpu.memory_space<vmem>>, vector<4x128xf32>
    %307 = arith.maximumf %305, %306 : vector<4x128xf32>
    %308 = arith.maximumf %304, %307 : vector<4x128xf32>
    %309 = arith.truncf %308 : vector<4x128xf32> to vector<4x128xbf16>
    %c0_313 = arith.constant 0 : index
    %c2_314 = arith.constant 2 : index
    %c1_315 = arith.constant 1 : index
    %c0_316 = arith.constant 0 : index
    %310 = vector.load %arg14[%c0_313, %c2_314, %c1_315, %c0_316] : memref<2x6x6x128xbf16, #tpu.memory_space<vmem>>, vector<1x1x4x128xbf16>
    %311 = vector.shape_cast %310 : vector<1x1x4x128xbf16> to vector<4x128xbf16>
    %312 = vector.shape_cast %309 : vector<4x128xbf16> to vector<1x1x4x128xbf16>
    tpu.vector_store %arg14[%c0_313, %c2_314, %c1_315, %c0_316], %312 {strides = array<i32>} : memref<2x6x6x128xbf16, #tpu.memory_space<vmem>>, vector<1x1x4x128xbf16>,
    %c32_317 = arith.constant 32 : index
    %c0_318 = arith.constant 0 : index
    %313 = tpu.strided_load %arg21[%c32_317, %c0_318] {strides = array<i32: 2, 1>} : memref<128x128xf32, #tpu.memory_space<vmem>>, vector<4x128xf32>
    %c33_319 = arith.constant 33 : index
    %c0_320 = arith.constant 0 : index
    %314 = tpu.strided_load %arg21[%c33_319, %c0_320] {strides = array<i32: 2, 1>} : memref<128x128xf32, #tpu.memory_space<vmem>>, vector<4x128xf32>
    %315 = arith.maximumf %313, %314 : vector<4x128xf32>
    %c40 = arith.constant 40 : index
    %c0_321 = arith.constant 0 : index
    %316 = tpu.strided_load %arg21[%c40, %c0_321] {strides = array<i32: 2, 1>} : memref<128x128xf32, #tpu.memory_space<vmem>>, vector<4x128xf32>
    %c41 = arith.constant 41 : index
    %c0_322 = arith.constant 0 : index
    %317 = tpu.strided_load %arg21[%c41, %c0_322] {strides = array<i32: 2, 1>} : memref<128x128xf32, #tpu.memory_space<vmem>>, vector<4x128xf32>
    %318 = arith.maximumf %316, %317 : vector<4x128xf32>
    %319 = arith.maximumf %315, %318 : vector<4x128xf32>
    %320 = arith.truncf %319 : vector<4x128xf32> to vector<4x128xbf16>
    %c0_323 = arith.constant 0 : index
    %c3_324 = arith.constant 3 : index
    %c1_325 = arith.constant 1 : index
    %c0_326 = arith.constant 0 : index
    %321 = vector.load %arg14[%c0_323, %c3_324, %c1_325, %c0_326] : memref<2x6x6x128xbf16, #tpu.memory_space<vmem>>, vector<1x1x4x128xbf16>
    %322 = vector.shape_cast %321 : vector<1x1x4x128xbf16> to vector<4x128xbf16>
    %323 = vector.shape_cast %320 : vector<4x128xbf16> to vector<1x1x4x128xbf16>
    tpu.vector_store %arg14[%c0_323, %c3_324, %c1_325, %c0_326], %323 {strides = array<i32>} : memref<2x6x6x128xbf16, #tpu.memory_space<vmem>>, vector<1x1x4x128xbf16>,
    %c48_327 = arith.constant 48 : index
    %c0_328 = arith.constant 0 : index
    %324 = tpu.strided_load %arg21[%c48_327, %c0_328] {strides = array<i32: 2, 1>} : memref<128x128xf32, #tpu.memory_space<vmem>>, vector<4x128xf32>
    %c49_329 = arith.constant 49 : index
    %c0_330 = arith.constant 0 : index
    %325 = tpu.strided_load %arg21[%c49_329, %c0_330] {strides = array<i32: 2, 1>} : memref<128x128xf32, #tpu.memory_space<vmem>>, vector<4x128xf32>
    %326 = arith.maximumf %324, %325 : vector<4x128xf32>
    %c56 = arith.constant 56 : index
    %c0_331 = arith.constant 0 : index
    %327 = tpu.strided_load %arg21[%c56, %c0_331] {strides = array<i32: 2, 1>} : memref<128x128xf32, #tpu.memory_space<vmem>>, vector<4x128xf32>
    %c57 = arith.constant 57 : index
    %c0_332 = arith.constant 0 : index
    %328 = tpu.strided_load %arg21[%c57, %c0_332] {strides = array<i32: 2, 1>} : memref<128x128xf32, #tpu.memory_space<vmem>>, vector<4x128xf32>
    %329 = arith.maximumf %327, %328 : vector<4x128xf32>
    %330 = arith.maximumf %326, %329 : vector<4x128xf32>
    %331 = arith.truncf %330 : vector<4x128xf32> to vector<4x128xbf16>
    %c0_333 = arith.constant 0 : index
    %c4_334 = arith.constant 4 : index
    %c1_335 = arith.constant 1 : index
    %c0_336 = arith.constant 0 : index
    %332 = vector.load %arg14[%c0_333, %c4_334, %c1_335, %c0_336] : memref<2x6x6x128xbf16, #tpu.memory_space<vmem>>, vector<1x1x4x128xbf16>
    %333 = vector.shape_cast %332 : vector<1x1x4x128xbf16> to vector<4x128xbf16>
    %334 = vector.shape_cast %331 : vector<4x128xbf16> to vector<1x1x4x128xbf16>
    tpu.vector_store %arg14[%c0_333, %c4_334, %c1_335, %c0_336], %334 {strides = array<i32>} : memref<2x6x6x128xbf16, #tpu.memory_space<vmem>>, vector<1x1x4x128xbf16>,
    %c64_337 = arith.constant 64 : index
    %c0_338 = arith.constant 0 : index
    %335 = tpu.strided_load %arg21[%c64_337, %c0_338] {strides = array<i32: 2, 1>} : memref<128x128xf32, #tpu.memory_space<vmem>>, vector<4x128xf32>
    %c65_339 = arith.constant 65 : index
    %c0_340 = arith.constant 0 : index
    %336 = tpu.strided_load %arg21[%c65_339, %c0_340] {strides = array<i32: 2, 1>} : memref<128x128xf32, #tpu.memory_space<vmem>>, vector<4x128xf32>
    %337 = arith.maximumf %335, %336 : vector<4x128xf32>
    %c72 = arith.constant 72 : index
    %c0_341 = arith.constant 0 : index
    %338 = tpu.strided_load %arg21[%c72, %c0_341] {strides = array<i32: 2, 1>} : memref<128x128xf32, #tpu.memory_space<vmem>>, vector<4x128xf32>
    %c73 = arith.constant 73 : index
    %c0_342 = arith.constant 0 : index
    %339 = tpu.strided_load %arg21[%c73, %c0_342] {strides = array<i32: 2, 1>} : memref<128x128xf32, #tpu.memory_space<vmem>>, vector<4x128xf32>
    %340 = arith.maximumf %338, %339 : vector<4x128xf32>
    %341 = arith.maximumf %337, %340 : vector<4x128xf32>
    %342 = arith.truncf %341 : vector<4x128xf32> to vector<4x128xbf16>
    %c1_343 = arith.constant 1 : index
    %c1_344 = arith.constant 1 : index
    %c1_345 = arith.constant 1 : index
    %c0_346 = arith.constant 0 : index
    %343 = vector.load %arg14[%c1_343, %c1_344, %c1_345, %c0_346] : memref<2x6x6x128xbf16, #tpu.memory_space<vmem>>, vector<1x1x4x128xbf16>
    %344 = vector.shape_cast %343 : vector<1x1x4x128xbf16> to vector<4x128xbf16>
    %345 = vector.shape_cast %342 : vector<4x128xbf16> to vector<1x1x4x128xbf16>
    tpu.vector_store %arg14[%c1_343, %c1_344, %c1_345, %c0_346], %345 {strides = array<i32>} : memref<2x6x6x128xbf16, #tpu.memory_space<vmem>>, vector<1x1x4x128xbf16>,
    %c80_347 = arith.constant 80 : index
    %c0_348 = arith.constant 0 : index
    %346 = tpu.strided_load %arg21[%c80_347, %c0_348] {strides = array<i32: 2, 1>} : memref<128x128xf32, #tpu.memory_space<vmem>>, vector<4x128xf32>
    %c81_349 = arith.constant 81 : index
    %c0_350 = arith.constant 0 : index
    %347 = tpu.strided_load %arg21[%c81_349, %c0_350] {strides = array<i32: 2, 1>} : memref<128x128xf32, #tpu.memory_space<vmem>>, vector<4x128xf32>
    %348 = arith.maximumf %346, %347 : vector<4x128xf32>
    %c88 = arith.constant 88 : index
    %c0_351 = arith.constant 0 : index
    %349 = tpu.strided_load %arg21[%c88, %c0_351] {strides = array<i32: 2, 1>} : memref<128x128xf32, #tpu.memory_space<vmem>>, vector<4x128xf32>
    %c89 = arith.constant 89 : index
    %c0_352 = arith.constant 0 : index
    %350 = tpu.strided_load %arg21[%c89, %c0_352] {strides = array<i32: 2, 1>} : memref<128x128xf32, #tpu.memory_space<vmem>>, vector<4x128xf32>
    %351 = arith.maximumf %349, %350 : vector<4x128xf32>
    %352 = arith.maximumf %348, %351 : vector<4x128xf32>
    %353 = arith.truncf %352 : vector<4x128xf32> to vector<4x128xbf16>
    %c1_353 = arith.constant 1 : index
    %c2_354 = arith.constant 2 : index
    %c1_355 = arith.constant 1 : index
    %c0_356 = arith.constant 0 : index
    %354 = vector.load %arg14[%c1_353, %c2_354, %c1_355, %c0_356] : memref<2x6x6x128xbf16, #tpu.memory_space<vmem>>, vector<1x1x4x128xbf16>
    %355 = vector.shape_cast %354 : vector<1x1x4x128xbf16> to vector<4x128xbf16>
    %356 = vector.shape_cast %353 : vector<4x128xbf16> to vector<1x1x4x128xbf16>
    tpu.vector_store %arg14[%c1_353, %c2_354, %c1_355, %c0_356], %356 {strides = array<i32>} : memref<2x6x6x128xbf16, #tpu.memory_space<vmem>>, vector<1x1x4x128xbf16>,
    %c96_357 = arith.constant 96 : index
    %c0_358 = arith.constant 0 : index
    %357 = tpu.strided_load %arg21[%c96_357, %c0_358] {strides = array<i32: 2, 1>} : memref<128x128xf32, #tpu.memory_space<vmem>>, vector<4x128xf32>
    %c97_359 = arith.constant 97 : index
    %c0_360 = arith.constant 0 : index
    %358 = tpu.strided_load %arg21[%c97_359, %c0_360] {strides = array<i32: 2, 1>} : memref<128x128xf32, #tpu.memory_space<vmem>>, vector<4x128xf32>
    %359 = arith.maximumf %357, %358 : vector<4x128xf32>
    %c104 = arith.constant 104 : index
    %c0_361 = arith.constant 0 : index
    %360 = tpu.strided_load %arg21[%c104, %c0_361] {strides = array<i32: 2, 1>} : memref<128x128xf32, #tpu.memory_space<vmem>>, vector<4x128xf32>
    %c105 = arith.constant 105 : index
    %c0_362 = arith.constant 0 : index
    %361 = tpu.strided_load %arg21[%c105, %c0_362] {strides = array<i32: 2, 1>} : memref<128x128xf32, #tpu.memory_space<vmem>>, vector<4x128xf32>
    %362 = arith.maximumf %360, %361 : vector<4x128xf32>
    %363 = arith.maximumf %359, %362 : vector<4x128xf32>
    %364 = arith.truncf %363 : vector<4x128xf32> to vector<4x128xbf16>
    %c1_363 = arith.constant 1 : index
    %c3_364 = arith.constant 3 : index
    %c1_365 = arith.constant 1 : index
    %c0_366 = arith.constant 0 : index
    %365 = vector.load %arg14[%c1_363, %c3_364, %c1_365, %c0_366] : memref<2x6x6x128xbf16, #tpu.memory_space<vmem>>, vector<1x1x4x128xbf16>
    %366 = vector.shape_cast %365 : vector<1x1x4x128xbf16> to vector<4x128xbf16>
    %367 = vector.shape_cast %364 : vector<4x128xbf16> to vector<1x1x4x128xbf16>
    tpu.vector_store %arg14[%c1_363, %c3_364, %c1_365, %c0_366], %367 {strides = array<i32>} : memref<2x6x6x128xbf16, #tpu.memory_space<vmem>>, vector<1x1x4x128xbf16>,
    %c112_367 = arith.constant 112 : index
    %c0_368 = arith.constant 0 : index
    %368 = tpu.strided_load %arg21[%c112_367, %c0_368] {strides = array<i32: 2, 1>} : memref<128x128xf32, #tpu.memory_space<vmem>>, vector<4x128xf32>
    %c113_369 = arith.constant 113 : index
    %c0_370 = arith.constant 0 : index
    %369 = tpu.strided_load %arg21[%c113_369, %c0_370] {strides = array<i32: 2, 1>} : memref<128x128xf32, #tpu.memory_space<vmem>>, vector<4x128xf32>
    %370 = arith.maximumf %368, %369 : vector<4x128xf32>
    %c120 = arith.constant 120 : index
    %c0_371 = arith.constant 0 : index
    %371 = tpu.strided_load %arg21[%c120, %c0_371] {strides = array<i32: 2, 1>} : memref<128x128xf32, #tpu.memory_space<vmem>>, vector<4x128xf32>
    %c121 = arith.constant 121 : index
    %c0_372 = arith.constant 0 : index
    %372 = tpu.strided_load %arg21[%c121, %c0_372] {strides = array<i32: 2, 1>} : memref<128x128xf32, #tpu.memory_space<vmem>>, vector<4x128xf32>
    %373 = arith.maximumf %371, %372 : vector<4x128xf32>
    %374 = arith.maximumf %370, %373 : vector<4x128xf32>
    %375 = arith.truncf %374 : vector<4x128xf32> to vector<4x128xbf16>
    %c1_373 = arith.constant 1 : index
    %c4_374 = arith.constant 4 : index
    %c1_375 = arith.constant 1 : index
    %c0_376 = arith.constant 0 : index
    %376 = vector.load %arg14[%c1_373, %c4_374, %c1_375, %c0_376] : memref<2x6x6x128xbf16, #tpu.memory_space<vmem>>, vector<1x1x4x128xbf16>
    %377 = vector.shape_cast %376 : vector<1x1x4x128xbf16> to vector<4x128xbf16>
    %378 = vector.shape_cast %375 : vector<4x128xbf16> to vector<1x1x4x128xbf16>
    tpu.vector_store %arg14[%c1_373, %c4_374, %c1_375, %c0_376], %378 {strides = array<i32>} : memref<2x6x6x128xbf16, #tpu.memory_space<vmem>>, vector<1x1x4x128xbf16>,
    %c0_377 = arith.constant 0 : index
    %c0_378 = arith.constant 0 : index
    %c0_379 = arith.constant 0 : index
    %c0_380 = arith.constant 0 : index
    %379 = vector.load %arg14[%c0_377, %c0_378, %c0_379, %c0_380] : memref<2x6x6x128xbf16, #tpu.memory_space<vmem>>, vector<1x4x4x128xbf16>
    %380 = vector.shape_cast %379 : vector<1x4x4x128xbf16> to vector<4x4x128xbf16>
    %c0_381 = arith.constant 0 : index
    %c0_382 = arith.constant 0 : index
    %c0_383 = arith.constant 0 : index
    %c0_384 = arith.constant 0 : index
    %381 = vector.load %arg18[%c0_381, %c0_382, %c0_383, %c0_384] : memref<2x4x4x1152xbf16, #tpu.memory_space<vmem>>, vector<1x4x4x128xbf16>
    %382 = vector.shape_cast %381 : vector<1x4x4x128xbf16> to vector<4x4x128xbf16>
    %383 = vector.shape_cast %380 : vector<4x4x128xbf16> to vector<1x4x4x128xbf16>
    tpu.vector_store %arg18[%c0_381, %c0_382, %c0_383, %c0_384], %383 {strides = array<i32>} : memref<2x4x4x1152xbf16, #tpu.memory_space<vmem>>, vector<1x4x4x128xbf16>,
    %c0_385 = arith.constant 0 : index
    %c0_386 = arith.constant 0 : index
    %c1_387 = arith.constant 1 : index
    %c0_388 = arith.constant 0 : index
    %384 = vector.load %arg14[%c0_385, %c0_386, %c1_387, %c0_388] : memref<2x6x6x128xbf16, #tpu.memory_space<vmem>>, vector<1x4x4x128xbf16>
    %385 = vector.shape_cast %384 : vector<1x4x4x128xbf16> to vector<4x4x128xbf16>
    %c0_389 = arith.constant 0 : index
    %c0_390 = arith.constant 0 : index
    %c0_391 = arith.constant 0 : index
    %c128_392 = arith.constant 128 : index
    %386 = vector.load %arg18[%c0_389, %c0_390, %c0_391, %c128_392] : memref<2x4x4x1152xbf16, #tpu.memory_space<vmem>>, vector<1x4x4x128xbf16>
    %387 = vector.shape_cast %386 : vector<1x4x4x128xbf16> to vector<4x4x128xbf16>
    %388 = vector.shape_cast %385 : vector<4x4x128xbf16> to vector<1x4x4x128xbf16>
    tpu.vector_store %arg18[%c0_389, %c0_390, %c0_391, %c128_392], %388 {strides = array<i32>} : memref<2x4x4x1152xbf16, #tpu.memory_space<vmem>>, vector<1x4x4x128xbf16>,
    %c0_393 = arith.constant 0 : index
    %c0_394 = arith.constant 0 : index
    %c2_395 = arith.constant 2 : index
    %c0_396 = arith.constant 0 : index
    %389 = vector.load %arg14[%c0_393, %c0_394, %c2_395, %c0_396] : memref<2x6x6x128xbf16, #tpu.memory_space<vmem>>, vector<1x4x4x128xbf16>
    %390 = vector.shape_cast %389 : vector<1x4x4x128xbf16> to vector<4x4x128xbf16>
    %c0_397 = arith.constant 0 : index
    %c0_398 = arith.constant 0 : index
    %c0_399 = arith.constant 0 : index
    %c256_400 = arith.constant 256 : index
    %391 = vector.load %arg18[%c0_397, %c0_398, %c0_399, %c256_400] : memref<2x4x4x1152xbf16, #tpu.memory_space<vmem>>, vector<1x4x4x128xbf16>
    %392 = vector.shape_cast %391 : vector<1x4x4x128xbf16> to vector<4x4x128xbf16>
    %393 = vector.shape_cast %390 : vector<4x4x128xbf16> to vector<1x4x4x128xbf16>
    tpu.vector_store %arg18[%c0_397, %c0_398, %c0_399, %c256_400], %393 {strides = array<i32>} : memref<2x4x4x1152xbf16, #tpu.memory_space<vmem>>, vector<1x4x4x128xbf16>,
    %c0_401 = arith.constant 0 : index
    %c1_402 = arith.constant 1 : index
    %c0_403 = arith.constant 0 : index
    %c0_404 = arith.constant 0 : index
    %394 = vector.load %arg14[%c0_401, %c1_402, %c0_403, %c0_404] : memref<2x6x6x128xbf16, #tpu.memory_space<vmem>>, vector<1x4x4x128xbf16>
    %395 = vector.shape_cast %394 : vector<1x4x4x128xbf16> to vector<4x4x128xbf16>
    %c0_405 = arith.constant 0 : index
    %c0_406 = arith.constant 0 : index
    %c0_407 = arith.constant 0 : index
    %c384_408 = arith.constant 384 : index
    %396 = vector.load %arg18[%c0_405, %c0_406, %c0_407, %c384_408] : memref<2x4x4x1152xbf16, #tpu.memory_space<vmem>>, vector<1x4x4x128xbf16>
    %397 = vector.shape_cast %396 : vector<1x4x4x128xbf16> to vector<4x4x128xbf16>
    %398 = vector.shape_cast %395 : vector<4x4x128xbf16> to vector<1x4x4x128xbf16>
    tpu.vector_store %arg18[%c0_405, %c0_406, %c0_407, %c384_408], %398 {strides = array<i32>} : memref<2x4x4x1152xbf16, #tpu.memory_space<vmem>>, vector<1x4x4x128xbf16>,
    %c0_409 = arith.constant 0 : index
    %c1_410 = arith.constant 1 : index
    %c1_411 = arith.constant 1 : index
    %c0_412 = arith.constant 0 : index
    %399 = vector.load %arg14[%c0_409, %c1_410, %c1_411, %c0_412] : memref<2x6x6x128xbf16, #tpu.memory_space<vmem>>, vector<1x4x4x128xbf16>
    %400 = vector.shape_cast %399 : vector<1x4x4x128xbf16> to vector<4x4x128xbf16>
    %c0_413 = arith.constant 0 : index
    %c0_414 = arith.constant 0 : index
    %c0_415 = arith.constant 0 : index
    %c512_416 = arith.constant 512 : index
    %401 = vector.load %arg18[%c0_413, %c0_414, %c0_415, %c512_416] : memref<2x4x4x1152xbf16, #tpu.memory_space<vmem>>, vector<1x4x4x128xbf16>
    %402 = vector.shape_cast %401 : vector<1x4x4x128xbf16> to vector<4x4x128xbf16>
    %403 = vector.shape_cast %400 : vector<4x4x128xbf16> to vector<1x4x4x128xbf16>
    tpu.vector_store %arg18[%c0_413, %c0_414, %c0_415, %c512_416], %403 {strides = array<i32>} : memref<2x4x4x1152xbf16, #tpu.memory_space<vmem>>, vector<1x4x4x128xbf16>,
    %c0_417 = arith.constant 0 : index
    %c1_418 = arith.constant 1 : index
    %c2_419 = arith.constant 2 : index
    %c0_420 = arith.constant 0 : index
    %404 = vector.load %arg14[%c0_417, %c1_418, %c2_419, %c0_420] : memref<2x6x6x128xbf16, #tpu.memory_space<vmem>>, vector<1x4x4x128xbf16>
    %405 = vector.shape_cast %404 : vector<1x4x4x128xbf16> to vector<4x4x128xbf16>
    %c0_421 = arith.constant 0 : index
    %c0_422 = arith.constant 0 : index
    %c0_423 = arith.constant 0 : index
    %c640_424 = arith.constant 640 : index
    %406 = vector.load %arg18[%c0_421, %c0_422, %c0_423, %c640_424] : memref<2x4x4x1152xbf16, #tpu.memory_space<vmem>>, vector<1x4x4x128xbf16>
    %407 = vector.shape_cast %406 : vector<1x4x4x128xbf16> to vector<4x4x128xbf16>
    %408 = vector.shape_cast %405 : vector<4x4x128xbf16> to vector<1x4x4x128xbf16>
    tpu.vector_store %arg18[%c0_421, %c0_422, %c0_423, %c640_424], %408 {strides = array<i32>} : memref<2x4x4x1152xbf16, #tpu.memory_space<vmem>>, vector<1x4x4x128xbf16>,
    %c0_425 = arith.constant 0 : index
    %c2_426 = arith.constant 2 : index
    %c0_427 = arith.constant 0 : index
    %c0_428 = arith.constant 0 : index
    %409 = vector.load %arg14[%c0_425, %c2_426, %c0_427, %c0_428] : memref<2x6x6x128xbf16, #tpu.memory_space<vmem>>, vector<1x4x4x128xbf16>
    %410 = vector.shape_cast %409 : vector<1x4x4x128xbf16> to vector<4x4x128xbf16>
    %c0_429 = arith.constant 0 : index
    %c0_430 = arith.constant 0 : index
    %c0_431 = arith.constant 0 : index
    %c768_432 = arith.constant 768 : index
    %411 = vector.load %arg18[%c0_429, %c0_430, %c0_431, %c768_432] : memref<2x4x4x1152xbf16, #tpu.memory_space<vmem>>, vector<1x4x4x128xbf16>
    %412 = vector.shape_cast %411 : vector<1x4x4x128xbf16> to vector<4x4x128xbf16>
    %413 = vector.shape_cast %410 : vector<4x4x128xbf16> to vector<1x4x4x128xbf16>
    tpu.vector_store %arg18[%c0_429, %c0_430, %c0_431, %c768_432], %413 {strides = array<i32>} : memref<2x4x4x1152xbf16, #tpu.memory_space<vmem>>, vector<1x4x4x128xbf16>,
    %c0_433 = arith.constant 0 : index
    %c2_434 = arith.constant 2 : index
    %c1_435 = arith.constant 1 : index
    %c0_436 = arith.constant 0 : index
    %414 = vector.load %arg14[%c0_433, %c2_434, %c1_435, %c0_436] : memref<2x6x6x128xbf16, #tpu.memory_space<vmem>>, vector<1x4x4x128xbf16>
    %415 = vector.shape_cast %414 : vector<1x4x4x128xbf16> to vector<4x4x128xbf16>
    %c0_437 = arith.constant 0 : index
    %c0_438 = arith.constant 0 : index
    %c0_439 = arith.constant 0 : index
    %c896_440 = arith.constant 896 : index
    %416 = vector.load %arg18[%c0_437, %c0_438, %c0_439, %c896_440] : memref<2x4x4x1152xbf16, #tpu.memory_space<vmem>>, vector<1x4x4x128xbf16>
    %417 = vector.shape_cast %416 : vector<1x4x4x128xbf16> to vector<4x4x128xbf16>
    %418 = vector.shape_cast %415 : vector<4x4x128xbf16> to vector<1x4x4x128xbf16>
    tpu.vector_store %arg18[%c0_437, %c0_438, %c0_439, %c896_440], %418 {strides = array<i32>} : memref<2x4x4x1152xbf16, #tpu.memory_space<vmem>>, vector<1x4x4x128xbf16>,
    %c0_441 = arith.constant 0 : index
    %c2_442 = arith.constant 2 : index
    %c2_443 = arith.constant 2 : index
    %c0_444 = arith.constant 0 : index
    %419 = vector.load %arg14[%c0_441, %c2_442, %c2_443, %c0_444] : memref<2x6x6x128xbf16, #tpu.memory_space<vmem>>, vector<1x4x4x128xbf16>
    %420 = vector.shape_cast %419 : vector<1x4x4x128xbf16> to vector<4x4x128xbf16>
    %c0_445 = arith.constant 0 : index
    %c0_446 = arith.constant 0 : index
    %c0_447 = arith.constant 0 : index
    %c1024_448 = arith.constant 1024 : index
    %421 = vector.load %arg18[%c0_445, %c0_446, %c0_447, %c1024_448] : memref<2x4x4x1152xbf16, #tpu.memory_space<vmem>>, vector<1x4x4x128xbf16>
    %422 = vector.shape_cast %421 : vector<1x4x4x128xbf16> to vector<4x4x128xbf16>
    %423 = vector.shape_cast %420 : vector<4x4x128xbf16> to vector<1x4x4x128xbf16>
    tpu.vector_store %arg18[%c0_445, %c0_446, %c0_447, %c1024_448], %423 {strides = array<i32>} : memref<2x4x4x1152xbf16, #tpu.memory_space<vmem>>, vector<1x4x4x128xbf16>,
    %c1_449 = arith.constant 1 : index
    %c0_450 = arith.constant 0 : index
    %c0_451 = arith.constant 0 : index
    %c0_452 = arith.constant 0 : index
    %424 = vector.load %arg14[%c1_449, %c0_450, %c0_451, %c0_452] : memref<2x6x6x128xbf16, #tpu.memory_space<vmem>>, vector<1x4x4x128xbf16>
    %425 = vector.shape_cast %424 : vector<1x4x4x128xbf16> to vector<4x4x128xbf16>
    %c1_453 = arith.constant 1 : index
    %c0_454 = arith.constant 0 : index
    %c0_455 = arith.constant 0 : index
    %c0_456 = arith.constant 0 : index
    %426 = vector.load %arg18[%c1_453, %c0_454, %c0_455, %c0_456] : memref<2x4x4x1152xbf16, #tpu.memory_space<vmem>>, vector<1x4x4x128xbf16>
    %427 = vector.shape_cast %426 : vector<1x4x4x128xbf16> to vector<4x4x128xbf16>
    %428 = vector.shape_cast %425 : vector<4x4x128xbf16> to vector<1x4x4x128xbf16>
    tpu.vector_store %arg18[%c1_453, %c0_454, %c0_455, %c0_456], %428 {strides = array<i32>} : memref<2x4x4x1152xbf16, #tpu.memory_space<vmem>>, vector<1x4x4x128xbf16>,
    %c1_457 = arith.constant 1 : index
    %c0_458 = arith.constant 0 : index
    %c1_459 = arith.constant 1 : index
    %c0_460 = arith.constant 0 : index
    %429 = vector.load %arg14[%c1_457, %c0_458, %c1_459, %c0_460] : memref<2x6x6x128xbf16, #tpu.memory_space<vmem>>, vector<1x4x4x128xbf16>
    %430 = vector.shape_cast %429 : vector<1x4x4x128xbf16> to vector<4x4x128xbf16>
    %c1_461 = arith.constant 1 : index
    %c0_462 = arith.constant 0 : index
    %c0_463 = arith.constant 0 : index
    %c128_464 = arith.constant 128 : index
    %431 = vector.load %arg18[%c1_461, %c0_462, %c0_463, %c128_464] : memref<2x4x4x1152xbf16, #tpu.memory_space<vmem>>, vector<1x4x4x128xbf16>
    %432 = vector.shape_cast %431 : vector<1x4x4x128xbf16> to vector<4x4x128xbf16>
    %433 = vector.shape_cast %430 : vector<4x4x128xbf16> to vector<1x4x4x128xbf16>
    tpu.vector_store %arg18[%c1_461, %c0_462, %c0_463, %c128_464], %433 {strides = array<i32>} : memref<2x4x4x1152xbf16, #tpu.memory_space<vmem>>, vector<1x4x4x128xbf16>,
    %c1_465 = arith.constant 1 : index
    %c0_466 = arith.constant 0 : index
    %c2_467 = arith.constant 2 : index
    %c0_468 = arith.constant 0 : index
    %434 = vector.load %arg14[%c1_465, %c0_466, %c2_467, %c0_468] : memref<2x6x6x128xbf16, #tpu.memory_space<vmem>>, vector<1x4x4x128xbf16>
    %435 = vector.shape_cast %434 : vector<1x4x4x128xbf16> to vector<4x4x128xbf16>
    %c1_469 = arith.constant 1 : index
    %c0_470 = arith.constant 0 : index
    %c0_471 = arith.constant 0 : index
    %c256_472 = arith.constant 256 : index
    %436 = vector.load %arg18[%c1_469, %c0_470, %c0_471, %c256_472] : memref<2x4x4x1152xbf16, #tpu.memory_space<vmem>>, vector<1x4x4x128xbf16>
    %437 = vector.shape_cast %436 : vector<1x4x4x128xbf16> to vector<4x4x128xbf16>
    %438 = vector.shape_cast %435 : vector<4x4x128xbf16> to vector<1x4x4x128xbf16>
    tpu.vector_store %arg18[%c1_469, %c0_470, %c0_471, %c256_472], %438 {strides = array<i32>} : memref<2x4x4x1152xbf16, #tpu.memory_space<vmem>>, vector<1x4x4x128xbf16>,
    %c1_473 = arith.constant 1 : index
    %c1_474 = arith.constant 1 : index
    %c0_475 = arith.constant 0 : index
    %c0_476 = arith.constant 0 : index
    %439 = vector.load %arg14[%c1_473, %c1_474, %c0_475, %c0_476] : memref<2x6x6x128xbf16, #tpu.memory_space<vmem>>, vector<1x4x4x128xbf16>
    %440 = vector.shape_cast %439 : vector<1x4x4x128xbf16> to vector<4x4x128xbf16>
    %c1_477 = arith.constant 1 : index
    %c0_478 = arith.constant 0 : index
    %c0_479 = arith.constant 0 : index
    %c384_480 = arith.constant 384 : index
    %441 = vector.load %arg18[%c1_477, %c0_478, %c0_479, %c384_480] : memref<2x4x4x1152xbf16, #tpu.memory_space<vmem>>, vector<1x4x4x128xbf16>
    %442 = vector.shape_cast %441 : vector<1x4x4x128xbf16> to vector<4x4x128xbf16>
    %443 = vector.shape_cast %440 : vector<4x4x128xbf16> to vector<1x4x4x128xbf16>
    tpu.vector_store %arg18[%c1_477, %c0_478, %c0_479, %c384_480], %443 {strides = array<i32>} : memref<2x4x4x1152xbf16, #tpu.memory_space<vmem>>, vector<1x4x4x128xbf16>,
    %c1_481 = arith.constant 1 : index
    %c1_482 = arith.constant 1 : index
    %c1_483 = arith.constant 1 : index
    %c0_484 = arith.constant 0 : index
    %444 = vector.load %arg14[%c1_481, %c1_482, %c1_483, %c0_484] : memref<2x6x6x128xbf16, #tpu.memory_space<vmem>>, vector<1x4x4x128xbf16>
    %445 = vector.shape_cast %444 : vector<1x4x4x128xbf16> to vector<4x4x128xbf16>
    %c1_485 = arith.constant 1 : index
    %c0_486 = arith.constant 0 : index
    %c0_487 = arith.constant 0 : index
    %c512_488 = arith.constant 512 : index
    %446 = vector.load %arg18[%c1_485, %c0_486, %c0_487, %c512_488] : memref<2x4x4x1152xbf16, #tpu.memory_space<vmem>>, vector<1x4x4x128xbf16>
    %447 = vector.shape_cast %446 : vector<1x4x4x128xbf16> to vector<4x4x128xbf16>
    %448 = vector.shape_cast %445 : vector<4x4x128xbf16> to vector<1x4x4x128xbf16>
    tpu.vector_store %arg18[%c1_485, %c0_486, %c0_487, %c512_488], %448 {strides = array<i32>} : memref<2x4x4x1152xbf16, #tpu.memory_space<vmem>>, vector<1x4x4x128xbf16>,
    %c1_489 = arith.constant 1 : index
    %c1_490 = arith.constant 1 : index
    %c2_491 = arith.constant 2 : index
    %c0_492 = arith.constant 0 : index
    %449 = vector.load %arg14[%c1_489, %c1_490, %c2_491, %c0_492] : memref<2x6x6x128xbf16, #tpu.memory_space<vmem>>, vector<1x4x4x128xbf16>
    %450 = vector.shape_cast %449 : vector<1x4x4x128xbf16> to vector<4x4x128xbf16>
    %c1_493 = arith.constant 1 : index
    %c0_494 = arith.constant 0 : index
    %c0_495 = arith.constant 0 : index
    %c640_496 = arith.constant 640 : index
    %451 = vector.load %arg18[%c1_493, %c0_494, %c0_495, %c640_496] : memref<2x4x4x1152xbf16, #tpu.memory_space<vmem>>, vector<1x4x4x128xbf16>
    %452 = vector.shape_cast %451 : vector<1x4x4x128xbf16> to vector<4x4x128xbf16>
    %453 = vector.shape_cast %450 : vector<4x4x128xbf16> to vector<1x4x4x128xbf16>
    tpu.vector_store %arg18[%c1_493, %c0_494, %c0_495, %c640_496], %453 {strides = array<i32>} : memref<2x4x4x1152xbf16, #tpu.memory_space<vmem>>, vector<1x4x4x128xbf16>,
    %c1_497 = arith.constant 1 : index
    %c2_498 = arith.constant 2 : index
    %c0_499 = arith.constant 0 : index
    %c0_500 = arith.constant 0 : index
    %454 = vector.load %arg14[%c1_497, %c2_498, %c0_499, %c0_500] : memref<2x6x6x128xbf16, #tpu.memory_space<vmem>>, vector<1x4x4x128xbf16>
    %455 = vector.shape_cast %454 : vector<1x4x4x128xbf16> to vector<4x4x128xbf16>
    %c1_501 = arith.constant 1 : index
    %c0_502 = arith.constant 0 : index
    %c0_503 = arith.constant 0 : index
    %c768_504 = arith.constant 768 : index
    %456 = vector.load %arg18[%c1_501, %c0_502, %c0_503, %c768_504] : memref<2x4x4x1152xbf16, #tpu.memory_space<vmem>>, vector<1x4x4x128xbf16>
    %457 = vector.shape_cast %456 : vector<1x4x4x128xbf16> to vector<4x4x128xbf16>
    %458 = vector.shape_cast %455 : vector<4x4x128xbf16> to vector<1x4x4x128xbf16>
    tpu.vector_store %arg18[%c1_501, %c0_502, %c0_503, %c768_504], %458 {strides = array<i32>} : memref<2x4x4x1152xbf16, #tpu.memory_space<vmem>>, vector<1x4x4x128xbf16>,
    %c1_505 = arith.constant 1 : index
    %c2_506 = arith.constant 2 : index
    %c1_507 = arith.constant 1 : index
    %c0_508 = arith.constant 0 : index
    %459 = vector.load %arg14[%c1_505, %c2_506, %c1_507, %c0_508] : memref<2x6x6x128xbf16, #tpu.memory_space<vmem>>, vector<1x4x4x128xbf16>
    %460 = vector.shape_cast %459 : vector<1x4x4x128xbf16> to vector<4x4x128xbf16>
    %c1_509 = arith.constant 1 : index
    %c0_510 = arith.constant 0 : index
    %c0_511 = arith.constant 0 : index
    %c896_512 = arith.constant 896 : index
    %461 = vector.load %arg18[%c1_509, %c0_510, %c0_511, %c896_512] : memref<2x4x4x1152xbf16, #tpu.memory_space<vmem>>, vector<1x4x4x128xbf16>
    %462 = vector.shape_cast %461 : vector<1x4x4x128xbf16> to vector<4x4x128xbf16>
    %463 = vector.shape_cast %460 : vector<4x4x128xbf16> to vector<1x4x4x128xbf16>
    tpu.vector_store %arg18[%c1_509, %c0_510, %c0_511, %c896_512], %463 {strides = array<i32>} : memref<2x4x4x1152xbf16, #tpu.memory_space<vmem>>, vector<1x4x4x128xbf16>,
    %c1_513 = arith.constant 1 : index
    %c2_514 = arith.constant 2 : index
    %c2_515 = arith.constant 2 : index
    %c0_516 = arith.constant 0 : index
    %464 = vector.load %arg14[%c1_513, %c2_514, %c2_515, %c0_516] : memref<2x6x6x128xbf16, #tpu.memory_space<vmem>>, vector<1x4x4x128xbf16>
    %465 = vector.shape_cast %464 : vector<1x4x4x128xbf16> to vector<4x4x128xbf16>
    %c1_517 = arith.constant 1 : index
    %c0_518 = arith.constant 0 : index
    %c0_519 = arith.constant 0 : index
    %c1024_520 = arith.constant 1024 : index
    %466 = vector.load %arg18[%c1_517, %c0_518, %c0_519, %c1024_520] : memref<2x4x4x1152xbf16, #tpu.memory_space<vmem>>, vector<1x4x4x128xbf16>
    %467 = vector.shape_cast %466 : vector<1x4x4x128xbf16> to vector<4x4x128xbf16>
    %468 = vector.shape_cast %465 : vector<4x4x128xbf16> to vector<1x4x4x128xbf16>
    tpu.vector_store %arg18[%c1_517, %c0_518, %c0_519, %c1024_520], %468 {strides = array<i32>} : memref<2x4x4x1152xbf16, #tpu.memory_space<vmem>>, vector<1x4x4x128xbf16>,
    %c0_521 = arith.constant 0 : index
    %c0_522 = arith.constant 0 : index
    %c0_523 = arith.constant 0 : index
    %c0_524 = arith.constant 0 : index
    %469 = vector.load %arg18[%c0_521, %c0_522, %c0_523, %c0_524] : memref<2x4x4x1152xbf16, #tpu.memory_space<vmem>>, vector<2x4x4x1152xbf16>
    %470 = vector.shape_cast %469 : vector<2x4x4x1152xbf16> to vector<32x1152xbf16>
    %c0_525 = arith.constant 0 : index
    %c0_526 = arith.constant 0 : index
    %471 = vector.load %arg6[%c0_525, %c0_526] : memref<1152x128xbf16, #tpu.memory_space<vmem>>, vector<1152x128xbf16>
    %cst_527 = arith.constant dense<0.000000e+00> : vector<32x128xf32>
    %472 = tpu.matmul %470, %471, %cst_527 {dimension_numbers = #tpu.dot_dimension_numbers<[1], [0], [0], [1], [0, 0, 1, 1], [], []>} : vector<32x1152xbf16>, vector<1152x128xbf16>, vector<32x128xf32> -> vector<32x128xf32>
    %c0_528 = arith.constant 0 : index
    %c0_529 = arith.constant 0 : index
    %473 = vector.load %arg7[%c0_528, %c0_529] : memref<1x128xf32, #tpu.memory_space<vmem>>, vector<1x128xf32>
    %474 = vector.broadcast %473 : vector<1x128xf32> to vector<32x128xf32>
    %475 = arith.addf %472, %474 : vector<32x128xf32>
    %cst_530 = arith.constant 0.000000e+00 : f32
    %476 = vector.broadcast %cst_530 : f32 to vector<32x128xf32>
    %477 = arith.maximumf %475, %476 : vector<32x128xf32>
    %c0_531 = arith.constant 0 : index
    %c0_532 = arith.constant 0 : index
    %478 = vector.load %arg22[%c0_531, %c0_532] : memref<32x128xf32, #tpu.memory_space<vmem>>, vector<32x128xf32>
    tpu.vector_store %arg22[%c0_531, %c0_532], %477 {strides = array<i32>} : memref<32x128xf32, #tpu.memory_space<vmem>>, vector<32x128xf32>,
    %c0_533 = arith.constant 0 : index
    %c0_534 = arith.constant 0 : index
    %479 = tpu.strided_load %arg22[%c0_533, %c0_534] {strides = array<i32: 2, 1>} : memref<32x128xf32, #tpu.memory_space<vmem>>, vector<2x128xf32>
    %c1_535 = arith.constant 1 : index
    %c0_536 = arith.constant 0 : index
    %480 = tpu.strided_load %arg22[%c1_535, %c0_536] {strides = array<i32: 2, 1>} : memref<32x128xf32, #tpu.memory_space<vmem>>, vector<2x128xf32>
    %481 = arith.maximumf %479, %480 : vector<2x128xf32>
    %c4_537 = arith.constant 4 : index
    %c0_538 = arith.constant 0 : index
    %482 = tpu.strided_load %arg22[%c4_537, %c0_538] {strides = array<i32: 2, 1>} : memref<32x128xf32, #tpu.memory_space<vmem>>, vector<2x128xf32>
    %c5_539 = arith.constant 5 : index
    %c0_540 = arith.constant 0 : index
    %483 = tpu.strided_load %arg22[%c5_539, %c0_540] {strides = array<i32: 2, 1>} : memref<32x128xf32, #tpu.memory_space<vmem>>, vector<2x128xf32>
    %484 = arith.maximumf %482, %483 : vector<2x128xf32>
    %485 = arith.maximumf %481, %484 : vector<2x128xf32>
    %486 = arith.truncf %485 : vector<2x128xf32> to vector<2x128xbf16>
    %c0_541 = arith.constant 0 : index
    %c1_542 = arith.constant 1 : index
    %c1_543 = arith.constant 1 : index
    %c0_544 = arith.constant 0 : index
    %487 = vector.load %arg15[%c0_541, %c1_542, %c1_543, %c0_544] : memref<2x4x4x128xbf16, #tpu.memory_space<vmem>>, vector<1x1x2x128xbf16>
    %488 = vector.shape_cast %487 : vector<1x1x2x128xbf16> to vector<2x128xbf16>
    %489 = vector.shape_cast %486 : vector<2x128xbf16> to vector<1x1x2x128xbf16>
    tpu.vector_store %arg15[%c0_541, %c1_542, %c1_543, %c0_544], %489 {strides = array<i32>} : memref<2x4x4x128xbf16, #tpu.memory_space<vmem>>, vector<1x1x2x128xbf16>,
    %c8_545 = arith.constant 8 : index
    %c0_546 = arith.constant 0 : index
    %490 = tpu.strided_load %arg22[%c8_545, %c0_546] {strides = array<i32: 2, 1>} : memref<32x128xf32, #tpu.memory_space<vmem>>, vector<2x128xf32>
    %c9_547 = arith.constant 9 : index
    %c0_548 = arith.constant 0 : index
    %491 = tpu.strided_load %arg22[%c9_547, %c0_548] {strides = array<i32: 2, 1>} : memref<32x128xf32, #tpu.memory_space<vmem>>, vector<2x128xf32>
    %492 = arith.maximumf %490, %491 : vector<2x128xf32>
    %c12 = arith.constant 12 : index
    %c0_549 = arith.constant 0 : index
    %493 = tpu.strided_load %arg22[%c12, %c0_549] {strides = array<i32: 2, 1>} : memref<32x128xf32, #tpu.memory_space<vmem>>, vector<2x128xf32>
    %c13 = arith.constant 13 : index
    %c0_550 = arith.constant 0 : index
    %494 = tpu.strided_load %arg22[%c13, %c0_550] {strides = array<i32: 2, 1>} : memref<32x128xf32, #tpu.memory_space<vmem>>, vector<2x128xf32>
    %495 = arith.maximumf %493, %494 : vector<2x128xf32>
    %496 = arith.maximumf %492, %495 : vector<2x128xf32>
    %497 = arith.truncf %496 : vector<2x128xf32> to vector<2x128xbf16>
    %c0_551 = arith.constant 0 : index
    %c2_552 = arith.constant 2 : index
    %c1_553 = arith.constant 1 : index
    %c0_554 = arith.constant 0 : index
    %498 = vector.load %arg15[%c0_551, %c2_552, %c1_553, %c0_554] : memref<2x4x4x128xbf16, #tpu.memory_space<vmem>>, vector<1x1x2x128xbf16>
    %499 = vector.shape_cast %498 : vector<1x1x2x128xbf16> to vector<2x128xbf16>
    %500 = vector.shape_cast %497 : vector<2x128xbf16> to vector<1x1x2x128xbf16>
    tpu.vector_store %arg15[%c0_551, %c2_552, %c1_553, %c0_554], %500 {strides = array<i32>} : memref<2x4x4x128xbf16, #tpu.memory_space<vmem>>, vector<1x1x2x128xbf16>,
    %c16_555 = arith.constant 16 : index
    %c0_556 = arith.constant 0 : index
    %501 = tpu.strided_load %arg22[%c16_555, %c0_556] {strides = array<i32: 2, 1>} : memref<32x128xf32, #tpu.memory_space<vmem>>, vector<2x128xf32>
    %c17_557 = arith.constant 17 : index
    %c0_558 = arith.constant 0 : index
    %502 = tpu.strided_load %arg22[%c17_557, %c0_558] {strides = array<i32: 2, 1>} : memref<32x128xf32, #tpu.memory_space<vmem>>, vector<2x128xf32>
    %503 = arith.maximumf %501, %502 : vector<2x128xf32>
    %c20 = arith.constant 20 : index
    %c0_559 = arith.constant 0 : index
    %504 = tpu.strided_load %arg22[%c20, %c0_559] {strides = array<i32: 2, 1>} : memref<32x128xf32, #tpu.memory_space<vmem>>, vector<2x128xf32>
    %c21 = arith.constant 21 : index
    %c0_560 = arith.constant 0 : index
    %505 = tpu.strided_load %arg22[%c21, %c0_560] {strides = array<i32: 2, 1>} : memref<32x128xf32, #tpu.memory_space<vmem>>, vector<2x128xf32>
    %506 = arith.maximumf %504, %505 : vector<2x128xf32>
    %507 = arith.maximumf %503, %506 : vector<2x128xf32>
    %508 = arith.truncf %507 : vector<2x128xf32> to vector<2x128xbf16>
    %c1_561 = arith.constant 1 : index
    %c1_562 = arith.constant 1 : index
    %c1_563 = arith.constant 1 : index
    %c0_564 = arith.constant 0 : index
    %509 = vector.load %arg15[%c1_561, %c1_562, %c1_563, %c0_564] : memref<2x4x4x128xbf16, #tpu.memory_space<vmem>>, vector<1x1x2x128xbf16>
    %510 = vector.shape_cast %509 : vector<1x1x2x128xbf16> to vector<2x128xbf16>
    %511 = vector.shape_cast %508 : vector<2x128xbf16> to vector<1x1x2x128xbf16>
    tpu.vector_store %arg15[%c1_561, %c1_562, %c1_563, %c0_564], %511 {strides = array<i32>} : memref<2x4x4x128xbf16, #tpu.memory_space<vmem>>, vector<1x1x2x128xbf16>,
    %c24_565 = arith.constant 24 : index
    %c0_566 = arith.constant 0 : index
    %512 = tpu.strided_load %arg22[%c24_565, %c0_566] {strides = array<i32: 2, 1>} : memref<32x128xf32, #tpu.memory_space<vmem>>, vector<2x128xf32>
    %c25_567 = arith.constant 25 : index
    %c0_568 = arith.constant 0 : index
    %513 = tpu.strided_load %arg22[%c25_567, %c0_568] {strides = array<i32: 2, 1>} : memref<32x128xf32, #tpu.memory_space<vmem>>, vector<2x128xf32>
    %514 = arith.maximumf %512, %513 : vector<2x128xf32>
    %c28 = arith.constant 28 : index
    %c0_569 = arith.constant 0 : index
    %515 = tpu.strided_load %arg22[%c28, %c0_569] {strides = array<i32: 2, 1>} : memref<32x128xf32, #tpu.memory_space<vmem>>, vector<2x128xf32>
    %c29 = arith.constant 29 : index
    %c0_570 = arith.constant 0 : index
    %516 = tpu.strided_load %arg22[%c29, %c0_570] {strides = array<i32: 2, 1>} : memref<32x128xf32, #tpu.memory_space<vmem>>, vector<2x128xf32>
    %517 = arith.maximumf %515, %516 : vector<2x128xf32>
    %518 = arith.maximumf %514, %517 : vector<2x128xf32>
    %519 = arith.truncf %518 : vector<2x128xf32> to vector<2x128xbf16>
    %c1_571 = arith.constant 1 : index
    %c2_572 = arith.constant 2 : index
    %c1_573 = arith.constant 1 : index
    %c0_574 = arith.constant 0 : index
    %520 = vector.load %arg15[%c1_571, %c2_572, %c1_573, %c0_574] : memref<2x4x4x128xbf16, #tpu.memory_space<vmem>>, vector<1x1x2x128xbf16>
    %521 = vector.shape_cast %520 : vector<1x1x2x128xbf16> to vector<2x128xbf16>
    %522 = vector.shape_cast %519 : vector<2x128xbf16> to vector<1x1x2x128xbf16>
    tpu.vector_store %arg15[%c1_571, %c2_572, %c1_573, %c0_574], %522 {strides = array<i32>} : memref<2x4x4x128xbf16, #tpu.memory_space<vmem>>, vector<1x1x2x128xbf16>,
    %c0_575 = arith.constant 0 : index
    %c0_576 = arith.constant 0 : index
    %c0_577 = arith.constant 0 : index
    %c0_578 = arith.constant 0 : index
    %523 = vector.load %arg15[%c0_575, %c0_576, %c0_577, %c0_578] : memref<2x4x4x128xbf16, #tpu.memory_space<vmem>>, vector<1x2x2x128xbf16>
    %524 = vector.shape_cast %523 : vector<1x2x2x128xbf16> to vector<2x2x128xbf16>
    %c0_579 = arith.constant 0 : index
    %c0_580 = arith.constant 0 : index
    %c0_581 = arith.constant 0 : index
    %c0_582 = arith.constant 0 : index
    %525 = vector.load %arg19[%c0_579, %c0_580, %c0_581, %c0_582] : memref<2x2x2x1152xbf16, #tpu.memory_space<vmem>>, vector<1x2x2x128xbf16>
    %526 = vector.shape_cast %525 : vector<1x2x2x128xbf16> to vector<2x2x128xbf16>
    %527 = vector.shape_cast %524 : vector<2x2x128xbf16> to vector<1x2x2x128xbf16>
    tpu.vector_store %arg19[%c0_579, %c0_580, %c0_581, %c0_582], %527 {strides = array<i32>} : memref<2x2x2x1152xbf16, #tpu.memory_space<vmem>>, vector<1x2x2x128xbf16>,
    %c0_583 = arith.constant 0 : index
    %c0_584 = arith.constant 0 : index
    %c1_585 = arith.constant 1 : index
    %c0_586 = arith.constant 0 : index
    %528 = vector.load %arg15[%c0_583, %c0_584, %c1_585, %c0_586] : memref<2x4x4x128xbf16, #tpu.memory_space<vmem>>, vector<1x2x2x128xbf16>
    %529 = vector.shape_cast %528 : vector<1x2x2x128xbf16> to vector<2x2x128xbf16>
    %c0_587 = arith.constant 0 : index
    %c0_588 = arith.constant 0 : index
    %c0_589 = arith.constant 0 : index
    %c128_590 = arith.constant 128 : index
    %530 = vector.load %arg19[%c0_587, %c0_588, %c0_589, %c128_590] : memref<2x2x2x1152xbf16, #tpu.memory_space<vmem>>, vector<1x2x2x128xbf16>
    %531 = vector.shape_cast %530 : vector<1x2x2x128xbf16> to vector<2x2x128xbf16>
    %532 = vector.shape_cast %529 : vector<2x2x128xbf16> to vector<1x2x2x128xbf16>
    tpu.vector_store %arg19[%c0_587, %c0_588, %c0_589, %c128_590], %532 {strides = array<i32>} : memref<2x2x2x1152xbf16, #tpu.memory_space<vmem>>, vector<1x2x2x128xbf16>,
    %c0_591 = arith.constant 0 : index
    %c0_592 = arith.constant 0 : index
    %c2_593 = arith.constant 2 : index
    %c0_594 = arith.constant 0 : index
    %533 = vector.load %arg15[%c0_591, %c0_592, %c2_593, %c0_594] : memref<2x4x4x128xbf16, #tpu.memory_space<vmem>>, vector<1x2x2x128xbf16>
    %534 = vector.shape_cast %533 : vector<1x2x2x128xbf16> to vector<2x2x128xbf16>
    %c0_595 = arith.constant 0 : index
    %c0_596 = arith.constant 0 : index
    %c0_597 = arith.constant 0 : index
    %c256_598 = arith.constant 256 : index
    %535 = vector.load %arg19[%c0_595, %c0_596, %c0_597, %c256_598] : memref<2x2x2x1152xbf16, #tpu.memory_space<vmem>>, vector<1x2x2x128xbf16>
    %536 = vector.shape_cast %535 : vector<1x2x2x128xbf16> to vector<2x2x128xbf16>
    %537 = vector.shape_cast %534 : vector<2x2x128xbf16> to vector<1x2x2x128xbf16>
    tpu.vector_store %arg19[%c0_595, %c0_596, %c0_597, %c256_598], %537 {strides = array<i32>} : memref<2x2x2x1152xbf16, #tpu.memory_space<vmem>>, vector<1x2x2x128xbf16>,
    %c0_599 = arith.constant 0 : index
    %c1_600 = arith.constant 1 : index
    %c0_601 = arith.constant 0 : index
    %c0_602 = arith.constant 0 : index
    %538 = vector.load %arg15[%c0_599, %c1_600, %c0_601, %c0_602] : memref<2x4x4x128xbf16, #tpu.memory_space<vmem>>, vector<1x2x2x128xbf16>
    %539 = vector.shape_cast %538 : vector<1x2x2x128xbf16> to vector<2x2x128xbf16>
    %c0_603 = arith.constant 0 : index
    %c0_604 = arith.constant 0 : index
    %c0_605 = arith.constant 0 : index
    %c384_606 = arith.constant 384 : index
    %540 = vector.load %arg19[%c0_603, %c0_604, %c0_605, %c384_606] : memref<2x2x2x1152xbf16, #tpu.memory_space<vmem>>, vector<1x2x2x128xbf16>
    %541 = vector.shape_cast %540 : vector<1x2x2x128xbf16> to vector<2x2x128xbf16>
    %542 = vector.shape_cast %539 : vector<2x2x128xbf16> to vector<1x2x2x128xbf16>
    tpu.vector_store %arg19[%c0_603, %c0_604, %c0_605, %c384_606], %542 {strides = array<i32>} : memref<2x2x2x1152xbf16, #tpu.memory_space<vmem>>, vector<1x2x2x128xbf16>,
    %c0_607 = arith.constant 0 : index
    %c1_608 = arith.constant 1 : index
    %c1_609 = arith.constant 1 : index
    %c0_610 = arith.constant 0 : index
    %543 = vector.load %arg15[%c0_607, %c1_608, %c1_609, %c0_610] : memref<2x4x4x128xbf16, #tpu.memory_space<vmem>>, vector<1x2x2x128xbf16>
    %544 = vector.shape_cast %543 : vector<1x2x2x128xbf16> to vector<2x2x128xbf16>
    %c0_611 = arith.constant 0 : index
    %c0_612 = arith.constant 0 : index
    %c0_613 = arith.constant 0 : index
    %c512_614 = arith.constant 512 : index
    %545 = vector.load %arg19[%c0_611, %c0_612, %c0_613, %c512_614] : memref<2x2x2x1152xbf16, #tpu.memory_space<vmem>>, vector<1x2x2x128xbf16>
    %546 = vector.shape_cast %545 : vector<1x2x2x128xbf16> to vector<2x2x128xbf16>
    %547 = vector.shape_cast %544 : vector<2x2x128xbf16> to vector<1x2x2x128xbf16>
    tpu.vector_store %arg19[%c0_611, %c0_612, %c0_613, %c512_614], %547 {strides = array<i32>} : memref<2x2x2x1152xbf16, #tpu.memory_space<vmem>>, vector<1x2x2x128xbf16>,
    %c0_615 = arith.constant 0 : index
    %c1_616 = arith.constant 1 : index
    %c2_617 = arith.constant 2 : index
    %c0_618 = arith.constant 0 : index
    %548 = vector.load %arg15[%c0_615, %c1_616, %c2_617, %c0_618] : memref<2x4x4x128xbf16, #tpu.memory_space<vmem>>, vector<1x2x2x128xbf16>
    %549 = vector.shape_cast %548 : vector<1x2x2x128xbf16> to vector<2x2x128xbf16>
    %c0_619 = arith.constant 0 : index
    %c0_620 = arith.constant 0 : index
    %c0_621 = arith.constant 0 : index
    %c640_622 = arith.constant 640 : index
    %550 = vector.load %arg19[%c0_619, %c0_620, %c0_621, %c640_622] : memref<2x2x2x1152xbf16, #tpu.memory_space<vmem>>, vector<1x2x2x128xbf16>
    %551 = vector.shape_cast %550 : vector<1x2x2x128xbf16> to vector<2x2x128xbf16>
    %552 = vector.shape_cast %549 : vector<2x2x128xbf16> to vector<1x2x2x128xbf16>
    tpu.vector_store %arg19[%c0_619, %c0_620, %c0_621, %c640_622], %552 {strides = array<i32>} : memref<2x2x2x1152xbf16, #tpu.memory_space<vmem>>, vector<1x2x2x128xbf16>,
    %c0_623 = arith.constant 0 : index
    %c2_624 = arith.constant 2 : index
    %c0_625 = arith.constant 0 : index
    %c0_626 = arith.constant 0 : index
    %553 = vector.load %arg15[%c0_623, %c2_624, %c0_625, %c0_626] : memref<2x4x4x128xbf16, #tpu.memory_space<vmem>>, vector<1x2x2x128xbf16>
    %554 = vector.shape_cast %553 : vector<1x2x2x128xbf16> to vector<2x2x128xbf16>
    %c0_627 = arith.constant 0 : index
    %c0_628 = arith.constant 0 : index
    %c0_629 = arith.constant 0 : index
    %c768_630 = arith.constant 768 : index
    %555 = vector.load %arg19[%c0_627, %c0_628, %c0_629, %c768_630] : memref<2x2x2x1152xbf16, #tpu.memory_space<vmem>>, vector<1x2x2x128xbf16>
    %556 = vector.shape_cast %555 : vector<1x2x2x128xbf16> to vector<2x2x128xbf16>
    %557 = vector.shape_cast %554 : vector<2x2x128xbf16> to vector<1x2x2x128xbf16>
    tpu.vector_store %arg19[%c0_627, %c0_628, %c0_629, %c768_630], %557 {strides = array<i32>} : memref<2x2x2x1152xbf16, #tpu.memory_space<vmem>>, vector<1x2x2x128xbf16>,
    %c0_631 = arith.constant 0 : index
    %c2_632 = arith.constant 2 : index
    %c1_633 = arith.constant 1 : index
    %c0_634 = arith.constant 0 : index
    %558 = vector.load %arg15[%c0_631, %c2_632, %c1_633, %c0_634] : memref<2x4x4x128xbf16, #tpu.memory_space<vmem>>, vector<1x2x2x128xbf16>
    %559 = vector.shape_cast %558 : vector<1x2x2x128xbf16> to vector<2x2x128xbf16>
    %c0_635 = arith.constant 0 : index
    %c0_636 = arith.constant 0 : index
    %c0_637 = arith.constant 0 : index
    %c896_638 = arith.constant 896 : index
    %560 = vector.load %arg19[%c0_635, %c0_636, %c0_637, %c896_638] : memref<2x2x2x1152xbf16, #tpu.memory_space<vmem>>, vector<1x2x2x128xbf16>
    %561 = vector.shape_cast %560 : vector<1x2x2x128xbf16> to vector<2x2x128xbf16>
    %562 = vector.shape_cast %559 : vector<2x2x128xbf16> to vector<1x2x2x128xbf16>
    tpu.vector_store %arg19[%c0_635, %c0_636, %c0_637, %c896_638], %562 {strides = array<i32>} : memref<2x2x2x1152xbf16, #tpu.memory_space<vmem>>, vector<1x2x2x128xbf16>,
    %c0_639 = arith.constant 0 : index
    %c2_640 = arith.constant 2 : index
    %c2_641 = arith.constant 2 : index
    %c0_642 = arith.constant 0 : index
    %563 = vector.load %arg15[%c0_639, %c2_640, %c2_641, %c0_642] : memref<2x4x4x128xbf16, #tpu.memory_space<vmem>>, vector<1x2x2x128xbf16>
    %564 = vector.shape_cast %563 : vector<1x2x2x128xbf16> to vector<2x2x128xbf16>
    %c0_643 = arith.constant 0 : index
    %c0_644 = arith.constant 0 : index
    %c0_645 = arith.constant 0 : index
    %c1024_646 = arith.constant 1024 : index
    %565 = vector.load %arg19[%c0_643, %c0_644, %c0_645, %c1024_646] : memref<2x2x2x1152xbf16, #tpu.memory_space<vmem>>, vector<1x2x2x128xbf16>
    %566 = vector.shape_cast %565 : vector<1x2x2x128xbf16> to vector<2x2x128xbf16>
    %567 = vector.shape_cast %564 : vector<2x2x128xbf16> to vector<1x2x2x128xbf16>
    tpu.vector_store %arg19[%c0_643, %c0_644, %c0_645, %c1024_646], %567 {strides = array<i32>} : memref<2x2x2x1152xbf16, #tpu.memory_space<vmem>>, vector<1x2x2x128xbf16>,
    %c1_647 = arith.constant 1 : index
    %c0_648 = arith.constant 0 : index
    %c0_649 = arith.constant 0 : index
    %c0_650 = arith.constant 0 : index
    %568 = vector.load %arg15[%c1_647, %c0_648, %c0_649, %c0_650] : memref<2x4x4x128xbf16, #tpu.memory_space<vmem>>, vector<1x2x2x128xbf16>
    %569 = vector.shape_cast %568 : vector<1x2x2x128xbf16> to vector<2x2x128xbf16>
    %c1_651 = arith.constant 1 : index
    %c0_652 = arith.constant 0 : index
    %c0_653 = arith.constant 0 : index
    %c0_654 = arith.constant 0 : index
    %570 = vector.load %arg19[%c1_651, %c0_652, %c0_653, %c0_654] : memref<2x2x2x1152xbf16, #tpu.memory_space<vmem>>, vector<1x2x2x128xbf16>
    %571 = vector.shape_cast %570 : vector<1x2x2x128xbf16> to vector<2x2x128xbf16>
    %572 = vector.shape_cast %569 : vector<2x2x128xbf16> to vector<1x2x2x128xbf16>
    tpu.vector_store %arg19[%c1_651, %c0_652, %c0_653, %c0_654], %572 {strides = array<i32>} : memref<2x2x2x1152xbf16, #tpu.memory_space<vmem>>, vector<1x2x2x128xbf16>,
    %c1_655 = arith.constant 1 : index
    %c0_656 = arith.constant 0 : index
    %c1_657 = arith.constant 1 : index
    %c0_658 = arith.constant 0 : index
    %573 = vector.load %arg15[%c1_655, %c0_656, %c1_657, %c0_658] : memref<2x4x4x128xbf16, #tpu.memory_space<vmem>>, vector<1x2x2x128xbf16>
    %574 = vector.shape_cast %573 : vector<1x2x2x128xbf16> to vector<2x2x128xbf16>
    %c1_659 = arith.constant 1 : index
    %c0_660 = arith.constant 0 : index
    %c0_661 = arith.constant 0 : index
    %c128_662 = arith.constant 128 : index
    %575 = vector.load %arg19[%c1_659, %c0_660, %c0_661, %c128_662] : memref<2x2x2x1152xbf16, #tpu.memory_space<vmem>>, vector<1x2x2x128xbf16>
    %576 = vector.shape_cast %575 : vector<1x2x2x128xbf16> to vector<2x2x128xbf16>
    %577 = vector.shape_cast %574 : vector<2x2x128xbf16> to vector<1x2x2x128xbf16>
    tpu.vector_store %arg19[%c1_659, %c0_660, %c0_661, %c128_662], %577 {strides = array<i32>} : memref<2x2x2x1152xbf16, #tpu.memory_space<vmem>>, vector<1x2x2x128xbf16>,
    %c1_663 = arith.constant 1 : index
    %c0_664 = arith.constant 0 : index
    %c2_665 = arith.constant 2 : index
    %c0_666 = arith.constant 0 : index
    %578 = vector.load %arg15[%c1_663, %c0_664, %c2_665, %c0_666] : memref<2x4x4x128xbf16, #tpu.memory_space<vmem>>, vector<1x2x2x128xbf16>
    %579 = vector.shape_cast %578 : vector<1x2x2x128xbf16> to vector<2x2x128xbf16>
    %c1_667 = arith.constant 1 : index
    %c0_668 = arith.constant 0 : index
    %c0_669 = arith.constant 0 : index
    %c256_670 = arith.constant 256 : index
    %580 = vector.load %arg19[%c1_667, %c0_668, %c0_669, %c256_670] : memref<2x2x2x1152xbf16, #tpu.memory_space<vmem>>, vector<1x2x2x128xbf16>
    %581 = vector.shape_cast %580 : vector<1x2x2x128xbf16> to vector<2x2x128xbf16>
    %582 = vector.shape_cast %579 : vector<2x2x128xbf16> to vector<1x2x2x128xbf16>
    tpu.vector_store %arg19[%c1_667, %c0_668, %c0_669, %c256_670], %582 {strides = array<i32>} : memref<2x2x2x1152xbf16, #tpu.memory_space<vmem>>, vector<1x2x2x128xbf16>,
    %c1_671 = arith.constant 1 : index
    %c1_672 = arith.constant 1 : index
    %c0_673 = arith.constant 0 : index
    %c0_674 = arith.constant 0 : index
    %583 = vector.load %arg15[%c1_671, %c1_672, %c0_673, %c0_674] : memref<2x4x4x128xbf16, #tpu.memory_space<vmem>>, vector<1x2x2x128xbf16>
    %584 = vector.shape_cast %583 : vector<1x2x2x128xbf16> to vector<2x2x128xbf16>
    %c1_675 = arith.constant 1 : index
    %c0_676 = arith.constant 0 : index
    %c0_677 = arith.constant 0 : index
    %c384_678 = arith.constant 384 : index
    %585 = vector.load %arg19[%c1_675, %c0_676, %c0_677, %c384_678] : memref<2x2x2x1152xbf16, #tpu.memory_space<vmem>>, vector<1x2x2x128xbf16>
    %586 = vector.shape_cast %585 : vector<1x2x2x128xbf16> to vector<2x2x128xbf16>
    %587 = vector.shape_cast %584 : vector<2x2x128xbf16> to vector<1x2x2x128xbf16>
    tpu.vector_store %arg19[%c1_675, %c0_676, %c0_677, %c384_678], %587 {strides = array<i32>} : memref<2x2x2x1152xbf16, #tpu.memory_space<vmem>>, vector<1x2x2x128xbf16>,
    %c1_679 = arith.constant 1 : index
    %c1_680 = arith.constant 1 : index
    %c1_681 = arith.constant 1 : index
    %c0_682 = arith.constant 0 : index
    %588 = vector.load %arg15[%c1_679, %c1_680, %c1_681, %c0_682] : memref<2x4x4x128xbf16, #tpu.memory_space<vmem>>, vector<1x2x2x128xbf16>
    %589 = vector.shape_cast %588 : vector<1x2x2x128xbf16> to vector<2x2x128xbf16>
    %c1_683 = arith.constant 1 : index
    %c0_684 = arith.constant 0 : index
    %c0_685 = arith.constant 0 : index
    %c512_686 = arith.constant 512 : index
    %590 = vector.load %arg19[%c1_683, %c0_684, %c0_685, %c512_686] : memref<2x2x2x1152xbf16, #tpu.memory_space<vmem>>, vector<1x2x2x128xbf16>
    %591 = vector.shape_cast %590 : vector<1x2x2x128xbf16> to vector<2x2x128xbf16>
    %592 = vector.shape_cast %589 : vector<2x2x128xbf16> to vector<1x2x2x128xbf16>
    tpu.vector_store %arg19[%c1_683, %c0_684, %c0_685, %c512_686], %592 {strides = array<i32>} : memref<2x2x2x1152xbf16, #tpu.memory_space<vmem>>, vector<1x2x2x128xbf16>,
    %c1_687 = arith.constant 1 : index
    %c1_688 = arith.constant 1 : index
    %c2_689 = arith.constant 2 : index
    %c0_690 = arith.constant 0 : index
    %593 = vector.load %arg15[%c1_687, %c1_688, %c2_689, %c0_690] : memref<2x4x4x128xbf16, #tpu.memory_space<vmem>>, vector<1x2x2x128xbf16>
    %594 = vector.shape_cast %593 : vector<1x2x2x128xbf16> to vector<2x2x128xbf16>
    %c1_691 = arith.constant 1 : index
    %c0_692 = arith.constant 0 : index
    %c0_693 = arith.constant 0 : index
    %c640_694 = arith.constant 640 : index
    %595 = vector.load %arg19[%c1_691, %c0_692, %c0_693, %c640_694] : memref<2x2x2x1152xbf16, #tpu.memory_space<vmem>>, vector<1x2x2x128xbf16>
    %596 = vector.shape_cast %595 : vector<1x2x2x128xbf16> to vector<2x2x128xbf16>
    %597 = vector.shape_cast %594 : vector<2x2x128xbf16> to vector<1x2x2x128xbf16>
    tpu.vector_store %arg19[%c1_691, %c0_692, %c0_693, %c640_694], %597 {strides = array<i32>} : memref<2x2x2x1152xbf16, #tpu.memory_space<vmem>>, vector<1x2x2x128xbf16>,
    %c1_695 = arith.constant 1 : index
    %c2_696 = arith.constant 2 : index
    %c0_697 = arith.constant 0 : index
    %c0_698 = arith.constant 0 : index
    %598 = vector.load %arg15[%c1_695, %c2_696, %c0_697, %c0_698] : memref<2x4x4x128xbf16, #tpu.memory_space<vmem>>, vector<1x2x2x128xbf16>
    %599 = vector.shape_cast %598 : vector<1x2x2x128xbf16> to vector<2x2x128xbf16>
    %c1_699 = arith.constant 1 : index
    %c0_700 = arith.constant 0 : index
    %c0_701 = arith.constant 0 : index
    %c768_702 = arith.constant 768 : index
    %600 = vector.load %arg19[%c1_699, %c0_700, %c0_701, %c768_702] : memref<2x2x2x1152xbf16, #tpu.memory_space<vmem>>, vector<1x2x2x128xbf16>
    %601 = vector.shape_cast %600 : vector<1x2x2x128xbf16> to vector<2x2x128xbf16>
    %602 = vector.shape_cast %599 : vector<2x2x128xbf16> to vector<1x2x2x128xbf16>
    tpu.vector_store %arg19[%c1_699, %c0_700, %c0_701, %c768_702], %602 {strides = array<i32>} : memref<2x2x2x1152xbf16, #tpu.memory_space<vmem>>, vector<1x2x2x128xbf16>,
    %c1_703 = arith.constant 1 : index
    %c2_704 = arith.constant 2 : index
    %c1_705 = arith.constant 1 : index
    %c0_706 = arith.constant 0 : index
    %603 = vector.load %arg15[%c1_703, %c2_704, %c1_705, %c0_706] : memref<2x4x4x128xbf16, #tpu.memory_space<vmem>>, vector<1x2x2x128xbf16>
    %604 = vector.shape_cast %603 : vector<1x2x2x128xbf16> to vector<2x2x128xbf16>
    %c1_707 = arith.constant 1 : index
    %c0_708 = arith.constant 0 : index
    %c0_709 = arith.constant 0 : index
    %c896_710 = arith.constant 896 : index
    %605 = vector.load %arg19[%c1_707, %c0_708, %c0_709, %c896_710] : memref<2x2x2x1152xbf16, #tpu.memory_space<vmem>>, vector<1x2x2x128xbf16>
    %606 = vector.shape_cast %605 : vector<1x2x2x128xbf16> to vector<2x2x128xbf16>
    %607 = vector.shape_cast %604 : vector<2x2x128xbf16> to vector<1x2x2x128xbf16>
    tpu.vector_store %arg19[%c1_707, %c0_708, %c0_709, %c896_710], %607 {strides = array<i32>} : memref<2x2x2x1152xbf16, #tpu.memory_space<vmem>>, vector<1x2x2x128xbf16>,
    %c1_711 = arith.constant 1 : index
    %c2_712 = arith.constant 2 : index
    %c2_713 = arith.constant 2 : index
    %c0_714 = arith.constant 0 : index
    %608 = vector.load %arg15[%c1_711, %c2_712, %c2_713, %c0_714] : memref<2x4x4x128xbf16, #tpu.memory_space<vmem>>, vector<1x2x2x128xbf16>
    %609 = vector.shape_cast %608 : vector<1x2x2x128xbf16> to vector<2x2x128xbf16>
    %c1_715 = arith.constant 1 : index
    %c0_716 = arith.constant 0 : index
    %c0_717 = arith.constant 0 : index
    %c1024_718 = arith.constant 1024 : index
    %610 = vector.load %arg19[%c1_715, %c0_716, %c0_717, %c1024_718] : memref<2x2x2x1152xbf16, #tpu.memory_space<vmem>>, vector<1x2x2x128xbf16>
    %611 = vector.shape_cast %610 : vector<1x2x2x128xbf16> to vector<2x2x128xbf16>
    %612 = vector.shape_cast %609 : vector<2x2x128xbf16> to vector<1x2x2x128xbf16>
    tpu.vector_store %arg19[%c1_715, %c0_716, %c0_717, %c1024_718], %612 {strides = array<i32>} : memref<2x2x2x1152xbf16, #tpu.memory_space<vmem>>, vector<1x2x2x128xbf16>,
    %c0_719 = arith.constant 0 : index
    %c0_720 = arith.constant 0 : index
    %c0_721 = arith.constant 0 : index
    %c0_722 = arith.constant 0 : index
    %613 = vector.load %arg19[%c0_719, %c0_720, %c0_721, %c0_722] : memref<2x2x2x1152xbf16, #tpu.memory_space<vmem>>, vector<2x2x2x1152xbf16>
    %614 = vector.shape_cast %613 : vector<2x2x2x1152xbf16> to vector<8x1152xbf16>
    %c0_723 = arith.constant 0 : index
    %c0_724 = arith.constant 0 : index
    %615 = vector.load %arg8[%c0_723, %c0_724] : memref<1152x256xbf16, #tpu.memory_space<vmem>>, vector<1152x256xbf16>
    %cst_725 = arith.constant dense<0.000000e+00> : vector<8x256xf32>
    %616 = tpu.matmul %614, %615, %cst_725 {dimension_numbers = #tpu.dot_dimension_numbers<[1], [0], [0], [1], [0, 0, 1, 1], [], []>} : vector<8x1152xbf16>, vector<1152x256xbf16>, vector<8x256xf32> -> vector<8x256xf32>
    %c0_726 = arith.constant 0 : index
    %c0_727 = arith.constant 0 : index
    %617 = vector.load %arg9[%c0_726, %c0_727] : memref<1x256xf32, #tpu.memory_space<vmem>>, vector<1x256xf32>
    %618 = vector.broadcast %617 : vector<1x256xf32> to vector<8x256xf32>
    %619 = arith.addf %616, %618 : vector<8x256xf32>
    %cst_728 = arith.constant 0.000000e+00 : f32
    %620 = vector.broadcast %cst_728 : f32 to vector<8x256xf32>
    %621 = arith.maximumf %619, %620 : vector<8x256xf32>
    %c0_729 = arith.constant 0 : index
    %c0_730 = arith.constant 0 : index
    %622 = vector.load %arg23[%c0_729, %c0_730] : memref<8x256xf32, #tpu.memory_space<vmem>>, vector<8x256xf32>
    tpu.vector_store %arg23[%c0_729, %c0_730], %621 {strides = array<i32>} : memref<8x256xf32, #tpu.memory_space<vmem>>, vector<8x256xf32>,
    %c0_731 = arith.constant 0 : index
    %c0_732 = arith.constant 0 : index
    %623 = vector.load %arg23[%c0_731, %c0_732] : memref<8x256xf32, #tpu.memory_space<vmem>>, vector<1x256xf32>
    %c1_733 = arith.constant 1 : index
    %c0_734 = arith.constant 0 : index
    %624 = vector.load %arg23[%c1_733, %c0_734] : memref<8x256xf32, #tpu.memory_space<vmem>>, vector<1x256xf32>
    %625 = arith.maximumf %623, %624 : vector<1x256xf32>
    %c2_735 = arith.constant 2 : index
    %c0_736 = arith.constant 0 : index
    %626 = vector.load %arg23[%c2_735, %c0_736] : memref<8x256xf32, #tpu.memory_space<vmem>>, vector<1x256xf32>
    %c3_737 = arith.constant 3 : index
    %c0_738 = arith.constant 0 : index
    %627 = vector.load %arg23[%c3_737, %c0_738] : memref<8x256xf32, #tpu.memory_space<vmem>>, vector<1x256xf32>
    %628 = arith.maximumf %626, %627 : vector<1x256xf32>
    %629 = arith.maximumf %625, %628 : vector<1x256xf32>
    %630 = arith.truncf %629 : vector<1x256xf32> to vector<1x256xbf16>
    %c0_739 = arith.constant 0 : index
    %c0_740 = arith.constant 0 : index
    %631 = vector.load %arg16[%c0_739, %c0_740] : memref<2x256xbf16, #tpu.memory_space<vmem>>, vector<1x256xbf16>
    tpu.vector_store %arg16[%c0_739, %c0_740], %630 {strides = array<i32>} : memref<2x256xbf16, #tpu.memory_space<vmem>>, vector<1x256xbf16>,
    %c4_741 = arith.constant 4 : index
    %c0_742 = arith.constant 0 : index
    %632 = vector.load %arg23[%c4_741, %c0_742] : memref<8x256xf32, #tpu.memory_space<vmem>>, vector<1x256xf32>
    %c5_743 = arith.constant 5 : index
    %c0_744 = arith.constant 0 : index
    %633 = vector.load %arg23[%c5_743, %c0_744] : memref<8x256xf32, #tpu.memory_space<vmem>>, vector<1x256xf32>
    %634 = arith.maximumf %632, %633 : vector<1x256xf32>
    %c6_745 = arith.constant 6 : index
    %c0_746 = arith.constant 0 : index
    %635 = vector.load %arg23[%c6_745, %c0_746] : memref<8x256xf32, #tpu.memory_space<vmem>>, vector<1x256xf32>
    %c7_747 = arith.constant 7 : index
    %c0_748 = arith.constant 0 : index
    %636 = vector.load %arg23[%c7_747, %c0_748] : memref<8x256xf32, #tpu.memory_space<vmem>>, vector<1x256xf32>
    %637 = arith.maximumf %635, %636 : vector<1x256xf32>
    %638 = arith.maximumf %634, %637 : vector<1x256xf32>
    %639 = arith.truncf %638 : vector<1x256xf32> to vector<1x256xbf16>
    %c1_749 = arith.constant 1 : index
    %c0_750 = arith.constant 0 : index
    %640 = vector.load %arg16[%c1_749, %c0_750] : memref<2x256xbf16, #tpu.memory_space<vmem>>, vector<1x256xbf16>
    tpu.vector_store %arg16[%c1_749, %c0_750], %639 {strides = array<i32>} : memref<2x256xbf16, #tpu.memory_space<vmem>>, vector<1x256xbf16>,
    %c0_751 = arith.constant 0 : index
    %c0_752 = arith.constant 0 : index
    %641 = vector.load %arg16[%c0_751, %c0_752] : memref<2x256xbf16, #tpu.memory_space<vmem>>, vector<2x256xbf16>
    %c0_753 = arith.constant 0 : index
    %c0_754 = arith.constant 0 : index
    %642 = vector.load %arg10[%c0_753, %c0_754] : memref<256x512xbf16, #tpu.memory_space<vmem>>, vector<256x512xbf16>
    %cst_755 = arith.constant dense<0.000000e+00> : vector<2x512xf32>
    %643 = tpu.matmul %641, %642, %cst_755 {dimension_numbers = #tpu.dot_dimension_numbers<[1], [0], [0], [1], [0, 0, 1, 1], [], []>} : vector<2x256xbf16>, vector<256x512xbf16>, vector<2x512xf32> -> vector<2x512xf32>
    %c0_756 = arith.constant 0 : index
    %c0_757 = arith.constant 0 : index
    %644 = vector.load %arg11[%c0_756, %c0_757] : memref<1x512xf32, #tpu.memory_space<vmem>>, vector<1x512xf32>
    %645 = vector.broadcast %644 : vector<1x512xf32> to vector<2x512xf32>
    %646 = arith.addf %643, %645 : vector<2x512xf32>
    %cst_758 = arith.constant 0.000000e+00 : f32
    %647 = vector.broadcast %cst_758 : f32 to vector<2x512xf32>
    %648 = arith.maximumf %646, %647 : vector<2x512xf32>
    %c0_759 = arith.constant 0 : index
    %c0_760 = arith.constant 0 : index
    %649 = vector.load %arg12[%c0_759, %c0_760] : memref<2x512xf32, #tpu.memory_space<vmem>>, vector<2x512xf32>
    tpu.vector_store %arg12[%c0_759, %c0_760], %648 {strides = array<i32>} : memref<2x512xf32, #tpu.memory_space<vmem>>, vector<2x512xf32>,
    return
  }
  func.func @transform_0(%arg0: i32) -> (i32, i32) {
    %c0_i32 = arith.constant 0 : i32
    %c0_i32_0 = arith.constant 0 : i32
    return %arg0, %c0_i32 : i32, i32
  }
  func.func @transform_1(%arg0: i32) -> (i32, i32) {
    %c0_i32 = arith.constant 0 : i32
    %c0_i32_0 = arith.constant 0 : i32
    %c0_i32_1 = arith.constant 0 : i32
    return %c0_i32, %c0_i32_0 : i32, i32
  }
  func.func @transform_2(%arg0: i32) -> (i32, i32) {
    %c0_i32 = arith.constant 0 : i32
    %c0_i32_0 = arith.constant 0 : i32
    %c0_i32_1 = arith.constant 0 : i32
    return %c0_i32, %c0_i32_0 : i32, i32
  }
  func.func @transform_3(%arg0: i32) -> (i32, i32) {
    %c0_i32 = arith.constant 0 : i32
    %c0_i32_0 = arith.constant 0 : i32
    %c0_i32_1 = arith.constant 0 : i32
    return %c0_i32, %c0_i32_0 : i32, i32
  }
  func.func @transform_4(%arg0: i32) -> (i32, i32) {
    %c0_i32 = arith.constant 0 : i32
    %c0_i32_0 = arith.constant 0 : i32
    %c0_i32_1 = arith.constant 0 : i32
    return %c0_i32, %c0_i32_0 : i32, i32
  }
  func.func @transform_5(%arg0: i32) -> (i32, i32) {
    %c0_i32 = arith.constant 0 : i32
    %c0_i32_0 = arith.constant 0 : i32
    %c0_i32_1 = arith.constant 0 : i32
    return %c0_i32, %c0_i32_0 : i32, i32
  }
  func.func @transform_6(%arg0: i32) -> (i32, i32) {
    %c0_i32 = arith.constant 0 : i32
    %c0_i32_0 = arith.constant 0 : i32
    %c0_i32_1 = arith.constant 0 : i32
    return %c0_i32, %c0_i32_0 : i32, i32
  }
  func.func @transform_7(%arg0: i32) -> (i32, i32) {
    %c0_i32 = arith.constant 0 : i32
    %c0_i32_0 = arith.constant 0 : i32
    %c0_i32_1 = arith.constant 0 : i32
    return %c0_i32, %c0_i32_0 : i32, i32
  }
  func.func @transform_8(%arg0: i32) -> (i32, i32) {
    %c0_i32 = arith.constant 0 : i32
    %c0_i32_0 = arith.constant 0 : i32
    %c0_i32_1 = arith.constant 0 : i32
    return %c0_i32, %c0_i32_0 : i32, i32
  }
  func.func @transform_9(%arg0: i32) -> (i32, i32) {
    %c0_i32 = arith.constant 0 : i32
    %c0_i32_0 = arith.constant 0 : i32
    %c0_i32_1 = arith.constant 0 : i32
    return %c0_i32, %c0_i32_0 : i32, i32
  }
  func.func @transform_10(%arg0: i32) -> (i32, i32) {
    %c0_i32 = arith.constant 0 : i32
    %c0_i32_0 = arith.constant 0 : i32
    %c0_i32_1 = arith.constant 0 : i32
    return %c0_i32, %c0_i32_0 : i32, i32
  }
  func.func @transform_11(%arg0: i32) -> (i32, i32) {
    %c0_i32 = arith.constant 0 : i32
    %c0_i32_0 = arith.constant 0 : i32
    return %arg0, %c0_i32 : i32, i32
  }
}

</mosaic_0001>

<llo_original>
// kernel: five_layer_cnn_forward.1
$region0: #{five_layer_cnn_forward.1}
  #allocation0 [shape = 'u32[]', space=smem, size = 0x4, offset = 0x4, fixed_abs, tag = 'smem constant byte address 0x4 - core index']
  #allocation1 [shape = 'u32[144,128]{1,0:T(1,128)}', space=vmem, size = 0x12000, scoped, tag = 'internal scratch']
  #allocation2 [shape = 'bf16[2,10,10,128]{3,2,1,0:T(8,128)(2,1)}', space=vmem, size = 0x14000, scoped, tag = 'scratch operand']
  #allocation3 [shape = 'bf16[2,6,6,128]{3,2,1,0:T(8,128)(2,1)}', space=vmem, size = 0x6000, scoped, tag = 'scratch operand']
  #allocation4 [shape = 'bf16[2,4,4,128]{3,2,1,0:T(4,128)(2,1)}', space=vmem, size = 0x2000, scoped, tag = 'scratch operand']
  #allocation5 [shape = 'bf16[2,256]{1,0:T(2,128)(2,1)}', space=vmem, size = 0x400, scoped, tag = 'scratch operand']
  #allocation6 [shape = 'bf16[2,8,8,1152]{3,2,1,0:T(8,128)(2,1)}', space=vmem, size = 0x48000, scoped, tag = 'scratch operand']
  #allocation7 [shape = 'bf16[2,4,4,1152]{3,2,1,0:T(4,128)(2,1)}', space=vmem, size = 0x12000, scoped, tag = 'scratch operand']
  #allocation8 [shape = 'bf16[2,2,2,1152]{3,2,1,0:T(2,128)(2,1)}', space=vmem, size = 0x4800, scoped, tag = 'scratch operand']
  #allocation9 [shape = 'f32[512,128]{1,0:T(8,128)}', space=vmem, size = 0x40000, scoped, tag = 'scratch operand']
  #allocation10 [shape = 'f32[128,128]{1,0:T(8,128)}', space=vmem, size = 0x10000, scoped, tag = 'scratch operand']
  #allocation11 [shape = 'f32[32,128]{1,0:T(8,128)}', space=vmem, size = 0x4000, scoped, tag = 'scratch operand']
  #allocation12 [shape = 'f32[8,256]{1,0:T(8,128)}', space=vmem, size = 0x2000, scoped, tag = 'scratch operand']
  %s0 = inlined_call_operand.vmem [shape: bf16[512,128], index: 0, kind: input, shape index: {}]
  %s1 = inlined_call_operand.vmem [shape: bf16[128,128], index: 1, kind: input, shape index: {}]
  %s2 = inlined_call_operand.vmem [shape: f32[1,128], index: 2, kind: input, shape index: {}]
  %s3 = inlined_call_operand.vmem [shape: bf16[1152,128], index: 3, kind: input, shape index: {}]
  %s4 = inlined_call_operand.vmem [shape: f32[1,128], index: 4, kind: input, shape index: {}]
  %s5 = inlined_call_operand.vmem [shape: bf16[1152,128], index: 5, kind: input, shape index: {}]
  %s6 = inlined_call_operand.hbm [shape: f32[1,128], index: 6, kind: input, shape index: {}]
  %s7 = inlined_call_operand.vmem [shape: bf16[1152,256], index: 7, kind: input, shape index: {}]
  %s8 = inlined_call_operand.hbm [shape: f32[1,256], index: 8, kind: input, shape index: {}]
  %s9 = inlined_call_operand.vmem [shape: bf16[256,512], index: 9, kind: input, shape index: {}]
  %s10 = inlined_call_operand.hbm [shape: f32[1,512], index: 10, kind: input, shape index: {}]
  %s11 = inlined_call_operand.hbm [shape: f32[2,512], index: 11, kind: output, shape index: {}]
  %s12 = sld [smem:[#allocation0]]
  $region66: #{five_layer_cnn_forward.1} parent=0
    _
  %s14 = ssub.s32 1, %s12
  %s15 = scalar_select 0, %s14, %s12
  $region1: #{five_layer_cnn_forward.1} parent=0
    #allocation13 [shape = 'u8[512]{0}', space=vmem, size = 0x400, scoped, tag = 'input window, operand 6, single buffered']
    #allocation14 [shape = 's32[1]{0}', space=sflag, size = 0x4, scoped, tag = 'scoped memory for five_layer_cnn_forward.1']
    #allocation15 [shape = 's32[1]{0}', space=sflag, size = 0x4, scoped, tag = 'scoped memory for five_layer_cnn_forward.1']
    #allocation16 [shape = 'u8[1024]{0}', space=vmem, size = 0x400, scoped, tag = 'input window, operand 8, single buffered']
    #allocation17 [shape = 's32[1]{0}', space=sflag, size = 0x4, scoped, tag = 'scoped memory for five_layer_cnn_forward.1']
    #allocation18 [shape = 'u8[2048]{0}', space=vmem, size = 0x800, scoped, tag = 'input window, operand 10, single buffered']
    #allocation19 [shape = 'u8[4096]{0}', space=vmem, size = 0x1000, scoped, tag = 'output window, operand 0, single buffered']
    %16 = vsyncpa [#allocation14], 0
    %17 = vsyncpa [#allocation17], 0
    %18 = vsyncpa [#allocation15], 0
    // Predicated region
    $region2: #{five_layer_cnn_forward.1} parent=1 // pred_check
      _
    $region3: #{five_layer_cnn_forward.1} parent=1 // pred_check_branch
      %20 = sbr.rel (0) target = $region5
    $region4: #{five_layer_cnn_forward.1} parent=1 // pred_region
      _
    $region5: #{five_layer_cnn_forward.1} parent=1 // pred_fallthru
      _
    // Predicated region
    $region6: #{five_layer_cnn_forward.1} parent=1 // pred_check
      _
    $region7: #{five_layer_cnn_forward.1} parent=1 // pred_check_branch
      %22 = sbr.rel (0) target = $region9
    $region8: #{five_layer_cnn_forward.1} parent=1 // pred_region
      _
    $region9: #{five_layer_cnn_forward.1} parent=1 // pred_fallthru
      _
    // Predicated region
    $region10: #{five_layer_cnn_forward.1} parent=1 // pred_check
      _
    $region11: #{five_layer_cnn_forward.1} parent=1 // pred_check_branch
      %24 = sbr.rel (0) target = $region13
    $region12: #{five_layer_cnn_forward.1} parent=1 // pred_region
      _
    $region13: #{five_layer_cnn_forward.1} parent=1 // pred_fallthru
      _
    // Predicated region
    $region14: #{five_layer_cnn_forward.1} parent=1 // pred_check
      _
    $region15: #{five_layer_cnn_forward.1} parent=1 // pred_check_branch
      %26 = sbr.rel (0) target = $region17
    $region16: #{five_layer_cnn_forward.1} parent=1 // pred_region
      _
    $region17: #{five_layer_cnn_forward.1} parent=1 // pred_fallthru
      _
    // Predicated region
    $region18: #{five_layer_cnn_forward.1} parent=1 // pred_check
      _
    $region19: #{five_layer_cnn_forward.1} parent=1 // pred_check_branch
      %28 = sbr.rel (0) target = $region21
    $region20: #{five_layer_cnn_forward.1} parent=1 // pred_region
      _
    $region21: #{five_layer_cnn_forward.1} parent=1 // pred_fallthru
      _
    // Predicated region
    $region22: #{five_layer_cnn_forward.1} parent=1 // pred_check
      _
    $region23: #{five_layer_cnn_forward.1} parent=1 // pred_check_branch
      %30 = sbr.rel (0) target = $region25
    $region24: #{five_layer_cnn_forward.1} parent=1 // pred_region
      _
    $region25: #{five_layer_cnn_forward.1} parent=1 // pred_fallthru
      _
    // Predicated region
    $region26: #{five_layer_cnn_forward.1} parent=1 // pred_check
      _
    $region27: #{five_layer_cnn_forward.1} parent=1 // pred_check_branch
      %32 = sbr.rel (0) target = $region29
    $region28: #{five_layer_cnn_forward.1} parent=1 // pred_region
      %s34 = ssub.s32 16, 16
      %35 = vsyncadd [#allocation14], %s34
      %s37 = sshll.u32 [#allocation13], 4
      %s38 = int_to_ptr.vmem [resolvable:$true] %s37
      %40 = dma.hbm_to_vmem [thread:$0]  %s6, 16, %s38, [#allocation14]
    $region29: #{five_layer_cnn_forward.1} parent=1 // pred_fallthru
      _
    // Predicated region
    $region30: #{five_layer_cnn_forward.1} parent=1 // pred_check
      _
    $region31: #{five_layer_cnn_forward.1} parent=1 // pred_check_branch
      %42 = sbr.rel (0) target = $region33
    $region32: #{five_layer_cnn_forward.1} parent=1 // pred_region
      _
    $region33: #{five_layer_cnn_forward.1} parent=1 // pred_fallthru
      _
    // Predicated region
    $region34: #{five_layer_cnn_forward.1} parent=1 // pred_check
      _
    $region35: #{five_layer_cnn_forward.1} parent=1 // pred_check_branch
      %44 = sbr.rel (0) target = $region37
    $region36: #{five_layer_cnn_forward.1} parent=1 // pred_region
      %s46 = ssub.s32 32, 32
      %47 = vsyncadd [#allocation17], %s46
      %s49 = sshll.u32 [#allocation16], 4
      %s50 = int_to_ptr.vmem [resolvable:$true] %s49
      %52 = dma.hbm_to_vmem [thread:$0]  %s8, 32, %s50, [#allocation17]
    $region37: #{five_layer_cnn_forward.1} parent=1 // pred_fallthru
      _
    // Predicated region
    $region38: #{five_layer_cnn_forward.1} parent=1 // pred_check
      _
    $region39: #{five_layer_cnn_forward.1} parent=1 // pred_check_branch
      %54 = sbr.rel (0) target = $region41
    $region40: #{five_layer_cnn_forward.1} parent=1 // pred_region
      _
    $region41: #{five_layer_cnn_forward.1} parent=1 // pred_fallthru
      _
    // Predicated region
    $region42: #{five_layer_cnn_forward.1} parent=1 // pred_check
      _
    $region43: #{five_layer_cnn_forward.1} parent=1 // pred_check_branch
      %56 = sbr.rel (0) target = $region45
    $region44: #{five_layer_cnn_forward.1} parent=1 // pred_region
      %s58 = ssub.s32 64, 64
      %59 = vsyncadd [#allocation17], %s58
      %s61 = sshll.u32 [#allocation18], 4
      %s62 = int_to_ptr.vmem [resolvable:$true] %s61
      %64 = dma.hbm_to_vmem [thread:$0]  %s10, 64, %s62, [#allocation17]
    $region45: #{five_layer_cnn_forward.1} parent=1 // pred_fallthru
      _
    // Predicated region
    $region46: #{five_layer_cnn_forward.1} parent=1 // pred_check
      _
    $region47: #{five_layer_cnn_forward.1} parent=1 // pred_check_branch
      %66 = sbr.rel (0) target = $region49
    $region48: #{five_layer_cnn_forward.1} parent=1 // pred_region
      %67 = dma.done [#allocation14], 16
    $region49: #{five_layer_cnn_forward.1} parent=1 // pred_fallthru
      _
    // Predicated region
    $region50: #{five_layer_cnn_forward.1} parent=1 // pred_check
      _
    $region51: #{five_layer_cnn_forward.1} parent=1 // pred_check_branch
      %69 = sbr.rel (0) target = $region53
    $region52: #{five_layer_cnn_forward.1} parent=1 // pred_region
      %70 = dma.done [#allocation17], 32
    $region53: #{five_layer_cnn_forward.1} parent=1 // pred_fallthru
      _
    // Predicated region
    $region54: #{five_layer_cnn_forward.1} parent=1 // pred_check
      _
    $region55: #{five_layer_cnn_forward.1} parent=1 // pred_check_branch
      %72 = sbr.rel (0) target = $region57
    $region56: #{five_layer_cnn_forward.1} parent=1 // pred_region
      %73 = dma.done [#allocation17], 64
    $region57: #{five_layer_cnn_forward.1} parent=1 // pred_fallthru
      _
    %75 = vst [vmem:[#allocation2] sm:$0xf] 0
    %76 = vst [vmem:[#allocation2 + $0x4] sm:$0x1] 0
    %77 = vst [vmem:[#allocation2 + $0x8] sm:$0xf] 0
    %78 = vst [vmem:[#allocation2 + $0xc] sm:$0x1] 0
    %79 = vst [vmem:[#allocation2 + $0x10] sm:$0xf] 0
    %80 = vst [vmem:[#allocation2 + $0x14] sm:$0x1] 0
    %81 = vst [vmem:[#allocation2 + $0x18] sm:$0xf] 0
    %82 = vst [vmem:[#allocation2 + $0x1c] sm:$0x1] 0
    %83 = vst [vmem:[#allocation2 + $0x20] sm:$0xf] 0
    %84 = vst [vmem:[#allocation2 + $0x24] sm:$0x1] 0
    %85 = vst [vmem:[#allocation2 + $0x28] sm:$0xf] 0
    %86 = vst [vmem:[#allocation2 + $0x2c] sm:$0x1] 0
    %87 = vst [vmem:[#allocation2 + $0x30] sm:$0xf] 0
    %88 = vst [vmem:[#allocation2 + $0x34] sm:$0x1] 0
    %89 = vst [vmem:[#allocation2 + $0x38] sm:$0xf] 0
    %90 = vst [vmem:[#allocation2 + $0x3c] sm:$0x1] 0
    %91 = vst [vmem:[#allocation2 + $0x40] sm:$0xf] 0
    %92 = vst [vmem:[#allocation2 + $0x44] sm:$0x1] 0
    %93 = vst [vmem:[#allocation2 + $0x48] sm:$0xf] 0
    %94 = vst [vmem:[#allocation2 + $0x4c] sm:$0x1] 0
    %95 = vst [vmem:[#allocation2 + $0x50] sm:$0xf] 0
    %96 = vst [vmem:[#allocation2 + $0x54] sm:$0x1] 0
    %97 = vst [vmem:[#allocation2 + $0x58] sm:$0xf] 0
    %98 = vst [vmem:[#allocation2 + $0x5c] sm:$0x1] 0
    %99 = vst [vmem:[#allocation2 + $0x60] sm:$0xf] 0
    %100 = vst [vmem:[#allocation2 + $0x64] sm:$0x1] 0
    %101 = vst [vmem:[#allocation2 + $0x68] sm:$0xf] 0
    %102 = vst [vmem:[#allocation2 + $0x6c] sm:$0x1] 0
    %103 = vst [vmem:[#allocation2 + $0x70] sm:$0xf] 0
    %104 = vst [vmem:[#allocation2 + $0x74] sm:$0x1] 0
    %105 = vst [vmem:[#allocation2 + $0x78] sm:$0xf] 0
    %106 = vst [vmem:[#allocation2 + $0x7c] sm:$0x1] 0
    %107 = vst [vmem:[#allocation2 + $0x80] sm:$0xf] 0
    %108 = vst [vmem:[#allocation2 + $0x84] sm:$0x1] 0
    %109 = vst [vmem:[#allocation2 + $0x88] sm:$0xf] 0
    %110 = vst [vmem:[#allocation2 + $0x8c] sm:$0x1] 0
    %111 = vst [vmem:[#allocation2 + $0x90] sm:$0xf] 0
    %112 = vst [vmem:[#allocation2 + $0x94] sm:$0x1] 0
    %113 = vst [vmem:[#allocation2 + $0x98] sm:$0xf] 0
    %114 = vst [vmem:[#allocation2 + $0x9c] sm:$0x1] 0
    %115 = vst [vmem:[#allocation3] sm:$0x7] 0
    %116 = vst [vmem:[#allocation3 + $0x4] sm:$0x7] 0
    %117 = vst [vmem:[#allocation3 + $0x8] sm:$0x7] 0
    %118 = vst [vmem:[#allocation3 + $0xc] sm:$0x7] 0
    %119 = vst [vmem:[#allocation3 + $0x10] sm:$0x7] 0
    %120 = vst [vmem:[#allocation3 + $0x14] sm:$0x7] 0
    %121 = vst [vmem:[#allocation3 + $0x18] sm:$0x7] 0
    %122 = vst [vmem:[#allocation3 + $0x1c] sm:$0x7] 0
    %123 = vst [vmem:[#allocation3 + $0x20] sm:$0x7] 0
    %124 = vst [vmem:[#allocation3 + $0x24] sm:$0x7] 0
    %125 = vst [vmem:[#allocation3 + $0x28] sm:$0x7] 0
    %126 = vst [vmem:[#allocation3 + $0x2c] sm:$0x7] 0
    %127 = vst [vmem:[#allocation4] sm:$0x3] 0
    %128 = vst [vmem:[#allocation4 + $0x2] sm:$0x3] 0
    %129 = vst [vmem:[#allocation4 + $0x4] sm:$0x3] 0
    %130 = vst [vmem:[#allocation4 + $0x6] sm:$0x3] 0
    %131 = vst [vmem:[#allocation4 + $0x8] sm:$0x3] 0
    %132 = vst [vmem:[#allocation4 + $0xa] sm:$0x3] 0
    %133 = vst [vmem:[#allocation4 + $0xc] sm:$0x3] 0
    %134 = vst [vmem:[#allocation4 + $0xe] sm:$0x3] 0
    %v135 = vld [vmem:[%s0] sm:$0xf]
    %v136 = vld [vmem:[%s0 + $0x4] sm:$0xf]
    %v137 = vld [vmem:[%s0 + $0x8] sm:$0xf]
    %v138 = vld [vmem:[%s0 + $0xc] sm:$0xf]
    %v139 = vld [vmem:[%s0 + $0x10] sm:$0xf]
    %v140 = vld [vmem:[%s0 + $0x14] sm:$0xf]
    %v141 = vld [vmem:[%s0 + $0x18] sm:$0xf]
    %v142 = vld [vmem:[%s0 + $0x1c] sm:$0xf]
    %v143 = vld [vmem:[%s0 + $0x20] sm:$0xf]
    %v144 = vld [vmem:[%s0 + $0x24] sm:$0xf]
    %v145 = vld [vmem:[%s0 + $0x28] sm:$0xf]
    %v146 = vld [vmem:[%s0 + $0x2c] sm:$0xf]
    %v147 = vld [vmem:[%s0 + $0x30] sm:$0xf]
    %v148 = vld [vmem:[%s0 + $0x34] sm:$0xf]
    %v149 = vld [vmem:[%s0 + $0x38] sm:$0xf]
    %v150 = vld [vmem:[%s0 + $0x3c] sm:$0xf]
    %v151 = vld [vmem:[%s0 + $0x40] sm:$0xf]
    %v152 = vld [vmem:[%s0 + $0x44] sm:$0xf]
    %v153 = vld [vmem:[%s0 + $0x48] sm:$0xf]
    %v154 = vld [vmem:[%s0 + $0x4c] sm:$0xf]
    %v155 = vld [vmem:[%s0 + $0x50] sm:$0xf]
    %v156 = vld [vmem:[%s0 + $0x54] sm:$0xf]
    %v157 = vld [vmem:[%s0 + $0x58] sm:$0xf]
    %v158 = vld [vmem:[%s0 + $0x5c] sm:$0xf]
    %v159 = vld [vmem:[%s0 + $0x60] sm:$0xf]
    %v160 = vld [vmem:[%s0 + $0x64] sm:$0xf]
    %v161 = vld [vmem:[%s0 + $0x68] sm:$0xf]
    %v162 = vld [vmem:[%s0 + $0x6c] sm:$0xf]
    %v163 = vld [vmem:[%s0 + $0x70] sm:$0xf]
    %v164 = vld [vmem:[%s0 + $0x74] sm:$0xf]
    %v165 = vld [vmem:[%s0 + $0x78] sm:$0xf]
    %v166 = vld [vmem:[%s0 + $0x7c] sm:$0xf]
    %v167 = vld [vmem:[%s0 + $0x80] sm:$0xf]
    %v168 = vld [vmem:[%s0 + $0x84] sm:$0xf]
    %v169 = vld [vmem:[%s0 + $0x88] sm:$0xf]
    %v170 = vld [vmem:[%s0 + $0x8c] sm:$0xf]
    %v171 = vld [vmem:[%s0 + $0x90] sm:$0xf]
    %v172 = vld [vmem:[%s0 + $0x94] sm:$0xf]
    %v173 = vld [vmem:[%s0 + $0x98] sm:$0xf]
    %v174 = vld [vmem:[%s0 + $0x9c] sm:$0xf]
    %v175 = vld [vmem:[%s0 + $0xa0] sm:$0xf]
    %v176 = vld [vmem:[%s0 + $0xa4] sm:$0xf]
    %v177 = vld [vmem:[%s0 + $0xa8] sm:$0xf]
    %v178 = vld [vmem:[%s0 + $0xac] sm:$0xf]
    %v179 = vld [vmem:[%s0 + $0xb0] sm:$0xf]
    %v180 = vld [vmem:[%s0 + $0xb4] sm:$0xf]
    %v181 = vld [vmem:[%s0 + $0xb8] sm:$0xf]
    %v182 = vld [vmem:[%s0 + $0xbc] sm:$0xf]
    %v183 = vld [vmem:[%s0 + $0xc0] sm:$0xf]
    %v184 = vld [vmem:[%s0 + $0xc4] sm:$0xf]
    %v185 = vld [vmem:[%s0 + $0xc8] sm:$0xf]
    %v186 = vld [vmem:[%s0 + $0xcc] sm:$0xf]
    %v187 = vld [vmem:[%s0 + $0xd0] sm:$0xf]
    %v188 = vld [vmem:[%s0 + $0xd4] sm:$0xf]
    %v189 = vld [vmem:[%s0 + $0xd8] sm:$0xf]
    %v190 = vld [vmem:[%s0 + $0xdc] sm:$0xf]
    %v191 = vld [vmem:[%s0 + $0xe0] sm:$0xf]
    %v192 = vld [vmem:[%s0 + $0xe4] sm:$0xf]
    %v193 = vld [vmem:[%s0 + $0xe8] sm:$0xf]
    %v194 = vld [vmem:[%s0 + $0xec] sm:$0xf]
    %v195 = vld [vmem:[%s0 + $0xf0] sm:$0xf]
    %v196 = vld [vmem:[%s0 + $0xf4] sm:$0xf]
    %v197 = vld [vmem:[%s0 + $0xf8] sm:$0xf]
    %v198 = vld [vmem:[%s0 + $0xfc] sm:$0xf]
    %v199 = vld [vmem:[%s1] sm:$0xf]
    %v200 = vld [vmem:[%s1 + $0x4] sm:$0xf]
    %v201 = vld [vmem:[%s1 + $0x8] sm:$0xf]
    %v202 = vld [vmem:[%s1 + $0xc] sm:$0xf]
    %v203 = vld [vmem:[%s1 + $0x10] sm:$0xf]
    %v204 = vld [vmem:[%s1 + $0x14] sm:$0xf]
    %v205 = vld [vmem:[%s1 + $0x18] sm:$0xf]
    %v206 = vld [vmem:[%s1 + $0x1c] sm:$0xf]
    %v207 = vld [vmem:[%s1 + $0x20] sm:$0xf]
    %v208 = vld [vmem:[%s1 + $0x24] sm:$0xf]
    %v209 = vld [vmem:[%s1 + $0x28] sm:$0xf]
    %v210 = vld [vmem:[%s1 + $0x2c] sm:$0xf]
    %v211 = vld [vmem:[%s1 + $0x30] sm:$0xf]
    %v212 = vld [vmem:[%s1 + $0x34] sm:$0xf]
    %v213 = vld [vmem:[%s1 + $0x38] sm:$0xf]
    %v214 = vld [vmem:[%s1 + $0x3c] sm:$0xf]
    %v215 = vld [vmem:[%s2] sm:$0x1]
    %v217 = vlaneseq
    %v218 = vshrl.u32 %v217, 7
    %v219 = vsub.s32 0, %v218
    %v220 = vrot.slane %v215, %v219
    %v286 = vunpack.c.l.b16 %v135
    %v287 = vunpack.c.l.b16 %v136
    %v288 = vunpack.c.l.b16 %v137
    %v289 = vunpack.c.l.b16 %v138
    %v290 = vunpack.c.l.b16 %v139
    %v291 = vunpack.c.l.b16 %v140
    %v292 = vunpack.c.l.b16 %v141
    %v293 = vunpack.c.l.b16 %v142
    %v294 = vunpack.c.l.b16 %v143
    %v295 = vunpack.c.l.b16 %v144
    %v296 = vunpack.c.l.b16 %v145
    %v297 = vunpack.c.l.b16 %v146
    %v298 = vunpack.c.l.b16 %v147
    %v299 = vunpack.c.l.b16 %v148
    %v300 = vunpack.c.l.b16 %v149
    %v301 = vunpack.c.l.b16 %v150
    %v302 = vunpack.c.l.b16 %v151
    %v303 = vunpack.c.l.b16 %v152
    %v304 = vunpack.c.l.b16 %v153
    %v305 = vunpack.c.l.b16 %v154
    %v306 = vunpack.c.l.b16 %v155
    %v307 = vunpack.c.l.b16 %v156
    %v308 = vunpack.c.l.b16 %v157
    %v309 = vunpack.c.l.b16 %v158
    %v310 = vunpack.c.l.b16 %v159
    %v311 = vunpack.c.l.b16 %v160
    %v312 = vunpack.c.l.b16 %v161
    %v313 = vunpack.c.l.b16 %v162
    %v314 = vunpack.c.l.b16 %v163
    %v315 = vunpack.c.l.b16 %v164
    %v316 = vunpack.c.l.b16 %v165
    %v317 = vunpack.c.l.b16 %v166
    %v318 = vunpack.c.l.b16 %v167
    %v319 = vunpack.c.l.b16 %v168
    %v320 = vunpack.c.l.b16 %v169
    %v321 = vunpack.c.l.b16 %v170
    %v322 = vunpack.c.l.b16 %v171
    %v323 = vunpack.c.l.b16 %v172
    %v324 = vunpack.c.l.b16 %v173
    %v325 = vunpack.c.l.b16 %v174
    %v326 = vunpack.c.l.b16 %v175
    %v327 = vunpack.c.l.b16 %v176
    %v328 = vunpack.c.l.b16 %v177
    %v329 = vunpack.c.l.b16 %v178
    %v330 = vunpack.c.l.b16 %v179
    %v331 = vunpack.c.l.b16 %v180
    %v332 = vunpack.c.l.b16 %v181
    %v333 = vunpack.c.l.b16 %v182
    %v334 = vunpack.c.l.b16 %v183
    %v335 = vunpack.c.l.b16 %v184
    %v336 = vunpack.c.l.b16 %v185
    %v337 = vunpack.c.l.b16 %v186
    %v338 = vunpack.c.l.b16 %v187
    %v339 = vunpack.c.l.b16 %v188
    %v340 = vunpack.c.l.b16 %v189
    %v341 = vunpack.c.l.b16 %v190
    %v342 = vunpack.c.l.b16 %v191
    %v343 = vunpack.c.l.b16 %v192
    %v344 = vunpack.c.l.b16 %v193
    %v345 = vunpack.c.l.b16 %v194
    %v346 = vunpack.c.l.b16 %v195
    %v347 = vunpack.c.l.b16 %v196
    %v348 = vunpack.c.l.b16 %v197
    %v349 = vunpack.c.l.b16 %v198
    %v350 = vpack.c.b16 %v287, %v286
    %v351 = vpack.c.b16 %v289, %v288
    %v352 = vpack.c.b16 %v291, %v290
    %v353 = vpack.c.b16 %v293, %v292
    %v354 = vpack.c.b16 %v295, %v294
    %v355 = vpack.c.b16 %v297, %v296
    %v356 = vpack.c.b16 %v299, %v298
    %v357 = vpack.c.b16 %v301, %v300
    %v358 = vpack.c.b16 %v303, %v302
    %v359 = vpack.c.b16 %v305, %v304
    %v360 = vpack.c.b16 %v307, %v306
    %v361 = vpack.c.b16 %v309, %v308
    %v362 = vpack.c.b16 %v311, %v310
    %v363 = vpack.c.b16 %v313, %v312
    %v364 = vpack.c.b16 %v315, %v314
    %v365 = vpack.c.b16 %v317, %v316
    %v366 = vpack.c.b16 %v319, %v318
    %v367 = vpack.c.b16 %v321, %v320
    %v368 = vpack.c.b16 %v323, %v322
    %v369 = vpack.c.b16 %v325, %v324
    %v370 = vpack.c.b16 %v327, %v326
    %v371 = vpack.c.b16 %v329, %v328
    %v372 = vpack.c.b16 %v331, %v330
    %v373 = vpack.c.b16 %v333, %v332
    %v374 = vpack.c.b16 %v335, %v334
    %v375 = vpack.c.b16 %v337, %v336
    %v376 = vpack.c.b16 %v339, %v338
    %v377 = vpack.c.b16 %v341, %v340
    %v378 = vpack.c.b16 %v343, %v342
    %v379 = vpack.c.b16 %v345, %v344
    %v380 = vpack.c.b16 %v347, %v346
    %v381 = vpack.c.b16 %v349, %v348
    %v430 = vunpack.c.l.b16 %v199
    %v431 = vunpack.c.l.b16 %v200
    %v432 = vunpack.c.l.b16 %v201
    %v433 = vunpack.c.l.b16 %v202
    %v434 = vunpack.c.l.b16 %v203
    %v435 = vunpack.c.l.b16 %v204
    %v436 = vunpack.c.l.b16 %v205
    %v437 = vunpack.c.l.b16 %v206
    %v438 = vunpack.c.l.b16 %v207
    %v439 = vunpack.c.l.b16 %v208
    %v440 = vunpack.c.l.b16 %v209
    %v441 = vunpack.c.l.b16 %v210
    %v442 = vunpack.c.l.b16 %v211
    %v443 = vunpack.c.l.b16 %v212
    %v444 = vunpack.c.l.b16 %v213
    %v445 = vunpack.c.l.b16 %v214
    %v446 = vpack.c.b16 %v431, %v430
    %v447 = vpack.c.b16 %v433, %v432
    %v448 = vpack.c.b16 %v435, %v434
    %v449 = vpack.c.b16 %v437, %v436
    %v450 = vpack.c.b16 %v439, %v438
    %v451 = vpack.c.b16 %v441, %v440
    %v452 = vpack.c.b16 %v443, %v442
    %v453 = vpack.c.b16 %v445, %v444
    %462 = vmatprep.subr.bf16.mxu0 0
    %463 = vmatpush1.bf16.msra.mxu0 %v453
    %464 = vmatprep.subr.bf16.mxu0 0
    %465 = vmatpush1.bf16.msra.mxu0 %v452
    %466 = vmatprep.subr.bf16.mxu0 0
    %467 = vmatpush1.bf16.msra.mxu0 %v451
    %468 = vmatprep.subr.bf16.mxu0 0
    %469 = vmatpush1.bf16.msra.mxu0 %v450
    %470 = vmatprep.subr.bf16.mxu0 0
    %471 = vmatpush1.bf16.msra.mxu0 %v449
    %472 = vmatprep.subr.bf16.mxu0 0
    %473 = vmatpush1.bf16.msra.mxu0 %v448
    %474 = vmatprep.subr.bf16.mxu0 0
    %475 = vmatpush1.bf16.msra.mxu0 %v447
    %476 = vmatprep.subr.bf16.mxu0 0
    %477 = vmatpush1.bf16.msra.mxu0 %v446
    %478 = vmatprep.subr.bf16.mxu0 0
    %479 = vmatpush2.bf16.msra.mxu0 0
    %480 = vmatprep.subr.bf16.mxu0 0
    %481 = vmatpush2.bf16.msra.mxu0 0
    %482 = vmatprep.subr.bf16.mxu0 0
    %483 = vmatpush2.bf16.msra.mxu0 0
    %484 = vmatprep.subr.bf16.mxu0 0
    %485 = vmatpush2.bf16.msra.mxu0 0
    %486 = vmatprep.subr.bf16.mxu0 0
    %487 = vmatpush2.bf16.msra.mxu0 0
    %488 = vmatprep.subr.bf16.mxu0 0
    %489 = vmatpush2.bf16.msra.mxu0 0
    %490 = vmatprep.subr.bf16.mxu0 0
    %491 = vmatpush2.bf16.msra.mxu0 0
    %492 = vmatprep.subr.bf16.mxu0 0
    %493 = vmatpush2.bf16.msra.mxu0 0
    %494 = vmatprep.mubr.bf16.mxu0 0
    %495 = vmatmul.mubr.bf16.gmra.mxu0 %v350
    %v496 = vpop.f32.mrf.mxu0
    %v497 = vadd.f32 %v220, %v496
    %v498 = vpop.f32.mrf.mxu0
    %v499 = vpop.f32.mrf.mxu0
    %v500 = vadd.f32 %v220, %v499
    %v501 = vpop.f32.mrf.mxu0
    %502 = vmatprep.mubr.bf16.mxu0 0
    %503 = vmatmul.mubr.bf16.gmra.mxu0 %v351
    %v504 = vpop.f32.mrf.mxu0
    %v505 = vadd.f32 %v220, %v504
    %v506 = vpop.f32.mrf.mxu0
    %v507 = vpop.f32.mrf.mxu0
    %v508 = vadd.f32 %v220, %v507
    %v509 = vpop.f32.mrf.mxu0
    %510 = vmatprep.mubr.bf16.mxu0 0
    %511 = vmatmul.mubr.bf16.gmra.mxu0 %v352
    %v512 = vpop.f32.mrf.mxu0
    %v513 = vadd.f32 %v220, %v512
    %v514 = vpop.f32.mrf.mxu0
    %v515 = vpop.f32.mrf.mxu0
    %v516 = vadd.f32 %v220, %v515
    %v517 = vpop.f32.mrf.mxu0
    %518 = vmatprep.mubr.bf16.mxu0 0
    %519 = vmatmul.mubr.bf16.gmra.mxu0 %v353
    %v520 = vpop.f32.mrf.mxu0
    %v521 = vadd.f32 %v220, %v520
    %v522 = vpop.f32.mrf.mxu0
    %v523 = vpop.f32.mrf.mxu0
    %v524 = vadd.f32 %v220, %v523
    %v525 = vpop.f32.mrf.mxu0
    %526 = vmatprep.mubr.bf16.mxu0 0
    %527 = vmatmul.mubr.bf16.gmra.mxu0 %v354
    %v528 = vpop.f32.mrf.mxu0
    %v529 = vadd.f32 %v220, %v528
    %v530 = vpop.f32.mrf.mxu0
    %v531 = vpop.f32.mrf.mxu0
    %v532 = vadd.f32 %v220, %v531
    %v533 = vpop.f32.mrf.mxu0
    %534 = vmatprep.mubr.bf16.mxu0 0
    %535 = vmatmul.mubr.bf16.gmra.mxu0 %v355
    %v536 = vpop.f32.mrf.mxu0
    %v537 = vadd.f32 %v220, %v536
    %v538 = vpop.f32.mrf.mxu0
    %v539 = vpop.f32.mrf.mxu0
    %v540 = vadd.f32 %v220, %v539
    %v541 = vpop.f32.mrf.mxu0
    %542 = vmatprep.mubr.bf16.mxu0 0
    %543 = vmatmul.mubr.bf16.gmra.mxu0 %v356
    %v544 = vpop.f32.mrf.mxu0
    %v545 = vadd.f32 %v220, %v544
    %v546 = vpop.f32.mrf.mxu0
    %v547 = vpop.f32.mrf.mxu0
    %v548 = vadd.f32 %v220, %v547
    %v549 = vpop.f32.mrf.mxu0
    %550 = vmatprep.mubr.bf16.mxu0 0
    %551 = vmatmul.mubr.bf16.gmra.mxu0 %v357
    %v552 = vpop.f32.mrf.mxu0
    %v553 = vadd.f32 %v220, %v552
    %v554 = vpop.f32.mrf.mxu0
    %v555 = vpop.f32.mrf.mxu0
    %v556 = vadd.f32 %v220, %v555
    %v557 = vpop.f32.mrf.mxu0
    %558 = vmatprep.mubr.bf16.mxu0 0
    %559 = vmatmul.mubr.bf16.gmra.mxu0 %v358
    %v560 = vpop.f32.mrf.mxu0
    %v561 = vadd.f32 %v220, %v560
    %v562 = vpop.f32.mrf.mxu0
    %v563 = vpop.f32.mrf.mxu0
    %v564 = vadd.f32 %v220, %v563
    %v565 = vpop.f32.mrf.mxu0
    %566 = vmatprep.mubr.bf16.mxu0 0
    %567 = vmatmul.mubr.bf16.gmra.mxu0 %v359
    %v568 = vpop.f32.mrf.mxu0
    %v569 = vadd.f32 %v220, %v568
    %v570 = vpop.f32.mrf.mxu0
    %v571 = vpop.f32.mrf.mxu0
    %v572 = vadd.f32 %v220, %v571
    %v573 = vpop.f32.mrf.mxu0
    %574 = vmatprep.mubr.bf16.mxu0 0
    %575 = vmatmul.mubr.bf16.gmra.mxu0 %v360
    %v576 = vpop.f32.mrf.mxu0
    %v577 = vadd.f32 %v220, %v576
    %v578 = vpop.f32.mrf.mxu0
    %v579 = vpop.f32.mrf.mxu0
    %v580 = vadd.f32 %v220, %v579
    %v581 = vpop.f32.mrf.mxu0
    %582 = vmatprep.mubr.bf16.mxu0 0
    %583 = vmatmul.mubr.bf16.gmra.mxu0 %v361
    %v584 = vpop.f32.mrf.mxu0
    %v585 = vadd.f32 %v220, %v584
    %v586 = vpop.f32.mrf.mxu0
    %v587 = vpop.f32.mrf.mxu0
    %v588 = vadd.f32 %v220, %v587
    %v589 = vpop.f32.mrf.mxu0
    %590 = vmatprep.mubr.bf16.mxu0 0
    %591 = vmatmul.mubr.bf16.gmra.mxu0 %v362
    %v592 = vpop.f32.mrf.mxu0
    %v593 = vadd.f32 %v220, %v592
    %v594 = vpop.f32.mrf.mxu0
    %v595 = vpop.f32.mrf.mxu0
    %v596 = vadd.f32 %v220, %v595
    %v597 = vpop.f32.mrf.mxu0
    %598 = vmatprep.mubr.bf16.mxu0 0
    %599 = vmatmul.mubr.bf16.gmra.mxu0 %v363
    %v600 = vpop.f32.mrf.mxu0
    %v601 = vadd.f32 %v220, %v600
    %v602 = vpop.f32.mrf.mxu0
    %v603 = vpop.f32.mrf.mxu0
    %v604 = vadd.f32 %v220, %v603
    %v605 = vpop.f32.mrf.mxu0
    %606 = vmatprep.mubr.bf16.mxu0 0
    %607 = vmatmul.mubr.bf16.gmra.mxu0 %v364
    %v608 = vpop.f32.mrf.mxu0
    %v609 = vadd.f32 %v220, %v608
    %v610 = vpop.f32.mrf.mxu0
    %v611 = vpop.f32.mrf.mxu0
    %v612 = vadd.f32 %v220, %v611
    %v613 = vpop.f32.mrf.mxu0
    %614 = vmatprep.mubr.bf16.mxu0 0
    %615 = vmatmul.mubr.bf16.gmra.mxu0 %v365
    %v616 = vpop.f32.mrf.mxu0
    %v617 = vadd.f32 %v220, %v616
    %v618 = vpop.f32.mrf.mxu0
    %v619 = vpop.f32.mrf.mxu0
    %v620 = vadd.f32 %v220, %v619
    %v621 = vpop.f32.mrf.mxu0
    %622 = vmatprep.mubr.bf16.mxu0 0
    %623 = vmatmul.mubr.bf16.gmra.mxu0 %v366
    %v624 = vpop.f32.mrf.mxu0
    %v625 = vadd.f32 %v220, %v624
    %v626 = vpop.f32.mrf.mxu0
    %v627 = vpop.f32.mrf.mxu0
    %v628 = vadd.f32 %v220, %v627
    %v629 = vpop.f32.mrf.mxu0
    %630 = vmatprep.mubr.bf16.mxu0 0
    %631 = vmatmul.mubr.bf16.gmra.mxu0 %v367
    %v632 = vpop.f32.mrf.mxu0
    %v633 = vadd.f32 %v220, %v632
    %v634 = vpop.f32.mrf.mxu0
    %v635 = vpop.f32.mrf.mxu0
    %v636 = vadd.f32 %v220, %v635
    %v637 = vpop.f32.mrf.mxu0
    %638 = vmatprep.mubr.bf16.mxu0 0
    %639 = vmatmul.mubr.bf16.gmra.mxu0 %v368
    %v640 = vpop.f32.mrf.mxu0
    %v641 = vadd.f32 %v220, %v640
    %v642 = vpop.f32.mrf.mxu0
    %v643 = vpop.f32.mrf.mxu0
    %v644 = vadd.f32 %v220, %v643
    %v645 = vpop.f32.mrf.mxu0
    %646 = vmatprep.mubr.bf16.mxu0 0
    %647 = vmatmul.mubr.bf16.gmra.mxu0 %v369
    %v648 = vpop.f32.mrf.mxu0
    %v649 = vadd.f32 %v220, %v648
    %v650 = vpop.f32.mrf.mxu0
    %v651 = vpop.f32.mrf.mxu0
    %v652 = vadd.f32 %v220, %v651
    %v653 = vpop.f32.mrf.mxu0
    %654 = vmatprep.mubr.bf16.mxu0 0
    %655 = vmatmul.mubr.bf16.gmra.mxu0 %v370
    %v656 = vpop.f32.mrf.mxu0
    %v657 = vadd.f32 %v220, %v656
    %v658 = vpop.f32.mrf.mxu0
    %v659 = vpop.f32.mrf.mxu0
    %v660 = vadd.f32 %v220, %v659
    %v661 = vpop.f32.mrf.mxu0
    %662 = vmatprep.mubr.bf16.mxu0 0
    %663 = vmatmul.mubr.bf16.gmra.mxu0 %v371
    %v664 = vpop.f32.mrf.mxu0
    %v665 = vadd.f32 %v220, %v664
    %v666 = vpop.f32.mrf.mxu0
    %v667 = vpop.f32.mrf.mxu0
    %v668 = vadd.f32 %v220, %v667
    %v669 = vpop.f32.mrf.mxu0
    %670 = vmatprep.mubr.bf16.mxu0 0
    %671 = vmatmul.mubr.bf16.gmra.mxu0 %v372
    %v672 = vpop.f32.mrf.mxu0
    %v673 = vadd.f32 %v220, %v672
    %v674 = vpop.f32.mrf.mxu0
    %v675 = vpop.f32.mrf.mxu0
    %v676 = vadd.f32 %v220, %v675
    %v677 = vpop.f32.mrf.mxu0
    %678 = vmatprep.mubr.bf16.mxu0 0
    %679 = vmatmul.mubr.bf16.gmra.mxu0 %v373
    %v680 = vpop.f32.mrf.mxu0
    %v681 = vadd.f32 %v220, %v680
    %v682 = vpop.f32.mrf.mxu0
    %v683 = vpop.f32.mrf.mxu0
    %v684 = vadd.f32 %v220, %v683
    %v685 = vpop.f32.mrf.mxu0
    %686 = vmatprep.mubr.bf16.mxu0 0
    %687 = vmatmul.mubr.bf16.gmra.mxu0 %v374
    %v688 = vpop.f32.mrf.mxu0
    %v689 = vadd.f32 %v220, %v688
    %v690 = vpop.f32.mrf.mxu0
    %v691 = vpop.f32.mrf.mxu0
    %v692 = vadd.f32 %v220, %v691
    %v693 = vpop.f32.mrf.mxu0
    %694 = vmatprep.mubr.bf16.mxu0 0
    %695 = vmatmul.mubr.bf16.gmra.mxu0 %v375
    %v696 = vpop.f32.mrf.mxu0
    %v697 = vadd.f32 %v220, %v696
    %v698 = vpop.f32.mrf.mxu0
    %v699 = vpop.f32.mrf.mxu0
    %v700 = vadd.f32 %v220, %v699
    %v701 = vpop.f32.mrf.mxu0
    %702 = vmatprep.mubr.bf16.mxu0 0
    %703 = vmatmul.mubr.bf16.gmra.mxu0 %v376
    %v704 = vpop.f32.mrf.mxu0
    %v705 = vadd.f32 %v220, %v704
    %v706 = vpop.f32.mrf.mxu0
    %v707 = vpop.f32.mrf.mxu0
    %v708 = vadd.f32 %v220, %v707
    %v709 = vpop.f32.mrf.mxu0
    %710 = vmatprep.mubr.bf16.mxu0 0
    %711 = vmatmul.mubr.bf16.gmra.mxu0 %v377
    %v712 = vpop.f32.mrf.mxu0
    %v713 = vadd.f32 %v220, %v712
    %v714 = vpop.f32.mrf.mxu0
    %v715 = vpop.f32.mrf.mxu0
    %v716 = vadd.f32 %v220, %v715
    %v717 = vpop.f32.mrf.mxu0
    %718 = vmatprep.mubr.bf16.mxu0 0
    %719 = vmatmul.mubr.bf16.gmra.mxu0 %v378
    %v720 = vpop.f32.mrf.mxu0
    %v721 = vadd.f32 %v220, %v720
    %v722 = vpop.f32.mrf.mxu0
    %v723 = vpop.f32.mrf.mxu0
    %v724 = vadd.f32 %v220, %v723
    %v725 = vpop.f32.mrf.mxu0
    %726 = vmatprep.mubr.bf16.mxu0 0
    %727 = vmatmul.mubr.bf16.gmra.mxu0 %v379
    %v728 = vpop.f32.mrf.mxu0
    %v729 = vadd.f32 %v220, %v728
    %v730 = vpop.f32.mrf.mxu0
    %v731 = vpop.f32.mrf.mxu0
    %v732 = vadd.f32 %v220, %v731
    %v733 = vpop.f32.mrf.mxu0
    %734 = vmatprep.mubr.bf16.mxu0 0
    %735 = vmatmul.mubr.bf16.gmra.mxu0 %v380
    %v736 = vpop.f32.mrf.mxu0
    %v737 = vadd.f32 %v220, %v736
    %v738 = vpop.f32.mrf.mxu0
    %v739 = vpop.f32.mrf.mxu0
    %v740 = vadd.f32 %v220, %v739
    %v741 = vpop.f32.mrf.mxu0
    %742 = vmatprep.mubr.bf16.mxu0 0
    %743 = vmatmul.mubr.bf16.gmra.mxu0 %v381
    %v744 = vpop.f32.mrf.mxu0
    %v745 = vadd.f32 %v220, %v744
    %v746 = vpop.f32.mrf.mxu0
    %v747 = vpop.f32.mrf.mxu0
    %v748 = vadd.f32 %v220, %v747
    %v749 = vpop.f32.mrf.mxu0
    %750 = vdwg.mxu0
    %v751 = vmax.f32 %v497, 0.0
    %v752 = vmax.f32 %v500, 0.0
    %v753 = vmax.f32 %v505, 0.0
    %v754 = vmax.f32 %v508, 0.0
    %v755 = vmax.f32 %v513, 0.0
    %v756 = vmax.f32 %v516, 0.0
    %v757 = vmax.f32 %v521, 0.0
    %v758 = vmax.f32 %v524, 0.0
    %v759 = vmax.f32 %v529, 0.0
    %v760 = vmax.f32 %v532, 0.0
    %v761 = vmax.f32 %v537, 0.0
    %v762 = vmax.f32 %v540, 0.0
    %v763 = vmax.f32 %v545, 0.0
    %v764 = vmax.f32 %v548, 0.0
    %v765 = vmax.f32 %v553, 0.0
    %v766 = vmax.f32 %v556, 0.0
    %v767 = vmax.f32 %v561, 0.0
    %v768 = vmax.f32 %v564, 0.0
    %v769 = vmax.f32 %v569, 0.0
    %v770 = vmax.f32 %v572, 0.0
    %v771 = vmax.f32 %v577, 0.0
    %v772 = vmax.f32 %v580, 0.0
    %v773 = vmax.f32 %v585, 0.0
    %v774 = vmax.f32 %v588, 0.0
    %v775 = vmax.f32 %v593, 0.0
    %v776 = vmax.f32 %v596, 0.0
    %v777 = vmax.f32 %v601, 0.0
    %v778 = vmax.f32 %v604, 0.0
    %v779 = vmax.f32 %v609, 0.0
    %v780 = vmax.f32 %v612, 0.0
    %v781 = vmax.f32 %v617, 0.0
    %v782 = vmax.f32 %v620, 0.0
    %v783 = vmax.f32 %v625, 0.0
    %v784 = vmax.f32 %v628, 0.0
    %v785 = vmax.f32 %v633, 0.0
    %v786 = vmax.f32 %v636, 0.0
    %v787 = vmax.f32 %v641, 0.0
    %v788 = vmax.f32 %v644, 0.0
    %v789 = vmax.f32 %v649, 0.0
    %v790 = vmax.f32 %v652, 0.0
    %v791 = vmax.f32 %v657, 0.0
    %v792 = vmax.f32 %v660, 0.0
    %v793 = vmax.f32 %v665, 0.0
    %v794 = vmax.f32 %v668, 0.0
    %v795 = vmax.f32 %v673, 0.0
    %v796 = vmax.f32 %v676, 0.0
    %v797 = vmax.f32 %v681, 0.0
    %v798 = vmax.f32 %v684, 0.0
    %v799 = vmax.f32 %v689, 0.0
    %v800 = vmax.f32 %v692, 0.0
    %v801 = vmax.f32 %v697, 0.0
    %v802 = vmax.f32 %v700, 0.0
    %v803 = vmax.f32 %v705, 0.0
    %v804 = vmax.f32 %v708, 0.0
    %v805 = vmax.f32 %v713, 0.0
    %v806 = vmax.f32 %v716, 0.0
    %v807 = vmax.f32 %v721, 0.0
    %v808 = vmax.f32 %v724, 0.0
    %v809 = vmax.f32 %v729, 0.0
    %v810 = vmax.f32 %v732, 0.0
    %v811 = vmax.f32 %v737, 0.0
    %v812 = vmax.f32 %v740, 0.0
    %v813 = vmax.f32 %v745, 0.0
    %v814 = vmax.f32 %v748, 0.0
    %815 = vst [vmem:[#allocation9] sm:$0xff] %v751
    %816 = vst [vmem:[#allocation9 + $0x8] sm:$0xff] %v752
    %817 = vst [vmem:[#allocation9 + $0x10] sm:$0xff] %v753
    %818 = vst [vmem:[#allocation9 + $0x18] sm:$0xff] %v754
    %819 = vst [vmem:[#allocation9 + $0x20] sm:$0xff] %v755
    %820 = vst [vmem:[#allocation9 + $0x28] sm:$0xff] %v756
    %821 = vst [vmem:[#allocation9 + $0x30] sm:$0xff] %v757
    %822 = vst [vmem:[#allocation9 + $0x38] sm:$0xff] %v758
    %823 = vst [vmem:[#allocation9 + $0x40] sm:$0xff] %v759
    %824 = vst [vmem:[#allocation9 + $0x48] sm:$0xff] %v760
    %825 = vst [vmem:[#allocation9 + $0x50] sm:$0xff] %v761
    %826 = vst [vmem:[#allocation9 + $0x58] sm:$0xff] %v762
    %827 = vst [vmem:[#allocation9 + $0x60] sm:$0xff] %v763
    %828 = vst [vmem:[#allocation9 + $0x68] sm:$0xff] %v764
    %829 = vst [vmem:[#allocation9 + $0x70] sm:$0xff] %v765
    %830 = vst [vmem:[#allocation9 + $0x78] sm:$0xff] %v766
    %831 = vst [vmem:[#allocation9 + $0x80] sm:$0xff] %v767
    %832 = vst [vmem:[#allocation9 + $0x88] sm:$0xff] %v768
    %833 = vst [vmem:[#allocation9 + $0x90] sm:$0xff] %v769
    %834 = vst [vmem:[#allocation9 + $0x98] sm:$0xff] %v770
    %835 = vst [vmem:[#allocation9 + $0xa0] sm:$0xff] %v771
    %836 = vst [vmem:[#allocation9 + $0xa8] sm:$0xff] %v772
    %837 = vst [vmem:[#allocation9 + $0xb0] sm:$0xff] %v773
    %838 = vst [vmem:[#allocation9 + $0xb8] sm:$0xff] %v774
    %839 = vst [vmem:[#allocation9 + $0xc0] sm:$0xff] %v775
    %840 = vst [vmem:[#allocation9 + $0xc8] sm:$0xff] %v776
    %841 = vst [vmem:[#allocation9 + $0xd0] sm:$0xff] %v777
    %842 = vst [vmem:[#allocation9 + $0xd8] sm:$0xff] %v778
    %843 = vst [vmem:[#allocation9 + $0xe0] sm:$0xff] %v779
    %844 = vst [vmem:[#allocation9 + $0xe8] sm:$0xff] %v780
    %845 = vst [vmem:[#allocation9 + $0xf0] sm:$0xff] %v781
    %846 = vst [vmem:[#allocation9 + $0xf8] sm:$0xff] %v782
    %847 = vst [vmem:[#allocation9 + $0x100] sm:$0xff] %v783
    %848 = vst [vmem:[#allocation9 + $0x108] sm:$0xff] %v784
    %849 = vst [vmem:[#allocation9 + $0x110] sm:$0xff] %v785
    %850 = vst [vmem:[#allocation9 + $0x118] sm:$0xff] %v786
    %851 = vst [vmem:[#allocation9 + $0x120] sm:$0xff] %v787
    %852 = vst [vmem:[#allocation9 + $0x128] sm:$0xff] %v788
    %853 = vst [vmem:[#allocation9 + $0x130] sm:$0xff] %v789
    %854 = vst [vmem:[#allocation9 + $0x138] sm:$0xff] %v790
    %855 = vst [vmem:[#allocation9 + $0x140] sm:$0xff] %v791
    %856 = vst [vmem:[#allocation9 + $0x148] sm:$0xff] %v792
    %857 = vst [vmem:[#allocation9 + $0x150] sm:$0xff] %v793
    %858 = vst [vmem:[#allocation9 + $0x158] sm:$0xff] %v794
    %859 = vst [vmem:[#allocation9 + $0x160] sm:$0xff] %v795
    %860 = vst [vmem:[#allocation9 + $0x168] sm:$0xff] %v796
    %861 = vst [vmem:[#allocation9 + $0x170] sm:$0xff] %v797
    %862 = vst [vmem:[#allocation9 + $0x178] sm:$0xff] %v798
    %863 = vst [vmem:[#allocation9 + $0x180] sm:$0xff] %v799
    %864 = vst [vmem:[#allocation9 + $0x188] sm:$0xff] %v800
    %865 = vst [vmem:[#allocation9 + $0x190] sm:$0xff] %v801
    %866 = vst [vmem:[#allocation9 + $0x198] sm:$0xff] %v802
    %867 = vst [vmem:[#allocation9 + $0x1a0] sm:$0xff] %v803
    %868 = vst [vmem:[#allocation9 + $0x1a8] sm:$0xff] %v804
    %869 = vst [vmem:[#allocation9 + $0x1b0] sm:$0xff] %v805
    %870 = vst [vmem:[#allocation9 + $0x1b8] sm:$0xff] %v806
    %871 = vst [vmem:[#allocation9 + $0x1c0] sm:$0xff] %v807
    %872 = vst [vmem:[#allocation9 + $0x1c8] sm:$0xff] %v808
    %873 = vst [vmem:[#allocation9 + $0x1d0] sm:$0xff] %v809
    %874 = vst [vmem:[#allocation9 + $0x1d8] sm:$0xff] %v810
    %875 = vst [vmem:[#allocation9 + $0x1e0] sm:$0xff] %v811
    %876 = vst [vmem:[#allocation9 + $0x1e8] sm:$0xff] %v812
    %877 = vst [vmem:[#allocation9 + $0x1f0] sm:$0xff] %v813
    %878 = vst [vmem:[#allocation9 + $0x1f8] sm:$0xff] %v814
    %v879 = vld [vmem:[#allocation9] ss:$2 sm:$0xff]
    %s880 = scalar_lea.vmem [#allocation9], 1
    %v881 = vld [vmem:[%s880] ss:$2 sm:$0xff]
    %v882 = vmax.f32 %v879, %v881
    %s883 = scalar_lea.vmem [#allocation9], 16
    %v884 = vld [vmem:[%s883] ss:$2 sm:$0xff]
    %s885 = scalar_lea.vmem [#allocation9], 17
    %v886 = vld [vmem:[%s885] ss:$2 sm:$0xff]
    %v887 = vmax.f32 %v884, %v886
    %v888 = vmax.f32 %v882, %v887
    %v889 = vpack.c.bf16 %v888, %v888
    %v891 = vunpack.c.l.b16 %v889
    %v892 = vpack.c.b16 %v891, %v891
    %v894 = vshrl.u32 %v892, 16
    %v896 = vrot.slane %v894, 7
    %v897 = vshll.u32 %v892, 16
    %v899 = vor.u32 %v896, %v897
    %v900 = vrot.slane %v896, 4
    %s903 = scalar_lea.vmem [#allocation2], 8
    %vm904 = vcmask 1043456
    %vm905 = vsmask.f32 7938
    %vm906 = vmand %vm904, %vm905
    %v907 = vld [vmem:[%s903] sm:$0xf]
    %v908 = vsel %vm906, %v899, %v907
    %909 = vst [vmem:[%s903] sm:$0xf] %v908
    %vm910 = vcmask 1040384
    %vm911 = vsmask.f32 256
    %vm912 = vmand %vm910, %vm911
    %v913 = vld [vmem:[%s903 + $0x4] sm:$0x1]
    %v914 = vsel %vm912, %v900, %v913
    %915 = vst [vmem:[%s903 + $0x4] sm:$0x1] %v914
    %s916 = scalar_lea.vmem [#allocation9], 32
    %v917 = vld [vmem:[%s916] ss:$2 sm:$0xff]
    %s918 = scalar_lea.vmem [#allocation9], 33
    %v919 = vld [vmem:[%s918] ss:$2 sm:$0xff]
    %v920 = vmax.f32 %v917, %v919
    %s921 = scalar_lea.vmem [#allocation9], 48
    %v922 = vld [vmem:[%s921] ss:$2 sm:$0xff]
    %s923 = scalar_lea.vmem [#allocation9], 49
    %v924 = vld [vmem:[%s923] ss:$2 sm:$0xff]
    %v925 = vmax.f32 %v922, %v924
    %v926 = vmax.f32 %v920, %v925
    %v927 = vpack.c.bf16 %v926, %v926
    %v929 = vunpack.c.l.b16 %v927
    %v930 = vpack.c.b16 %v929, %v929
    %v932 = vshrl.u32 %v930, 16
    %v934 = vrot.slane %v932, 7
    %v935 = vshll.u32 %v930, 16
    %v937 = vor.u32 %v934, %v935
    %v938 = vrot.slane %v934, 4
    %s941 = scalar_lea.vmem [#allocation2], 16
    %v942 = vld [vmem:[%s941] sm:$0xf]
    %v943 = vsel %vm906, %v937, %v942
    %944 = vst [vmem:[%s941] sm:$0xf] %v943
    %v945 = vld [vmem:[%s941 + $0x4] sm:$0x1]
    %v946 = vsel %vm912, %v938, %v945
    %947 = vst [vmem:[%s941 + $0x4] sm:$0x1] %v946
    %s948 = scalar_lea.vmem [#allocation9], 64
    %v949 = vld [vmem:[%s948] ss:$2 sm:$0xff]
    %s950 = scalar_lea.vmem [#allocation9], 65
    %v951 = vld [vmem:[%s950] ss:$2 sm:$0xff]
    %v952 = vmax.f32 %v949, %v951
    %s953 = scalar_lea.vmem [#allocation9], 80
    %v954 = vld [vmem:[%s953] ss:$2 sm:$0xff]
    %s955 = scalar_lea.vmem [#allocation9], 81
    %v956 = vld [vmem:[%s955] ss:$2 sm:$0xff]
    %v957 = vmax.f32 %v954, %v956
    %v958 = vmax.f32 %v952, %v957
    %v959 = vpack.c.bf16 %v958, %v958
    %v961 = vunpack.c.l.b16 %v959
    %v962 = vpack.c.b16 %v961, %v961
    %v964 = vshrl.u32 %v962, 16
    %v966 = vrot.slane %v964, 7
    %v967 = vshll.u32 %v962, 16
    %v969 = vor.u32 %v966, %v967
    %v970 = vrot.slane %v966, 4
    %s973 = scalar_lea.vmem [#allocation2], 24
    %v974 = vld [vmem:[%s973] sm:$0xf]
    %v975 = vsel %vm906, %v969, %v974
    %976 = vst [vmem:[%s973] sm:$0xf] %v975
    %v977 = vld [vmem:[%s973 + $0x4] sm:$0x1]
    %v978 = vsel %vm912, %v970, %v977
    %979 = vst [vmem:[%s973 + $0x4] sm:$0x1] %v978
    %s980 = scalar_lea.vmem [#allocation9], 96
    %v981 = vld [vmem:[%s980] ss:$2 sm:$0xff]
    %s982 = scalar_lea.vmem [#allocation9], 97
    %v983 = vld [vmem:[%s982] ss:$2 sm:$0xff]
    %v984 = vmax.f32 %v981, %v983
    %s985 = scalar_lea.vmem [#allocation9], 112
    %v986 = vld [vmem:[%s985] ss:$2 sm:$0xff]
    %s987 = scalar_lea.vmem [#allocation9], 113
    %v988 = vld [vmem:[%s987] ss:$2 sm:$0xff]
    %v989 = vmax.f32 %v986, %v988
    %v990 = vmax.f32 %v984, %v989
    %v991 = vpack.c.bf16 %v990, %v990
    %v993 = vunpack.c.l.b16 %v991
    %v994 = vpack.c.b16 %v993, %v993
    %v996 = vshrl.u32 %v994, 16
    %v998 = vrot.slane %v996, 7
    %v999 = vshll.u32 %v994, 16
    %v1001 = vor.u32 %v998, %v999
    %v1002 = vrot.slane %v998, 4
    %s1005 = scalar_lea.vmem [#allocation2], 32
    %v1006 = vld [vmem:[%s1005] sm:$0xf]
    %v1007 = vsel %vm906, %v1001, %v1006
    %1008 = vst [vmem:[%s1005] sm:$0xf] %v1007
    %v1009 = vld [vmem:[%s1005 + $0x4] sm:$0x1]
    %v1010 = vsel %vm912, %v1002, %v1009
    %1011 = vst [vmem:[%s1005 + $0x4] sm:$0x1] %v1010
    %s1012 = scalar_lea.vmem [#allocation9], 128
    %v1013 = vld [vmem:[%s1012] ss:$2 sm:$0xff]
    %s1014 = scalar_lea.vmem [#allocation9], 129
    %v1015 = vld [vmem:[%s1014] ss:$2 sm:$0xff]
    %v1016 = vmax.f32 %v1013, %v1015
    %s1017 = scalar_lea.vmem [#allocation9], 144
    %v1018 = vld [vmem:[%s1017] ss:$2 sm:$0xff]
    %s1019 = scalar_lea.vmem [#allocation9], 145
    %v1020 = vld [vmem:[%s1019] ss:$2 sm:$0xff]
    %v1021 = vmax.f32 %v1018, %v1020
    %v1022 = vmax.f32 %v1016, %v1021
    %v1023 = vpack.c.bf16 %v1022, %v1022
    %v1025 = vunpack.c.l.b16 %v1023
    %v1026 = vpack.c.b16 %v1025, %v1025
    %v1028 = vshrl.u32 %v1026, 16
    %v1030 = vrot.slane %v1028, 7
    %v1031 = vshll.u32 %v1026, 16
    %v1033 = vor.u32 %v1030, %v1031
    %v1034 = vrot.slane %v1030, 4
    %s1037 = scalar_lea.vmem [#allocation2], 40
    %v1038 = vld [vmem:[%s1037] sm:$0xf]
    %v1039 = vsel %vm906, %v1033, %v1038
    %1040 = vst [vmem:[%s1037] sm:$0xf] %v1039
    %v1041 = vld [vmem:[%s1037 + $0x4] sm:$0x1]
    %v1042 = vsel %vm912, %v1034, %v1041
    %1043 = vst [vmem:[%s1037 + $0x4] sm:$0x1] %v1042
    %s1044 = scalar_lea.vmem [#allocation9], 160
    %v1045 = vld [vmem:[%s1044] ss:$2 sm:$0xff]
    %s1046 = scalar_lea.vmem [#allocation9], 161
    %v1047 = vld [vmem:[%s1046] ss:$2 sm:$0xff]
    %v1048 = vmax.f32 %v1045, %v1047
    %s1049 = scalar_lea.vmem [#allocation9], 176
    %v1050 = vld [vmem:[%s1049] ss:$2 sm:$0xff]
    %s1051 = scalar_lea.vmem [#allocation9], 177
    %v1052 = vld [vmem:[%s1051] ss:$2 sm:$0xff]
    %v1053 = vmax.f32 %v1050, %v1052
    %v1054 = vmax.f32 %v1048, %v1053
    %v1055 = vpack.c.bf16 %v1054, %v1054
    %v1057 = vunpack.c.l.b16 %v1055
    %v1058 = vpack.c.b16 %v1057, %v1057
    %v1060 = vshrl.u32 %v1058, 16
    %v1062 = vrot.slane %v1060, 7
    %v1063 = vshll.u32 %v1058, 16
    %v1065 = vor.u32 %v1062, %v1063
    %v1066 = vrot.slane %v1062, 4
    %s1069 = scalar_lea.vmem [#allocation2], 48
    %v1070 = vld [vmem:[%s1069] sm:$0xf]
    %v1071 = vsel %vm906, %v1065, %v1070
    %1072 = vst [vmem:[%s1069] sm:$0xf] %v1071
    %v1073 = vld [vmem:[%s1069 + $0x4] sm:$0x1]
    %v1074 = vsel %vm912, %v1066, %v1073
    %1075 = vst [vmem:[%s1069 + $0x4] sm:$0x1] %v1074
    %s1076 = scalar_lea.vmem [#allocation9], 192
    %v1077 = vld [vmem:[%s1076] ss:$2 sm:$0xff]
    %s1078 = scalar_lea.vmem [#allocation9], 193
    %v1079 = vld [vmem:[%s1078] ss:$2 sm:$0xff]
    %v1080 = vmax.f32 %v1077, %v1079
    %s1081 = scalar_lea.vmem [#allocation9], 208
    %v1082 = vld [vmem:[%s1081] ss:$2 sm:$0xff]
    %s1083 = scalar_lea.vmem [#allocation9], 209
    %v1084 = vld [vmem:[%s1083] ss:$2 sm:$0xff]
    %v1085 = vmax.f32 %v1082, %v1084
    %v1086 = vmax.f32 %v1080, %v1085
    %v1087 = vpack.c.bf16 %v1086, %v1086
    %v1089 = vunpack.c.l.b16 %v1087
    %v1090 = vpack.c.b16 %v1089, %v1089
    %v1092 = vshrl.u32 %v1090, 16
    %v1094 = vrot.slane %v1092, 7
    %v1095 = vshll.u32 %v1090, 16
    %v1097 = vor.u32 %v1094, %v1095
    %v1098 = vrot.slane %v1094, 4
    %s1101 = scalar_lea.vmem [#allocation2], 56
    %v1102 = vld [vmem:[%s1101] sm:$0xf]
    %v1103 = vsel %vm906, %v1097, %v1102
    %1104 = vst [vmem:[%s1101] sm:$0xf] %v1103
    %v1105 = vld [vmem:[%s1101 + $0x4] sm:$0x1]
    %v1106 = vsel %vm912, %v1098, %v1105
    %1107 = vst [vmem:[%s1101 + $0x4] sm:$0x1] %v1106
    %s1108 = scalar_lea.vmem [#allocation9], 224
    %v1109 = vld [vmem:[%s1108] ss:$2 sm:$0xff]
    %s1110 = scalar_lea.vmem [#allocation9], 225
    %v1111 = vld [vmem:[%s1110] ss:$2 sm:$0xff]
    %v1112 = vmax.f32 %v1109, %v1111
    %s1113 = scalar_lea.vmem [#allocation9], 240
    %v1114 = vld [vmem:[%s1113] ss:$2 sm:$0xff]
    %s1115 = scalar_lea.vmem [#allocation9], 241
    %v1116 = vld [vmem:[%s1115] ss:$2 sm:$0xff]
    %v1117 = vmax.f32 %v1114, %v1116
    %v1118 = vmax.f32 %v1112, %v1117
    %v1119 = vpack.c.bf16 %v1118, %v1118
    %v1121 = vunpack.c.l.b16 %v1119
    %v1122 = vpack.c.b16 %v1121, %v1121
    %v1124 = vshrl.u32 %v1122, 16
    %v1126 = vrot.slane %v1124, 7
    %v1127 = vshll.u32 %v1122, 16
    %v1129 = vor.u32 %v1126, %v1127
    %v1130 = vrot.slane %v1126, 4
    %s1133 = scalar_lea.vmem [#allocation2], 64
    %v1134 = vld [vmem:[%s1133] sm:$0xf]
    %v1135 = vsel %vm906, %v1129, %v1134
    %1136 = vst [vmem:[%s1133] sm:$0xf] %v1135
    %v1137 = vld [vmem:[%s1133 + $0x4] sm:$0x1]
    %v1138 = vsel %vm912, %v1130, %v1137
    %1139 = vst [vmem:[%s1133 + $0x4] sm:$0x1] %v1138
    %s1140 = scalar_lea.vmem [#allocation9], 256
    %v1141 = vld [vmem:[%s1140] ss:$2 sm:$0xff]
    %s1142 = scalar_lea.vmem [#allocation9], 257
    %v1143 = vld [vmem:[%s1142] ss:$2 sm:$0xff]
    %v1144 = vmax.f32 %v1141, %v1143
    %s1145 = scalar_lea.vmem [#allocation9], 272
    %v1146 = vld [vmem:[%s1145] ss:$2 sm:$0xff]
    %s1147 = scalar_lea.vmem [#allocation9], 273
    %v1148 = vld [vmem:[%s1147] ss:$2 sm:$0xff]
    %v1149 = vmax.f32 %v1146, %v1148
    %v1150 = vmax.f32 %v1144, %v1149
    %v1151 = vpack.c.bf16 %v1150, %v1150
    %v1153 = vunpack.c.l.b16 %v1151
    %v1154 = vpack.c.b16 %v1153, %v1153
    %v1156 = vshrl.u32 %v1154, 16
    %v1158 = vrot.slane %v1156, 7
    %v1159 = vshll.u32 %v1154, 16
    %v1161 = vor.u32 %v1158, %v1159
    %v1162 = vrot.slane %v1158, 4
    %s1165 = scalar_lea.vmem [#allocation2], 88
    %v1166 = vld [vmem:[%s1165] sm:$0xf]
    %v1167 = vsel %vm906, %v1161, %v1166
    %1168 = vst [vmem:[%s1165] sm:$0xf] %v1167
    %v1169 = vld [vmem:[%s1165 + $0x4] sm:$0x1]
    %v1170 = vsel %vm912, %v1162, %v1169
    %1171 = vst [vmem:[%s1165 + $0x4] sm:$0x1] %v1170
    %s1172 = scalar_lea.vmem [#allocation9], 288
    %v1173 = vld [vmem:[%s1172] ss:$2 sm:$0xff]
    %s1174 = scalar_lea.vmem [#allocation9], 289
    %v1175 = vld [vmem:[%s1174] ss:$2 sm:$0xff]
    %v1176 = vmax.f32 %v1173, %v1175
    %s1177 = scalar_lea.vmem [#allocation9], 304
    %v1178 = vld [vmem:[%s1177] ss:$2 sm:$0xff]
    %s1179 = scalar_lea.vmem [#allocation9], 305
    %v1180 = vld [vmem:[%s1179] ss:$2 sm:$0xff]
    %v1181 = vmax.f32 %v1178, %v1180
    %v1182 = vmax.f32 %v1176, %v1181
    %v1183 = vpack.c.bf16 %v1182, %v1182
    %v1185 = vunpack.c.l.b16 %v1183
    %v1186 = vpack.c.b16 %v1185, %v1185
    %v1188 = vshrl.u32 %v1186, 16
    %v1190 = vrot.slane %v1188, 7
    %v1191 = vshll.u32 %v1186, 16
    %v1193 = vor.u32 %v1190, %v1191
    %v1194 = vrot.slane %v1190, 4
    %s1197 = scalar_lea.vmem [#allocation2], 96
    %v1198 = vld [vmem:[%s1197] sm:$0xf]
    %v1199 = vsel %vm906, %v1193, %v1198
    %1200 = vst [vmem:[%s1197] sm:$0xf] %v1199
    %v1201 = vld [vmem:[%s1197 + $0x4] sm:$0x1]
    %v1202 = vsel %vm912, %v1194, %v1201
    %1203 = vst [vmem:[%s1197 + $0x4] sm:$0x1] %v1202
    %s1204 = scalar_lea.vmem [#allocation9], 320
    %v1205 = vld [vmem:[%s1204] ss:$2 sm:$0xff]
    %s1206 = scalar_lea.vmem [#allocation9], 321
    %v1207 = vld [vmem:[%s1206] ss:$2 sm:$0xff]
    %v1208 = vmax.f32 %v1205, %v1207
    %s1209 = scalar_lea.vmem [#allocation9], 336
    %v1210 = vld [vmem:[%s1209] ss:$2 sm:$0xff]
    %s1211 = scalar_lea.vmem [#allocation9], 337
    %v1212 = vld [vmem:[%s1211] ss:$2 sm:$0xff]
    %v1213 = vmax.f32 %v1210, %v1212
    %v1214 = vmax.f32 %v1208, %v1213
    %v1215 = vpack.c.bf16 %v1214, %v1214
    %v1217 = vunpack.c.l.b16 %v1215
    %v1218 = vpack.c.b16 %v1217, %v1217
    %v1220 = vshrl.u32 %v1218, 16
    %v1222 = vrot.slane %v1220, 7
    %v1223 = vshll.u32 %v1218, 16
    %v1225 = vor.u32 %v1222, %v1223
    %v1226 = vrot.slane %v1222, 4
    %s1229 = scalar_lea.vmem [#allocation2], 104
    %v1230 = vld [vmem:[%s1229] sm:$0xf]
    %v1231 = vsel %vm906, %v1225, %v1230
    %1232 = vst [vmem:[%s1229] sm:$0xf] %v1231
    %v1233 = vld [vmem:[%s1229 + $0x4] sm:$0x1]
    %v1234 = vsel %vm912, %v1226, %v1233
    %1235 = vst [vmem:[%s1229 + $0x4] sm:$0x1] %v1234
    %s1236 = scalar_lea.vmem [#allocation9], 352
    %v1237 = vld [vmem:[%s1236] ss:$2 sm:$0xff]
    %s1238 = scalar_lea.vmem [#allocation9], 353
    %v1239 = vld [vmem:[%s1238] ss:$2 sm:$0xff]
    %v1240 = vmax.f32 %v1237, %v1239
    %s1241 = scalar_lea.vmem [#allocation9], 368
    %v1242 = vld [vmem:[%s1241] ss:$2 sm:$0xff]
    %s1243 = scalar_lea.vmem [#allocation9], 369
    %v1244 = vld [vmem:[%s1243] ss:$2 sm:$0xff]
    %v1245 = vmax.f32 %v1242, %v1244
    %v1246 = vmax.f32 %v1240, %v1245
    %v1247 = vpack.c.bf16 %v1246, %v1246
    %v1249 = vunpack.c.l.b16 %v1247
    %v1250 = vpack.c.b16 %v1249, %v1249
    %v1252 = vshrl.u32 %v1250, 16
    %v1254 = vrot.slane %v1252, 7
    %v1255 = vshll.u32 %v1250, 16
    %v1257 = vor.u32 %v1254, %v1255
    %v1258 = vrot.slane %v1254, 4
    %s1261 = scalar_lea.vmem [#allocation2], 112
    %v1262 = vld [vmem:[%s1261] sm:$0xf]
    %v1263 = vsel %vm906, %v1257, %v1262
    %1264 = vst [vmem:[%s1261] sm:$0xf] %v1263
    %v1265 = vld [vmem:[%s1261 + $0x4] sm:$0x1]
    %v1266 = vsel %vm912, %v1258, %v1265
    %1267 = vst [vmem:[%s1261 + $0x4] sm:$0x1] %v1266
    %s1268 = scalar_lea.vmem [#allocation9], 384
    %v1269 = vld [vmem:[%s1268] ss:$2 sm:$0xff]
    %s1270 = scalar_lea.vmem [#allocation9], 385
    %v1271 = vld [vmem:[%s1270] ss:$2 sm:$0xff]
    %v1272 = vmax.f32 %v1269, %v1271
    %s1273 = scalar_lea.vmem [#allocation9], 400
    %v1274 = vld [vmem:[%s1273] ss:$2 sm:$0xff]
    %s1275 = scalar_lea.vmem [#allocation9], 401
    %v1276 = vld [vmem:[%s1275] ss:$2 sm:$0xff]
    %v1277 = vmax.f32 %v1274, %v1276
    %v1278 = vmax.f32 %v1272, %v1277
    %v1279 = vpack.c.bf16 %v1278, %v1278
    %v1281 = vunpack.c.l.b16 %v1279
    %v1282 = vpack.c.b16 %v1281, %v1281
    %v1284 = vshrl.u32 %v1282, 16
    %v1286 = vrot.slane %v1284, 7
    %v1287 = vshll.u32 %v1282, 16
    %v1289 = vor.u32 %v1286, %v1287
    %v1290 = vrot.slane %v1286, 4
    %s1293 = scalar_lea.vmem [#allocation2], 120
    %v1294 = vld [vmem:[%s1293] sm:$0xf]
    %v1295 = vsel %vm906, %v1289, %v1294
    %1296 = vst [vmem:[%s1293] sm:$0xf] %v1295
    %v1297 = vld [vmem:[%s1293 + $0x4] sm:$0x1]
    %v1298 = vsel %vm912, %v1290, %v1297
    %1299 = vst [vmem:[%s1293 + $0x4] sm:$0x1] %v1298
    %s1300 = scalar_lea.vmem [#allocation9], 416
    %v1301 = vld [vmem:[%s1300] ss:$2 sm:$0xff]
    %s1302 = scalar_lea.vmem [#allocation9], 417
    %v1303 = vld [vmem:[%s1302] ss:$2 sm:$0xff]
    %v1304 = vmax.f32 %v1301, %v1303
    %s1305 = scalar_lea.vmem [#allocation9], 432
    %v1306 = vld [vmem:[%s1305] ss:$2 sm:$0xff]
    %s1307 = scalar_lea.vmem [#allocation9], 433
    %v1308 = vld [vmem:[%s1307] ss:$2 sm:$0xff]
    %v1309 = vmax.f32 %v1306, %v1308
    %v1310 = vmax.f32 %v1304, %v1309
    %v1311 = vpack.c.bf16 %v1310, %v1310
    %v1313 = vunpack.c.l.b16 %v1311
    %v1314 = vpack.c.b16 %v1313, %v1313
    %v1316 = vshrl.u32 %v1314, 16
    %v1318 = vrot.slane %v1316, 7
    %v1319 = vshll.u32 %v1314, 16
    %v1321 = vor.u32 %v1318, %v1319
    %v1322 = vrot.slane %v1318, 4
    %s1325 = scalar_lea.vmem [#allocation2], 128
    %v1326 = vld [vmem:[%s1325] sm:$0xf]
    %v1327 = vsel %vm906, %v1321, %v1326
    %1328 = vst [vmem:[%s1325] sm:$0xf] %v1327
    %v1329 = vld [vmem:[%s1325 + $0x4] sm:$0x1]
    %v1330 = vsel %vm912, %v1322, %v1329
    %1331 = vst [vmem:[%s1325 + $0x4] sm:$0x1] %v1330
    %s1332 = scalar_lea.vmem [#allocation9], 448
    %v1333 = vld [vmem:[%s1332] ss:$2 sm:$0xff]
    %s1334 = scalar_lea.vmem [#allocation9], 449
    %v1335 = vld [vmem:[%s1334] ss:$2 sm:$0xff]
    %v1336 = vmax.f32 %v1333, %v1335
    %s1337 = scalar_lea.vmem [#allocation9], 464
    %v1338 = vld [vmem:[%s1337] ss:$2 sm:$0xff]
    %s1339 = scalar_lea.vmem [#allocation9], 465
    %v1340 = vld [vmem:[%s1339] ss:$2 sm:$0xff]
    %v1341 = vmax.f32 %v1338, %v1340
    %v1342 = vmax.f32 %v1336, %v1341
    %v1343 = vpack.c.bf16 %v1342, %v1342
    %v1345 = vunpack.c.l.b16 %v1343
    %v1346 = vpack.c.b16 %v1345, %v1345
    %v1348 = vshrl.u32 %v1346, 16
    %v1350 = vrot.slane %v1348, 7
    %v1351 = vshll.u32 %v1346, 16
    %v1353 = vor.u32 %v1350, %v1351
    %v1354 = vrot.slane %v1350, 4
    %s1357 = scalar_lea.vmem [#allocation2], 136
    %v1358 = vld [vmem:[%s1357] sm:$0xf]
    %v1359 = vsel %vm906, %v1353, %v1358
    %1360 = vst [vmem:[%s1357] sm:$0xf] %v1359
    %v1361 = vld [vmem:[%s1357 + $0x4] sm:$0x1]
    %v1362 = vsel %vm912, %v1354, %v1361
    %1363 = vst [vmem:[%s1357 + $0x4] sm:$0x1] %v1362
    %s1364 = scalar_lea.vmem [#allocation9], 480
    %v1365 = vld [vmem:[%s1364] ss:$2 sm:$0xff]
    %s1366 = scalar_lea.vmem [#allocation9], 481
    %v1367 = vld [vmem:[%s1366] ss:$2 sm:$0xff]
    %v1368 = vmax.f32 %v1365, %v1367
    %s1369 = scalar_lea.vmem [#allocation9], 496
    %v1370 = vld [vmem:[%s1369] ss:$2 sm:$0xff]
    %s1371 = scalar_lea.vmem [#allocation9], 497
    %v1372 = vld [vmem:[%s1371] ss:$2 sm:$0xff]
    %v1373 = vmax.f32 %v1370, %v1372
    %v1374 = vmax.f32 %v1368, %v1373
    %v1375 = vpack.c.bf16 %v1374, %v1374
    %v1377 = vunpack.c.l.b16 %v1375
    %v1378 = vpack.c.b16 %v1377, %v1377
    %v1380 = vshrl.u32 %v1378, 16
    %v1382 = vrot.slane %v1380, 7
    %v1383 = vshll.u32 %v1378, 16
    %v1385 = vor.u32 %v1382, %v1383
    %v1386 = vrot.slane %v1382, 4
    %s1389 = scalar_lea.vmem [#allocation2], 144
    %v1390 = vld [vmem:[%s1389] sm:$0xf]
    %v1391 = vsel %vm906, %v1385, %v1390
    %1392 = vst [vmem:[%s1389] sm:$0xf] %v1391
    %v1393 = vld [vmem:[%s1389 + $0x4] sm:$0x1]
    %v1394 = vsel %vm912, %v1386, %v1393
    %1395 = vst [vmem:[%s1389 + $0x4] sm:$0x1] %v1394
    %v1396 = vld [vmem:[#allocation2] sm:$0xf]
    %v1397 = vld [vmem:[#allocation2 + $0x8] sm:$0xf]
    %v1398 = vld [vmem:[#allocation2 + $0x10] sm:$0xf]
    %v1399 = vld [vmem:[#allocation2 + $0x18] sm:$0xf]
    %v1400 = vld [vmem:[#allocation2 + $0x20] sm:$0xf]
    %v1401 = vld [vmem:[#allocation2 + $0x28] sm:$0xf]
    %v1402 = vld [vmem:[#allocation2 + $0x30] sm:$0xf]
    %v1403 = vld [vmem:[#allocation2 + $0x38] sm:$0xf]
    %1404 = vst [vmem:[#allocation6] sm:$0xf] %v1396
    %1405 = vst [vmem:[#allocation6 + $0x24] sm:$0xf] %v1397
    %1406 = vst [vmem:[#allocation6 + $0x48] sm:$0xf] %v1398
    %1407 = vst [vmem:[#allocation6 + $0x6c] sm:$0xf] %v1399
    %1408 = vst [vmem:[#allocation6 + $0x90] sm:$0xf] %v1400
    %1409 = vst [vmem:[#allocation6 + $0xb4] sm:$0xf] %v1401
    %1410 = vst [vmem:[#allocation6 + $0xd8] sm:$0xf] %v1402
    %1411 = vst [vmem:[#allocation6 + $0xfc] sm:$0xf] %v1403
    %v1412 = vld [vmem:[#allocation2] sm:$0xf]
    %v1413 = vld [vmem:[#allocation2 + $0x4] sm:$0x1]
    %v1414 = vld [vmem:[#allocation2 + $0x8] sm:$0xf]
    %v1415 = vld [vmem:[#allocation2 + $0xc] sm:$0x1]
    %v1416 = vld [vmem:[#allocation2 + $0x10] sm:$0xf]
    %v1417 = vld [vmem:[#allocation2 + $0x14] sm:$0x1]
    %v1418 = vld [vmem:[#allocation2 + $0x18] sm:$0xf]
    %v1419 = vld [vmem:[#allocation2 + $0x1c] sm:$0x1]
    %v1420 = vld [vmem:[#allocation2 + $0x20] sm:$0xf]
    %v1421 = vld [vmem:[#allocation2 + $0x24] sm:$0x1]
    %v1422 = vld [vmem:[#allocation2 + $0x28] sm:$0xf]
    %v1423 = vld [vmem:[#allocation2 + $0x2c] sm:$0x1]
    %v1424 = vld [vmem:[#allocation2 + $0x30] sm:$0xf]
    %v1425 = vld [vmem:[#allocation2 + $0x34] sm:$0x1]
    %v1426 = vld [vmem:[#allocation2 + $0x38] sm:$0xf]
    %v1427 = vld [vmem:[#allocation2 + $0x3c] sm:$0x1]
    %vm1428 = vsmask.f32 3328
    %vm1429 = vsmask.f32 7440
    %vm1430 = vmor %vm1428, %vm1429
    %v1432 = vshrl.u32 %v1412, 16
    %v1434 = vrot.slane %v1432, 4
    %v1435 = vshll.u32 %v1412, 16
    %v1437 = vrot.slane %v1435, 5
    %v1438 = vor.u32 %v1434, %v1437
    %v1439 = vrot.slane %v1438, 4
    %v1441 = vshll.u32 %v1413, 16
    %v1443 = vrot.slane %v1441, 5
    %v1444 = vsel %vm1430, %v1439, %v1443
    %v1446 = vshrl.u32 %v1414, 16
    %v1448 = vrot.slane %v1446, 4
    %v1449 = vshll.u32 %v1414, 16
    %v1451 = vrot.slane %v1449, 5
    %v1452 = vor.u32 %v1448, %v1451
    %v1453 = vrot.slane %v1452, 4
    %v1455 = vshll.u32 %v1415, 16
    %v1457 = vrot.slane %v1455, 5
    %v1458 = vsel %vm1430, %v1453, %v1457
    %v1460 = vshrl.u32 %v1416, 16
    %v1462 = vrot.slane %v1460, 4
    %v1463 = vshll.u32 %v1416, 16
    %v1465 = vrot.slane %v1463, 5
    %v1466 = vor.u32 %v1462, %v1465
    %v1467 = vrot.slane %v1466, 4
    %v1469 = vshll.u32 %v1417, 16
    %v1471 = vrot.slane %v1469, 5
    %v1472 = vsel %vm1430, %v1467, %v1471
    %v1474 = vshrl.u32 %v1418, 16
    %v1476 = vrot.slane %v1474, 4
    %v1477 = vshll.u32 %v1418, 16
    %v1479 = vrot.slane %v1477, 5
    %v1480 = vor.u32 %v1476, %v1479
    %v1481 = vrot.slane %v1480, 4
    %v1483 = vshll.u32 %v1419, 16
    %v1485 = vrot.slane %v1483, 5
    %v1486 = vsel %vm1430, %v1481, %v1485
    %v1488 = vshrl.u32 %v1420, 16
    %v1490 = vrot.slane %v1488, 4
    %v1491 = vshll.u32 %v1420, 16
    %v1493 = vrot.slane %v1491, 5
    %v1494 = vor.u32 %v1490, %v1493
    %v1495 = vrot.slane %v1494, 4
    %v1497 = vshll.u32 %v1421, 16
    %v1499 = vrot.slane %v1497, 5
    %v1500 = vsel %vm1430, %v1495, %v1499
    %v1502 = vshrl.u32 %v1422, 16
    %v1504 = vrot.slane %v1502, 4
    %v1505 = vshll.u32 %v1422, 16
    %v1507 = vrot.slane %v1505, 5
    %v1508 = vor.u32 %v1504, %v1507
    %v1509 = vrot.slane %v1508, 4
    %v1511 = vshll.u32 %v1423, 16
    %v1513 = vrot.slane %v1511, 5
    %v1514 = vsel %vm1430, %v1509, %v1513
    %v1516 = vshrl.u32 %v1424, 16
    %v1518 = vrot.slane %v1516, 4
    %v1519 = vshll.u32 %v1424, 16
    %v1521 = vrot.slane %v1519, 5
    %v1522 = vor.u32 %v1518, %v1521
    %v1523 = vrot.slane %v1522, 4
    %v1525 = vshll.u32 %v1425, 16
    %v1527 = vrot.slane %v1525, 5
    %v1528 = vsel %vm1430, %v1523, %v1527
    %v1530 = vshrl.u32 %v1426, 16
    %v1532 = vrot.slane %v1530, 4
    %v1533 = vshll.u32 %v1426, 16
    %v1535 = vrot.slane %v1533, 5
    %v1536 = vor.u32 %v1532, %v1535
    %v1537 = vrot.slane %v1536, 4
    %v1539 = vshll.u32 %v1427, 16
    %v1541 = vrot.slane %v1539, 5
    %v1542 = vsel %vm1430, %v1537, %v1541
    %1551 = vst [vmem:[#allocation6 + $0x4] sm:$0xf] %v1444
    %1552 = vst [vmem:[#allocation6 + $0x28] sm:$0xf] %v1458
    %1553 = vst [vmem:[#allocation6 + $0x4c] sm:$0xf] %v1472
    %1554 = vst [vmem:[#allocation6 + $0x70] sm:$0xf] %v1486
    %1555 = vst [vmem:[#allocation6 + $0x94] sm:$0xf] %v1500
    %1556 = vst [vmem:[#allocation6 + $0xb8] sm:$0xf] %v1514
    %1557 = vst [vmem:[#allocation6 + $0xdc] sm:$0xf] %v1528
    %1558 = vst [vmem:[#allocation6 + $0x100] sm:$0xf] %v1542
    %v1559 = vld [vmem:[#allocation2] sm:$0xe]
    %v1560 = vld [vmem:[#allocation2 + $0x4] sm:$0x1]
    %v1561 = vld [vmem:[#allocation2 + $0x8] sm:$0xe]
    %v1562 = vld [vmem:[#allocation2 + $0xc] sm:$0x1]
    %v1563 = vld [vmem:[#allocation2 + $0x10] sm:$0xe]
    %v1564 = vld [vmem:[#allocation2 + $0x14] sm:$0x1]
    %v1565 = vld [vmem:[#allocation2 + $0x18] sm:$0xe]
    %v1566 = vld [vmem:[#allocation2 + $0x1c] sm:$0x1]
    %v1567 = vld [vmem:[#allocation2 + $0x20] sm:$0xe]
    %v1568 = vld [vmem:[#allocation2 + $0x24] sm:$0x1]
    %v1569 = vld [vmem:[#allocation2 + $0x28] sm:$0xe]
    %v1570 = vld [vmem:[#allocation2 + $0x2c] sm:$0x1]
    %v1571 = vld [vmem:[#allocation2 + $0x30] sm:$0xe]
    %v1572 = vld [vmem:[#allocation2 + $0x34] sm:$0x1]
    %v1573 = vld [vmem:[#allocation2 + $0x38] sm:$0xe]
    %v1574 = vld [vmem:[#allocation2 + $0x3c] sm:$0x1]
    %vm1591 = vcmask 1042432
    %vm1592 = vcmask 1046532
    %vm1593 = vmor %vm1591, %vm1592
    %v1594 = vrot.slane %v1559, 5
    %v1595 = vrot.slane %v1594, 4
    %v1596 = vrot.slane %v1560, 5
    %v1597 = vsel %vm1593, %v1595, %v1596
    %v1598 = vrot.slane %v1561, 5
    %v1599 = vrot.slane %v1598, 4
    %v1600 = vrot.slane %v1562, 5
    %v1601 = vsel %vm1593, %v1599, %v1600
    %v1602 = vrot.slane %v1563, 5
    %v1603 = vrot.slane %v1602, 4
    %v1604 = vrot.slane %v1564, 5
    %v1605 = vsel %vm1593, %v1603, %v1604
    %v1606 = vrot.slane %v1565, 5
    %v1607 = vrot.slane %v1606, 4
    %v1608 = vrot.slane %v1566, 5
    %v1609 = vsel %vm1593, %v1607, %v1608
    %v1610 = vrot.slane %v1567, 5
    %v1611 = vrot.slane %v1610, 4
    %v1612 = vrot.slane %v1568, 5
    %v1613 = vsel %vm1593, %v1611, %v1612
    %v1614 = vrot.slane %v1569, 5
    %v1615 = vrot.slane %v1614, 4
    %v1616 = vrot.slane %v1570, 5
    %v1617 = vsel %vm1593, %v1615, %v1616
    %v1618 = vrot.slane %v1571, 5
    %v1619 = vrot.slane %v1618, 4
    %v1620 = vrot.slane %v1572, 5
    %v1621 = vsel %vm1593, %v1619, %v1620
    %v1622 = vrot.slane %v1573, 5
    %v1623 = vrot.slane %v1622, 4
    %v1624 = vrot.slane %v1574, 5
    %v1625 = vsel %vm1593, %v1623, %v1624
    %1634 = vst [vmem:[#allocation6 + $0x8] sm:$0xf] %v1597
    %1635 = vst [vmem:[#allocation6 + $0x2c] sm:$0xf] %v1601
    %1636 = vst [vmem:[#allocation6 + $0x50] sm:$0xf] %v1605
    %1637 = vst [vmem:[#allocation6 + $0x74] sm:$0xf] %v1609
    %1638 = vst [vmem:[#allocation6 + $0x98] sm:$0xf] %v1613
    %1639 = vst [vmem:[#allocation6 + $0xbc] sm:$0xf] %v1617
    %1640 = vst [vmem:[#allocation6 + $0xe0] sm:$0xf] %v1621
    %1641 = vst [vmem:[#allocation6 + $0x104] sm:$0xf] %v1625
    %v1642 = vld [vmem:[%s903] sm:$0xf]
    %v1643 = vld [vmem:[%s903 + $0x8] sm:$0xf]
    %v1644 = vld [vmem:[%s903 + $0x10] sm:$0xf]
    %v1645 = vld [vmem:[%s903 + $0x18] sm:$0xf]
    %v1646 = vld [vmem:[%s903 + $0x20] sm:$0xf]
    %v1647 = vld [vmem:[%s903 + $0x28] sm:$0xf]
    %v1648 = vld [vmem:[%s903 + $0x30] sm:$0xf]
    %v1649 = vld [vmem:[%s903 + $0x38] sm:$0xf]
    %1650 = vst [vmem:[#allocation6 + $0xc] sm:$0xf] %v1642
    %1651 = vst [vmem:[#allocation6 + $0x30] sm:$0xf] %v1643
    %1652 = vst [vmem:[#allocation6 + $0x54] sm:$0xf] %v1644
    %1653 = vst [vmem:[#allocation6 + $0x78] sm:$0xf] %v1645
    %1654 = vst [vmem:[#allocation6 + $0x9c] sm:$0xf] %v1646
    %1655 = vst [vmem:[#allocation6 + $0xc0] sm:$0xf] %v1647
    %1656 = vst [vmem:[#allocation6 + $0xe4] sm:$0xf] %v1648
    %1657 = vst [vmem:[#allocation6 + $0x108] sm:$0xf] %v1649
    %v1658 = vld [vmem:[%s903] sm:$0xf]
    %v1659 = vld [vmem:[%s903 + $0x4] sm:$0x1]
    %v1660 = vld [vmem:[%s903 + $0x8] sm:$0xf]
    %v1661 = vld [vmem:[%s903 + $0xc] sm:$0x1]
    %v1662 = vld [vmem:[%s903 + $0x10] sm:$0xf]
    %v1663 = vld [vmem:[%s903 + $0x14] sm:$0x1]
    %v1664 = vld [vmem:[%s903 + $0x18] sm:$0xf]
    %v1665 = vld [vmem:[%s903 + $0x1c] sm:$0x1]
    %v1666 = vld [vmem:[%s903 + $0x20] sm:$0xf]
    %v1667 = vld [vmem:[%s903 + $0x24] sm:$0x1]
    %v1668 = vld [vmem:[%s903 + $0x28] sm:$0xf]
    %v1669 = vld [vmem:[%s903 + $0x2c] sm:$0x1]
    %v1670 = vld [vmem:[%s903 + $0x30] sm:$0xf]
    %v1671 = vld [vmem:[%s903 + $0x34] sm:$0x1]
    %v1672 = vld [vmem:[%s903 + $0x38] sm:$0xf]
    %v1673 = vld [vmem:[%s903 + $0x3c] sm:$0x1]
    %v1675 = vshrl.u32 %v1658, 16
    %v1677 = vrot.slane %v1675, 4
    %v1678 = vshll.u32 %v1658, 16
    %v1680 = vrot.slane %v1678, 5
    %v1681 = vor.u32 %v1677, %v1680
    %v1682 = vrot.slane %v1681, 4
    %v1684 = vshll.u32 %v1659, 16
    %v1686 = vrot.slane %v1684, 5
    %v1687 = vsel %vm1430, %v1682, %v1686
    %v1689 = vshrl.u32 %v1660, 16
    %v1691 = vrot.slane %v1689, 4
    %v1692 = vshll.u32 %v1660, 16
    %v1694 = vrot.slane %v1692, 5
    %v1695 = vor.u32 %v1691, %v1694
    %v1696 = vrot.slane %v1695, 4
    %v1698 = vshll.u32 %v1661, 16
    %v1700 = vrot.slane %v1698, 5
    %v1701 = vsel %vm1430, %v1696, %v1700
    %v1703 = vshrl.u32 %v1662, 16
    %v1705 = vrot.slane %v1703, 4
    %v1706 = vshll.u32 %v1662, 16
    %v1708 = vrot.slane %v1706, 5
    %v1709 = vor.u32 %v1705, %v1708
    %v1710 = vrot.slane %v1709, 4
    %v1712 = vshll.u32 %v1663, 16
    %v1714 = vrot.slane %v1712, 5
    %v1715 = vsel %vm1430, %v1710, %v1714
    %v1717 = vshrl.u32 %v1664, 16
    %v1719 = vrot.slane %v1717, 4
    %v1720 = vshll.u32 %v1664, 16
    %v1722 = vrot.slane %v1720, 5
    %v1723 = vor.u32 %v1719, %v1722
    %v1724 = vrot.slane %v1723, 4
    %v1726 = vshll.u32 %v1665, 16
    %v1728 = vrot.slane %v1726, 5
    %v1729 = vsel %vm1430, %v1724, %v1728
    %v1731 = vshrl.u32 %v1666, 16
    %v1733 = vrot.slane %v1731, 4
    %v1734 = vshll.u32 %v1666, 16
    %v1736 = vrot.slane %v1734, 5
    %v1737 = vor.u32 %v1733, %v1736
    %v1738 = vrot.slane %v1737, 4
    %v1740 = vshll.u32 %v1667, 16
    %v1742 = vrot.slane %v1740, 5
    %v1743 = vsel %vm1430, %v1738, %v1742
    %v1745 = vshrl.u32 %v1668, 16
    %v1747 = vrot.slane %v1745, 4
    %v1748 = vshll.u32 %v1668, 16
    %v1750 = vrot.slane %v1748, 5
    %v1751 = vor.u32 %v1747, %v1750
    %v1752 = vrot.slane %v1751, 4
    %v1754 = vshll.u32 %v1669, 16
    %v1756 = vrot.slane %v1754, 5
    %v1757 = vsel %vm1430, %v1752, %v1756
    %v1759 = vshrl.u32 %v1670, 16
    %v1761 = vrot.slane %v1759, 4
    %v1762 = vshll.u32 %v1670, 16
    %v1764 = vrot.slane %v1762, 5
    %v1765 = vor.u32 %v1761, %v1764
    %v1766 = vrot.slane %v1765, 4
    %v1768 = vshll.u32 %v1671, 16
    %v1770 = vrot.slane %v1768, 5
    %v1771 = vsel %vm1430, %v1766, %v1770
    %v1773 = vshrl.u32 %v1672, 16
    %v1775 = vrot.slane %v1773, 4
    %v1776 = vshll.u32 %v1672, 16
    %v1778 = vrot.slane %v1776, 5
    %v1779 = vor.u32 %v1775, %v1778
    %v1780 = vrot.slane %v1779, 4
    %v1782 = vshll.u32 %v1673, 16
    %v1784 = vrot.slane %v1782, 5
    %v1785 = vsel %vm1430, %v1780, %v1784
    %1794 = vst [vmem:[#allocation6 + $0x10] sm:$0xf] %v1687
    %1795 = vst [vmem:[#allocation6 + $0x34] sm:$0xf] %v1701
    %1796 = vst [vmem:[#allocation6 + $0x58] sm:$0xf] %v1715
    %1797 = vst [vmem:[#allocation6 + $0x7c] sm:$0xf] %v1729
    %1798 = vst [vmem:[#allocation6 + $0xa0] sm:$0xf] %v1743
    %1799 = vst [vmem:[#allocation6 + $0xc4] sm:$0xf] %v1757
    %1800 = vst [vmem:[#allocation6 + $0xe8] sm:$0xf] %v1771
    %1801 = vst [vmem:[#allocation6 + $0x10c] sm:$0xf] %v1785
    %v1802 = vld [vmem:[%s903] sm:$0xe]
    %v1803 = vld [vmem:[%s903 + $0x4] sm:$0x1]
    %v1804 = vld [vmem:[%s903 + $0x8] sm:$0xe]
    %v1805 = vld [vmem:[%s903 + $0xc] sm:$0x1]
    %v1806 = vld [vmem:[%s903 + $0x10] sm:$0xe]
    %v1807 = vld [vmem:[%s903 + $0x14] sm:$0x1]
    %v1808 = vld [vmem:[%s903 + $0x18] sm:$0xe]
    %v1809 = vld [vmem:[%s903 + $0x1c] sm:$0x1]
    %v1810 = vld [vmem:[%s903 + $0x20] sm:$0xe]
    %v1811 = vld [vmem:[%s903 + $0x24] sm:$0x1]
    %v1812 = vld [vmem:[%s903 + $0x28] sm:$0xe]
    %v1813 = vld [vmem:[%s903 + $0x2c] sm:$0x1]
    %v1814 = vld [vmem:[%s903 + $0x30] sm:$0xe]
    %v1815 = vld [vmem:[%s903 + $0x34] sm:$0x1]
    %v1816 = vld [vmem:[%s903 + $0x38] sm:$0xe]
    %v1817 = vld [vmem:[%s903 + $0x3c] sm:$0x1]
    %v1834 = vrot.slane %v1802, 5
    %v1835 = vrot.slane %v1834, 4
    %v1836 = vrot.slane %v1803, 5
    %v1837 = vsel %vm1593, %v1835, %v1836
    %v1838 = vrot.slane %v1804, 5
    %v1839 = vrot.slane %v1838, 4
    %v1840 = vrot.slane %v1805, 5
    %v1841 = vsel %vm1593, %v1839, %v1840
    %v1842 = vrot.slane %v1806, 5
    %v1843 = vrot.slane %v1842, 4
    %v1844 = vrot.slane %v1807, 5
    %v1845 = vsel %vm1593, %v1843, %v1844
    %v1846 = vrot.slane %v1808, 5
    %v1847 = vrot.slane %v1846, 4
    %v1848 = vrot.slane %v1809, 5
    %v1849 = vsel %vm1593, %v1847, %v1848
    %v1850 = vrot.slane %v1810, 5
    %v1851 = vrot.slane %v1850, 4
    %v1852 = vrot.slane %v1811, 5
    %v1853 = vsel %vm1593, %v1851, %v1852
    %v1854 = vrot.slane %v1812, 5
    %v1855 = vrot.slane %v1854, 4
    %v1856 = vrot.slane %v1813, 5
    %v1857 = vsel %vm1593, %v1855, %v1856
    %v1858 = vrot.slane %v1814, 5
    %v1859 = vrot.slane %v1858, 4
    %v1860 = vrot.slane %v1815, 5
    %v1861 = vsel %vm1593, %v1859, %v1860
    %v1862 = vrot.slane %v1816, 5
    %v1863 = vrot.slane %v1862, 4
    %v1864 = vrot.slane %v1817, 5
    %v1865 = vsel %vm1593, %v1863, %v1864
    %1874 = vst [vmem:[#allocation6 + $0x14] sm:$0xf] %v1837
    %1875 = vst [vmem:[#allocation6 + $0x38] sm:$0xf] %v1841
    %1876 = vst [vmem:[#allocation6 + $0x5c] sm:$0xf] %v1845
    %1877 = vst [vmem:[#allocation6 + $0x80] sm:$0xf] %v1849
    %1878 = vst [vmem:[#allocation6 + $0xa4] sm:$0xf] %v1853
    %1879 = vst [vmem:[#allocation6 + $0xc8] sm:$0xf] %v1857
    %1880 = vst [vmem:[#allocation6 + $0xec] sm:$0xf] %v1861
    %1881 = vst [vmem:[#allocation6 + $0x110] sm:$0xf] %v1865
    %v1882 = vld [vmem:[%s941] sm:$0xf]
    %v1883 = vld [vmem:[%s941 + $0x8] sm:$0xf]
    %v1884 = vld [vmem:[%s941 + $0x10] sm:$0xf]
    %v1885 = vld [vmem:[%s941 + $0x18] sm:$0xf]
    %v1886 = vld [vmem:[%s941 + $0x20] sm:$0xf]
    %v1887 = vld [vmem:[%s941 + $0x28] sm:$0xf]
    %v1888 = vld [vmem:[%s941 + $0x30] sm:$0xf]
    %v1889 = vld [vmem:[%s941 + $0x38] sm:$0xf]
    %1890 = vst [vmem:[#allocation6 + $0x18] sm:$0xf] %v1882
    %1891 = vst [vmem:[#allocation6 + $0x3c] sm:$0xf] %v1883
    %1892 = vst [vmem:[#allocation6 + $0x60] sm:$0xf] %v1884
    %1893 = vst [vmem:[#allocation6 + $0x84] sm:$0xf] %v1885
    %1894 = vst [vmem:[#allocation6 + $0xa8] sm:$0xf] %v1886
    %1895 = vst [vmem:[#allocation6 + $0xcc] sm:$0xf] %v1887
    %1896 = vst [vmem:[#allocation6 + $0xf0] sm:$0xf] %v1888
    %1897 = vst [vmem:[#allocation6 + $0x114] sm:$0xf] %v1889
    %v1898 = vld [vmem:[%s941] sm:$0xf]
    %v1899 = vld [vmem:[%s941 + $0x4] sm:$0x1]
    %v1900 = vld [vmem:[%s941 + $0x8] sm:$0xf]
    %v1901 = vld [vmem:[%s941 + $0xc] sm:$0x1]
    %v1902 = vld [vmem:[%s941 + $0x10] sm:$0xf]
    %v1903 = vld [vmem:[%s941 + $0x14] sm:$0x1]
    %v1904 = vld [vmem:[%s941 + $0x18] sm:$0xf]
    %v1905 = vld [vmem:[%s941 + $0x1c] sm:$0x1]
    %v1906 = vld [vmem:[%s941 + $0x20] sm:$0xf]
    %v1907 = vld [vmem:[%s941 + $0x24] sm:$0x1]
    %v1908 = vld [vmem:[%s941 + $0x28] sm:$0xf]
    %v1909 = vld [vmem:[%s941 + $0x2c] sm:$0x1]
    %v1910 = vld [vmem:[%s941 + $0x30] sm:$0xf]
    %v1911 = vld [vmem:[%s941 + $0x34] sm:$0x1]
    %v1912 = vld [vmem:[%s941 + $0x38] sm:$0xf]
    %v1913 = vld [vmem:[%s941 + $0x3c] sm:$0x1]
    %v1915 = vshrl.u32 %v1898, 16
    %v1917 = vrot.slane %v1915, 4
    %v1918 = vshll.u32 %v1898, 16
    %v1920 = vrot.slane %v1918, 5
    %v1921 = vor.u32 %v1917, %v1920
    %v1922 = vrot.slane %v1921, 4
    %v1924 = vshll.u32 %v1899, 16
    %v1926 = vrot.slane %v1924, 5
    %v1927 = vsel %vm1430, %v1922, %v1926
    %v1929 = vshrl.u32 %v1900, 16
    %v1931 = vrot.slane %v1929, 4
    %v1932 = vshll.u32 %v1900, 16
    %v1934 = vrot.slane %v1932, 5
    %v1935 = vor.u32 %v1931, %v1934
    %v1936 = vrot.slane %v1935, 4
    %v1938 = vshll.u32 %v1901, 16
    %v1940 = vrot.slane %v1938, 5
    %v1941 = vsel %vm1430, %v1936, %v1940
    %v1943 = vshrl.u32 %v1902, 16
    %v1945 = vrot.slane %v1943, 4
    %v1946 = vshll.u32 %v1902, 16
    %v1948 = vrot.slane %v1946, 5
    %v1949 = vor.u32 %v1945, %v1948
    %v1950 = vrot.slane %v1949, 4
    %v1952 = vshll.u32 %v1903, 16
    %v1954 = vrot.slane %v1952, 5
    %v1955 = vsel %vm1430, %v1950, %v1954
    %v1957 = vshrl.u32 %v1904, 16
    %v1959 = vrot.slane %v1957, 4
    %v1960 = vshll.u32 %v1904, 16
    %v1962 = vrot.slane %v1960, 5
    %v1963 = vor.u32 %v1959, %v1962
    %v1964 = vrot.slane %v1963, 4
    %v1966 = vshll.u32 %v1905, 16
    %v1968 = vrot.slane %v1966, 5
    %v1969 = vsel %vm1430, %v1964, %v1968
    %v1971 = vshrl.u32 %v1906, 16
    %v1973 = vrot.slane %v1971, 4
    %v1974 = vshll.u32 %v1906, 16
    %v1976 = vrot.slane %v1974, 5
    %v1977 = vor.u32 %v1973, %v1976
    %v1978 = vrot.slane %v1977, 4
    %v1980 = vshll.u32 %v1907, 16
    %v1982 = vrot.slane %v1980, 5
    %v1983 = vsel %vm1430, %v1978, %v1982
    %v1985 = vshrl.u32 %v1908, 16
    %v1987 = vrot.slane %v1985, 4
    %v1988 = vshll.u32 %v1908, 16
    %v1990 = vrot.slane %v1988, 5
    %v1991 = vor.u32 %v1987, %v1990
    %v1992 = vrot.slane %v1991, 4
    %v1994 = vshll.u32 %v1909, 16
    %v1996 = vrot.slane %v1994, 5
    %v1997 = vsel %vm1430, %v1992, %v1996
    %v1999 = vshrl.u32 %v1910, 16
    %v2001 = vrot.slane %v1999, 4
    %v2002 = vshll.u32 %v1910, 16
    %v2004 = vrot.slane %v2002, 5
    %v2005 = vor.u32 %v2001, %v2004
    %v2006 = vrot.slane %v2005, 4
    %v2008 = vshll.u32 %v1911, 16
    %v2010 = vrot.slane %v2008, 5
    %v2011 = vsel %vm1430, %v2006, %v2010
    %v2013 = vshrl.u32 %v1912, 16
    %v2015 = vrot.slane %v2013, 4
    %v2016 = vshll.u32 %v1912, 16
    %v2018 = vrot.slane %v2016, 5
    %v2019 = vor.u32 %v2015, %v2018
    %v2020 = vrot.slane %v2019, 4
    %v2022 = vshll.u32 %v1913, 16
    %v2024 = vrot.slane %v2022, 5
    %v2025 = vsel %vm1430, %v2020, %v2024
    %2034 = vst [vmem:[#allocation6 + $0x1c] sm:$0xf] %v1927
    %2035 = vst [vmem:[#allocation6 + $0x40] sm:$0xf] %v1941
    %2036 = vst [vmem:[#allocation6 + $0x64] sm:$0xf] %v1955
    %2037 = vst [vmem:[#allocation6 + $0x88] sm:$0xf] %v1969
    %2038 = vst [vmem:[#allocation6 + $0xac] sm:$0xf] %v1983
    %2039 = vst [vmem:[#allocation6 + $0xd0] sm:$0xf] %v1997
    %2040 = vst [vmem:[#allocation6 + $0xf4] sm:$0xf] %v2011
    %2041 = vst [vmem:[#allocation6 + $0x118] sm:$0xf] %v2025
    %v2042 = vld [vmem:[%s941] sm:$0xe]
    %v2043 = vld [vmem:[%s941 + $0x4] sm:$0x1]
    %v2044 = vld [vmem:[%s941 + $0x8] sm:$0xe]
    %v2045 = vld [vmem:[%s941 + $0xc] sm:$0x1]
    %v2046 = vld [vmem:[%s941 + $0x10] sm:$0xe]
    %v2047 = vld [vmem:[%s941 + $0x14] sm:$0x1]
    %v2048 = vld [vmem:[%s941 + $0x18] sm:$0xe]
    %v2049 = vld [vmem:[%s941 + $0x1c] sm:$0x1]
    %v2050 = vld [vmem:[%s941 + $0x20] sm:$0xe]
    %v2051 = vld [vmem:[%s941 + $0x24] sm:$0x1]
    %v2052 = vld [vmem:[%s941 + $0x28] sm:$0xe]
    %v2053 = vld [vmem:[%s941 + $0x2c] sm:$0x1]
    %v2054 = vld [vmem:[%s941 + $0x30] sm:$0xe]
    %v2055 = vld [vmem:[%s941 + $0x34] sm:$0x1]
    %v2056 = vld [vmem:[%s941 + $0x38] sm:$0xe]
    %v2057 = vld [vmem:[%s941 + $0x3c] sm:$0x1]
    %v2074 = vrot.slane %v2042, 5
    %v2075 = vrot.slane %v2074, 4
    %v2076 = vrot.slane %v2043, 5
    %v2077 = vsel %vm1593, %v2075, %v2076
    %v2078 = vrot.slane %v2044, 5
    %v2079 = vrot.slane %v2078, 4
    %v2080 = vrot.slane %v2045, 5
    %v2081 = vsel %vm1593, %v2079, %v2080
    %v2082 = vrot.slane %v2046, 5
    %v2083 = vrot.slane %v2082, 4
    %v2084 = vrot.slane %v2047, 5
    %v2085 = vsel %vm1593, %v2083, %v2084
    %v2086 = vrot.slane %v2048, 5
    %v2087 = vrot.slane %v2086, 4
    %v2088 = vrot.slane %v2049, 5
    %v2089 = vsel %vm1593, %v2087, %v2088
    %v2090 = vrot.slane %v2050, 5
    %v2091 = vrot.slane %v2090, 4
    %v2092 = vrot.slane %v2051, 5
    %v2093 = vsel %vm1593, %v2091, %v2092
    %v2094 = vrot.slane %v2052, 5
    %v2095 = vrot.slane %v2094, 4
    %v2096 = vrot.slane %v2053, 5
    %v2097 = vsel %vm1593, %v2095, %v2096
    %v2098 = vrot.slane %v2054, 5
    %v2099 = vrot.slane %v2098, 4
    %v2100 = vrot.slane %v2055, 5
    %v2101 = vsel %vm1593, %v2099, %v2100
    %v2102 = vrot.slane %v2056, 5
    %v2103 = vrot.slane %v2102, 4
    %v2104 = vrot.slane %v2057, 5
    %v2105 = vsel %vm1593, %v2103, %v2104
    %2114 = vst [vmem:[#allocation6 + $0x20] sm:$0xf] %v2077
    %2115 = vst [vmem:[#allocation6 + $0x44] sm:$0xf] %v2081
    %2116 = vst [vmem:[#allocation6 + $0x68] sm:$0xf] %v2085
    %2117 = vst [vmem:[#allocation6 + $0x8c] sm:$0xf] %v2089
    %2118 = vst [vmem:[#allocation6 + $0xb0] sm:$0xf] %v2093
    %2119 = vst [vmem:[#allocation6 + $0xd4] sm:$0xf] %v2097
    %2120 = vst [vmem:[#allocation6 + $0xf8] sm:$0xf] %v2101
    %2121 = vst [vmem:[#allocation6 + $0x11c] sm:$0xf] %v2105
    %s2122 = scalar_lea.vmem [#allocation2], 80
    %v2123 = vld [vmem:[%s2122] sm:$0xf]
    %v2124 = vld [vmem:[%s2122 + $0x8] sm:$0xf]
    %v2125 = vld [vmem:[%s2122 + $0x10] sm:$0xf]
    %v2126 = vld [vmem:[%s2122 + $0x18] sm:$0xf]
    %v2127 = vld [vmem:[%s2122 + $0x20] sm:$0xf]
    %v2128 = vld [vmem:[%s2122 + $0x28] sm:$0xf]
    %v2129 = vld [vmem:[%s2122 + $0x30] sm:$0xf]
    %v2130 = vld [vmem:[%s2122 + $0x38] sm:$0xf]
    %s2131 = scalar_lea.vmem [#allocation6], 288
    %2132 = vst [vmem:[%s2131] sm:$0xf] %v2123
    %2133 = vst [vmem:[%s2131 + $0x24] sm:$0xf] %v2124
    %2134 = vst [vmem:[%s2131 + $0x48] sm:$0xf] %v2125
    %2135 = vst [vmem:[%s2131 + $0x6c] sm:$0xf] %v2126
    %2136 = vst [vmem:[%s2131 + $0x90] sm:$0xf] %v2127
    %2137 = vst [vmem:[%s2131 + $0xb4] sm:$0xf] %v2128
    %2138 = vst [vmem:[%s2131 + $0xd8] sm:$0xf] %v2129
    %2139 = vst [vmem:[%s2131 + $0xfc] sm:$0xf] %v2130
    %v2140 = vld [vmem:[%s2122] sm:$0xf]
    %v2141 = vld [vmem:[%s2122 + $0x4] sm:$0x1]
    %v2142 = vld [vmem:[%s2122 + $0x8] sm:$0xf]
    %v2143 = vld [vmem:[%s2122 + $0xc] sm:$0x1]
    %v2144 = vld [vmem:[%s2122 + $0x10] sm:$0xf]
    %v2145 = vld [vmem:[%s2122 + $0x14] sm:$0x1]
    %v2146 = vld [vmem:[%s2122 + $0x18] sm:$0xf]
    %v2147 = vld [vmem:[%s2122 + $0x1c] sm:$0x1]
    %v2148 = vld [vmem:[%s2122 + $0x20] sm:$0xf]
    %v2149 = vld [vmem:[%s2122 + $0x24] sm:$0x1]
    %v2150 = vld [vmem:[%s2122 + $0x28] sm:$0xf]
    %v2151 = vld [vmem:[%s2122 + $0x2c] sm:$0x1]
    %v2152 = vld [vmem:[%s2122 + $0x30] sm:$0xf]
    %v2153 = vld [vmem:[%s2122 + $0x34] sm:$0x1]
    %v2154 = vld [vmem:[%s2122 + $0x38] sm:$0xf]
    %v2155 = vld [vmem:[%s2122 + $0x3c] sm:$0x1]
    %v2157 = vshrl.u32 %v2140, 16
    %v2159 = vrot.slane %v2157, 4
    %v2160 = vshll.u32 %v2140, 16
    %v2162 = vrot.slane %v2160, 5
    %v2163 = vor.u32 %v2159, %v2162
    %v2164 = vrot.slane %v2163, 4
    %v2166 = vshll.u32 %v2141, 16
    %v2168 = vrot.slane %v2166, 5
    %v2169 = vsel %vm1430, %v2164, %v2168
    %v2171 = vshrl.u32 %v2142, 16
    %v2173 = vrot.slane %v2171, 4
    %v2174 = vshll.u32 %v2142, 16
    %v2176 = vrot.slane %v2174, 5
    %v2177 = vor.u32 %v2173, %v2176
    %v2178 = vrot.slane %v2177, 4
    %v2180 = vshll.u32 %v2143, 16
    %v2182 = vrot.slane %v2180, 5
    %v2183 = vsel %vm1430, %v2178, %v2182
    %v2185 = vshrl.u32 %v2144, 16
    %v2187 = vrot.slane %v2185, 4
    %v2188 = vshll.u32 %v2144, 16
    %v2190 = vrot.slane %v2188, 5
    %v2191 = vor.u32 %v2187, %v2190
    %v2192 = vrot.slane %v2191, 4
    %v2194 = vshll.u32 %v2145, 16
    %v2196 = vrot.slane %v2194, 5
    %v2197 = vsel %vm1430, %v2192, %v2196
    %v2199 = vshrl.u32 %v2146, 16
    %v2201 = vrot.slane %v2199, 4
    %v2202 = vshll.u32 %v2146, 16
    %v2204 = vrot.slane %v2202, 5
    %v2205 = vor.u32 %v2201, %v2204
    %v2206 = vrot.slane %v2205, 4
    %v2208 = vshll.u32 %v2147, 16
    %v2210 = vrot.slane %v2208, 5
    %v2211 = vsel %vm1430, %v2206, %v2210
    %v2213 = vshrl.u32 %v2148, 16
    %v2215 = vrot.slane %v2213, 4
    %v2216 = vshll.u32 %v2148, 16
    %v2218 = vrot.slane %v2216, 5
    %v2219 = vor.u32 %v2215, %v2218
    %v2220 = vrot.slane %v2219, 4
    %v2222 = vshll.u32 %v2149, 16
    %v2224 = vrot.slane %v2222, 5
    %v2225 = vsel %vm1430, %v2220, %v2224
    %v2227 = vshrl.u32 %v2150, 16
    %v2229 = vrot.slane %v2227, 4
    %v2230 = vshll.u32 %v2150, 16
    %v2232 = vrot.slane %v2230, 5
    %v2233 = vor.u32 %v2229, %v2232
    %v2234 = vrot.slane %v2233, 4
    %v2236 = vshll.u32 %v2151, 16
    %v2238 = vrot.slane %v2236, 5
    %v2239 = vsel %vm1430, %v2234, %v2238
    %v2241 = vshrl.u32 %v2152, 16
    %v2243 = vrot.slane %v2241, 4
    %v2244 = vshll.u32 %v2152, 16
    %v2246 = vrot.slane %v2244, 5
    %v2247 = vor.u32 %v2243, %v2246
    %v2248 = vrot.slane %v2247, 4
    %v2250 = vshll.u32 %v2153, 16
    %v2252 = vrot.slane %v2250, 5
    %v2253 = vsel %vm1430, %v2248, %v2252
    %v2255 = vshrl.u32 %v2154, 16
    %v2257 = vrot.slane %v2255, 4
    %v2258 = vshll.u32 %v2154, 16
    %v2260 = vrot.slane %v2258, 5
    %v2261 = vor.u32 %v2257, %v2260
    %v2262 = vrot.slane %v2261, 4
    %v2264 = vshll.u32 %v2155, 16
    %v2266 = vrot.slane %v2264, 5
    %v2267 = vsel %vm1430, %v2262, %v2266
    %2276 = vst [vmem:[%s2131 + $0x4] sm:$0xf] %v2169
    %2277 = vst [vmem:[%s2131 + $0x28] sm:$0xf] %v2183
    %2278 = vst [vmem:[%s2131 + $0x4c] sm:$0xf] %v2197
    %2279 = vst [vmem:[%s2131 + $0x70] sm:$0xf] %v2211
    %2280 = vst [vmem:[%s2131 + $0x94] sm:$0xf] %v2225
    %2281 = vst [vmem:[%s2131 + $0xb8] sm:$0xf] %v2239
    %2282 = vst [vmem:[%s2131 + $0xdc] sm:$0xf] %v2253
    %2283 = vst [vmem:[%s2131 + $0x100] sm:$0xf] %v2267
    %v2284 = vld [vmem:[%s2122] sm:$0xe]
    %v2285 = vld [vmem:[%s2122 + $0x4] sm:$0x1]
    %v2286 = vld [vmem:[%s2122 + $0x8] sm:$0xe]
    %v2287 = vld [vmem:[%s2122 + $0xc] sm:$0x1]
    %v2288 = vld [vmem:[%s2122 + $0x10] sm:$0xe]
    %v2289 = vld [vmem:[%s2122 + $0x14] sm:$0x1]
    %v2290 = vld [vmem:[%s2122 + $0x18] sm:$0xe]
    %v2291 = vld [vmem:[%s2122 + $0x1c] sm:$0x1]
    %v2292 = vld [vmem:[%s2122 + $0x20] sm:$0xe]
    %v2293 = vld [vmem:[%s2122 + $0x24] sm:$0x1]
    %v2294 = vld [vmem:[%s2122 + $0x28] sm:$0xe]
    %v2295 = vld [vmem:[%s2122 + $0x2c] sm:$0x1]
    %v2296 = vld [vmem:[%s2122 + $0x30] sm:$0xe]
    %v2297 = vld [vmem:[%s2122 + $0x34] sm:$0x1]
    %v2298 = vld [vmem:[%s2122 + $0x38] sm:$0xe]
    %v2299 = vld [vmem:[%s2122 + $0x3c] sm:$0x1]
    %v2316 = vrot.slane %v2284, 5
    %v2317 = vrot.slane %v2316, 4
    %v2318 = vrot.slane %v2285, 5
    %v2319 = vsel %vm1593, %v2317, %v2318
    %v2320 = vrot.slane %v2286, 5
    %v2321 = vrot.slane %v2320, 4
    %v2322 = vrot.slane %v2287, 5
    %v2323 = vsel %vm1593, %v2321, %v2322
    %v2324 = vrot.slane %v2288, 5
    %v2325 = vrot.slane %v2324, 4
    %v2326 = vrot.slane %v2289, 5
    %v2327 = vsel %vm1593, %v2325, %v2326
    %v2328 = vrot.slane %v2290, 5
    %v2329 = vrot.slane %v2328, 4
    %v2330 = vrot.slane %v2291, 5
    %v2331 = vsel %vm1593, %v2329, %v2330
    %v2332 = vrot.slane %v2292, 5
    %v2333 = vrot.slane %v2332, 4
    %v2334 = vrot.slane %v2293, 5
    %v2335 = vsel %vm1593, %v2333, %v2334
    %v2336 = vrot.slane %v2294, 5
    %v2337 = vrot.slane %v2336, 4
    %v2338 = vrot.slane %v2295, 5
    %v2339 = vsel %vm1593, %v2337, %v2338
    %v2340 = vrot.slane %v2296, 5
    %v2341 = vrot.slane %v2340, 4
    %v2342 = vrot.slane %v2297, 5
    %v2343 = vsel %vm1593, %v2341, %v2342
    %v2344 = vrot.slane %v2298, 5
    %v2345 = vrot.slane %v2344, 4
    %v2346 = vrot.slane %v2299, 5
    %v2347 = vsel %vm1593, %v2345, %v2346
    %2356 = vst [vmem:[%s2131 + $0x8] sm:$0xf] %v2319
    %2357 = vst [vmem:[%s2131 + $0x2c] sm:$0xf] %v2323
    %2358 = vst [vmem:[%s2131 + $0x50] sm:$0xf] %v2327
    %2359 = vst [vmem:[%s2131 + $0x74] sm:$0xf] %v2331
    %2360 = vst [vmem:[%s2131 + $0x98] sm:$0xf] %v2335
    %2361 = vst [vmem:[%s2131 + $0xbc] sm:$0xf] %v2339
    %2362 = vst [vmem:[%s2131 + $0xe0] sm:$0xf] %v2343
    %2363 = vst [vmem:[%s2131 + $0x104] sm:$0xf] %v2347
    %v2364 = vld [vmem:[%s1165] sm:$0xf]
    %v2365 = vld [vmem:[%s1165 + $0x8] sm:$0xf]
    %v2366 = vld [vmem:[%s1165 + $0x10] sm:$0xf]
    %v2367 = vld [vmem:[%s1165 + $0x18] sm:$0xf]
    %v2368 = vld [vmem:[%s1165 + $0x20] sm:$0xf]
    %v2369 = vld [vmem:[%s1165 + $0x28] sm:$0xf]
    %v2370 = vld [vmem:[%s1165 + $0x30] sm:$0xf]
    %v2371 = vld [vmem:[%s1165 + $0x38] sm:$0xf]
    %2372 = vst [vmem:[%s2131 + $0xc] sm:$0xf] %v2364
    %2373 = vst [vmem:[%s2131 + $0x30] sm:$0xf] %v2365
    %2374 = vst [vmem:[%s2131 + $0x54] sm:$0xf] %v2366
    %2375 = vst [vmem:[%s2131 + $0x78] sm:$0xf] %v2367
    %2376 = vst [vmem:[%s2131 + $0x9c] sm:$0xf] %v2368
    %2377 = vst [vmem:[%s2131 + $0xc0] sm:$0xf] %v2369
    %2378 = vst [vmem:[%s2131 + $0xe4] sm:$0xf] %v2370
    %2379 = vst [vmem:[%s2131 + $0x108] sm:$0xf] %v2371
    %v2380 = vld [vmem:[%s1165] sm:$0xf]
    %v2381 = vld [vmem:[%s1165 + $0x4] sm:$0x1]
    %v2382 = vld [vmem:[%s1165 + $0x8] sm:$0xf]
    %v2383 = vld [vmem:[%s1165 + $0xc] sm:$0x1]
    %v2384 = vld [vmem:[%s1165 + $0x10] sm:$0xf]
    %v2385 = vld [vmem:[%s1165 + $0x14] sm:$0x1]
    %v2386 = vld [vmem:[%s1165 + $0x18] sm:$0xf]
    %v2387 = vld [vmem:[%s1165 + $0x1c] sm:$0x1]
    %v2388 = vld [vmem:[%s1165 + $0x20] sm:$0xf]
    %v2389 = vld [vmem:[%s1165 + $0x24] sm:$0x1]
    %v2390 = vld [vmem:[%s1165 + $0x28] sm:$0xf]
    %v2391 = vld [vmem:[%s1165 + $0x2c] sm:$0x1]
    %v2392 = vld [vmem:[%s1165 + $0x30] sm:$0xf]
    %v2393 = vld [vmem:[%s1165 + $0x34] sm:$0x1]
    %v2394 = vld [vmem:[%s1165 + $0x38] sm:$0xf]
    %v2395 = vld [vmem:[%s1165 + $0x3c] sm:$0x1]
    %v2397 = vshrl.u32 %v2380, 16
    %v2399 = vrot.slane %v2397, 4
    %v2400 = vshll.u32 %v2380, 16
    %v2402 = vrot.slane %v2400, 5
    %v2403 = vor.u32 %v2399, %v2402
    %v2404 = vrot.slane %v2403, 4
    %v2406 = vshll.u32 %v2381, 16
    %v2408 = vrot.slane %v2406, 5
    %v2409 = vsel %vm1430, %v2404, %v2408
    %v2411 = vshrl.u32 %v2382, 16
    %v2413 = vrot.slane %v2411, 4
    %v2414 = vshll.u32 %v2382, 16
    %v2416 = vrot.slane %v2414, 5
    %v2417 = vor.u32 %v2413, %v2416
    %v2418 = vrot.slane %v2417, 4
    %v2420 = vshll.u32 %v2383, 16
    %v2422 = vrot.slane %v2420, 5
    %v2423 = vsel %vm1430, %v2418, %v2422
    %v2425 = vshrl.u32 %v2384, 16
    %v2427 = vrot.slane %v2425, 4
    %v2428 = vshll.u32 %v2384, 16
    %v2430 = vrot.slane %v2428, 5
    %v2431 = vor.u32 %v2427, %v2430
    %v2432 = vrot.slane %v2431, 4
    %v2434 = vshll.u32 %v2385, 16
    %v2436 = vrot.slane %v2434, 5
    %v2437 = vsel %vm1430, %v2432, %v2436
    %v2439 = vshrl.u32 %v2386, 16
    %v2441 = vrot.slane %v2439, 4
    %v2442 = vshll.u32 %v2386, 16
    %v2444 = vrot.slane %v2442, 5
    %v2445 = vor.u32 %v2441, %v2444
    %v2446 = vrot.slane %v2445, 4
    %v2448 = vshll.u32 %v2387, 16
    %v2450 = vrot.slane %v2448, 5
    %v2451 = vsel %vm1430, %v2446, %v2450
    %v2453 = vshrl.u32 %v2388, 16
    %v2455 = vrot.slane %v2453, 4
    %v2456 = vshll.u32 %v2388, 16
    %v2458 = vrot.slane %v2456, 5
    %v2459 = vor.u32 %v2455, %v2458
    %v2460 = vrot.slane %v2459, 4
    %v2462 = vshll.u32 %v2389, 16
    %v2464 = vrot.slane %v2462, 5
    %v2465 = vsel %vm1430, %v2460, %v2464
    %v2467 = vshrl.u32 %v2390, 16
    %v2469 = vrot.slane %v2467, 4
    %v2470 = vshll.u32 %v2390, 16
    %v2472 = vrot.slane %v2470, 5
    %v2473 = vor.u32 %v2469, %v2472
    %v2474 = vrot.slane %v2473, 4
    %v2476 = vshll.u32 %v2391, 16
    %v2478 = vrot.slane %v2476, 5
    %v2479 = vsel %vm1430, %v2474, %v2478
    %v2481 = vshrl.u32 %v2392, 16
    %v2483 = vrot.slane %v2481, 4
    %v2484 = vshll.u32 %v2392, 16
    %v2486 = vrot.slane %v2484, 5
    %v2487 = vor.u32 %v2483, %v2486
    %v2488 = vrot.slane %v2487, 4
    %v2490 = vshll.u32 %v2393, 16
    %v2492 = vrot.slane %v2490, 5
    %v2493 = vsel %vm1430, %v2488, %v2492
    %v2495 = vshrl.u32 %v2394, 16
    %v2497 = vrot.slane %v2495, 4
    %v2498 = vshll.u32 %v2394, 16
    %v2500 = vrot.slane %v2498, 5
    %v2501 = vor.u32 %v2497, %v2500
    %v2502 = vrot.slane %v2501, 4
    %v2504 = vshll.u32 %v2395, 16
    %v2506 = vrot.slane %v2504, 5
    %v2507 = vsel %vm1430, %v2502, %v2506
    %2516 = vst [vmem:[%s2131 + $0x10] sm:$0xf] %v2409
    %2517 = vst [vmem:[%s2131 + $0x34] sm:$0xf] %v2423
    %2518 = vst [vmem:[%s2131 + $0x58] sm:$0xf] %v2437
    %2519 = vst [vmem:[%s2131 + $0x7c] sm:$0xf] %v2451
    %2520 = vst [vmem:[%s2131 + $0xa0] sm:$0xf] %v2465
    %2521 = vst [vmem:[%s2131 + $0xc4] sm:$0xf] %v2479
    %2522 = vst [vmem:[%s2131 + $0xe8] sm:$0xf] %v2493
    %2523 = vst [vmem:[%s2131 + $0x10c] sm:$0xf] %v2507
    %v2524 = vld [vmem:[%s1165] sm:$0xe]
    %v2525 = vld [vmem:[%s1165 + $0x4] sm:$0x1]
    %v2526 = vld [vmem:[%s1165 + $0x8] sm:$0xe]
    %v2527 = vld [vmem:[%s1165 + $0xc] sm:$0x1]
    %v2528 = vld [vmem:[%s1165 + $0x10] sm:$0xe]
    %v2529 = vld [vmem:[%s1165 + $0x14] sm:$0x1]
    %v2530 = vld [vmem:[%s1165 + $0x18] sm:$0xe]
    %v2531 = vld [vmem:[%s1165 + $0x1c] sm:$0x1]
    %v2532 = vld [vmem:[%s1165 + $0x20] sm:$0xe]
    %v2533 = vld [vmem:[%s1165 + $0x24] sm:$0x1]
    %v2534 = vld [vmem:[%s1165 + $0x28] sm:$0xe]
    %v2535 = vld [vmem:[%s1165 + $0x2c] sm:$0x1]
    %v2536 = vld [vmem:[%s1165 + $0x30] sm:$0xe]
    %v2537 = vld [vmem:[%s1165 + $0x34] sm:$0x1]
    %v2538 = vld [vmem:[%s1165 + $0x38] sm:$0xe]
    %v2539 = vld [vmem:[%s1165 + $0x3c] sm:$0x1]
    %v2556 = vrot.slane %v2524, 5
    %v2557 = vrot.slane %v2556, 4
    %v2558 = vrot.slane %v2525, 5
    %v2559 = vsel %vm1593, %v2557, %v2558
    %v2560 = vrot.slane %v2526, 5
    %v2561 = vrot.slane %v2560, 4
    %v2562 = vrot.slane %v2527, 5
    %v2563 = vsel %vm1593, %v2561, %v2562
    %v2564 = vrot.slane %v2528, 5
    %v2565 = vrot.slane %v2564, 4
    %v2566 = vrot.slane %v2529, 5
    %v2567 = vsel %vm1593, %v2565, %v2566
    %v2568 = vrot.slane %v2530, 5
    %v2569 = vrot.slane %v2568, 4
    %v2570 = vrot.slane %v2531, 5
    %v2571 = vsel %vm1593, %v2569, %v2570
    %v2572 = vrot.slane %v2532, 5
    %v2573 = vrot.slane %v2572, 4
    %v2574 = vrot.slane %v2533, 5
    %v2575 = vsel %vm1593, %v2573, %v2574
    %v2576 = vrot.slane %v2534, 5
    %v2577 = vrot.slane %v2576, 4
    %v2578 = vrot.slane %v2535, 5
    %v2579 = vsel %vm1593, %v2577, %v2578
    %v2580 = vrot.slane %v2536, 5
    %v2581 = vrot.slane %v2580, 4
    %v2582 = vrot.slane %v2537, 5
    %v2583 = vsel %vm1593, %v2581, %v2582
    %v2584 = vrot.slane %v2538, 5
    %v2585 = vrot.slane %v2584, 4
    %v2586 = vrot.slane %v2539, 5
    %v2587 = vsel %vm1593, %v2585, %v2586
    %2596 = vst [vmem:[%s2131 + $0x14] sm:$0xf] %v2559
    %2597 = vst [vmem:[%s2131 + $0x38] sm:$0xf] %v2563
    %2598 = vst [vmem:[%s2131 + $0x5c] sm:$0xf] %v2567
    %2599 = vst [vmem:[%s2131 + $0x80] sm:$0xf] %v2571
    %2600 = vst [vmem:[%s2131 + $0xa4] sm:$0xf] %v2575
    %2601 = vst [vmem:[%s2131 + $0xc8] sm:$0xf] %v2579
    %2602 = vst [vmem:[%s2131 + $0xec] sm:$0xf] %v2583
    %2603 = vst [vmem:[%s2131 + $0x110] sm:$0xf] %v2587
    %v2604 = vld [vmem:[%s1197] sm:$0xf]
    %v2605 = vld [vmem:[%s1197 + $0x8] sm:$0xf]
    %v2606 = vld [vmem:[%s1197 + $0x10] sm:$0xf]
    %v2607 = vld [vmem:[%s1197 + $0x18] sm:$0xf]
    %v2608 = vld [vmem:[%s1197 + $0x20] sm:$0xf]
    %v2609 = vld [vmem:[%s1197 + $0x28] sm:$0xf]
    %v2610 = vld [vmem:[%s1197 + $0x30] sm:$0xf]
    %v2611 = vld [vmem:[%s1197 + $0x38] sm:$0xf]
    %2612 = vst [vmem:[%s2131 + $0x18] sm:$0xf] %v2604
    %2613 = vst [vmem:[%s2131 + $0x3c] sm:$0xf] %v2605
    %2614 = vst [vmem:[%s2131 + $0x60] sm:$0xf] %v2606
    %2615 = vst [vmem:[%s2131 + $0x84] sm:$0xf] %v2607
    %2616 = vst [vmem:[%s2131 + $0xa8] sm:$0xf] %v2608
    %2617 = vst [vmem:[%s2131 + $0xcc] sm:$0xf] %v2609
    %2618 = vst [vmem:[%s2131 + $0xf0] sm:$0xf] %v2610
    %2619 = vst [vmem:[%s2131 + $0x114] sm:$0xf] %v2611
    %v2620 = vld [vmem:[%s1197] sm:$0xf]
    %v2621 = vld [vmem:[%s1197 + $0x4] sm:$0x1]
    %v2622 = vld [vmem:[%s1197 + $0x8] sm:$0xf]
    %v2623 = vld [vmem:[%s1197 + $0xc] sm:$0x1]
    %v2624 = vld [vmem:[%s1197 + $0x10] sm:$0xf]
    %v2625 = vld [vmem:[%s1197 + $0x14] sm:$0x1]
    %v2626 = vld [vmem:[%s1197 + $0x18] sm:$0xf]
    %v2627 = vld [vmem:[%s1197 + $0x1c] sm:$0x1]
    %v2628 = vld [vmem:[%s1197 + $0x20] sm:$0xf]
    %v2629 = vld [vmem:[%s1197 + $0x24] sm:$0x1]
    %v2630 = vld [vmem:[%s1197 + $0x28] sm:$0xf]
    %v2631 = vld [vmem:[%s1197 + $0x2c] sm:$0x1]
    %v2632 = vld [vmem:[%s1197 + $0x30] sm:$0xf]
    %v2633 = vld [vmem:[%s1197 + $0x34] sm:$0x1]
    %v2634 = vld [vmem:[%s1197 + $0x38] sm:$0xf]
    %v2635 = vld [vmem:[%s1197 + $0x3c] sm:$0x1]
    %v2637 = vshrl.u32 %v2620, 16
    %v2639 = vrot.slane %v2637, 4
    %v2640 = vshll.u32 %v2620, 16
    %v2642 = vrot.slane %v2640, 5
    %v2643 = vor.u32 %v2639, %v2642
    %v2644 = vrot.slane %v2643, 4
    %v2646 = vshll.u32 %v2621, 16
    %v2648 = vrot.slane %v2646, 5
    %v2649 = vsel %vm1430, %v2644, %v2648
    %v2651 = vshrl.u32 %v2622, 16
    %v2653 = vrot.slane %v2651, 4
    %v2654 = vshll.u32 %v2622, 16
    %v2656 = vrot.slane %v2654, 5
    %v2657 = vor.u32 %v2653, %v2656
    %v2658 = vrot.slane %v2657, 4
    %v2660 = vshll.u32 %v2623, 16
    %v2662 = vrot.slane %v2660, 5
    %v2663 = vsel %vm1430, %v2658, %v2662
    %v2665 = vshrl.u32 %v2624, 16
    %v2667 = vrot.slane %v2665, 4
    %v2668 = vshll.u32 %v2624, 16
    %v2670 = vrot.slane %v2668, 5
    %v2671 = vor.u32 %v2667, %v2670
    %v2672 = vrot.slane %v2671, 4
    %v2674 = vshll.u32 %v2625, 16
    %v2676 = vrot.slane %v2674, 5
    %v2677 = vsel %vm1430, %v2672, %v2676
    %v2679 = vshrl.u32 %v2626, 16
    %v2681 = vrot.slane %v2679, 4
    %v2682 = vshll.u32 %v2626, 16
    %v2684 = vrot.slane %v2682, 5
    %v2685 = vor.u32 %v2681, %v2684
    %v2686 = vrot.slane %v2685, 4
    %v2688 = vshll.u32 %v2627, 16
    %v2690 = vrot.slane %v2688, 5
    %v2691 = vsel %vm1430, %v2686, %v2690
    %v2693 = vshrl.u32 %v2628, 16
    %v2695 = vrot.slane %v2693, 4
    %v2696 = vshll.u32 %v2628, 16
    %v2698 = vrot.slane %v2696, 5
    %v2699 = vor.u32 %v2695, %v2698
    %v2700 = vrot.slane %v2699, 4
    %v2702 = vshll.u32 %v2629, 16
    %v2704 = vrot.slane %v2702, 5
    %v2705 = vsel %vm1430, %v2700, %v2704
    %v2707 = vshrl.u32 %v2630, 16
    %v2709 = vrot.slane %v2707, 4
    %v2710 = vshll.u32 %v2630, 16
    %v2712 = vrot.slane %v2710, 5
    %v2713 = vor.u32 %v2709, %v2712
    %v2714 = vrot.slane %v2713, 4
    %v2716 = vshll.u32 %v2631, 16
    %v2718 = vrot.slane %v2716, 5
    %v2719 = vsel %vm1430, %v2714, %v2718
    %v2721 = vshrl.u32 %v2632, 16
    %v2723 = vrot.slane %v2721, 4
    %v2724 = vshll.u32 %v2632, 16
    %v2726 = vrot.slane %v2724, 5
    %v2727 = vor.u32 %v2723, %v2726
    %v2728 = vrot.slane %v2727, 4
    %v2730 = vshll.u32 %v2633, 16
    %v2732 = vrot.slane %v2730, 5
    %v2733 = vsel %vm1430, %v2728, %v2732
    %v2735 = vshrl.u32 %v2634, 16
    %v2737 = vrot.slane %v2735, 4
    %v2738 = vshll.u32 %v2634, 16
    %v2740 = vrot.slane %v2738, 5
    %v2741 = vor.u32 %v2737, %v2740
    %v2742 = vrot.slane %v2741, 4
    %v2744 = vshll.u32 %v2635, 16
    %v2746 = vrot.slane %v2744, 5
    %v2747 = vsel %vm1430, %v2742, %v2746
    %2756 = vst [vmem:[%s2131 + $0x1c] sm:$0xf] %v2649
    %2757 = vst [vmem:[%s2131 + $0x40] sm:$0xf] %v2663
    %2758 = vst [vmem:[%s2131 + $0x64] sm:$0xf] %v2677
    %2759 = vst [vmem:[%s2131 + $0x88] sm:$0xf] %v2691
    %2760 = vst [vmem:[%s2131 + $0xac] sm:$0xf] %v2705
    %2761 = vst [vmem:[%s2131 + $0xd0] sm:$0xf] %v2719
    %2762 = vst [vmem:[%s2131 + $0xf4] sm:$0xf] %v2733
    %2763 = vst [vmem:[%s2131 + $0x118] sm:$0xf] %v2747
    %v2764 = vld [vmem:[%s1197] sm:$0xe]
    %v2765 = vld [vmem:[%s1197 + $0x4] sm:$0x1]
    %v2766 = vld [vmem:[%s1197 + $0x8] sm:$0xe]
    %v2767 = vld [vmem:[%s1197 + $0xc] sm:$0x1]
    %v2768 = vld [vmem:[%s1197 + $0x10] sm:$0xe]
    %v2769 = vld [vmem:[%s1197 + $0x14] sm:$0x1]
    %v2770 = vld [vmem:[%s1197 + $0x18] sm:$0xe]
    %v2771 = vld [vmem:[%s1197 + $0x1c] sm:$0x1]
    %v2772 = vld [vmem:[%s1197 + $0x20] sm:$0xe]
    %v2773 = vld [vmem:[%s1197 + $0x24] sm:$0x1]
    %v2774 = vld [vmem:[%s1197 + $0x28] sm:$0xe]
    %v2775 = vld [vmem:[%s1197 + $0x2c] sm:$0x1]
    %v2776 = vld [vmem:[%s1197 + $0x30] sm:$0xe]
    %v2777 = vld [vmem:[%s1197 + $0x34] sm:$0x1]
    %v2778 = vld [vmem:[%s1197 + $0x38] sm:$0xe]
    %v2779 = vld [vmem:[%s1197 + $0x3c] sm:$0x1]
    %v2796 = vrot.slane %v2764, 5
    %v2797 = vrot.slane %v2796, 4
    %v2798 = vrot.slane %v2765, 5
    %v2799 = vsel %vm1593, %v2797, %v2798
    %v2800 = vrot.slane %v2766, 5
    %v2801 = vrot.slane %v2800, 4
    %v2802 = vrot.slane %v2767, 5
    %v2803 = vsel %vm1593, %v2801, %v2802
    %v2804 = vrot.slane %v2768, 5
    %v2805 = vrot.slane %v2804, 4
    %v2806 = vrot.slane %v2769, 5
    %v2807 = vsel %vm1593, %v2805, %v2806
    %v2808 = vrot.slane %v2770, 5
    %v2809 = vrot.slane %v2808, 4
    %v2810 = vrot.slane %v2771, 5
    %v2811 = vsel %vm1593, %v2809, %v2810
    %v2812 = vrot.slane %v2772, 5
    %v2813 = vrot.slane %v2812, 4
    %v2814 = vrot.slane %v2773, 5
    %v2815 = vsel %vm1593, %v2813, %v2814
    %v2816 = vrot.slane %v2774, 5
    %v2817 = vrot.slane %v2816, 4
    %v2818 = vrot.slane %v2775, 5
    %v2819 = vsel %vm1593, %v2817, %v2818
    %v2820 = vrot.slane %v2776, 5
    %v2821 = vrot.slane %v2820, 4
    %v2822 = vrot.slane %v2777, 5
    %v2823 = vsel %vm1593, %v2821, %v2822
    %v2824 = vrot.slane %v2778, 5
    %v2825 = vrot.slane %v2824, 4
    %v2826 = vrot.slane %v2779, 5
    %v2827 = vsel %vm1593, %v2825, %v2826
    %2836 = vst [vmem:[%s2131 + $0x20] sm:$0xf] %v2799
    %2837 = vst [vmem:[%s2131 + $0x44] sm:$0xf] %v2803
    %2838 = vst [vmem:[%s2131 + $0x68] sm:$0xf] %v2807
    %2839 = vst [vmem:[%s2131 + $0x8c] sm:$0xf] %v2811
    %2840 = vst [vmem:[%s2131 + $0xb0] sm:$0xf] %v2815
    %2841 = vst [vmem:[%s2131 + $0xd4] sm:$0xf] %v2819
    %2842 = vst [vmem:[%s2131 + $0xf8] sm:$0xf] %v2823
    %2843 = vst [vmem:[%s2131 + $0x11c] sm:$0xf] %v2827
    %v2844 = vld [vmem:[#allocation6] sm:$0xff]
    %v2845 = vld [vmem:[#allocation6 + $0x8] sm:$0xff]
    %v2846 = vld [vmem:[#allocation6 + $0x10] sm:$0xff]
    %v2847 = vld [vmem:[#allocation6 + $0x18] sm:$0xff]
    %v2848 = vld [vmem:[#allocation6 + $0x20] sm:$0xf]
    %v2849 = vld [vmem:[#allocation6 + $0x24] sm:$0xff]
    %v2850 = vld [vmem:[#allocation6 + $0x2c] sm:$0xff]
    %v2851 = vld [vmem:[#allocation6 + $0x34] sm:$0xff]
    %v2852 = vld [vmem:[#allocation6 + $0x3c] sm:$0xff]
    %v2853 = vld [vmem:[#allocation6 + $0x44] sm:$0xf]
    %v2854 = vld [vmem:[#allocation6 + $0x48] sm:$0xff]
    %v2855 = vld [vmem:[#allocation6 + $0x50] sm:$0xff]
    %v2856 = vld [vmem:[#allocation6 + $0x58] sm:$0xff]
    %v2857 = vld [vmem:[#allocation6 + $0x60] sm:$0xff]
    %v2858 = vld [vmem:[#allocation6 + $0x68] sm:$0xf]
    %v2859 = vld [vmem:[#allocation6 + $0x6c] sm:$0xff]
    %v2860 = vld [vmem:[#allocation6 + $0x74] sm:$0xff]
    %v2861 = vld [vmem:[#allocation6 + $0x7c] sm:$0xff]
    %v2862 = vld [vmem:[#allocation6 + $0x84] sm:$0xff]
    %v2863 = vld [vmem:[#allocation6 + $0x8c] sm:$0xf]
    %v2864 = vld [vmem:[#allocation6 + $0x90] sm:$0xff]
    %v2865 = vld [vmem:[#allocation6 + $0x98] sm:$0xff]
    %v2866 = vld [vmem:[#allocation6 + $0xa0] sm:$0xff]
    %v2867 = vld [vmem:[#allocation6 + $0xa8] sm:$0xff]
    %v2868 = vld [vmem:[#allocation6 + $0xb0] sm:$0xf]
    %v2869 = vld [vmem:[#allocation6 + $0xb4] sm:$0xff]
    %v2870 = vld [vmem:[#allocation6 + $0xbc] sm:$0xff]
    %v2871 = vld [vmem:[#allocation6 + $0xc4] sm:$0xff]
    %v2872 = vld [vmem:[#allocation6 + $0xcc] sm:$0xff]
    %v2873 = vld [vmem:[#allocation6 + $0xd4] sm:$0xf]
    %v2874 = vld [vmem:[#allocation6 + $0xd8] sm:$0xff]
    %v2875 = vld [vmem:[#allocation6 + $0xe0] sm:$0xff]
    %v2876 = vld [vmem:[#allocation6 + $0xe8] sm:$0xff]
    %v2877 = vld [vmem:[#allocation6 + $0xf0] sm:$0xff]
    %v2878 = vld [vmem:[#allocation6 + $0xf8] sm:$0xf]
    %v2879 = vld [vmem:[#allocation6 + $0xfc] sm:$0xff]
    %v2880 = vld [vmem:[#allocation6 + $0x104] sm:$0xff]
    %v2881 = vld [vmem:[#allocation6 + $0x10c] sm:$0xff]
    %v2882 = vld [vmem:[#allocation6 + $0x114] sm:$0xff]
    %v2883 = vld [vmem:[#allocation6 + $0x11c] sm:$0xf]
    %v2884 = vld [vmem:[#allocation6 + $0x120] sm:$0xff]
    %v2885 = vld [vmem:[#allocation6 + $0x128] sm:$0xff]
    %v2886 = vld [vmem:[#allocation6 + $0x130] sm:$0xff]
    %v2887 = vld [vmem:[#allocation6 + $0x138] sm:$0xff]
    %v2888 = vld [vmem:[#allocation6 + $0x140] sm:$0xf]
    %v2889 = vld [vmem:[#allocation6 + $0x144] sm:$0xff]
    %v2890 = vld [vmem:[#allocation6 + $0x14c] sm:$0xff]
    %v2891 = vld [vmem:[#allocation6 + $0x154] sm:$0xff]
    %v2892 = vld [vmem:[#allocation6 + $0x15c] sm:$0xff]
    %v2893 = vld [vmem:[#allocation6 + $0x164] sm:$0xf]
    %v2894 = vld [vmem:[#allocation6 + $0x168] sm:$0xff]
    %v2895 = vld [vmem:[#allocation6 + $0x170] sm:$0xff]
    %v2896 = vld [vmem:[#allocation6 + $0x178] sm:$0xff]
    %v2897 = vld [vmem:[#allocation6 + $0x180] sm:$0xff]
    %v2898 = vld [vmem:[#allocation6 + $0x188] sm:$0xf]
    %v2899 = vld [vmem:[#allocation6 + $0x18c] sm:$0xff]
    %v2900 = vld [vmem:[#allocation6 + $0x194] sm:$0xff]
    %v2901 = vld [vmem:[#allocation6 + $0x19c] sm:$0xff]
    %v2902 = vld [vmem:[#allocation6 + $0x1a4] sm:$0xff]
    %v2903 = vld [vmem:[#allocation6 + $0x1ac] sm:$0xf]
    %v2904 = vld [vmem:[#allocation6 + $0x1b0] sm:$0xff]
    %v2905 = vld [vmem:[#allocation6 + $0x1b8] sm:$0xff]
    %v2906 = vld [vmem:[#allocation6 + $0x1c0] sm:$0xff]
    %v2907 = vld [vmem:[#allocation6 + $0x1c8] sm:$0xff]
    %v2908 = vld [vmem:[#allocation6 + $0x1d0] sm:$0xf]
    %v2909 = vld [vmem:[#allocation6 + $0x1d4] sm:$0xff]
    %v2910 = vld [vmem:[#allocation6 + $0x1dc] sm:$0xff]
    %v2911 = vld [vmem:[#allocation6 + $0x1e4] sm:$0xff]
    %v2912 = vld [vmem:[#allocation6 + $0x1ec] sm:$0xff]
    %v2913 = vld [vmem:[#allocation6 + $0x1f4] sm:$0xf]
    %v2914 = vld [vmem:[#allocation6 + $0x1f8] sm:$0xff]
    %v2915 = vld [vmem:[#allocation6 + $0x200] sm:$0xff]
    %v2916 = vld [vmem:[#allocation6 + $0x208] sm:$0xff]
    %v2917 = vld [vmem:[#allocation6 + $0x210] sm:$0xff]
    %v2918 = vld [vmem:[#allocation6 + $0x218] sm:$0xf]
    %v2919 = vld [vmem:[#allocation6 + $0x21c] sm:$0xff]
    %v2920 = vld [vmem:[#allocation6 + $0x224] sm:$0xff]
    %v2921 = vld [vmem:[#allocation6 + $0x22c] sm:$0xff]
    %v2922 = vld [vmem:[#allocation6 + $0x234] sm:$0xff]
    %v2923 = vld [vmem:[#allocation6 + $0x23c] sm:$0xf]
    %v2924 = vld [vmem:[%s3] sm:$0xf]
    %v2925 = vld [vmem:[%s3 + $0x4] sm:$0xf]
    %v2926 = vld [vmem:[%s3 + $0x8] sm:$0xf]
    %v2927 = vld [vmem:[%s3 + $0xc] sm:$0xf]
    %v2928 = vld [vmem:[%s3 + $0x10] sm:$0xf]
    %v2929 = vld [vmem:[%s3 + $0x14] sm:$0xf]
    %v2930 = vld [vmem:[%s3 + $0x18] sm:$0xf]
    %v2931 = vld [vmem:[%s3 + $0x1c] sm:$0xf]
    %v2932 = vld [vmem:[%s3 + $0x20] sm:$0xf]
    %v2933 = vld [vmem:[%s3 + $0x24] sm:$0xf]
    %v2934 = vld [vmem:[%s3 + $0x28] sm:$0xf]
    %v2935 = vld [vmem:[%s3 + $0x2c] sm:$0xf]
    %v2936 = vld [vmem:[%s3 + $0x30] sm:$0xf]
    %v2937 = vld [vmem:[%s3 + $0x34] sm:$0xf]
    %v2938 = vld [vmem:[%s3 + $0x38] sm:$0xf]
    %v2939 = vld [vmem:[%s3 + $0x3c] sm:$0xf]
    %v2940 = vld [vmem:[%s3 + $0x40] sm:$0xf]
    %v2941 = vld [vmem:[%s3 + $0x44] sm:$0xf]
    %v2942 = vld [vmem:[%s3 + $0x48] sm:$0xf]
    %v2943 = vld [vmem:[%s3 + $0x4c] sm:$0xf]
    %v2944 = vld [vmem:[%s3 + $0x50] sm:$0xf]
    %v2945 = vld [vmem:[%s3 + $0x54] sm:$0xf]
    %v2946 = vld [vmem:[%s3 + $0x58] sm:$0xf]
    %v2947 = vld [vmem:[%s3 + $0x5c] sm:$0xf]
    %v2948 = vld [vmem:[%s3 + $0x60] sm:$0xf]
    %v2949 = vld [vmem:[%s3 + $0x64] sm:$0xf]
    %v2950 = vld [vmem:[%s3 + $0x68] sm:$0xf]
    %v2951 = vld [vmem:[%s3 + $0x6c] sm:$0xf]
    %v2952 = vld [vmem:[%s3 + $0x70] sm:$0xf]
    %v2953 = vld [vmem:[%s3 + $0x74] sm:$0xf]
    %v2954 = vld [vmem:[%s3 + $0x78] sm:$0xf]
    %v2955 = vld [vmem:[%s3 + $0x7c] sm:$0xf]
    %v2956 = vld [vmem:[%s3 + $0x80] sm:$0xf]
    %v2957 = vld [vmem:[%s3 + $0x84] sm:$0xf]
    %v2958 = vld [vmem:[%s3 + $0x88] sm:$0xf]
    %v2959 = vld [vmem:[%s3 + $0x8c] sm:$0xf]
    %v2960 = vld [vmem:[%s3 + $0x90] sm:$0xf]
    %v2961 = vld [vmem:[%s3 + $0x94] sm:$0xf]
    %v2962 = vld [vmem:[%s3 + $0x98] sm:$0xf]
    %v2963 = vld [vmem:[%s3 + $0x9c] sm:$0xf]
    %v2964 = vld [vmem:[%s3 + $0xa0] sm:$0xf]
    %v2965 = vld [vmem:[%s3 + $0xa4] sm:$0xf]
    %v2966 = vld [vmem:[%s3 + $0xa8] sm:$0xf]
    %v2967 = vld [vmem:[%s3 + $0xac] sm:$0xf]
    %v2968 = vld [vmem:[%s3 + $0xb0] sm:$0xf]
    %v2969 = vld [vmem:[%s3 + $0xb4] sm:$0xf]
    %v2970 = vld [vmem:[%s3 + $0xb8] sm:$0xf]
    %v2971 = vld [vmem:[%s3 + $0xbc] sm:$0xf]
    %v2972 = vld [vmem:[%s3 + $0xc0] sm:$0xf]
    %v2973 = vld [vmem:[%s3 + $0xc4] sm:$0xf]
    %v2974 = vld [vmem:[%s3 + $0xc8] sm:$0xf]
    %v2975 = vld [vmem:[%s3 + $0xcc] sm:$0xf]
    %v2976 = vld [vmem:[%s3 + $0xd0] sm:$0xf]
    %v2977 = vld [vmem:[%s3 + $0xd4] sm:$0xf]
    %v2978 = vld [vmem:[%s3 + $0xd8] sm:$0xf]
    %v2979 = vld [vmem:[%s3 + $0xdc] sm:$0xf]
    %v2980 = vld [vmem:[%s3 + $0xe0] sm:$0xf]
    %v2981 = vld [vmem:[%s3 + $0xe4] sm:$0xf]
    %v2982 = vld [vmem:[%s3 + $0xe8] sm:$0xf]
    %v2983 = vld [vmem:[%s3 + $0xec] sm:$0xf]
    %v2984 = vld [vmem:[%s3 + $0xf0] sm:$0xf]
    %v2985 = vld [vmem:[%s3 + $0xf4] sm:$0xf]
    %v2986 = vld [vmem:[%s3 + $0xf8] sm:$0xf]
    %v2987 = vld [vmem:[%s3 + $0xfc] sm:$0xf]
    %v2988 = vld [vmem:[%s3 + $0x100] sm:$0xf]
    %v2989 = vld [vmem:[%s3 + $0x104] sm:$0xf]
    %v2990 = vld [vmem:[%s3 + $0x108] sm:$0xf]
    %v2991 = vld [vmem:[%s3 + $0x10c] sm:$0xf]
    %v2992 = vld [vmem:[%s3 + $0x110] sm:$0xf]
    %v2993 = vld [vmem:[%s3 + $0x114] sm:$0xf]
    %v2994 = vld [vmem:[%s3 + $0x118] sm:$0xf]
    %v2995 = vld [vmem:[%s3 + $0x11c] sm:$0xf]
    %v2996 = vld [vmem:[%s3 + $0x120] sm:$0xf]
    %v2997 = vld [vmem:[%s3 + $0x124] sm:$0xf]
    %v2998 = vld [vmem:[%s3 + $0x128] sm:$0xf]
    %v2999 = vld [vmem:[%s3 + $0x12c] sm:$0xf]
    %v3000 = vld [vmem:[%s3 + $0x130] sm:$0xf]
    %v3001 = vld [vmem:[%s3 + $0x134] sm:$0xf]
    %v3002 = vld [vmem:[%s3 + $0x138] sm:$0xf]
    %v3003 = vld [vmem:[%s3 + $0x13c] sm:$0xf]
    %v3004 = vld [vmem:[%s3 + $0x140] sm:$0xf]
    %v3005 = vld [vmem:[%s3 + $0x144] sm:$0xf]
    %v3006 = vld [vmem:[%s3 + $0x148] sm:$0xf]
    %v3007 = vld [vmem:[%s3 + $0x14c] sm:$0xf]
    %v3008 = vld [vmem:[%s3 + $0x150] sm:$0xf]
    %v3009 = vld [vmem:[%s3 + $0x154] sm:$0xf]
    %v3010 = vld [vmem:[%s3 + $0x158] sm:$0xf]
    %v3011 = vld [vmem:[%s3 + $0x15c] sm:$0xf]
    %v3012 = vld [vmem:[%s3 + $0x160] sm:$0xf]
    %v3013 = vld [vmem:[%s3 + $0x164] sm:$0xf]
    %v3014 = vld [vmem:[%s3 + $0x168] sm:$0xf]
    %v3015 = vld [vmem:[%s3 + $0x16c] sm:$0xf]
    %v3016 = vld [vmem:[%s3 + $0x170] sm:$0xf]
    %v3017 = vld [vmem:[%s3 + $0x174] sm:$0xf]
    %v3018 = vld [vmem:[%s3 + $0x178] sm:$0xf]
    %v3019 = vld [vmem:[%s3 + $0x17c] sm:$0xf]
    %v3020 = vld [vmem:[%s3 + $0x180] sm:$0xf]
    %v3021 = vld [vmem:[%s3 + $0x184] sm:$0xf]
    %v3022 = vld [vmem:[%s3 + $0x188] sm:$0xf]
    %v3023 = vld [vmem:[%s3 + $0x18c] sm:$0xf]
    %v3024 = vld [vmem:[%s3 + $0x190] sm:$0xf]
    %v3025 = vld [vmem:[%s3 + $0x194] sm:$0xf]
    %v3026 = vld [vmem:[%s3 + $0x198] sm:$0xf]
    %v3027 = vld [vmem:[%s3 + $0x19c] sm:$0xf]
    %v3028 = vld [vmem:[%s3 + $0x1a0] sm:$0xf]
    %v3029 = vld [vmem:[%s3 + $0x1a4] sm:$0xf]
    %v3030 = vld [vmem:[%s3 + $0x1a8] sm:$0xf]
    %v3031 = vld [vmem:[%s3 + $0x1ac] sm:$0xf]
    %v3032 = vld [vmem:[%s3 + $0x1b0] sm:$0xf]
    %v3033 = vld [vmem:[%s3 + $0x1b4] sm:$0xf]
    %v3034 = vld [vmem:[%s3 + $0x1b8] sm:$0xf]
    %v3035 = vld [vmem:[%s3 + $0x1bc] sm:$0xf]
    %v3036 = vld [vmem:[%s3 + $0x1c0] sm:$0xf]
    %v3037 = vld [vmem:[%s3 + $0x1c4] sm:$0xf]
    %v3038 = vld [vmem:[%s3 + $0x1c8] sm:$0xf]
    %v3039 = vld [vmem:[%s3 + $0x1cc] sm:$0xf]
    %v3040 = vld [vmem:[%s3 + $0x1d0] sm:$0xf]
    %v3041 = vld [vmem:[%s3 + $0x1d4] sm:$0xf]
    %v3042 = vld [vmem:[%s3 + $0x1d8] sm:$0xf]
    %v3043 = vld [vmem:[%s3 + $0x1dc] sm:$0xf]
    %v3044 = vld [vmem:[%s3 + $0x1e0] sm:$0xf]
    %v3045 = vld [vmem:[%s3 + $0x1e4] sm:$0xf]
    %v3046 = vld [vmem:[%s3 + $0x1e8] sm:$0xf]
    %v3047 = vld [vmem:[%s3 + $0x1ec] sm:$0xf]
    %v3048 = vld [vmem:[%s3 + $0x1f0] sm:$0xf]
    %v3049 = vld [vmem:[%s3 + $0x1f4] sm:$0xf]
    %v3050 = vld [vmem:[%s3 + $0x1f8] sm:$0xf]
    %v3051 = vld [vmem:[%s3 + $0x1fc] sm:$0xf]
    %v3052 = vld [vmem:[%s3 + $0x200] sm:$0xf]
    %v3053 = vld [vmem:[%s3 + $0x204] sm:$0xf]
    %v3054 = vld [vmem:[%s3 + $0x208] sm:$0xf]
    %v3055 = vld [vmem:[%s3 + $0x20c] sm:$0xf]
    %v3056 = vld [vmem:[%s3 + $0x210] sm:$0xf]
    %v3057 = vld [vmem:[%s3 + $0x214] sm:$0xf]
    %v3058 = vld [vmem:[%s3 + $0x218] sm:$0xf]
    %v3059 = vld [vmem:[%s3 + $0x21c] sm:$0xf]
    %v3060 = vld [vmem:[%s3 + $0x220] sm:$0xf]
    %v3061 = vld [vmem:[%s3 + $0x224] sm:$0xf]
    %v3062 = vld [vmem:[%s3 + $0x228] sm:$0xf]
    %v3063 = vld [vmem:[%s3 + $0x22c] sm:$0xf]
    %v3064 = vld [vmem:[%s3 + $0x230] sm:$0xf]
    %v3065 = vld [vmem:[%s3 + $0x234] sm:$0xf]
    %v3066 = vld [vmem:[%s3 + $0x238] sm:$0xf]
    %v3067 = vld [vmem:[%s3 + $0x23c] sm:$0xf]
    %v3068 = vld [vmem:[%s4] sm:$0x1]
    %v3070 = vlaneseq
    %v3071 = vshrl.u32 %v3070, 7
    %v3072 = vsub.s32 0, %v3071
    %v3073 = vrot.slane %v3068, %v3072
    %v3155 = vunpack.c.l.b16 %v2844
    %v3156 = vunpack.c.h.b16 %v2844
    %v3157 = vunpack.c.l.b16 %v2845
    %v3158 = vunpack.c.h.b16 %v2845
    %v3159 = vunpack.c.l.b16 %v2846
    %v3160 = vunpack.c.h.b16 %v2846
    %v3161 = vunpack.c.l.b16 %v2847
    %v3162 = vunpack.c.h.b16 %v2847
    %v3163 = vunpack.c.l.b16 %v2848
    %v3164 = vunpack.c.l.b16 %v2849
    %v3165 = vunpack.c.h.b16 %v2849
    %v3166 = vunpack.c.l.b16 %v2850
    %v3167 = vunpack.c.h.b16 %v2850
    %v3168 = vunpack.c.l.b16 %v2851
    %v3169 = vunpack.c.h.b16 %v2851
    %v3170 = vunpack.c.l.b16 %v2852
    %v3171 = vunpack.c.h.b16 %v2852
    %v3172 = vunpack.c.l.b16 %v2853
    %v3173 = vunpack.c.l.b16 %v2854
    %v3174 = vunpack.c.h.b16 %v2854
    %v3175 = vunpack.c.l.b16 %v2855
    %v3176 = vunpack.c.h.b16 %v2855
    %v3177 = vunpack.c.l.b16 %v2856
    %v3178 = vunpack.c.h.b16 %v2856
    %v3179 = vunpack.c.l.b16 %v2857
    %v3180 = vunpack.c.h.b16 %v2857
    %v3181 = vunpack.c.l.b16 %v2858
    %v3182 = vunpack.c.l.b16 %v2859
    %v3183 = vunpack.c.h.b16 %v2859
    %v3184 = vunpack.c.l.b16 %v2860
    %v3185 = vunpack.c.h.b16 %v2860
    %v3186 = vunpack.c.l.b16 %v2861
    %v3187 = vunpack.c.h.b16 %v2861
    %v3188 = vunpack.c.l.b16 %v2862
    %v3189 = vunpack.c.h.b16 %v2862
    %v3190 = vunpack.c.l.b16 %v2863
    %v3191 = vunpack.c.l.b16 %v2864
    %v3192 = vunpack.c.h.b16 %v2864
    %v3193 = vunpack.c.l.b16 %v2865
    %v3194 = vunpack.c.h.b16 %v2865
    %v3195 = vunpack.c.l.b16 %v2866
    %v3196 = vunpack.c.h.b16 %v2866
    %v3197 = vunpack.c.l.b16 %v2867
    %v3198 = vunpack.c.h.b16 %v2867
    %v3199 = vunpack.c.l.b16 %v2868
    %v3200 = vunpack.c.l.b16 %v2869
    %v3201 = vunpack.c.h.b16 %v2869
    %v3202 = vunpack.c.l.b16 %v2870
    %v3203 = vunpack.c.h.b16 %v2870
    %v3204 = vunpack.c.l.b16 %v2871
    %v3205 = vunpack.c.h.b16 %v2871
    %v3206 = vunpack.c.l.b16 %v2872
    %v3207 = vunpack.c.h.b16 %v2872
    %v3208 = vunpack.c.l.b16 %v2873
    %v3209 = vunpack.c.l.b16 %v2874
    %v3210 = vunpack.c.h.b16 %v2874
    %v3211 = vunpack.c.l.b16 %v2875
    %v3212 = vunpack.c.h.b16 %v2875
    %v3213 = vunpack.c.l.b16 %v2876
    %v3214 = vunpack.c.h.b16 %v2876
    %v3215 = vunpack.c.l.b16 %v2877
    %v3216 = vunpack.c.h.b16 %v2877
    %v3217 = vunpack.c.l.b16 %v2878
    %v3218 = vunpack.c.l.b16 %v2879
    %v3219 = vunpack.c.h.b16 %v2879
    %v3220 = vunpack.c.l.b16 %v2880
    %v3221 = vunpack.c.h.b16 %v2880
    %v3222 = vunpack.c.l.b16 %v2881
    %v3223 = vunpack.c.h.b16 %v2881
    %v3224 = vunpack.c.l.b16 %v2882
    %v3225 = vunpack.c.h.b16 %v2882
    %v3226 = vunpack.c.l.b16 %v2883
    %v3227 = vunpack.c.l.b16 %v2884
    %v3228 = vunpack.c.h.b16 %v2884
    %v3229 = vunpack.c.l.b16 %v2885
    %v3230 = vunpack.c.h.b16 %v2885
    %v3231 = vunpack.c.l.b16 %v2886
    %v3232 = vunpack.c.h.b16 %v2886
    %v3233 = vunpack.c.l.b16 %v2887
    %v3234 = vunpack.c.h.b16 %v2887
    %v3235 = vunpack.c.l.b16 %v2888
    %v3236 = vunpack.c.l.b16 %v2889
    %v3237 = vunpack.c.h.b16 %v2889
    %v3238 = vunpack.c.l.b16 %v2890
    %v3239 = vunpack.c.h.b16 %v2890
    %v3240 = vunpack.c.l.b16 %v2891
    %v3241 = vunpack.c.h.b16 %v2891
    %v3242 = vunpack.c.l.b16 %v2892
    %v3243 = vunpack.c.h.b16 %v2892
    %v3244 = vunpack.c.l.b16 %v2893
    %v3245 = vunpack.c.l.b16 %v2894
    %v3246 = vunpack.c.h.b16 %v2894
    %v3247 = vunpack.c.l.b16 %v2895
    %v3248 = vunpack.c.h.b16 %v2895
    %v3249 = vunpack.c.l.b16 %v2896
    %v3250 = vunpack.c.h.b16 %v2896
    %v3251 = vunpack.c.l.b16 %v2897
    %v3252 = vunpack.c.h.b16 %v2897
    %v3253 = vunpack.c.l.b16 %v2898
    %v3254 = vunpack.c.l.b16 %v2899
    %v3255 = vunpack.c.h.b16 %v2899
    %v3256 = vunpack.c.l.b16 %v2900
    %v3257 = vunpack.c.h.b16 %v2900
    %v3258 = vunpack.c.l.b16 %v2901
    %v3259 = vunpack.c.h.b16 %v2901
    %v3260 = vunpack.c.l.b16 %v2902
    %v3261 = vunpack.c.h.b16 %v2902
    %v3262 = vunpack.c.l.b16 %v2903
    %v3263 = vunpack.c.l.b16 %v2904
    %v3264 = vunpack.c.h.b16 %v2904
    %v3265 = vunpack.c.l.b16 %v2905
    %v3266 = vunpack.c.h.b16 %v2905
    %v3267 = vunpack.c.l.b16 %v2906
    %v3268 = vunpack.c.h.b16 %v2906
    %v3269 = vunpack.c.l.b16 %v2907
    %v3270 = vunpack.c.h.b16 %v2907
    %v3271 = vunpack.c.l.b16 %v2908
    %v3272 = vunpack.c.l.b16 %v2909
    %v3273 = vunpack.c.h.b16 %v2909
    %v3274 = vunpack.c.l.b16 %v2910
    %v3275 = vunpack.c.h.b16 %v2910
    %v3276 = vunpack.c.l.b16 %v2911
    %v3277 = vunpack.c.h.b16 %v2911
    %v3278 = vunpack.c.l.b16 %v2912
    %v3279 = vunpack.c.h.b16 %v2912
    %v3280 = vunpack.c.l.b16 %v2913
    %v3281 = vunpack.c.l.b16 %v2914
    %v3282 = vunpack.c.h.b16 %v2914
    %v3283 = vunpack.c.l.b16 %v2915
    %v3284 = vunpack.c.h.b16 %v2915
    %v3285 = vunpack.c.l.b16 %v2916
    %v3286 = vunpack.c.h.b16 %v2916
    %v3287 = vunpack.c.l.b16 %v2917
    %v3288 = vunpack.c.h.b16 %v2917
    %v3289 = vunpack.c.l.b16 %v2918
    %v3290 = vunpack.c.l.b16 %v2919
    %v3291 = vunpack.c.h.b16 %v2919
    %v3292 = vunpack.c.l.b16 %v2920
    %v3293 = vunpack.c.h.b16 %v2920
    %v3294 = vunpack.c.l.b16 %v2921
    %v3295 = vunpack.c.h.b16 %v2921
    %v3296 = vunpack.c.l.b16 %v2922
    %v3297 = vunpack.c.h.b16 %v2922
    %v3298 = vunpack.c.l.b16 %v2923
    %v3299 = vpack.c.b16 %v3164, %v3155
    %v3300 = vpack.c.b16 %v3165, %v3156
    %v3301 = vpack.c.b16 %v3166, %v3157
    %v3302 = vpack.c.b16 %v3167, %v3158
    %v3303 = vpack.c.b16 %v3168, %v3159
    %v3304 = vpack.c.b16 %v3169, %v3160
    %v3305 = vpack.c.b16 %v3170, %v3161
    %v3306 = vpack.c.b16 %v3171, %v3162
    %v3307 = vpack.c.b16 %v3172, %v3163
    %v3308 = vpack.c.b16 %v3182, %v3173
    %v3309 = vpack.c.b16 %v3183, %v3174
    %v3310 = vpack.c.b16 %v3184, %v3175
    %v3311 = vpack.c.b16 %v3185, %v3176
    %v3312 = vpack.c.b16 %v3186, %v3177
    %v3313 = vpack.c.b16 %v3187, %v3178
    %v3314 = vpack.c.b16 %v3188, %v3179
    %v3315 = vpack.c.b16 %v3189, %v3180
    %v3316 = vpack.c.b16 %v3190, %v3181
    %v3317 = vpack.c.b16 %v3200, %v3191
    %v3318 = vpack.c.b16 %v3201, %v3192
    %v3319 = vpack.c.b16 %v3202, %v3193
    %v3320 = vpack.c.b16 %v3203, %v3194
    %v3321 = vpack.c.b16 %v3204, %v3195
    %v3322 = vpack.c.b16 %v3205, %v3196
    %v3323 = vpack.c.b16 %v3206, %v3197
    %v3324 = vpack.c.b16 %v3207, %v3198
    %v3325 = vpack.c.b16 %v3208, %v3199
    %v3326 = vpack.c.b16 %v3218, %v3209
    %v3327 = vpack.c.b16 %v3219, %v3210
    %v3328 = vpack.c.b16 %v3220, %v3211
    %v3329 = vpack.c.b16 %v3221, %v3212
    %v3330 = vpack.c.b16 %v3222, %v3213
    %v3331 = vpack.c.b16 %v3223, %v3214
    %v3332 = vpack.c.b16 %v3224, %v3215
    %v3333 = vpack.c.b16 %v3225, %v3216
    %v3334 = vpack.c.b16 %v3226, %v3217
    %v3335 = vpack.c.b16 %v3236, %v3227
    %v3336 = vpack.c.b16 %v3237, %v3228
    %v3337 = vpack.c.b16 %v3238, %v3229
    %v3338 = vpack.c.b16 %v3239, %v3230
    %v3339 = vpack.c.b16 %v3240, %v3231
    %v3340 = vpack.c.b16 %v3241, %v3232
    %v3341 = vpack.c.b16 %v3242, %v3233
    %v3342 = vpack.c.b16 %v3243, %v3234
    %v3343 = vpack.c.b16 %v3244, %v3235
    %v3344 = vpack.c.b16 %v3254, %v3245
    %v3345 = vpack.c.b16 %v3255, %v3246
    %v3346 = vpack.c.b16 %v3256, %v3247
    %v3347 = vpack.c.b16 %v3257, %v3248
    %v3348 = vpack.c.b16 %v3258, %v3249
    %v3349 = vpack.c.b16 %v3259, %v3250
    %v3350 = vpack.c.b16 %v3260, %v3251
    %v3351 = vpack.c.b16 %v3261, %v3252
    %v3352 = vpack.c.b16 %v3262, %v3253
    %v3353 = vpack.c.b16 %v3272, %v3263
    %v3354 = vpack.c.b16 %v3273, %v3264
    %v3355 = vpack.c.b16 %v3274, %v3265
    %v3356 = vpack.c.b16 %v3275, %v3266
    %v3357 = vpack.c.b16 %v3276, %v3267
    %v3358 = vpack.c.b16 %v3277, %v3268
    %v3359 = vpack.c.b16 %v3278, %v3269
    %v3360 = vpack.c.b16 %v3279, %v3270
    %v3361 = vpack.c.b16 %v3280, %v3271
    %v3362 = vpack.c.b16 %v3290, %v3281
    %v3363 = vpack.c.b16 %v3291, %v3282
    %v3364 = vpack.c.b16 %v3292, %v3283
    %v3365 = vpack.c.b16 %v3293, %v3284
    %v3366 = vpack.c.b16 %v3294, %v3285
    %v3367 = vpack.c.b16 %v3295, %v3286
    %v3368 = vpack.c.b16 %v3296, %v3287
    %v3369 = vpack.c.b16 %v3297, %v3288
    %v3370 = vpack.c.b16 %v3298, %v3289
    %v3587 = vunpack.c.l.b16 %v2924
    %v3588 = vunpack.c.l.b16 %v2925
    %v3589 = vunpack.c.l.b16 %v2926
    %v3590 = vunpack.c.l.b16 %v2927
    %v3591 = vunpack.c.l.b16 %v2928
    %v3592 = vunpack.c.l.b16 %v2929
    %v3593 = vunpack.c.l.b16 %v2930
    %v3594 = vunpack.c.l.b16 %v2931
    %v3595 = vunpack.c.l.b16 %v2932
    %v3596 = vunpack.c.l.b16 %v2933
    %v3597 = vunpack.c.l.b16 %v2934
    %v3598 = vunpack.c.l.b16 %v2935
    %v3599 = vunpack.c.l.b16 %v2936
    %v3600 = vunpack.c.l.b16 %v2937
    %v3601 = vunpack.c.l.b16 %v2938
    %v3602 = vunpack.c.l.b16 %v2939
    %v3603 = vunpack.c.l.b16 %v2940
    %v3604 = vunpack.c.l.b16 %v2941
    %v3605 = vunpack.c.l.b16 %v2942
    %v3606 = vunpack.c.l.b16 %v2943
    %v3607 = vunpack.c.l.b16 %v2944
    %v3608 = vunpack.c.l.b16 %v2945
    %v3609 = vunpack.c.l.b16 %v2946
    %v3610 = vunpack.c.l.b16 %v2947
    %v3611 = vunpack.c.l.b16 %v2948
    %v3612 = vunpack.c.l.b16 %v2949
    %v3613 = vunpack.c.l.b16 %v2950
    %v3614 = vunpack.c.l.b16 %v2951
    %v3615 = vunpack.c.l.b16 %v2952
    %v3616 = vunpack.c.l.b16 %v2953
    %v3617 = vunpack.c.l.b16 %v2954
    %v3618 = vunpack.c.l.b16 %v2955
    %v3619 = vunpack.c.l.b16 %v2956
    %v3620 = vunpack.c.l.b16 %v2957
    %v3621 = vunpack.c.l.b16 %v2958
    %v3622 = vunpack.c.l.b16 %v2959
    %v3623 = vunpack.c.l.b16 %v2960
    %v3624 = vunpack.c.l.b16 %v2961
    %v3625 = vunpack.c.l.b16 %v2962
    %v3626 = vunpack.c.l.b16 %v2963
    %v3627 = vunpack.c.l.b16 %v2964
    %v3628 = vunpack.c.l.b16 %v2965
    %v3629 = vunpack.c.l.b16 %v2966
    %v3630 = vunpack.c.l.b16 %v2967
    %v3631 = vunpack.c.l.b16 %v2968
    %v3632 = vunpack.c.l.b16 %v2969
    %v3633 = vunpack.c.l.b16 %v2970
    %v3634 = vunpack.c.l.b16 %v2971
    %v3635 = vunpack.c.l.b16 %v2972
    %v3636 = vunpack.c.l.b16 %v2973
    %v3637 = vunpack.c.l.b16 %v2974
    %v3638 = vunpack.c.l.b16 %v2975
    %v3639 = vunpack.c.l.b16 %v2976
    %v3640 = vunpack.c.l.b16 %v2977
    %v3641 = vunpack.c.l.b16 %v2978
    %v3642 = vunpack.c.l.b16 %v2979
    %v3643 = vunpack.c.l.b16 %v2980
    %v3644 = vunpack.c.l.b16 %v2981
    %v3645 = vunpack.c.l.b16 %v2982
    %v3646 = vunpack.c.l.b16 %v2983
    %v3647 = vunpack.c.l.b16 %v2984
    %v3648 = vunpack.c.l.b16 %v2985
    %v3649 = vunpack.c.l.b16 %v2986
    %v3650 = vunpack.c.l.b16 %v2987
    %v3651 = vunpack.c.l.b16 %v2988
    %v3652 = vunpack.c.l.b16 %v2989
    %v3653 = vunpack.c.l.b16 %v2990
    %v3654 = vunpack.c.l.b16 %v2991
    %v3655 = vunpack.c.l.b16 %v2992
    %v3656 = vunpack.c.l.b16 %v2993
    %v3657 = vunpack.c.l.b16 %v2994
    %v3658 = vunpack.c.l.b16 %v2995
    %v3659 = vunpack.c.l.b16 %v2996
    %v3660 = vunpack.c.l.b16 %v2997
    %v3661 = vunpack.c.l.b16 %v2998
    %v3662 = vunpack.c.l.b16 %v2999
    %v3663 = vunpack.c.l.b16 %v3000
    %v3664 = vunpack.c.l.b16 %v3001
    %v3665 = vunpack.c.l.b16 %v3002
    %v3666 = vunpack.c.l.b16 %v3003
    %v3667 = vunpack.c.l.b16 %v3004
    %v3668 = vunpack.c.l.b16 %v3005
    %v3669 = vunpack.c.l.b16 %v3006
    %v3670 = vunpack.c.l.b16 %v3007
    %v3671 = vunpack.c.l.b16 %v3008
    %v3672 = vunpack.c.l.b16 %v3009
    %v3673 = vunpack.c.l.b16 %v3010
    %v3674 = vunpack.c.l.b16 %v3011
    %v3675 = vunpack.c.l.b16 %v3012
    %v3676 = vunpack.c.l.b16 %v3013
    %v3677 = vunpack.c.l.b16 %v3014
    %v3678 = vunpack.c.l.b16 %v3015
    %v3679 = vunpack.c.l.b16 %v3016
    %v3680 = vunpack.c.l.b16 %v3017
    %v3681 = vunpack.c.l.b16 %v3018
    %v3682 = vunpack.c.l.b16 %v3019
    %v3683 = vunpack.c.l.b16 %v3020
    %v3684 = vunpack.c.l.b16 %v3021
    %v3685 = vunpack.c.l.b16 %v3022
    %v3686 = vunpack.c.l.b16 %v3023
    %v3687 = vunpack.c.l.b16 %v3024
    %v3688 = vunpack.c.l.b16 %v3025
    %v3689 = vunpack.c.l.b16 %v3026
    %v3690 = vunpack.c.l.b16 %v3027
    %v3691 = vunpack.c.l.b16 %v3028
    %v3692 = vunpack.c.l.b16 %v3029
    %v3693 = vunpack.c.l.b16 %v3030
    %v3694 = vunpack.c.l.b16 %v3031
    %v3695 = vunpack.c.l.b16 %v3032
    %v3696 = vunpack.c.l.b16 %v3033
    %v3697 = vunpack.c.l.b16 %v3034
    %v3698 = vunpack.c.l.b16 %v3035
    %v3699 = vunpack.c.l.b16 %v3036
    %v3700 = vunpack.c.l.b16 %v3037
    %v3701 = vunpack.c.l.b16 %v3038
    %v3702 = vunpack.c.l.b16 %v3039
    %v3703 = vunpack.c.l.b16 %v3040
    %v3704 = vunpack.c.l.b16 %v3041
    %v3705 = vunpack.c.l.b16 %v3042
    %v3706 = vunpack.c.l.b16 %v3043
    %v3707 = vunpack.c.l.b16 %v3044
    %v3708 = vunpack.c.l.b16 %v3045
    %v3709 = vunpack.c.l.b16 %v3046
    %v3710 = vunpack.c.l.b16 %v3047
    %v3711 = vunpack.c.l.b16 %v3048
    %v3712 = vunpack.c.l.b16 %v3049
    %v3713 = vunpack.c.l.b16 %v3050
    %v3714 = vunpack.c.l.b16 %v3051
    %v3715 = vunpack.c.l.b16 %v3052
    %v3716 = vunpack.c.l.b16 %v3053
    %v3717 = vunpack.c.l.b16 %v3054
    %v3718 = vunpack.c.l.b16 %v3055
    %v3719 = vunpack.c.l.b16 %v3056
    %v3720 = vunpack.c.l.b16 %v3057
    %v3721 = vunpack.c.l.b16 %v3058
    %v3722 = vunpack.c.l.b16 %v3059
    %v3723 = vunpack.c.l.b16 %v3060
    %v3724 = vunpack.c.l.b16 %v3061
    %v3725 = vunpack.c.l.b16 %v3062
    %v3726 = vunpack.c.l.b16 %v3063
    %v3727 = vunpack.c.l.b16 %v3064
    %v3728 = vunpack.c.l.b16 %v3065
    %v3729 = vunpack.c.l.b16 %v3066
    %v3730 = vunpack.c.l.b16 %v3067
    %v3731 = vpack.c.b16 %v3588, %v3587
    %v3732 = vpack.c.b16 %v3590, %v3589
    %v3733 = vpack.c.b16 %v3592, %v3591
    %v3734 = vpack.c.b16 %v3594, %v3593
    %v3735 = vpack.c.b16 %v3596, %v3595
    %v3736 = vpack.c.b16 %v3598, %v3597
    %v3737 = vpack.c.b16 %v3600, %v3599
    %v3738 = vpack.c.b16 %v3602, %v3601
    %v3739 = vpack.c.b16 %v3604, %v3603
    %v3740 = vpack.c.b16 %v3606, %v3605
    %v3741 = vpack.c.b16 %v3608, %v3607
    %v3742 = vpack.c.b16 %v3610, %v3609
    %v3743 = vpack.c.b16 %v3612, %v3611
    %v3744 = vpack.c.b16 %v3614, %v3613
    %v3745 = vpack.c.b16 %v3616, %v3615
    %v3746 = vpack.c.b16 %v3618, %v3617
    %v3747 = vpack.c.b16 %v3620, %v3619
    %v3748 = vpack.c.b16 %v3622, %v3621
    %v3749 = vpack.c.b16 %v3624, %v3623
    %v3750 = vpack.c.b16 %v3626, %v3625
    %v3751 = vpack.c.b16 %v3628, %v3627
    %v3752 = vpack.c.b16 %v3630, %v3629
    %v3753 = vpack.c.b16 %v3632, %v3631
    %v3754 = vpack.c.b16 %v3634, %v3633
    %v3755 = vpack.c.b16 %v3636, %v3635
    %v3756 = vpack.c.b16 %v3638, %v3637
    %v3757 = vpack.c.b16 %v3640, %v3639
    %v3758 = vpack.c.b16 %v3642, %v3641
    %v3759 = vpack.c.b16 %v3644, %v3643
    %v3760 = vpack.c.b16 %v3646, %v3645
    %v3761 = vpack.c.b16 %v3648, %v3647
    %v3762 = vpack.c.b16 %v3650, %v3649
    %v3763 = vpack.c.b16 %v3652, %v3651
    %v3764 = vpack.c.b16 %v3654, %v3653
    %v3765 = vpack.c.b16 %v3656, %v3655
    %v3766 = vpack.c.b16 %v3658, %v3657
    %v3767 = vpack.c.b16 %v3660, %v3659
    %v3768 = vpack.c.b16 %v3662, %v3661
    %v3769 = vpack.c.b16 %v3664, %v3663
    %v3770 = vpack.c.b16 %v3666, %v3665
    %v3771 = vpack.c.b16 %v3668, %v3667
    %v3772 = vpack.c.b16 %v3670, %v3669
    %v3773 = vpack.c.b16 %v3672, %v3671
    %v3774 = vpack.c.b16 %v3674, %v3673
    %v3775 = vpack.c.b16 %v3676, %v3675
    %v3776 = vpack.c.b16 %v3678, %v3677
    %v3777 = vpack.c.b16 %v3680, %v3679
    %v3778 = vpack.c.b16 %v3682, %v3681
    %v3779 = vpack.c.b16 %v3684, %v3683
    %v3780 = vpack.c.b16 %v3686, %v3685
    %v3781 = vpack.c.b16 %v3688, %v3687
    %v3782 = vpack.c.b16 %v3690, %v3689
    %v3783 = vpack.c.b16 %v3692, %v3691
    %v3784 = vpack.c.b16 %v3694, %v3693
    %v3785 = vpack.c.b16 %v3696, %v3695
    %v3786 = vpack.c.b16 %v3698, %v3697
    %v3787 = vpack.c.b16 %v3700, %v3699
    %v3788 = vpack.c.b16 %v3702, %v3701
    %v3789 = vpack.c.b16 %v3704, %v3703
    %v3790 = vpack.c.b16 %v3706, %v3705
    %v3791 = vpack.c.b16 %v3708, %v3707
    %v3792 = vpack.c.b16 %v3710, %v3709
    %v3793 = vpack.c.b16 %v3712, %v3711
    %v3794 = vpack.c.b16 %v3714, %v3713
    %v3795 = vpack.c.b16 %v3716, %v3715
    %v3796 = vpack.c.b16 %v3718, %v3717
    %v3797 = vpack.c.b16 %v3720, %v3719
    %v3798 = vpack.c.b16 %v3722, %v3721
    %v3799 = vpack.c.b16 %v3724, %v3723
    %v3800 = vpack.c.b16 %v3726, %v3725
    %v3801 = vpack.c.b16 %v3728, %v3727
    %v3802 = vpack.c.b16 %v3730, %v3729
    %3875 = vmatprep.subr.bf16.mxu0 0
    %3876 = vmatpush1.bf16.msra.mxu0 %v3738
    %3877 = vmatprep.subr.bf16.mxu0 0
    %3878 = vmatpush1.bf16.msra.mxu0 %v3737
    %3879 = vmatprep.subr.bf16.mxu0 0
    %3880 = vmatpush1.bf16.msra.mxu0 %v3736
    %3881 = vmatprep.subr.bf16.mxu0 0
    %3882 = vmatpush1.bf16.msra.mxu0 %v3735
    %3883 = vmatprep.subr.bf16.mxu0 0
    %3884 = vmatpush1.bf16.msra.mxu0 %v3734
    %3885 = vmatprep.subr.bf16.mxu0 0
    %3886 = vmatpush1.bf16.msra.mxu0 %v3733
    %3887 = vmatprep.subr.bf16.mxu0 0
    %3888 = vmatpush1.bf16.msra.mxu0 %v3732
    %3889 = vmatprep.subr.bf16.mxu0 0
    %3890 = vmatpush1.bf16.msra.mxu0 %v3731
    %3891 = vmatprep.subr.bf16.mxu0 0
    %3892 = vmatpush2.bf16.msra.mxu0 %v3746
    %3893 = vmatprep.subr.bf16.mxu0 0
    %3894 = vmatpush2.bf16.msra.mxu0 %v3745
    %3895 = vmatprep.subr.bf16.mxu0 0
    %3896 = vmatpush2.bf16.msra.mxu0 %v3744
    %3897 = vmatprep.subr.bf16.mxu0 0
    %3898 = vmatpush2.bf16.msra.mxu0 %v3743
    %3899 = vmatprep.subr.bf16.mxu0 0
    %3900 = vmatpush2.bf16.msra.mxu0 %v3742
    %3901 = vmatprep.subr.bf16.mxu0 0
    %3902 = vmatpush2.bf16.msra.mxu0 %v3741
    %3903 = vmatprep.subr.bf16.mxu0 0
    %3904 = vmatpush2.bf16.msra.mxu0 %v3740
    %3905 = vmatprep.subr.bf16.mxu0 0
    %3906 = vmatpush2.bf16.msra.mxu0 %v3739
    %3907 = vmatprep.mubr.bf16.mxu0 %v3300
    %3908 = vmatmul.mubr.bf16.gmra.mxu0 %v3299
    %v3909 = vpop.f32.mrf.mxu0
    %v3910 = vadd.f32 %v3073, %v3909
    %v3911 = vpop.f32.mrf.mxu0
    %v3912 = vpop.f32.mrf.mxu0
    %v3913 = vadd.f32 %v3073, %v3912
    %v3914 = vpop.f32.mrf.mxu0
    %3915 = vmatprep.mubr.bf16.mxu0 %v3309
    %3916 = vmatmul.mubr.bf16.gmra.mxu0 %v3308
    %v3917 = vpop.f32.mrf.mxu0
    %v3918 = vadd.f32 %v3073, %v3917
    %v3919 = vpop.f32.mrf.mxu0
    %v3920 = vpop.f32.mrf.mxu0
    %v3921 = vadd.f32 %v3073, %v3920
    %v3922 = vpop.f32.mrf.mxu0
    %3923 = vmatprep.mubr.bf16.mxu0 %v3318
    %3924 = vmatmul.mubr.bf16.gmra.mxu0 %v3317
    %v3925 = vpop.f32.mrf.mxu0
    %v3926 = vadd.f32 %v3073, %v3925
    %v3927 = vpop.f32.mrf.mxu0
    %v3928 = vpop.f32.mrf.mxu0
    %v3929 = vadd.f32 %v3073, %v3928
    %v3930 = vpop.f32.mrf.mxu0
    %3931 = vmatprep.mubr.bf16.mxu0 %v3327
    %3932 = vmatmul.mubr.bf16.gmra.mxu0 %v3326
    %v3933 = vpop.f32.mrf.mxu0
    %v3934 = vadd.f32 %v3073, %v3933
    %v3935 = vpop.f32.mrf.mxu0
    %v3936 = vpop.f32.mrf.mxu0
    %v3937 = vadd.f32 %v3073, %v3936
    %v3938 = vpop.f32.mrf.mxu0
    %3939 = vmatprep.mubr.bf16.mxu0 %v3336
    %3940 = vmatmul.mubr.bf16.gmra.mxu0 %v3335
    %v3941 = vpop.f32.mrf.mxu0
    %v3942 = vadd.f32 %v3073, %v3941
    %v3943 = vpop.f32.mrf.mxu0
    %v3944 = vpop.f32.mrf.mxu0
    %v3945 = vadd.f32 %v3073, %v3944
    %v3946 = vpop.f32.mrf.mxu0
    %3947 = vmatprep.mubr.bf16.mxu0 %v3345
    %3948 = vmatmul.mubr.bf16.gmra.mxu0 %v3344
    %v3949 = vpop.f32.mrf.mxu0
    %v3950 = vadd.f32 %v3073, %v3949
    %v3951 = vpop.f32.mrf.mxu0
    %v3952 = vpop.f32.mrf.mxu0
    %v3953 = vadd.f32 %v3073, %v3952
    %v3954 = vpop.f32.mrf.mxu0
    %3955 = vmatprep.mubr.bf16.mxu0 %v3354
    %3956 = vmatmul.mubr.bf16.gmra.mxu0 %v3353
    %v3957 = vpop.f32.mrf.mxu0
    %v3958 = vadd.f32 %v3073, %v3957
    %v3959 = vpop.f32.mrf.mxu0
    %v3960 = vpop.f32.mrf.mxu0
    %v3961 = vadd.f32 %v3073, %v3960
    %v3962 = vpop.f32.mrf.mxu0
    %3963 = vmatprep.mubr.bf16.mxu0 %v3363
    %3964 = vmatmul.mubr.bf16.gmra.mxu0 %v3362
    %v3965 = vpop.f32.mrf.mxu0
    %v3966 = vadd.f32 %v3073, %v3965
    %v3967 = vpop.f32.mrf.mxu0
    %v3968 = vpop.f32.mrf.mxu0
    %v3969 = vadd.f32 %v3073, %v3968
    %v3970 = vpop.f32.mrf.mxu0
    %3971 = vdwg.mxu0
    %3972 = vmatprep.subr.bf16.mxu0 0
    %3973 = vmatpush1.bf16.msra.mxu0 %v3754
    %3974 = vmatprep.subr.bf16.mxu0 0
    %3975 = vmatpush1.bf16.msra.mxu0 %v3753
    %3976 = vmatprep.subr.bf16.mxu0 0
    %3977 = vmatpush1.bf16.msra.mxu0 %v3752
    %3978 = vmatprep.subr.bf16.mxu0 0
    %3979 = vmatpush1.bf16.msra.mxu0 %v3751
    %3980 = vmatprep.subr.bf16.mxu0 0
    %3981 = vmatpush1.bf16.msra.mxu0 %v3750
    %3982 = vmatprep.subr.bf16.mxu0 0
    %3983 = vmatpush1.bf16.msra.mxu0 %v3749
    %3984 = vmatprep.subr.bf16.mxu0 0
    %3985 = vmatpush1.bf16.msra.mxu0 %v3748
    %3986 = vmatprep.subr.bf16.mxu0 0
    %3987 = vmatpush1.bf16.msra.mxu0 %v3747
    %3988 = vmatprep.subr.bf16.mxu0 0
    %3989 = vmatpush2.bf16.msra.mxu0 %v3762
    %3990 = vmatprep.subr.bf16.mxu0 0
    %3991 = vmatpush2.bf16.msra.mxu0 %v3761
    %3992 = vmatprep.subr.bf16.mxu0 0
    %3993 = vmatpush2.bf16.msra.mxu0 %v3760
    %3994 = vmatprep.subr.bf16.mxu0 0
    %3995 = vmatpush2.bf16.msra.mxu0 %v3759
    %3996 = vmatprep.subr.bf16.mxu0 0
    %3997 = vmatpush2.bf16.msra.mxu0 %v3758
    %3998 = vmatprep.subr.bf16.mxu0 0
    %3999 = vmatpush2.bf16.msra.mxu0 %v3757
    %4000 = vmatprep.subr.bf16.mxu0 0
    %4001 = vmatpush2.bf16.msra.mxu0 %v3756
    %4002 = vmatprep.subr.bf16.mxu0 0
    %4003 = vmatpush2.bf16.msra.mxu0 %v3755
    %4004 = vmatprep.mubr.bf16.mxu0 %v3302
    %4005 = vmatmul.mubr.bf16.gmra.mxu0 %v3301
    %v4006 = vpop.f32.mrf.mxu0
    %v4007 = vadd.f32 %v3910, %v4006
    %v4008 = vpop.f32.mrf.mxu0
    %v4009 = vpop.f32.mrf.mxu0
    %v4010 = vadd.f32 %v3913, %v4009
    %v4011 = vpop.f32.mrf.mxu0
    %4012 = vmatprep.mubr.bf16.mxu0 %v3311
    %4013 = vmatmul.mubr.bf16.gmra.mxu0 %v3310
    %v4014 = vpop.f32.mrf.mxu0
    %v4015 = vadd.f32 %v3918, %v4014
    %v4016 = vpop.f32.mrf.mxu0
    %v4017 = vpop.f32.mrf.mxu0
    %v4018 = vadd.f32 %v3921, %v4017
    %v4019 = vpop.f32.mrf.mxu0
    %4020 = vmatprep.mubr.bf16.mxu0 %v3320
    %4021 = vmatmul.mubr.bf16.gmra.mxu0 %v3319
    %v4022 = vpop.f32.mrf.mxu0
    %v4023 = vadd.f32 %v3926, %v4022
    %v4024 = vpop.f32.mrf.mxu0
    %v4025 = vpop.f32.mrf.mxu0
    %v4026 = vadd.f32 %v3929, %v4025
    %v4027 = vpop.f32.mrf.mxu0
    %4028 = vmatprep.mubr.bf16.mxu0 %v3329
    %4029 = vmatmul.mubr.bf16.gmra.mxu0 %v3328
    %v4030 = vpop.f32.mrf.mxu0
    %v4031 = vadd.f32 %v3934, %v4030
    %v4032 = vpop.f32.mrf.mxu0
    %v4033 = vpop.f32.mrf.mxu0
    %v4034 = vadd.f32 %v3937, %v4033
    %v4035 = vpop.f32.mrf.mxu0
    %4036 = vmatprep.mubr.bf16.mxu0 %v3338
    %4037 = vmatmul.mubr.bf16.gmra.mxu0 %v3337
    %v4038 = vpop.f32.mrf.mxu0
    %v4039 = vadd.f32 %v3942, %v4038
    %v4040 = vpop.f32.mrf.mxu0
    %v4041 = vpop.f32.mrf.mxu0
    %v4042 = vadd.f32 %v3945, %v4041
    %v4043 = vpop.f32.mrf.mxu0
    %4044 = vmatprep.mubr.bf16.mxu0 %v3347
    %4045 = vmatmul.mubr.bf16.gmra.mxu0 %v3346
    %v4046 = vpop.f32.mrf.mxu0
    %v4047 = vadd.f32 %v3950, %v4046
    %v4048 = vpop.f32.mrf.mxu0
    %v4049 = vpop.f32.mrf.mxu0
    %v4050 = vadd.f32 %v3953, %v4049
    %v4051 = vpop.f32.mrf.mxu0
    %4052 = vmatprep.mubr.bf16.mxu0 %v3356
    %4053 = vmatmul.mubr.bf16.gmra.mxu0 %v3355
    %v4054 = vpop.f32.mrf.mxu0
    %v4055 = vadd.f32 %v3958, %v4054
    %v4056 = vpop.f32.mrf.mxu0
    %v4057 = vpop.f32.mrf.mxu0
    %v4058 = vadd.f32 %v3961, %v4057
    %v4059 = vpop.f32.mrf.mxu0
    %4060 = vmatprep.mubr.bf16.mxu0 %v3365
    %4061 = vmatmul.mubr.bf16.gmra.mxu0 %v3364
    %v4062 = vpop.f32.mrf.mxu0
    %v4063 = vadd.f32 %v3966, %v4062
    %v4064 = vpop.f32.mrf.mxu0
    %v4065 = vpop.f32.mrf.mxu0
    %v4066 = vadd.f32 %v3969, %v4065
    %v4067 = vpop.f32.mrf.mxu0
    %4068 = vdwg.mxu0
    %4069 = vmatprep.subr.bf16.mxu0 0
    %4070 = vmatpush1.bf16.msra.mxu0 %v3770
    %4071 = vmatprep.subr.bf16.mxu0 0
    %4072 = vmatpush1.bf16.msra.mxu0 %v3769
    %4073 = vmatprep.subr.bf16.mxu0 0
    %4074 = vmatpush1.bf16.msra.mxu0 %v3768
    %4075 = vmatprep.subr.bf16.mxu0 0
    %4076 = vmatpush1.bf16.msra.mxu0 %v3767
    %4077 = vmatprep.subr.bf16.mxu0 0
    %4078 = vmatpush1.bf16.msra.mxu0 %v3766
    %4079 = vmatprep.subr.bf16.mxu0 0
    %4080 = vmatpush1.bf16.msra.mxu0 %v3765
    %4081 = vmatprep.subr.bf16.mxu0 0
    %4082 = vmatpush1.bf16.msra.mxu0 %v3764
    %4083 = vmatprep.subr.bf16.mxu0 0
    %4084 = vmatpush1.bf16.msra.mxu0 %v3763
    %4085 = vmatprep.subr.bf16.mxu0 0
    %4086 = vmatpush2.bf16.msra.mxu0 %v3778
    %4087 = vmatprep.subr.bf16.mxu0 0
    %4088 = vmatpush2.bf16.msra.mxu0 %v3777
    %4089 = vmatprep.subr.bf16.mxu0 0
    %4090 = vmatpush2.bf16.msra.mxu0 %v3776
    %4091 = vmatprep.subr.bf16.mxu0 0
    %4092 = vmatpush2.bf16.msra.mxu0 %v3775
    %4093 = vmatprep.subr.bf16.mxu0 0
    %4094 = vmatpush2.bf16.msra.mxu0 %v3774
    %4095 = vmatprep.subr.bf16.mxu0 0
    %4096 = vmatpush2.bf16.msra.mxu0 %v3773
    %4097 = vmatprep.subr.bf16.mxu0 0
    %4098 = vmatpush2.bf16.msra.mxu0 %v3772
    %4099 = vmatprep.subr.bf16.mxu0 0
    %4100 = vmatpush2.bf16.msra.mxu0 %v3771
    %4101 = vmatprep.mubr.bf16.mxu0 %v3304
    %4102 = vmatmul.mubr.bf16.gmra.mxu0 %v3303
    %v4103 = vpop.f32.mrf.mxu0
    %v4104 = vadd.f32 %v4007, %v4103
    %v4105 = vpop.f32.mrf.mxu0
    %v4106 = vpop.f32.mrf.mxu0
    %v4107 = vadd.f32 %v4010, %v4106
    %v4108 = vpop.f32.mrf.mxu0
    %4109 = vmatprep.mubr.bf16.mxu0 %v3313
    %4110 = vmatmul.mubr.bf16.gmra.mxu0 %v3312
    %v4111 = vpop.f32.mrf.mxu0
    %v4112 = vadd.f32 %v4015, %v4111
    %v4113 = vpop.f32.mrf.mxu0
    %v4114 = vpop.f32.mrf.mxu0
    %v4115 = vadd.f32 %v4018, %v4114
    %v4116 = vpop.f32.mrf.mxu0
    %4117 = vmatprep.mubr.bf16.mxu0 %v3322
    %4118 = vmatmul.mubr.bf16.gmra.mxu0 %v3321
    %v4119 = vpop.f32.mrf.mxu0
    %v4120 = vadd.f32 %v4023, %v4119
    %v4121 = vpop.f32.mrf.mxu0
    %v4122 = vpop.f32.mrf.mxu0
    %v4123 = vadd.f32 %v4026, %v4122
    %v4124 = vpop.f32.mrf.mxu0
    %4125 = vmatprep.mubr.bf16.mxu0 %v3331
    %4126 = vmatmul.mubr.bf16.gmra.mxu0 %v3330
    %v4127 = vpop.f32.mrf.mxu0
    %v4128 = vadd.f32 %v4031, %v4127
    %v4129 = vpop.f32.mrf.mxu0
    %v4130 = vpop.f32.mrf.mxu0
    %v4131 = vadd.f32 %v4034, %v4130
    %v4132 = vpop.f32.mrf.mxu0
    %4133 = vmatprep.mubr.bf16.mxu0 %v3340
    %4134 = vmatmul.mubr.bf16.gmra.mxu0 %v3339
    %v4135 = vpop.f32.mrf.mxu0
    %v4136 = vadd.f32 %v4039, %v4135
    %v4137 = vpop.f32.mrf.mxu0
    %v4138 = vpop.f32.mrf.mxu0
    %v4139 = vadd.f32 %v4042, %v4138
    %v4140 = vpop.f32.mrf.mxu0
    %4141 = vmatprep.mubr.bf16.mxu0 %v3349
    %4142 = vmatmul.mubr.bf16.gmra.mxu0 %v3348
    %v4143 = vpop.f32.mrf.mxu0
    %v4144 = vadd.f32 %v4047, %v4143
    %v4145 = vpop.f32.mrf.mxu0
    %v4146 = vpop.f32.mrf.mxu0
    %v4147 = vadd.f32 %v4050, %v4146
    %v4148 = vpop.f32.mrf.mxu0
    %4149 = vmatprep.mubr.bf16.mxu0 %v3358
    %4150 = vmatmul.mubr.bf16.gmra.mxu0 %v3357
    %v4151 = vpop.f32.mrf.mxu0
    %v4152 = vadd.f32 %v4055, %v4151
    %v4153 = vpop.f32.mrf.mxu0
    %v4154 = vpop.f32.mrf.mxu0
    %v4155 = vadd.f32 %v4058, %v4154
    %v4156 = vpop.f32.mrf.mxu0
    %4157 = vmatprep.mubr.bf16.mxu0 %v3367
    %4158 = vmatmul.mubr.bf16.gmra.mxu0 %v3366
    %v4159 = vpop.f32.mrf.mxu0
    %v4160 = vadd.f32 %v4063, %v4159
    %v4161 = vpop.f32.mrf.mxu0
    %v4162 = vpop.f32.mrf.mxu0
    %v4163 = vadd.f32 %v4066, %v4162
    %v4164 = vpop.f32.mrf.mxu0
    %4165 = vdwg.mxu0
    %4166 = vmatprep.subr.bf16.mxu0 0
    %4167 = vmatpush1.bf16.msra.mxu0 %v3786
    %4168 = vmatprep.subr.bf16.mxu0 0
    %4169 = vmatpush1.bf16.msra.mxu0 %v3785
    %4170 = vmatprep.subr.bf16.mxu0 0
    %4171 = vmatpush1.bf16.msra.mxu0 %v3784
    %4172 = vmatprep.subr.bf16.mxu0 0
    %4173 = vmatpush1.bf16.msra.mxu0 %v3783
    %4174 = vmatprep.subr.bf16.mxu0 0
    %4175 = vmatpush1.bf16.msra.mxu0 %v3782
    %4176 = vmatprep.subr.bf16.mxu0 0
    %4177 = vmatpush1.bf16.msra.mxu0 %v3781
    %4178 = vmatprep.subr.bf16.mxu0 0
    %4179 = vmatpush1.bf16.msra.mxu0 %v3780
    %4180 = vmatprep.subr.bf16.mxu0 0
    %4181 = vmatpush1.bf16.msra.mxu0 %v3779
    %4182 = vmatprep.subr.bf16.mxu0 0
    %4183 = vmatpush2.bf16.msra.mxu0 %v3794
    %4184 = vmatprep.subr.bf16.mxu0 0
    %4185 = vmatpush2.bf16.msra.mxu0 %v3793
    %4186 = vmatprep.subr.bf16.mxu0 0
    %4187 = vmatpush2.bf16.msra.mxu0 %v3792
    %4188 = vmatprep.subr.bf16.mxu0 0
    %4189 = vmatpush2.bf16.msra.mxu0 %v3791
    %4190 = vmatprep.subr.bf16.mxu0 0
    %4191 = vmatpush2.bf16.msra.mxu0 %v3790
    %4192 = vmatprep.subr.bf16.mxu0 0
    %4193 = vmatpush2.bf16.msra.mxu0 %v3789
    %4194 = vmatprep.subr.bf16.mxu0 0
    %4195 = vmatpush2.bf16.msra.mxu0 %v3788
    %4196 = vmatprep.subr.bf16.mxu0 0
    %4197 = vmatpush2.bf16.msra.mxu0 %v3787
    %4198 = vmatprep.mubr.bf16.mxu0 %v3306
    %4199 = vmatmul.mubr.bf16.gmra.mxu0 %v3305
    %v4200 = vpop.f32.mrf.mxu0
    %v4201 = vadd.f32 %v4104, %v4200
    %v4202 = vpop.f32.mrf.mxu0
    %v4203 = vpop.f32.mrf.mxu0
    %v4204 = vadd.f32 %v4107, %v4203
    %v4205 = vpop.f32.mrf.mxu0
    %4206 = vmatprep.mubr.bf16.mxu0 %v3315
    %4207 = vmatmul.mubr.bf16.gmra.mxu0 %v3314
    %v4208 = vpop.f32.mrf.mxu0
    %v4209 = vadd.f32 %v4112, %v4208
    %v4210 = vpop.f32.mrf.mxu0
    %v4211 = vpop.f32.mrf.mxu0
    %v4212 = vadd.f32 %v4115, %v4211
    %v4213 = vpop.f32.mrf.mxu0
    %4214 = vmatprep.mubr.bf16.mxu0 %v3324
    %4215 = vmatmul.mubr.bf16.gmra.mxu0 %v3323
    %v4216 = vpop.f32.mrf.mxu0
    %v4217 = vadd.f32 %v4120, %v4216
    %v4218 = vpop.f32.mrf.mxu0
    %v4219 = vpop.f32.mrf.mxu0
    %v4220 = vadd.f32 %v4123, %v4219
    %v4221 = vpop.f32.mrf.mxu0
    %4222 = vmatprep.mubr.bf16.mxu0 %v3333
    %4223 = vmatmul.mubr.bf16.gmra.mxu0 %v3332
    %v4224 = vpop.f32.mrf.mxu0
    %v4225 = vadd.f32 %v4128, %v4224
    %v4226 = vpop.f32.mrf.mxu0
    %v4227 = vpop.f32.mrf.mxu0
    %v4228 = vadd.f32 %v4131, %v4227
    %v4229 = vpop.f32.mrf.mxu0
    %4230 = vmatprep.mubr.bf16.mxu0 %v3342
    %4231 = vmatmul.mubr.bf16.gmra.mxu0 %v3341
    %v4232 = vpop.f32.mrf.mxu0
    %v4233 = vadd.f32 %v4136, %v4232
    %v4234 = vpop.f32.mrf.mxu0
    %v4235 = vpop.f32.mrf.mxu0
    %v4236 = vadd.f32 %v4139, %v4235
    %v4237 = vpop.f32.mrf.mxu0
    %4238 = vmatprep.mubr.bf16.mxu0 %v3351
    %4239 = vmatmul.mubr.bf16.gmra.mxu0 %v3350
    %v4240 = vpop.f32.mrf.mxu0
    %v4241 = vadd.f32 %v4144, %v4240
    %v4242 = vpop.f32.mrf.mxu0
    %v4243 = vpop.f32.mrf.mxu0
    %v4244 = vadd.f32 %v4147, %v4243
    %v4245 = vpop.f32.mrf.mxu0
    %4246 = vmatprep.mubr.bf16.mxu0 %v3360
    %4247 = vmatmul.mubr.bf16.gmra.mxu0 %v3359
    %v4248 = vpop.f32.mrf.mxu0
    %v4249 = vadd.f32 %v4152, %v4248
    %v4250 = vpop.f32.mrf.mxu0
    %v4251 = vpop.f32.mrf.mxu0
    %v4252 = vadd.f32 %v4155, %v4251
    %v4253 = vpop.f32.mrf.mxu0
    %4254 = vmatprep.mubr.bf16.mxu0 %v3369
    %4255 = vmatmul.mubr.bf16.gmra.mxu0 %v3368
    %v4256 = vpop.f32.mrf.mxu0
    %v4257 = vadd.f32 %v4160, %v4256
    %v4258 = vpop.f32.mrf.mxu0
    %v4259 = vpop.f32.mrf.mxu0
    %v4260 = vadd.f32 %v4163, %v4259
    %v4261 = vpop.f32.mrf.mxu0
    %4262 = vdwg.mxu0
    %4263 = vmatprep.subr.bf16.mxu0 0
    %4264 = vmatpush1.bf16.msra.mxu0 %v3802
    %4265 = vmatprep.subr.bf16.mxu0 0
    %4266 = vmatpush1.bf16.msra.mxu0 %v3801
    %4267 = vmatprep.subr.bf16.mxu0 0
    %4268 = vmatpush1.bf16.msra.mxu0 %v3800
    %4269 = vmatprep.subr.bf16.mxu0 0
    %4270 = vmatpush1.bf16.msra.mxu0 %v3799
    %4271 = vmatprep.subr.bf16.mxu0 0
    %4272 = vmatpush1.bf16.msra.mxu0 %v3798
    %4273 = vmatprep.subr.bf16.mxu0 0
    %4274 = vmatpush1.bf16.msra.mxu0 %v3797
    %4275 = vmatprep.subr.bf16.mxu0 0
    %4276 = vmatpush1.bf16.msra.mxu0 %v3796
    %4277 = vmatprep.subr.bf16.mxu0 0
    %4278 = vmatpush1.bf16.msra.mxu0 %v3795
    %4279 = vmatprep.subr.bf16.mxu0 0
    %4280 = vmatpush2.bf16.msra.mxu0 0
    %4281 = vmatprep.subr.bf16.mxu0 0
    %4282 = vmatpush2.bf16.msra.mxu0 0
    %4283 = vmatprep.subr.bf16.mxu0 0
    %4284 = vmatpush2.bf16.msra.mxu0 0
    %4285 = vmatprep.subr.bf16.mxu0 0
    %4286 = vmatpush2.bf16.msra.mxu0 0
    %4287 = vmatprep.subr.bf16.mxu0 0
    %4288 = vmatpush2.bf16.msra.mxu0 0
    %4289 = vmatprep.subr.bf16.mxu0 0
    %4290 = vmatpush2.bf16.msra.mxu0 0
    %4291 = vmatprep.subr.bf16.mxu0 0
    %4292 = vmatpush2.bf16.msra.mxu0 0
    %4293 = vmatprep.subr.bf16.mxu0 0
    %4294 = vmatpush2.bf16.msra.mxu0 0
    %4295 = vmatprep.mubr.bf16.mxu0 0
    %4296 = vmatmul.mubr.bf16.gmra.mxu0 %v3307
    %v4297 = vpop.f32.mrf.mxu0
    %v4298 = vadd.f32 %v4201, %v4297
    %v4299 = vpop.f32.mrf.mxu0
    %v4300 = vpop.f32.mrf.mxu0
    %v4301 = vadd.f32 %v4204, %v4300
    %v4302 = vpop.f32.mrf.mxu0
    %4303 = vmatprep.mubr.bf16.mxu0 0
    %4304 = vmatmul.mubr.bf16.gmra.mxu0 %v3316
    %v4305 = vpop.f32.mrf.mxu0
    %v4306 = vadd.f32 %v4209, %v4305
    %v4307 = vpop.f32.mrf.mxu0
    %v4308 = vpop.f32.mrf.mxu0
    %v4309 = vadd.f32 %v4212, %v4308
    %v4310 = vpop.f32.mrf.mxu0
    %4311 = vmatprep.mubr.bf16.mxu0 0
    %4312 = vmatmul.mubr.bf16.gmra.mxu0 %v3325
    %v4313 = vpop.f32.mrf.mxu0
    %v4314 = vadd.f32 %v4217, %v4313
    %v4315 = vpop.f32.mrf.mxu0
    %v4316 = vpop.f32.mrf.mxu0
    %v4317 = vadd.f32 %v4220, %v4316
    %v4318 = vpop.f32.mrf.mxu0
    %4319 = vmatprep.mubr.bf16.mxu0 0
    %4320 = vmatmul.mubr.bf16.gmra.mxu0 %v3334
    %v4321 = vpop.f32.mrf.mxu0
    %v4322 = vadd.f32 %v4225, %v4321
    %v4323 = vpop.f32.mrf.mxu0
    %v4324 = vpop.f32.mrf.mxu0
    %v4325 = vadd.f32 %v4228, %v4324
    %v4326 = vpop.f32.mrf.mxu0
    %4327 = vmatprep.mubr.bf16.mxu0 0
    %4328 = vmatmul.mubr.bf16.gmra.mxu0 %v3343
    %v4329 = vpop.f32.mrf.mxu0
    %v4330 = vadd.f32 %v4233, %v4329
    %v4331 = vpop.f32.mrf.mxu0
    %v4332 = vpop.f32.mrf.mxu0
    %v4333 = vadd.f32 %v4236, %v4332
    %v4334 = vpop.f32.mrf.mxu0
    %4335 = vmatprep.mubr.bf16.mxu0 0
    %4336 = vmatmul.mubr.bf16.gmra.mxu0 %v3352
    %v4337 = vpop.f32.mrf.mxu0
    %v4338 = vadd.f32 %v4241, %v4337
    %v4339 = vpop.f32.mrf.mxu0
    %v4340 = vpop.f32.mrf.mxu0
    %v4341 = vadd.f32 %v4244, %v4340
    %v4342 = vpop.f32.mrf.mxu0
    %4343 = vmatprep.mubr.bf16.mxu0 0
    %4344 = vmatmul.mubr.bf16.gmra.mxu0 %v3361
    %v4345 = vpop.f32.mrf.mxu0
    %v4346 = vadd.f32 %v4249, %v4345
    %v4347 = vpop.f32.mrf.mxu0
    %v4348 = vpop.f32.mrf.mxu0
    %v4349 = vadd.f32 %v4252, %v4348
    %v4350 = vpop.f32.mrf.mxu0
    %4351 = vmatprep.mubr.bf16.mxu0 0
    %4352 = vmatmul.mubr.bf16.gmra.mxu0 %v3370
    %v4353 = vpop.f32.mrf.mxu0
    %v4354 = vadd.f32 %v4257, %v4353
    %v4355 = vpop.f32.mrf.mxu0
    %v4356 = vpop.f32.mrf.mxu0
    %v4357 = vadd.f32 %v4260, %v4356
    %v4358 = vpop.f32.mrf.mxu0
    %4359 = vdwg.mxu0
    %v4360 = vmax.f32 %v4298, 0.0
    %v4361 = vmax.f32 %v4301, 0.0
    %v4362 = vmax.f32 %v4306, 0.0
    %v4363 = vmax.f32 %v4309, 0.0
    %v4364 = vmax.f32 %v4314, 0.0
    %v4365 = vmax.f32 %v4317, 0.0
    %v4366 = vmax.f32 %v4322, 0.0
    %v4367 = vmax.f32 %v4325, 0.0
    %v4368 = vmax.f32 %v4330, 0.0
    %v4369 = vmax.f32 %v4333, 0.0
    %v4370 = vmax.f32 %v4338, 0.0
    %v4371 = vmax.f32 %v4341, 0.0
    %v4372 = vmax.f32 %v4346, 0.0
    %v4373 = vmax.f32 %v4349, 0.0
    %v4374 = vmax.f32 %v4354, 0.0
    %v4375 = vmax.f32 %v4357, 0.0
    %4376 = vst [vmem:[#allocation10] sm:$0xff] %v4360
    %4377 = vst [vmem:[#allocation10 + $0x8] sm:$0xff] %v4361
    %4378 = vst [vmem:[#allocation10 + $0x10] sm:$0xff] %v4362
    %4379 = vst [vmem:[#allocation10 + $0x18] sm:$0xff] %v4363
    %4380 = vst [vmem:[#allocation10 + $0x20] sm:$0xff] %v4364
    %4381 = vst [vmem:[#allocation10 + $0x28] sm:$0xff] %v4365
    %4382 = vst [vmem:[#allocation10 + $0x30] sm:$0xff] %v4366
    %4383 = vst [vmem:[#allocation10 + $0x38] sm:$0xff] %v4367
    %4384 = vst [vmem:[#allocation10 + $0x40] sm:$0xff] %v4368
    %4385 = vst [vmem:[#allocation10 + $0x48] sm:$0xff] %v4369
    %4386 = vst [vmem:[#allocation10 + $0x50] sm:$0xff] %v4370
    %4387 = vst [vmem:[#allocation10 + $0x58] sm:$0xff] %v4371
    %4388 = vst [vmem:[#allocation10 + $0x60] sm:$0xff] %v4372
    %4389 = vst [vmem:[#allocation10 + $0x68] sm:$0xff] %v4373
    %4390 = vst [vmem:[#allocation10 + $0x70] sm:$0xff] %v4374
    %4391 = vst [vmem:[#allocation10 + $0x78] sm:$0xff] %v4375
    %v4392 = vld [vmem:[#allocation10] ss:$2 sm:$0xf]
    %s4393 = scalar_lea.vmem [#allocation10], 1
    %v4394 = vld [vmem:[%s4393] ss:$2 sm:$0xf]
    %v4395 = vmax.f32 %v4392, %v4394
    %s4396 = scalar_lea.vmem [#allocation10], 8
    %v4397 = vld [vmem:[%s4396] ss:$2 sm:$0xf]
    %s4398 = scalar_lea.vmem [#allocation10], 9
    %v4399 = vld [vmem:[%s4398] ss:$2 sm:$0xf]
    %v4400 = vmax.f32 %v4397, %v4399
    %v4401 = vmax.f32 %v4395, %v4400
    %v4402 = vpack.c.bf16 %v4401, %v4401
    %v4404 = vunpack.c.l.b16 %v4402
    %v4405 = vpack.c.b16 %v4404, %v4404
    %v4407 = vshrl.u32 %v4405, 16
    %v4409 = vrot.slane %v4407, 7
    %v4410 = vshll.u32 %v4405, 16
    %v4412 = vor.u32 %v4409, %v4410
    %s4414 = scalar_lea.vmem [#allocation3], 4
    %vm4415 = vsmask.f32 2306
    %vm4416 = vmand %vm1591, %vm4415
    %v4417 = vld [vmem:[%s4414] sm:$0x7]
    %v4418 = vsel %vm4416, %v4412, %v4417
    %4419 = vst [vmem:[%s4414] sm:$0x7] %v4418
    %s4420 = scalar_lea.vmem [#allocation10], 16
    %v4421 = vld [vmem:[%s4420] ss:$2 sm:$0xf]
    %s4422 = scalar_lea.vmem [#allocation10], 17
    %v4423 = vld [vmem:[%s4422] ss:$2 sm:$0xf]
    %v4424 = vmax.f32 %v4421, %v4423
    %s4425 = scalar_lea.vmem [#allocation10], 24
    %v4426 = vld [vmem:[%s4425] ss:$2 sm:$0xf]
    %s4427 = scalar_lea.vmem [#allocation10], 25
    %v4428 = vld [vmem:[%s4427] ss:$2 sm:$0xf]
    %v4429 = vmax.f32 %v4426, %v4428
    %v4430 = vmax.f32 %v4424, %v4429
    %v4431 = vpack.c.bf16 %v4430, %v4430
    %v4433 = vunpack.c.l.b16 %v4431
    %v4434 = vpack.c.b16 %v4433, %v4433
    %v4436 = vshrl.u32 %v4434, 16
    %v4438 = vrot.slane %v4436, 7
    %v4439 = vshll.u32 %v4434, 16
    %v4441 = vor.u32 %v4438, %v4439
    %s4443 = scalar_lea.vmem [#allocation3], 8
    %v4444 = vld [vmem:[%s4443] sm:$0x7]
    %v4445 = vsel %vm4416, %v4441, %v4444
    %4446 = vst [vmem:[%s4443] sm:$0x7] %v4445
    %s4447 = scalar_lea.vmem [#allocation10], 32
    %v4448 = vld [vmem:[%s4447] ss:$2 sm:$0xf]
    %s4449 = scalar_lea.vmem [#allocation10], 33
    %v4450 = vld [vmem:[%s4449] ss:$2 sm:$0xf]
    %v4451 = vmax.f32 %v4448, %v4450
    %s4452 = scalar_lea.vmem [#allocation10], 40
    %v4453 = vld [vmem:[%s4452] ss:$2 sm:$0xf]
    %s4454 = scalar_lea.vmem [#allocation10], 41
    %v4455 = vld [vmem:[%s4454] ss:$2 sm:$0xf]
    %v4456 = vmax.f32 %v4453, %v4455
    %v4457 = vmax.f32 %v4451, %v4456
    %v4458 = vpack.c.bf16 %v4457, %v4457
    %v4460 = vunpack.c.l.b16 %v4458
    %v4461 = vpack.c.b16 %v4460, %v4460
    %v4463 = vshrl.u32 %v4461, 16
    %v4465 = vrot.slane %v4463, 7
    %v4466 = vshll.u32 %v4461, 16
    %v4468 = vor.u32 %v4465, %v4466
    %s4470 = scalar_lea.vmem [#allocation3], 12
    %v4471 = vld [vmem:[%s4470] sm:$0x7]
    %v4472 = vsel %vm4416, %v4468, %v4471
    %4473 = vst [vmem:[%s4470] sm:$0x7] %v4472
    %s4474 = scalar_lea.vmem [#allocation10], 48
    %v4475 = vld [vmem:[%s4474] ss:$2 sm:$0xf]
    %s4476 = scalar_lea.vmem [#allocation10], 49
    %v4477 = vld [vmem:[%s4476] ss:$2 sm:$0xf]
    %v4478 = vmax.f32 %v4475, %v4477
    %s4479 = scalar_lea.vmem [#allocation10], 56
    %v4480 = vld [vmem:[%s4479] ss:$2 sm:$0xf]
    %s4481 = scalar_lea.vmem [#allocation10], 57
    %v4482 = vld [vmem:[%s4481] ss:$2 sm:$0xf]
    %v4483 = vmax.f32 %v4480, %v4482
    %v4484 = vmax.f32 %v4478, %v4483
    %v4485 = vpack.c.bf16 %v4484, %v4484
    %v4487 = vunpack.c.l.b16 %v4485
    %v4488 = vpack.c.b16 %v4487, %v4487
    %v4490 = vshrl.u32 %v4488, 16
    %v4492 = vrot.slane %v4490, 7
    %v4493 = vshll.u32 %v4488, 16
    %v4495 = vor.u32 %v4492, %v4493
    %s4497 = scalar_lea.vmem [#allocation3], 16
    %v4498 = vld [vmem:[%s4497] sm:$0x7]
    %v4499 = vsel %vm4416, %v4495, %v4498
    %4500 = vst [vmem:[%s4497] sm:$0x7] %v4499
    %s4501 = scalar_lea.vmem [#allocation10], 64
    %v4502 = vld [vmem:[%s4501] ss:$2 sm:$0xf]
    %s4503 = scalar_lea.vmem [#allocation10], 65
    %v4504 = vld [vmem:[%s4503] ss:$2 sm:$0xf]
    %v4505 = vmax.f32 %v4502, %v4504
    %s4506 = scalar_lea.vmem [#allocation10], 72
    %v4507 = vld [vmem:[%s4506] ss:$2 sm:$0xf]
    %s4508 = scalar_lea.vmem [#allocation10], 73
    %v4509 = vld [vmem:[%s4508] ss:$2 sm:$0xf]
    %v4510 = vmax.f32 %v4507, %v4509
    %v4511 = vmax.f32 %v4505, %v4510
    %v4512 = vpack.c.bf16 %v4511, %v4511
    %v4514 = vunpack.c.l.b16 %v4512
    %v4515 = vpack.c.b16 %v4514, %v4514
    %v4517 = vshrl.u32 %v4515, 16
    %v4519 = vrot.slane %v4517, 7
    %v4520 = vshll.u32 %v4515, 16
    %v4522 = vor.u32 %v4519, %v4520
    %s4524 = scalar_lea.vmem [#allocation3], 28
    %v4525 = vld [vmem:[%s4524] sm:$0x7]
    %v4526 = vsel %vm4416, %v4522, %v4525
    %4527 = vst [vmem:[%s4524] sm:$0x7] %v4526
    %s4528 = scalar_lea.vmem [#allocation10], 80
    %v4529 = vld [vmem:[%s4528] ss:$2 sm:$0xf]
    %s4530 = scalar_lea.vmem [#allocation10], 81
    %v4531 = vld [vmem:[%s4530] ss:$2 sm:$0xf]
    %v4532 = vmax.f32 %v4529, %v4531
    %s4533 = scalar_lea.vmem [#allocation10], 88
    %v4534 = vld [vmem:[%s4533] ss:$2 sm:$0xf]
    %s4535 = scalar_lea.vmem [#allocation10], 89
    %v4536 = vld [vmem:[%s4535] ss:$2 sm:$0xf]
    %v4537 = vmax.f32 %v4534, %v4536
    %v4538 = vmax.f32 %v4532, %v4537
    %v4539 = vpack.c.bf16 %v4538, %v4538
    %v4541 = vunpack.c.l.b16 %v4539
    %v4542 = vpack.c.b16 %v4541, %v4541
    %v4544 = vshrl.u32 %v4542, 16
    %v4546 = vrot.slane %v4544, 7
    %v4547 = vshll.u32 %v4542, 16
    %v4549 = vor.u32 %v4546, %v4547
    %s4551 = scalar_lea.vmem [#allocation3], 32
    %v4552 = vld [vmem:[%s4551] sm:$0x7]
    %v4553 = vsel %vm4416, %v4549, %v4552
    %4554 = vst [vmem:[%s4551] sm:$0x7] %v4553
    %s4555 = scalar_lea.vmem [#allocation10], 96
    %v4556 = vld [vmem:[%s4555] ss:$2 sm:$0xf]
    %s4557 = scalar_lea.vmem [#allocation10], 97
    %v4558 = vld [vmem:[%s4557] ss:$2 sm:$0xf]
    %v4559 = vmax.f32 %v4556, %v4558
    %s4560 = scalar_lea.vmem [#allocation10], 104
    %v4561 = vld [vmem:[%s4560] ss:$2 sm:$0xf]
    %s4562 = scalar_lea.vmem [#allocation10], 105
    %v4563 = vld [vmem:[%s4562] ss:$2 sm:$0xf]
    %v4564 = vmax.f32 %v4561, %v4563
    %v4565 = vmax.f32 %v4559, %v4564
    %v4566 = vpack.c.bf16 %v4565, %v4565
    %v4568 = vunpack.c.l.b16 %v4566
    %v4569 = vpack.c.b16 %v4568, %v4568
    %v4571 = vshrl.u32 %v4569, 16
    %v4573 = vrot.slane %v4571, 7
    %v4574 = vshll.u32 %v4569, 16
    %v4576 = vor.u32 %v4573, %v4574
    %s4578 = scalar_lea.vmem [#allocation3], 36
    %v4579 = vld [vmem:[%s4578] sm:$0x7]
    %v4580 = vsel %vm4416, %v4576, %v4579
    %4581 = vst [vmem:[%s4578] sm:$0x7] %v4580
    %s4582 = scalar_lea.vmem [#allocation10], 112
    %v4583 = vld [vmem:[%s4582] ss:$2 sm:$0xf]
    %s4584 = scalar_lea.vmem [#allocation10], 113
    %v4585 = vld [vmem:[%s4584] ss:$2 sm:$0xf]
    %v4586 = vmax.f32 %v4583, %v4585
    %s4587 = scalar_lea.vmem [#allocation10], 120
    %v4588 = vld [vmem:[%s4587] ss:$2 sm:$0xf]
    %s4589 = scalar_lea.vmem [#allocation10], 121
    %v4590 = vld [vmem:[%s4589] ss:$2 sm:$0xf]
    %v4591 = vmax.f32 %v4588, %v4590
    %v4592 = vmax.f32 %v4586, %v4591
    %v4593 = vpack.c.bf16 %v4592, %v4592
    %v4595 = vunpack.c.l.b16 %v4593
    %v4596 = vpack.c.b16 %v4595, %v4595
    %v4598 = vshrl.u32 %v4596, 16
    %v4600 = vrot.slane %v4598, 7
    %v4601 = vshll.u32 %v4596, 16
    %v4603 = vor.u32 %v4600, %v4601
    %s4605 = scalar_lea.vmem [#allocation3], 40
    %v4606 = vld [vmem:[%s4605] sm:$0x7]
    %v4607 = vsel %vm4416, %v4603, %v4606
    %4608 = vst [vmem:[%s4605] sm:$0x7] %v4607
    %v4609 = vld [vmem:[#allocation3] sm:$0x3]
    %v4610 = vld [vmem:[#allocation3 + $0x4] sm:$0x3]
    %v4611 = vld [vmem:[#allocation3 + $0x8] sm:$0x3]
    %v4612 = vld [vmem:[#allocation3 + $0xc] sm:$0x3]
    %4613 = vst [vmem:[#allocation7] sm:$0x3] %v4609
    %4614 = vst [vmem:[#allocation7 + $0x12] sm:$0x3] %v4610
    %4615 = vst [vmem:[#allocation7 + $0x24] sm:$0x3] %v4611
    %4616 = vst [vmem:[#allocation7 + $0x36] sm:$0x3] %v4612
    %v4617 = vld [vmem:[#allocation3] sm:$0x7]
    %v4618 = vld [vmem:[#allocation3 + $0x4] sm:$0x7]
    %v4619 = vld [vmem:[#allocation3 + $0x8] sm:$0x7]
    %v4620 = vld [vmem:[#allocation3 + $0xc] sm:$0x7]
    %v4626 = vunpack.c.l.s4 1983009808
    %v4627 = vunpack.c.0.s8 %v4626
    %v4628 = vlaneseq
    %v4629 = vshrl.u32 %v4628, 7
    %v4630 = vsub.s32 %v4627, %v4629
    %v4631 = vrot.slane %v4617, %v4630
    %v4632 = vcombine.high %v4631, %v4631
    %v4634 = vunpack.c.l.s4 1983009808
    %v4635 = vunpack.c.0.s8 %v4634
    %v4636 = vlaneseq
    %v4637 = vshrl.u32 %v4636, 7
    %v4638 = vsub.s32 %v4635, %v4637
    %v4639 = vrot.slane %v4618, %v4638
    %v4640 = vcombine.high %v4639, %v4639
    %v4642 = vunpack.c.l.s4 1983009808
    %v4643 = vunpack.c.0.s8 %v4642
    %v4644 = vlaneseq
    %v4645 = vshrl.u32 %v4644, 7
    %v4646 = vsub.s32 %v4643, %v4645
    %v4647 = vrot.slane %v4619, %v4646
    %v4648 = vcombine.high %v4647, %v4647
    %v4650 = vunpack.c.l.s4 1983009808
    %v4651 = vunpack.c.0.s8 %v4650
    %v4652 = vlaneseq
    %v4653 = vshrl.u32 %v4652, 7
    %v4654 = vsub.s32 %v4651, %v4653
    %v4655 = vrot.slane %v4620, %v4654
    %v4656 = vcombine.high %v4655, %v4655
    %vm4657 = vsmask.f32 1280
    %vm4658 = vsmask.f32 3336
    %vm4659 = vmor %vm4657, %vm4658
    %vm4660 = vsmask.f32 5392
    %vm4661 = vmor %vm4659, %vm4660
    %vm4662 = vsmask.f32 7448
    %vm4663 = vmor %vm4661, %vm4662
    %v4665 = vshrl.u32 %v4631, 16
    %v4667 = vrot.slane %v4665, 6
    %v4668 = vshll.u32 %v4631, 16
    %v4670 = vrot.slane %v4668, 7
    %v4671 = vor.u32 %v4667, %v4670
    %v4672 = vrot.slane %v4671, 2
    %v4674 = vshll.u32 %v4632, 16
    %v4676 = vrot.slane %v4674, 7
    %v4677 = vsel %vm4663, %v4672, %v4676
    %v4679 = vshrl.u32 %v4639, 16
    %v4681 = vrot.slane %v4679, 6
    %v4682 = vshll.u32 %v4639, 16
    %v4684 = vrot.slane %v4682, 7
    %v4685 = vor.u32 %v4681, %v4684
    %v4686 = vrot.slane %v4685, 2
    %v4688 = vshll.u32 %v4640, 16
    %v4690 = vrot.slane %v4688, 7
    %v4691 = vsel %vm4663, %v4686, %v4690
    %v4693 = vshrl.u32 %v4647, 16
    %v4695 = vrot.slane %v4693, 6
    %v4696 = vshll.u32 %v4647, 16
    %v4698 = vrot.slane %v4696, 7
    %v4699 = vor.u32 %v4695, %v4698
    %v4700 = vrot.slane %v4699, 2
    %v4702 = vshll.u32 %v4648, 16
    %v4704 = vrot.slane %v4702, 7
    %v4705 = vsel %vm4663, %v4700, %v4704
    %v4707 = vshrl.u32 %v4655, 16
    %v4709 = vrot.slane %v4707, 6
    %v4710 = vshll.u32 %v4655, 16
    %v4712 = vrot.slane %v4710, 7
    %v4713 = vor.u32 %v4709, %v4712
    %v4714 = vrot.slane %v4713, 2
    %v4716 = vshll.u32 %v4656, 16
    %v4718 = vrot.slane %v4716, 7
    %v4719 = vsel %vm4663, %v4714, %v4718
    %4724 = vst [vmem:[#allocation7 + $0x2] sm:$0x3] %v4677
    %4725 = vst [vmem:[#allocation7 + $0x14] sm:$0x3] %v4691
    %4726 = vst [vmem:[#allocation7 + $0x26] sm:$0x3] %v4705
    %4727 = vst [vmem:[#allocation7 + $0x38] sm:$0x3] %v4719
    %v4728 = vld [vmem:[#allocation3] sm:$0x6]
    %v4729 = vld [vmem:[#allocation3 + $0x4] sm:$0x6]
    %v4730 = vld [vmem:[#allocation3 + $0x8] sm:$0x6]
    %v4731 = vld [vmem:[#allocation3 + $0xc] sm:$0x6]
    %v4737 = vunpack.c.l.s4 1983009808
    %v4738 = vunpack.c.0.s8 %v4737
    %v4739 = vlaneseq
    %v4740 = vshrl.u32 %v4739, 7
    %v4741 = vsub.s32 %v4738, %v4740
    %v4742 = vrot.slane %v4728, %v4741
    %v4743 = vcombine.high %v4742, %v4742
    %v4745 = vunpack.c.l.s4 1983009808
    %v4746 = vunpack.c.0.s8 %v4745
    %v4747 = vlaneseq
    %v4748 = vshrl.u32 %v4747, 7
    %v4749 = vsub.s32 %v4746, %v4748
    %v4750 = vrot.slane %v4729, %v4749
    %v4751 = vcombine.high %v4750, %v4750
    %v4753 = vunpack.c.l.s4 1983009808
    %v4754 = vunpack.c.0.s8 %v4753
    %v4755 = vlaneseq
    %v4756 = vshrl.u32 %v4755, 7
    %v4757 = vsub.s32 %v4754, %v4756
    %v4758 = vrot.slane %v4730, %v4757
    %v4759 = vcombine.high %v4758, %v4758
    %v4761 = vunpack.c.l.s4 1983009808
    %v4762 = vunpack.c.0.s8 %v4761
    %v4763 = vlaneseq
    %v4764 = vshrl.u32 %v4763, 7
    %v4765 = vsub.s32 %v4762, %v4764
    %v4766 = vrot.slane %v4731, %v4765
    %v4767 = vcombine.high %v4766, %v4766
    %vm4768 = vcmask 1042434
    %vm4769 = vmor %vm910, %vm4768
    %vm4770 = vcmask 1044484
    %vm4771 = vmor %vm4769, %vm4770
    %vm4772 = vcmask 1046534
    %vm4773 = vmor %vm4771, %vm4772
    %v4774 = vrot.slane %v4742, 7
    %v4775 = vrot.slane %v4774, 2
    %v4776 = vrot.slane %v4743, 7
    %v4777 = vsel %vm4773, %v4775, %v4776
    %v4778 = vrot.slane %v4750, 7
    %v4779 = vrot.slane %v4778, 2
    %v4780 = vrot.slane %v4751, 7
    %v4781 = vsel %vm4773, %v4779, %v4780
    %v4782 = vrot.slane %v4758, 7
    %v4783 = vrot.slane %v4782, 2
    %v4784 = vrot.slane %v4759, 7
    %v4785 = vsel %vm4773, %v4783, %v4784
    %v4786 = vrot.slane %v4766, 7
    %v4787 = vrot.slane %v4786, 2
    %v4788 = vrot.slane %v4767, 7
    %v4789 = vsel %vm4773, %v4787, %v4788
    %4794 = vst [vmem:[#allocation7 + $0x4] sm:$0x3] %v4777
    %4795 = vst [vmem:[#allocation7 + $0x16] sm:$0x3] %v4781
    %4796 = vst [vmem:[#allocation7 + $0x28] sm:$0x3] %v4785
    %4797 = vst [vmem:[#allocation7 + $0x3a] sm:$0x3] %v4789
    %v4798 = vld [vmem:[%s4414] sm:$0x3]
    %v4799 = vld [vmem:[%s4414 + $0x4] sm:$0x3]
    %v4800 = vld [vmem:[%s4414 + $0x8] sm:$0x3]
    %v4801 = vld [vmem:[%s4414 + $0xc] sm:$0x3]
    %4802 = vst [vmem:[#allocation7 + $0x6] sm:$0x3] %v4798
    %4803 = vst [vmem:[#allocation7 + $0x18] sm:$0x3] %v4799
    %4804 = vst [vmem:[#allocation7 + $0x2a] sm:$0x3] %v4800
    %4805 = vst [vmem:[#allocation7 + $0x3c] sm:$0x3] %v4801
    %v4806 = vld [vmem:[%s4414] sm:$0x7]
    %v4807 = vld [vmem:[%s4414 + $0x4] sm:$0x7]
    %v4808 = vld [vmem:[%s4414 + $0x8] sm:$0x7]
    %v4809 = vld [vmem:[%s4414 + $0xc] sm:$0x7]
    %v4815 = vunpack.c.l.s4 1983009808
    %v4816 = vunpack.c.0.s8 %v4815
    %v4817 = vlaneseq
    %v4818 = vshrl.u32 %v4817, 7
    %v4819 = vsub.s32 %v4816, %v4818
    %v4820 = vrot.slane %v4806, %v4819
    %v4821 = vcombine.high %v4820, %v4820
    %v4823 = vunpack.c.l.s4 1983009808
    %v4824 = vunpack.c.0.s8 %v4823
    %v4825 = vlaneseq
    %v4826 = vshrl.u32 %v4825, 7
    %v4827 = vsub.s32 %v4824, %v4826
    %v4828 = vrot.slane %v4807, %v4827
    %v4829 = vcombine.high %v4828, %v4828
    %v4831 = vunpack.c.l.s4 1983009808
    %v4832 = vunpack.c.0.s8 %v4831
    %v4833 = vlaneseq
    %v4834 = vshrl.u32 %v4833, 7
    %v4835 = vsub.s32 %v4832, %v4834
    %v4836 = vrot.slane %v4808, %v4835
    %v4837 = vcombine.high %v4836, %v4836
    %v4839 = vunpack.c.l.s4 1983009808
    %v4840 = vunpack.c.0.s8 %v4839
    %v4841 = vlaneseq
    %v4842 = vshrl.u32 %v4841, 7
    %v4843 = vsub.s32 %v4840, %v4842
    %v4844 = vrot.slane %v4809, %v4843
    %v4845 = vcombine.high %v4844, %v4844
    %v4847 = vshrl.u32 %v4820, 16
    %v4849 = vrot.slane %v4847, 6
    %v4850 = vshll.u32 %v4820, 16
    %v4852 = vrot.slane %v4850, 7
    %v4853 = vor.u32 %v4849, %v4852
    %v4854 = vrot.slane %v4853, 2
    %v4856 = vshll.u32 %v4821, 16
    %v4858 = vrot.slane %v4856, 7
    %v4859 = vsel %vm4663, %v4854, %v4858
    %v4861 = vshrl.u32 %v4828, 16
    %v4863 = vrot.slane %v4861, 6
    %v4864 = vshll.u32 %v4828, 16
    %v4866 = vrot.slane %v4864, 7
    %v4867 = vor.u32 %v4863, %v4866
    %v4868 = vrot.slane %v4867, 2
    %v4870 = vshll.u32 %v4829, 16
    %v4872 = vrot.slane %v4870, 7
    %v4873 = vsel %vm4663, %v4868, %v4872
    %v4875 = vshrl.u32 %v4836, 16
    %v4877 = vrot.slane %v4875, 6
    %v4878 = vshll.u32 %v4836, 16
    %v4880 = vrot.slane %v4878, 7
    %v4881 = vor.u32 %v4877, %v4880
    %v4882 = vrot.slane %v4881, 2
    %v4884 = vshll.u32 %v4837, 16
    %v4886 = vrot.slane %v4884, 7
    %v4887 = vsel %vm4663, %v4882, %v4886
    %v4889 = vshrl.u32 %v4844, 16
    %v4891 = vrot.slane %v4889, 6
    %v4892 = vshll.u32 %v4844, 16
    %v4894 = vrot.slane %v4892, 7
    %v4895 = vor.u32 %v4891, %v4894
    %v4896 = vrot.slane %v4895, 2
    %v4898 = vshll.u32 %v4845, 16
    %v4900 = vrot.slane %v4898, 7
    %v4901 = vsel %vm4663, %v4896, %v4900
    %4906 = vst [vmem:[#allocation7 + $0x8] sm:$0x3] %v4859
    %4907 = vst [vmem:[#allocation7 + $0x1a] sm:$0x3] %v4873
    %4908 = vst [vmem:[#allocation7 + $0x2c] sm:$0x3] %v4887
    %4909 = vst [vmem:[#allocation7 + $0x3e] sm:$0x3] %v4901
    %v4910 = vld [vmem:[%s4414] sm:$0x6]
    %v4911 = vld [vmem:[%s4414 + $0x4] sm:$0x6]
    %v4912 = vld [vmem:[%s4414 + $0x8] sm:$0x6]
    %v4913 = vld [vmem:[%s4414 + $0xc] sm:$0x6]
    %v4919 = vunpack.c.l.s4 1983009808
    %v4920 = vunpack.c.0.s8 %v4919
    %v4921 = vlaneseq
    %v4922 = vshrl.u32 %v4921, 7
    %v4923 = vsub.s32 %v4920, %v4922
    %v4924 = vrot.slane %v4910, %v4923
    %v4925 = vcombine.high %v4924, %v4924
    %v4927 = vunpack.c.l.s4 1983009808
    %v4928 = vunpack.c.0.s8 %v4927
    %v4929 = vlaneseq
    %v4930 = vshrl.u32 %v4929, 7
    %v4931 = vsub.s32 %v4928, %v4930
    %v4932 = vrot.slane %v4911, %v4931
    %v4933 = vcombine.high %v4932, %v4932
    %v4935 = vunpack.c.l.s4 1983009808
    %v4936 = vunpack.c.0.s8 %v4935
    %v4937 = vlaneseq
    %v4938 = vshrl.u32 %v4937, 7
    %v4939 = vsub.s32 %v4936, %v4938
    %v4940 = vrot.slane %v4912, %v4939
    %v4941 = vcombine.high %v4940, %v4940
    %v4943 = vunpack.c.l.s4 1983009808
    %v4944 = vunpack.c.0.s8 %v4943
    %v4945 = vlaneseq
    %v4946 = vshrl.u32 %v4945, 7
    %v4947 = vsub.s32 %v4944, %v4946
    %v4948 = vrot.slane %v4913, %v4947
    %v4949 = vcombine.high %v4948, %v4948
    %v4950 = vrot.slane %v4924, 7
    %v4951 = vrot.slane %v4950, 2
    %v4952 = vrot.slane %v4925, 7
    %v4953 = vsel %vm4773, %v4951, %v4952
    %v4954 = vrot.slane %v4932, 7
    %v4955 = vrot.slane %v4954, 2
    %v4956 = vrot.slane %v4933, 7
    %v4957 = vsel %vm4773, %v4955, %v4956
    %v4958 = vrot.slane %v4940, 7
    %v4959 = vrot.slane %v4958, 2
    %v4960 = vrot.slane %v4941, 7
    %v4961 = vsel %vm4773, %v4959, %v4960
    %v4962 = vrot.slane %v4948, 7
    %v4963 = vrot.slane %v4962, 2
    %v4964 = vrot.slane %v4949, 7
    %v4965 = vsel %vm4773, %v4963, %v4964
    %4970 = vst [vmem:[#allocation7 + $0xa] sm:$0x3] %v4953
    %4971 = vst [vmem:[#allocation7 + $0x1c] sm:$0x3] %v4957
    %4972 = vst [vmem:[#allocation7 + $0x2e] sm:$0x3] %v4961
    %4973 = vst [vmem:[#allocation7 + $0x40] sm:$0x3] %v4965
    %v4974 = vld [vmem:[%s4443] sm:$0x3]
    %v4975 = vld [vmem:[%s4443 + $0x4] sm:$0x3]
    %v4976 = vld [vmem:[%s4443 + $0x8] sm:$0x3]
    %v4977 = vld [vmem:[%s4443 + $0xc] sm:$0x3]
    %4978 = vst [vmem:[#allocation7 + $0xc] sm:$0x3] %v4974
    %4979 = vst [vmem:[#allocation7 + $0x1e] sm:$0x3] %v4975
    %4980 = vst [vmem:[#allocation7 + $0x30] sm:$0x3] %v4976
    %4981 = vst [vmem:[#allocation7 + $0x42] sm:$0x3] %v4977
    %v4982 = vld [vmem:[%s4443] sm:$0x7]
    %v4983 = vld [vmem:[%s4443 + $0x4] sm:$0x7]
    %v4984 = vld [vmem:[%s4443 + $0x8] sm:$0x7]
    %v4985 = vld [vmem:[%s4443 + $0xc] sm:$0x7]
    %v4991 = vunpack.c.l.s4 1983009808
    %v4992 = vunpack.c.0.s8 %v4991
    %v4993 = vlaneseq
    %v4994 = vshrl.u32 %v4993, 7
    %v4995 = vsub.s32 %v4992, %v4994
    %v4996 = vrot.slane %v4982, %v4995
    %v4997 = vcombine.high %v4996, %v4996
    %v4999 = vunpack.c.l.s4 1983009808
    %v5000 = vunpack.c.0.s8 %v4999
    %v5001 = vlaneseq
    %v5002 = vshrl.u32 %v5001, 7
    %v5003 = vsub.s32 %v5000, %v5002
    %v5004 = vrot.slane %v4983, %v5003
    %v5005 = vcombine.high %v5004, %v5004
    %v5007 = vunpack.c.l.s4 1983009808
    %v5008 = vunpack.c.0.s8 %v5007
    %v5009 = vlaneseq
    %v5010 = vshrl.u32 %v5009, 7
    %v5011 = vsub.s32 %v5008, %v5010
    %v5012 = vrot.slane %v4984, %v5011
    %v5013 = vcombine.high %v5012, %v5012
    %v5015 = vunpack.c.l.s4 1983009808
    %v5016 = vunpack.c.0.s8 %v5015
    %v5017 = vlaneseq
    %v5018 = vshrl.u32 %v5017, 7
    %v5019 = vsub.s32 %v5016, %v5018
    %v5020 = vrot.slane %v4985, %v5019
    %v5021 = vcombine.high %v5020, %v5020
    %v5023 = vshrl.u32 %v4996, 16
    %v5025 = vrot.slane %v5023, 6
    %v5026 = vshll.u32 %v4996, 16
    %v5028 = vrot.slane %v5026, 7
    %v5029 = vor.u32 %v5025, %v5028
    %v5030 = vrot.slane %v5029, 2
    %v5032 = vshll.u32 %v4997, 16
    %v5034 = vrot.slane %v5032, 7
    %v5035 = vsel %vm4663, %v5030, %v5034
    %v5037 = vshrl.u32 %v5004, 16
    %v5039 = vrot.slane %v5037, 6
    %v5040 = vshll.u32 %v5004, 16
    %v5042 = vrot.slane %v5040, 7
    %v5043 = vor.u32 %v5039, %v5042
    %v5044 = vrot.slane %v5043, 2
    %v5046 = vshll.u32 %v5005, 16
    %v5048 = vrot.slane %v5046, 7
    %v5049 = vsel %vm4663, %v5044, %v5048
    %v5051 = vshrl.u32 %v5012, 16
    %v5053 = vrot.slane %v5051, 6
    %v5054 = vshll.u32 %v5012, 16
    %v5056 = vrot.slane %v5054, 7
    %v5057 = vor.u32 %v5053, %v5056
    %v5058 = vrot.slane %v5057, 2
    %v5060 = vshll.u32 %v5013, 16
    %v5062 = vrot.slane %v5060, 7
    %v5063 = vsel %vm4663, %v5058, %v5062
    %v5065 = vshrl.u32 %v5020, 16
    %v5067 = vrot.slane %v5065, 6
    %v5068 = vshll.u32 %v5020, 16
    %v5070 = vrot.slane %v5068, 7
    %v5071 = vor.u32 %v5067, %v5070
    %v5072 = vrot.slane %v5071, 2
    %v5074 = vshll.u32 %v5021, 16
    %v5076 = vrot.slane %v5074, 7
    %v5077 = vsel %vm4663, %v5072, %v5076
    %5082 = vst [vmem:[#allocation7 + $0xe] sm:$0x3] %v5035
    %5083 = vst [vmem:[#allocation7 + $0x20] sm:$0x3] %v5049
    %5084 = vst [vmem:[#allocation7 + $0x32] sm:$0x3] %v5063
    %5085 = vst [vmem:[#allocation7 + $0x44] sm:$0x3] %v5077
    %v5086 = vld [vmem:[%s4443] sm:$0x6]
    %v5087 = vld [vmem:[%s4443 + $0x4] sm:$0x6]
    %v5088 = vld [vmem:[%s4443 + $0x8] sm:$0x6]
    %v5089 = vld [vmem:[%s4443 + $0xc] sm:$0x6]
    %v5095 = vunpack.c.l.s4 1983009808
    %v5096 = vunpack.c.0.s8 %v5095
    %v5097 = vlaneseq
    %v5098 = vshrl.u32 %v5097, 7
    %v5099 = vsub.s32 %v5096, %v5098
    %v5100 = vrot.slane %v5086, %v5099
    %v5101 = vcombine.high %v5100, %v5100
    %v5103 = vunpack.c.l.s4 1983009808
    %v5104 = vunpack.c.0.s8 %v5103
    %v5105 = vlaneseq
    %v5106 = vshrl.u32 %v5105, 7
    %v5107 = vsub.s32 %v5104, %v5106
    %v5108 = vrot.slane %v5087, %v5107
    %v5109 = vcombine.high %v5108, %v5108
    %v5111 = vunpack.c.l.s4 1983009808
    %v5112 = vunpack.c.0.s8 %v5111
    %v5113 = vlaneseq
    %v5114 = vshrl.u32 %v5113, 7
    %v5115 = vsub.s32 %v5112, %v5114
    %v5116 = vrot.slane %v5088, %v5115
    %v5117 = vcombine.high %v5116, %v5116
    %v5119 = vunpack.c.l.s4 1983009808
    %v5120 = vunpack.c.0.s8 %v5119
    %v5121 = vlaneseq
    %v5122 = vshrl.u32 %v5121, 7
    %v5123 = vsub.s32 %v5120, %v5122
    %v5124 = vrot.slane %v5089, %v5123
    %v5125 = vcombine.high %v5124, %v5124
    %v5126 = vrot.slane %v5100, 7
    %v5127 = vrot.slane %v5126, 2
    %v5128 = vrot.slane %v5101, 7
    %v5129 = vsel %vm4773, %v5127, %v5128
    %v5130 = vrot.slane %v5108, 7
    %v5131 = vrot.slane %v5130, 2
    %v5132 = vrot.slane %v5109, 7
    %v5133 = vsel %vm4773, %v5131, %v5132
    %v5134 = vrot.slane %v5116, 7
    %v5135 = vrot.slane %v5134, 2
    %v5136 = vrot.slane %v5117, 7
    %v5137 = vsel %vm4773, %v5135, %v5136
    %v5138 = vrot.slane %v5124, 7
    %v5139 = vrot.slane %v5138, 2
    %v5140 = vrot.slane %v5125, 7
    %v5141 = vsel %vm4773, %v5139, %v5140
    %5146 = vst [vmem:[#allocation7 + $0x10] sm:$0x3] %v5129
    %5147 = vst [vmem:[#allocation7 + $0x22] sm:$0x3] %v5133
    %5148 = vst [vmem:[#allocation7 + $0x34] sm:$0x3] %v5137
    %5149 = vst [vmem:[#allocation7 + $0x46] sm:$0x3] %v5141
    %s5150 = scalar_lea.vmem [#allocation3], 24
    %v5151 = vld [vmem:[%s5150] sm:$0x3]
    %v5152 = vld [vmem:[%s5150 + $0x4] sm:$0x3]
    %v5153 = vld [vmem:[%s5150 + $0x8] sm:$0x3]
    %v5154 = vld [vmem:[%s5150 + $0xc] sm:$0x3]
    %s5155 = scalar_lea.vmem [#allocation7], 72
    %5156 = vst [vmem:[%s5155] sm:$0x3] %v5151
    %5157 = vst [vmem:[%s5155 + $0x12] sm:$0x3] %v5152
    %5158 = vst [vmem:[%s5155 + $0x24] sm:$0x3] %v5153
    %5159 = vst [vmem:[%s5155 + $0x36] sm:$0x3] %v5154
    %v5160 = vld [vmem:[%s5150] sm:$0x7]
    %v5161 = vld [vmem:[%s5150 + $0x4] sm:$0x7]
    %v5162 = vld [vmem:[%s5150 + $0x8] sm:$0x7]
    %v5163 = vld [vmem:[%s5150 + $0xc] sm:$0x7]
    %v5169 = vunpack.c.l.s4 1983009808
    %v5170 = vunpack.c.0.s8 %v5169
    %v5171 = vlaneseq
    %v5172 = vshrl.u32 %v5171, 7
    %v5173 = vsub.s32 %v5170, %v5172
    %v5174 = vrot.slane %v5160, %v5173
    %v5175 = vcombine.high %v5174, %v5174
    %v5177 = vunpack.c.l.s4 1983009808
    %v5178 = vunpack.c.0.s8 %v5177
    %v5179 = vlaneseq
    %v5180 = vshrl.u32 %v5179, 7
    %v5181 = vsub.s32 %v5178, %v5180
    %v5182 = vrot.slane %v5161, %v5181
    %v5183 = vcombine.high %v5182, %v5182
    %v5185 = vunpack.c.l.s4 1983009808
    %v5186 = vunpack.c.0.s8 %v5185
    %v5187 = vlaneseq
    %v5188 = vshrl.u32 %v5187, 7
    %v5189 = vsub.s32 %v5186, %v5188
    %v5190 = vrot.slane %v5162, %v5189
    %v5191 = vcombine.high %v5190, %v5190
    %v5193 = vunpack.c.l.s4 1983009808
    %v5194 = vunpack.c.0.s8 %v5193
    %v5195 = vlaneseq
    %v5196 = vshrl.u32 %v5195, 7
    %v5197 = vsub.s32 %v5194, %v5196
    %v5198 = vrot.slane %v5163, %v5197
    %v5199 = vcombine.high %v5198, %v5198
    %v5201 = vshrl.u32 %v5174, 16
    %v5203 = vrot.slane %v5201, 6
    %v5204 = vshll.u32 %v5174, 16
    %v5206 = vrot.slane %v5204, 7
    %v5207 = vor.u32 %v5203, %v5206
    %v5208 = vrot.slane %v5207, 2
    %v5210 = vshll.u32 %v5175, 16
    %v5212 = vrot.slane %v5210, 7
    %v5213 = vsel %vm4663, %v5208, %v5212
    %v5215 = vshrl.u32 %v5182, 16
    %v5217 = vrot.slane %v5215, 6
    %v5218 = vshll.u32 %v5182, 16
    %v5220 = vrot.slane %v5218, 7
    %v5221 = vor.u32 %v5217, %v5220
    %v5222 = vrot.slane %v5221, 2
    %v5224 = vshll.u32 %v5183, 16
    %v5226 = vrot.slane %v5224, 7
    %v5227 = vsel %vm4663, %v5222, %v5226
    %v5229 = vshrl.u32 %v5190, 16
    %v5231 = vrot.slane %v5229, 6
    %v5232 = vshll.u32 %v5190, 16
    %v5234 = vrot.slane %v5232, 7
    %v5235 = vor.u32 %v5231, %v5234
    %v5236 = vrot.slane %v5235, 2
    %v5238 = vshll.u32 %v5191, 16
    %v5240 = vrot.slane %v5238, 7
    %v5241 = vsel %vm4663, %v5236, %v5240
    %v5243 = vshrl.u32 %v5198, 16
    %v5245 = vrot.slane %v5243, 6
    %v5246 = vshll.u32 %v5198, 16
    %v5248 = vrot.slane %v5246, 7
    %v5249 = vor.u32 %v5245, %v5248
    %v5250 = vrot.slane %v5249, 2
    %v5252 = vshll.u32 %v5199, 16
    %v5254 = vrot.slane %v5252, 7
    %v5255 = vsel %vm4663, %v5250, %v5254
    %5260 = vst [vmem:[%s5155 + $0x2] sm:$0x3] %v5213
    %5261 = vst [vmem:[%s5155 + $0x14] sm:$0x3] %v5227
    %5262 = vst [vmem:[%s5155 + $0x26] sm:$0x3] %v5241
    %5263 = vst [vmem:[%s5155 + $0x38] sm:$0x3] %v5255
    %v5264 = vld [vmem:[%s5150] sm:$0x6]
    %v5265 = vld [vmem:[%s5150 + $0x4] sm:$0x6]
    %v5266 = vld [vmem:[%s5150 + $0x8] sm:$0x6]
    %v5267 = vld [vmem:[%s5150 + $0xc] sm:$0x6]
    %v5273 = vunpack.c.l.s4 1983009808
    %v5274 = vunpack.c.0.s8 %v5273
    %v5275 = vlaneseq
    %v5276 = vshrl.u32 %v5275, 7
    %v5277 = vsub.s32 %v5274, %v5276
    %v5278 = vrot.slane %v5264, %v5277
    %v5279 = vcombine.high %v5278, %v5278
    %v5281 = vunpack.c.l.s4 1983009808
    %v5282 = vunpack.c.0.s8 %v5281
    %v5283 = vlaneseq
    %v5284 = vshrl.u32 %v5283, 7
    %v5285 = vsub.s32 %v5282, %v5284
    %v5286 = vrot.slane %v5265, %v5285
    %v5287 = vcombine.high %v5286, %v5286
    %v5289 = vunpack.c.l.s4 1983009808
    %v5290 = vunpack.c.0.s8 %v5289
    %v5291 = vlaneseq
    %v5292 = vshrl.u32 %v5291, 7
    %v5293 = vsub.s32 %v5290, %v5292
    %v5294 = vrot.slane %v5266, %v5293
    %v5295 = vcombine.high %v5294, %v5294
    %v5297 = vunpack.c.l.s4 1983009808
    %v5298 = vunpack.c.0.s8 %v5297
    %v5299 = vlaneseq
    %v5300 = vshrl.u32 %v5299, 7
    %v5301 = vsub.s32 %v5298, %v5300
    %v5302 = vrot.slane %v5267, %v5301
    %v5303 = vcombine.high %v5302, %v5302
    %v5304 = vrot.slane %v5278, 7
    %v5305 = vrot.slane %v5304, 2
    %v5306 = vrot.slane %v5279, 7
    %v5307 = vsel %vm4773, %v5305, %v5306
    %v5308 = vrot.slane %v5286, 7
    %v5309 = vrot.slane %v5308, 2
    %v5310 = vrot.slane %v5287, 7
    %v5311 = vsel %vm4773, %v5309, %v5310
    %v5312 = vrot.slane %v5294, 7
    %v5313 = vrot.slane %v5312, 2
    %v5314 = vrot.slane %v5295, 7
    %v5315 = vsel %vm4773, %v5313, %v5314
    %v5316 = vrot.slane %v5302, 7
    %v5317 = vrot.slane %v5316, 2
    %v5318 = vrot.slane %v5303, 7
    %v5319 = vsel %vm4773, %v5317, %v5318
    %5324 = vst [vmem:[%s5155 + $0x4] sm:$0x3] %v5307
    %5325 = vst [vmem:[%s5155 + $0x16] sm:$0x3] %v5311
    %5326 = vst [vmem:[%s5155 + $0x28] sm:$0x3] %v5315
    %5327 = vst [vmem:[%s5155 + $0x3a] sm:$0x3] %v5319
    %v5328 = vld [vmem:[%s4524] sm:$0x3]
    %v5329 = vld [vmem:[%s4524 + $0x4] sm:$0x3]
    %v5330 = vld [vmem:[%s4524 + $0x8] sm:$0x3]
    %v5331 = vld [vmem:[%s4524 + $0xc] sm:$0x3]
    %5332 = vst [vmem:[%s5155 + $0x6] sm:$0x3] %v5328
    %5333 = vst [vmem:[%s5155 + $0x18] sm:$0x3] %v5329
    %5334 = vst [vmem:[%s5155 + $0x2a] sm:$0x3] %v5330
    %5335 = vst [vmem:[%s5155 + $0x3c] sm:$0x3] %v5331
    %v5336 = vld [vmem:[%s4524] sm:$0x7]
    %v5337 = vld [vmem:[%s4524 + $0x4] sm:$0x7]
    %v5338 = vld [vmem:[%s4524 + $0x8] sm:$0x7]
    %v5339 = vld [vmem:[%s4524 + $0xc] sm:$0x7]
    %v5345 = vunpack.c.l.s4 1983009808
    %v5346 = vunpack.c.0.s8 %v5345
    %v5347 = vlaneseq
    %v5348 = vshrl.u32 %v5347, 7
    %v5349 = vsub.s32 %v5346, %v5348
    %v5350 = vrot.slane %v5336, %v5349
    %v5351 = vcombine.high %v5350, %v5350
    %v5353 = vunpack.c.l.s4 1983009808
    %v5354 = vunpack.c.0.s8 %v5353
    %v5355 = vlaneseq
    %v5356 = vshrl.u32 %v5355, 7
    %v5357 = vsub.s32 %v5354, %v5356
    %v5358 = vrot.slane %v5337, %v5357
    %v5359 = vcombine.high %v5358, %v5358
    %v5361 = vunpack.c.l.s4 1983009808
    %v5362 = vunpack.c.0.s8 %v5361
    %v5363 = vlaneseq
    %v5364 = vshrl.u32 %v5363, 7
    %v5365 = vsub.s32 %v5362, %v5364
    %v5366 = vrot.slane %v5338, %v5365
    %v5367 = vcombine.high %v5366, %v5366
    %v5369 = vunpack.c.l.s4 1983009808
    %v5370 = vunpack.c.0.s8 %v5369
    %v5371 = vlaneseq
    %v5372 = vshrl.u32 %v5371, 7
    %v5373 = vsub.s32 %v5370, %v5372
    %v5374 = vrot.slane %v5339, %v5373
    %v5375 = vcombine.high %v5374, %v5374
    %v5377 = vshrl.u32 %v5350, 16
    %v5379 = vrot.slane %v5377, 6
    %v5380 = vshll.u32 %v5350, 16
    %v5382 = vrot.slane %v5380, 7
    %v5383 = vor.u32 %v5379, %v5382
    %v5384 = vrot.slane %v5383, 2
    %v5386 = vshll.u32 %v5351, 16
    %v5388 = vrot.slane %v5386, 7
    %v5389 = vsel %vm4663, %v5384, %v5388
    %v5391 = vshrl.u32 %v5358, 16
    %v5393 = vrot.slane %v5391, 6
    %v5394 = vshll.u32 %v5358, 16
    %v5396 = vrot.slane %v5394, 7
    %v5397 = vor.u32 %v5393, %v5396
    %v5398 = vrot.slane %v5397, 2
    %v5400 = vshll.u32 %v5359, 16
    %v5402 = vrot.slane %v5400, 7
    %v5403 = vsel %vm4663, %v5398, %v5402
    %v5405 = vshrl.u32 %v5366, 16
    %v5407 = vrot.slane %v5405, 6
    %v5408 = vshll.u32 %v5366, 16
    %v5410 = vrot.slane %v5408, 7
    %v5411 = vor.u32 %v5407, %v5410
    %v5412 = vrot.slane %v5411, 2
    %v5414 = vshll.u32 %v5367, 16
    %v5416 = vrot.slane %v5414, 7
    %v5417 = vsel %vm4663, %v5412, %v5416
    %v5419 = vshrl.u32 %v5374, 16
    %v5421 = vrot.slane %v5419, 6
    %v5422 = vshll.u32 %v5374, 16
    %v5424 = vrot.slane %v5422, 7
    %v5425 = vor.u32 %v5421, %v5424
    %v5426 = vrot.slane %v5425, 2
    %v5428 = vshll.u32 %v5375, 16
    %v5430 = vrot.slane %v5428, 7
    %v5431 = vsel %vm4663, %v5426, %v5430
    %5436 = vst [vmem:[%s5155 + $0x8] sm:$0x3] %v5389
    %5437 = vst [vmem:[%s5155 + $0x1a] sm:$0x3] %v5403
    %5438 = vst [vmem:[%s5155 + $0x2c] sm:$0x3] %v5417
    %5439 = vst [vmem:[%s5155 + $0x3e] sm:$0x3] %v5431
    %v5440 = vld [vmem:[%s4524] sm:$0x6]
    %v5441 = vld [vmem:[%s4524 + $0x4] sm:$0x6]
    %v5442 = vld [vmem:[%s4524 + $0x8] sm:$0x6]
    %v5443 = vld [vmem:[%s4524 + $0xc] sm:$0x6]
    %v5449 = vunpack.c.l.s4 1983009808
    %v5450 = vunpack.c.0.s8 %v5449
    %v5451 = vlaneseq
    %v5452 = vshrl.u32 %v5451, 7
    %v5453 = vsub.s32 %v5450, %v5452
    %v5454 = vrot.slane %v5440, %v5453
    %v5455 = vcombine.high %v5454, %v5454
    %v5457 = vunpack.c.l.s4 1983009808
    %v5458 = vunpack.c.0.s8 %v5457
    %v5459 = vlaneseq
    %v5460 = vshrl.u32 %v5459, 7
    %v5461 = vsub.s32 %v5458, %v5460
    %v5462 = vrot.slane %v5441, %v5461
    %v5463 = vcombine.high %v5462, %v5462
    %v5465 = vunpack.c.l.s4 1983009808
    %v5466 = vunpack.c.0.s8 %v5465
    %v5467 = vlaneseq
    %v5468 = vshrl.u32 %v5467, 7
    %v5469 = vsub.s32 %v5466, %v5468
    %v5470 = vrot.slane %v5442, %v5469
    %v5471 = vcombine.high %v5470, %v5470
    %v5473 = vunpack.c.l.s4 1983009808
    %v5474 = vunpack.c.0.s8 %v5473
    %v5475 = vlaneseq
    %v5476 = vshrl.u32 %v5475, 7
    %v5477 = vsub.s32 %v5474, %v5476
    %v5478 = vrot.slane %v5443, %v5477
    %v5479 = vcombine.high %v5478, %v5478
    %v5480 = vrot.slane %v5454, 7
    %v5481 = vrot.slane %v5480, 2
    %v5482 = vrot.slane %v5455, 7
    %v5483 = vsel %vm4773, %v5481, %v5482
    %v5484 = vrot.slane %v5462, 7
    %v5485 = vrot.slane %v5484, 2
    %v5486 = vrot.slane %v5463, 7
    %v5487 = vsel %vm4773, %v5485, %v5486
    %v5488 = vrot.slane %v5470, 7
    %v5489 = vrot.slane %v5488, 2
    %v5490 = vrot.slane %v5471, 7
    %v5491 = vsel %vm4773, %v5489, %v5490
    %v5492 = vrot.slane %v5478, 7
    %v5493 = vrot.slane %v5492, 2
    %v5494 = vrot.slane %v5479, 7
    %v5495 = vsel %vm4773, %v5493, %v5494
    %5500 = vst [vmem:[%s5155 + $0xa] sm:$0x3] %v5483
    %5501 = vst [vmem:[%s5155 + $0x1c] sm:$0x3] %v5487
    %5502 = vst [vmem:[%s5155 + $0x2e] sm:$0x3] %v5491
    %5503 = vst [vmem:[%s5155 + $0x40] sm:$0x3] %v5495
    %v5504 = vld [vmem:[%s4551] sm:$0x3]
    %v5505 = vld [vmem:[%s4551 + $0x4] sm:$0x3]
    %v5506 = vld [vmem:[%s4551 + $0x8] sm:$0x3]
    %v5507 = vld [vmem:[%s4551 + $0xc] sm:$0x3]
    %5508 = vst [vmem:[%s5155 + $0xc] sm:$0x3] %v5504
    %5509 = vst [vmem:[%s5155 + $0x1e] sm:$0x3] %v5505
    %5510 = vst [vmem:[%s5155 + $0x30] sm:$0x3] %v5506
    %5511 = vst [vmem:[%s5155 + $0x42] sm:$0x3] %v5507
    %v5512 = vld [vmem:[%s4551] sm:$0x7]
    %v5513 = vld [vmem:[%s4551 + $0x4] sm:$0x7]
    %v5514 = vld [vmem:[%s4551 + $0x8] sm:$0x7]
    %v5515 = vld [vmem:[%s4551 + $0xc] sm:$0x7]
    %v5521 = vunpack.c.l.s4 1983009808
    %v5522 = vunpack.c.0.s8 %v5521
    %v5523 = vlaneseq
    %v5524 = vshrl.u32 %v5523, 7
    %v5525 = vsub.s32 %v5522, %v5524
    %v5526 = vrot.slane %v5512, %v5525
    %v5527 = vcombine.high %v5526, %v5526
    %v5529 = vunpack.c.l.s4 1983009808
    %v5530 = vunpack.c.0.s8 %v5529
    %v5531 = vlaneseq
    %v5532 = vshrl.u32 %v5531, 7
    %v5533 = vsub.s32 %v5530, %v5532
    %v5534 = vrot.slane %v5513, %v5533
    %v5535 = vcombine.high %v5534, %v5534
    %v5537 = vunpack.c.l.s4 1983009808
    %v5538 = vunpack.c.0.s8 %v5537
    %v5539 = vlaneseq
    %v5540 = vshrl.u32 %v5539, 7
    %v5541 = vsub.s32 %v5538, %v5540
    %v5542 = vrot.slane %v5514, %v5541
    %v5543 = vcombine.high %v5542, %v5542
    %v5545 = vunpack.c.l.s4 1983009808
    %v5546 = vunpack.c.0.s8 %v5545
    %v5547 = vlaneseq
    %v5548 = vshrl.u32 %v5547, 7
    %v5549 = vsub.s32 %v5546, %v5548
    %v5550 = vrot.slane %v5515, %v5549
    %v5551 = vcombine.high %v5550, %v5550
    %v5553 = vshrl.u32 %v5526, 16
    %v5555 = vrot.slane %v5553, 6
    %v5556 = vshll.u32 %v5526, 16
    %v5558 = vrot.slane %v5556, 7
    %v5559 = vor.u32 %v5555, %v5558
    %v5560 = vrot.slane %v5559, 2
    %v5562 = vshll.u32 %v5527, 16
    %v5564 = vrot.slane %v5562, 7
    %v5565 = vsel %vm4663, %v5560, %v5564
    %v5567 = vshrl.u32 %v5534, 16
    %v5569 = vrot.slane %v5567, 6
    %v5570 = vshll.u32 %v5534, 16
    %v5572 = vrot.slane %v5570, 7
    %v5573 = vor.u32 %v5569, %v5572
    %v5574 = vrot.slane %v5573, 2
    %v5576 = vshll.u32 %v5535, 16
    %v5578 = vrot.slane %v5576, 7
    %v5579 = vsel %vm4663, %v5574, %v5578
    %v5581 = vshrl.u32 %v5542, 16
    %v5583 = vrot.slane %v5581, 6
    %v5584 = vshll.u32 %v5542, 16
    %v5586 = vrot.slane %v5584, 7
    %v5587 = vor.u32 %v5583, %v5586
    %v5588 = vrot.slane %v5587, 2
    %v5590 = vshll.u32 %v5543, 16
    %v5592 = vrot.slane %v5590, 7
    %v5593 = vsel %vm4663, %v5588, %v5592
    %v5595 = vshrl.u32 %v5550, 16
    %v5597 = vrot.slane %v5595, 6
    %v5598 = vshll.u32 %v5550, 16
    %v5600 = vrot.slane %v5598, 7
    %v5601 = vor.u32 %v5597, %v5600
    %v5602 = vrot.slane %v5601, 2
    %v5604 = vshll.u32 %v5551, 16
    %v5606 = vrot.slane %v5604, 7
    %v5607 = vsel %vm4663, %v5602, %v5606
    %5612 = vst [vmem:[%s5155 + $0xe] sm:$0x3] %v5565
    %5613 = vst [vmem:[%s5155 + $0x20] sm:$0x3] %v5579
    %5614 = vst [vmem:[%s5155 + $0x32] sm:$0x3] %v5593
    %5615 = vst [vmem:[%s5155 + $0x44] sm:$0x3] %v5607
    %v5616 = vld [vmem:[%s4551] sm:$0x6]
    %v5617 = vld [vmem:[%s4551 + $0x4] sm:$0x6]
    %v5618 = vld [vmem:[%s4551 + $0x8] sm:$0x6]
    %v5619 = vld [vmem:[%s4551 + $0xc] sm:$0x6]
    %v5625 = vunpack.c.l.s4 1983009808
    %v5626 = vunpack.c.0.s8 %v5625
    %v5627 = vlaneseq
    %v5628 = vshrl.u32 %v5627, 7
    %v5629 = vsub.s32 %v5626, %v5628
    %v5630 = vrot.slane %v5616, %v5629
    %v5631 = vcombine.high %v5630, %v5630
    %v5633 = vunpack.c.l.s4 1983009808
    %v5634 = vunpack.c.0.s8 %v5633
    %v5635 = vlaneseq
    %v5636 = vshrl.u32 %v5635, 7
    %v5637 = vsub.s32 %v5634, %v5636
    %v5638 = vrot.slane %v5617, %v5637
    %v5639 = vcombine.high %v5638, %v5638
    %v5641 = vunpack.c.l.s4 1983009808
    %v5642 = vunpack.c.0.s8 %v5641
    %v5643 = vlaneseq
    %v5644 = vshrl.u32 %v5643, 7
    %v5645 = vsub.s32 %v5642, %v5644
    %v5646 = vrot.slane %v5618, %v5645
    %v5647 = vcombine.high %v5646, %v5646
    %v5649 = vunpack.c.l.s4 1983009808
    %v5650 = vunpack.c.0.s8 %v5649
    %v5651 = vlaneseq
    %v5652 = vshrl.u32 %v5651, 7
    %v5653 = vsub.s32 %v5650, %v5652
    %v5654 = vrot.slane %v5619, %v5653
    %v5655 = vcombine.high %v5654, %v5654
    %v5656 = vrot.slane %v5630, 7
    %v5657 = vrot.slane %v5656, 2
    %v5658 = vrot.slane %v5631, 7
    %v5659 = vsel %vm4773, %v5657, %v5658
    %v5660 = vrot.slane %v5638, 7
    %v5661 = vrot.slane %v5660, 2
    %v5662 = vrot.slane %v5639, 7
    %v5663 = vsel %vm4773, %v5661, %v5662
    %v5664 = vrot.slane %v5646, 7
    %v5665 = vrot.slane %v5664, 2
    %v5666 = vrot.slane %v5647, 7
    %v5667 = vsel %vm4773, %v5665, %v5666
    %v5668 = vrot.slane %v5654, 7
    %v5669 = vrot.slane %v5668, 2
    %v5670 = vrot.slane %v5655, 7
    %v5671 = vsel %vm4773, %v5669, %v5670
    %5676 = vst [vmem:[%s5155 + $0x10] sm:$0x3] %v5659
    %5677 = vst [vmem:[%s5155 + $0x22] sm:$0x3] %v5663
    %5678 = vst [vmem:[%s5155 + $0x34] sm:$0x3] %v5667
    %5679 = vst [vmem:[%s5155 + $0x46] sm:$0x3] %v5671
    %v5680 = vld [vmem:[#allocation7] sm:$0xff]
    %v5681 = vld [vmem:[#allocation7 + $0x8] sm:$0xff]
    %v5682 = vld [vmem:[#allocation7 + $0x10] sm:$0x3]
    %v5683 = vld [vmem:[#allocation7 + $0x12] sm:$0xff]
    %v5684 = vld [vmem:[#allocation7 + $0x1a] sm:$0xff]
    %v5685 = vld [vmem:[#allocation7 + $0x22] sm:$0x3]
    %v5686 = vld [vmem:[#allocation7 + $0x24] sm:$0xff]
    %v5687 = vld [vmem:[#allocation7 + $0x2c] sm:$0xff]
    %v5688 = vld [vmem:[#allocation7 + $0x34] sm:$0x3]
    %v5689 = vld [vmem:[#allocation7 + $0x36] sm:$0xff]
    %v5690 = vld [vmem:[#allocation7 + $0x3e] sm:$0xff]
    %v5691 = vld [vmem:[#allocation7 + $0x46] sm:$0x3]
    %v5692 = vld [vmem:[#allocation7 + $0x48] sm:$0xff]
    %v5693 = vld [vmem:[#allocation7 + $0x50] sm:$0xff]
    %v5694 = vld [vmem:[#allocation7 + $0x58] sm:$0x3]
    %v5695 = vld [vmem:[#allocation7 + $0x5a] sm:$0xff]
    %v5696 = vld [vmem:[#allocation7 + $0x62] sm:$0xff]
    %v5697 = vld [vmem:[#allocation7 + $0x6a] sm:$0x3]
    %v5698 = vld [vmem:[#allocation7 + $0x6c] sm:$0xff]
    %v5699 = vld [vmem:[#allocation7 + $0x74] sm:$0xff]
    %v5700 = vld [vmem:[#allocation7 + $0x7c] sm:$0x3]
    %v5701 = vld [vmem:[#allocation7 + $0x7e] sm:$0xff]
    %v5702 = vld [vmem:[#allocation7 + $0x86] sm:$0xff]
    %v5703 = vld [vmem:[#allocation7 + $0x8e] sm:$0x3]
    %v5704 = vld [vmem:[%s5] sm:$0xf]
    %v5705 = vld [vmem:[%s5 + $0x4] sm:$0xf]
    %v5706 = vld [vmem:[%s5 + $0x8] sm:$0xf]
    %v5707 = vld [vmem:[%s5 + $0xc] sm:$0xf]
    %v5708 = vld [vmem:[%s5 + $0x10] sm:$0xf]
    %v5709 = vld [vmem:[%s5 + $0x14] sm:$0xf]
    %v5710 = vld [vmem:[%s5 + $0x18] sm:$0xf]
    %v5711 = vld [vmem:[%s5 + $0x1c] sm:$0xf]
    %v5712 = vld [vmem:[%s5 + $0x20] sm:$0xf]
    %v5713 = vld [vmem:[%s5 + $0x24] sm:$0xf]
    %v5714 = vld [vmem:[%s5 + $0x28] sm:$0xf]
    %v5715 = vld [vmem:[%s5 + $0x2c] sm:$0xf]
    %v5716 = vld [vmem:[%s5 + $0x30] sm:$0xf]
    %v5717 = vld [vmem:[%s5 + $0x34] sm:$0xf]
    %v5718 = vld [vmem:[%s5 + $0x38] sm:$0xf]
    %v5719 = vld [vmem:[%s5 + $0x3c] sm:$0xf]
    %v5720 = vld [vmem:[%s5 + $0x40] sm:$0xf]
    %v5721 = vld [vmem:[%s5 + $0x44] sm:$0xf]
    %v5722 = vld [vmem:[%s5 + $0x48] sm:$0xf]
    %v5723 = vld [vmem:[%s5 + $0x4c] sm:$0xf]
    %v5724 = vld [vmem:[%s5 + $0x50] sm:$0xf]
    %v5725 = vld [vmem:[%s5 + $0x54] sm:$0xf]
    %v5726 = vld [vmem:[%s5 + $0x58] sm:$0xf]
    %v5727 = vld [vmem:[%s5 + $0x5c] sm:$0xf]
    %v5728 = vld [vmem:[%s5 + $0x60] sm:$0xf]
    %v5729 = vld [vmem:[%s5 + $0x64] sm:$0xf]
    %v5730 = vld [vmem:[%s5 + $0x68] sm:$0xf]
    %v5731 = vld [vmem:[%s5 + $0x6c] sm:$0xf]
    %v5732 = vld [vmem:[%s5 + $0x70] sm:$0xf]
    %v5733 = vld [vmem:[%s5 + $0x74] sm:$0xf]
    %v5734 = vld [vmem:[%s5 + $0x78] sm:$0xf]
    %v5735 = vld [vmem:[%s5 + $0x7c] sm:$0xf]
    %v5736 = vld [vmem:[%s5 + $0x80] sm:$0xf]
    %v5737 = vld [vmem:[%s5 + $0x84] sm:$0xf]
    %v5738 = vld [vmem:[%s5 + $0x88] sm:$0xf]
    %v5739 = vld [vmem:[%s5 + $0x8c] sm:$0xf]
    %v5740 = vld [vmem:[%s5 + $0x90] sm:$0xf]
    %v5741 = vld [vmem:[%s5 + $0x94] sm:$0xf]
    %v5742 = vld [vmem:[%s5 + $0x98] sm:$0xf]
    %v5743 = vld [vmem:[%s5 + $0x9c] sm:$0xf]
    %v5744 = vld [vmem:[%s5 + $0xa0] sm:$0xf]
    %v5745 = vld [vmem:[%s5 + $0xa4] sm:$0xf]
    %v5746 = vld [vmem:[%s5 + $0xa8] sm:$0xf]
    %v5747 = vld [vmem:[%s5 + $0xac] sm:$0xf]
    %v5748 = vld [vmem:[%s5 + $0xb0] sm:$0xf]
    %v5749 = vld [vmem:[%s5 + $0xb4] sm:$0xf]
    %v5750 = vld [vmem:[%s5 + $0xb8] sm:$0xf]
    %v5751 = vld [vmem:[%s5 + $0xbc] sm:$0xf]
    %v5752 = vld [vmem:[%s5 + $0xc0] sm:$0xf]
    %v5753 = vld [vmem:[%s5 + $0xc4] sm:$0xf]
    %v5754 = vld [vmem:[%s5 + $0xc8] sm:$0xf]
    %v5755 = vld [vmem:[%s5 + $0xcc] sm:$0xf]
    %v5756 = vld [vmem:[%s5 + $0xd0] sm:$0xf]
    %v5757 = vld [vmem:[%s5 + $0xd4] sm:$0xf]
    %v5758 = vld [vmem:[%s5 + $0xd8] sm:$0xf]
    %v5759 = vld [vmem:[%s5 + $0xdc] sm:$0xf]
    %v5760 = vld [vmem:[%s5 + $0xe0] sm:$0xf]
    %v5761 = vld [vmem:[%s5 + $0xe4] sm:$0xf]
    %v5762 = vld [vmem:[%s5 + $0xe8] sm:$0xf]
    %v5763 = vld [vmem:[%s5 + $0xec] sm:$0xf]
    %v5764 = vld [vmem:[%s5 + $0xf0] sm:$0xf]
    %v5765 = vld [vmem:[%s5 + $0xf4] sm:$0xf]
    %v5766 = vld [vmem:[%s5 + $0xf8] sm:$0xf]
    %v5767 = vld [vmem:[%s5 + $0xfc] sm:$0xf]
    %v5768 = vld [vmem:[%s5 + $0x100] sm:$0xf]
    %v5769 = vld [vmem:[%s5 + $0x104] sm:$0xf]
    %v5770 = vld [vmem:[%s5 + $0x108] sm:$0xf]
    %v5771 = vld [vmem:[%s5 + $0x10c] sm:$0xf]
    %v5772 = vld [vmem:[%s5 + $0x110] sm:$0xf]
    %v5773 = vld [vmem:[%s5 + $0x114] sm:$0xf]
    %v5774 = vld [vmem:[%s5 + $0x118] sm:$0xf]
    %v5775 = vld [vmem:[%s5 + $0x11c] sm:$0xf]
    %v5776 = vld [vmem:[%s5 + $0x120] sm:$0xf]
    %v5777 = vld [vmem:[%s5 + $0x124] sm:$0xf]
    %v5778 = vld [vmem:[%s5 + $0x128] sm:$0xf]
    %v5779 = vld [vmem:[%s5 + $0x12c] sm:$0xf]
    %v5780 = vld [vmem:[%s5 + $0x130] sm:$0xf]
    %v5781 = vld [vmem:[%s5 + $0x134] sm:$0xf]
    %v5782 = vld [vmem:[%s5 + $0x138] sm:$0xf]
    %v5783 = vld [vmem:[%s5 + $0x13c] sm:$0xf]
    %v5784 = vld [vmem:[%s5 + $0x140] sm:$0xf]
    %v5785 = vld [vmem:[%s5 + $0x144] sm:$0xf]
    %v5786 = vld [vmem:[%s5 + $0x148] sm:$0xf]
    %v5787 = vld [vmem:[%s5 + $0x14c] sm:$0xf]
    %v5788 = vld [vmem:[%s5 + $0x150] sm:$0xf]
    %v5789 = vld [vmem:[%s5 + $0x154] sm:$0xf]
    %v5790 = vld [vmem:[%s5 + $0x158] sm:$0xf]
    %v5791 = vld [vmem:[%s5 + $0x15c] sm:$0xf]
    %v5792 = vld [vmem:[%s5 + $0x160] sm:$0xf]
    %v5793 = vld [vmem:[%s5 + $0x164] sm:$0xf]
    %v5794 = vld [vmem:[%s5 + $0x168] sm:$0xf]
    %v5795 = vld [vmem:[%s5 + $0x16c] sm:$0xf]
    %v5796 = vld [vmem:[%s5 + $0x170] sm:$0xf]
    %v5797 = vld [vmem:[%s5 + $0x174] sm:$0xf]
    %v5798 = vld [vmem:[%s5 + $0x178] sm:$0xf]
    %v5799 = vld [vmem:[%s5 + $0x17c] sm:$0xf]
    %v5800 = vld [vmem:[%s5 + $0x180] sm:$0xf]
    %v5801 = vld [vmem:[%s5 + $0x184] sm:$0xf]
    %v5802 = vld [vmem:[%s5 + $0x188] sm:$0xf]
    %v5803 = vld [vmem:[%s5 + $0x18c] sm:$0xf]
    %v5804 = vld [vmem:[%s5 + $0x190] sm:$0xf]
    %v5805 = vld [vmem:[%s5 + $0x194] sm:$0xf]
    %v5806 = vld [vmem:[%s5 + $0x198] sm:$0xf]
    %v5807 = vld [vmem:[%s5 + $0x19c] sm:$0xf]
    %v5808 = vld [vmem:[%s5 + $0x1a0] sm:$0xf]
    %v5809 = vld [vmem:[%s5 + $0x1a4] sm:$0xf]
    %v5810 = vld [vmem:[%s5 + $0x1a8] sm:$0xf]
    %v5811 = vld [vmem:[%s5 + $0x1ac] sm:$0xf]
    %v5812 = vld [vmem:[%s5 + $0x1b0] sm:$0xf]
    %v5813 = vld [vmem:[%s5 + $0x1b4] sm:$0xf]
    %v5814 = vld [vmem:[%s5 + $0x1b8] sm:$0xf]
    %v5815 = vld [vmem:[%s5 + $0x1bc] sm:$0xf]
    %v5816 = vld [vmem:[%s5 + $0x1c0] sm:$0xf]
    %v5817 = vld [vmem:[%s5 + $0x1c4] sm:$0xf]
    %v5818 = vld [vmem:[%s5 + $0x1c8] sm:$0xf]
    %v5819 = vld [vmem:[%s5 + $0x1cc] sm:$0xf]
    %v5820 = vld [vmem:[%s5 + $0x1d0] sm:$0xf]
    %v5821 = vld [vmem:[%s5 + $0x1d4] sm:$0xf]
    %v5822 = vld [vmem:[%s5 + $0x1d8] sm:$0xf]
    %v5823 = vld [vmem:[%s5 + $0x1dc] sm:$0xf]
    %v5824 = vld [vmem:[%s5 + $0x1e0] sm:$0xf]
    %v5825 = vld [vmem:[%s5 + $0x1e4] sm:$0xf]
    %v5826 = vld [vmem:[%s5 + $0x1e8] sm:$0xf]
    %v5827 = vld [vmem:[%s5 + $0x1ec] sm:$0xf]
    %v5828 = vld [vmem:[%s5 + $0x1f0] sm:$0xf]
    %v5829 = vld [vmem:[%s5 + $0x1f4] sm:$0xf]
    %v5830 = vld [vmem:[%s5 + $0x1f8] sm:$0xf]
    %v5831 = vld [vmem:[%s5 + $0x1fc] sm:$0xf]
    %v5832 = vld [vmem:[%s5 + $0x200] sm:$0xf]
    %v5833 = vld [vmem:[%s5 + $0x204] sm:$0xf]
    %v5834 = vld [vmem:[%s5 + $0x208] sm:$0xf]
    %v5835 = vld [vmem:[%s5 + $0x20c] sm:$0xf]
    %v5836 = vld [vmem:[%s5 + $0x210] sm:$0xf]
    %v5837 = vld [vmem:[%s5 + $0x214] sm:$0xf]
    %v5838 = vld [vmem:[%s5 + $0x218] sm:$0xf]
    %v5839 = vld [vmem:[%s5 + $0x21c] sm:$0xf]
    %v5840 = vld [vmem:[%s5 + $0x220] sm:$0xf]
    %v5841 = vld [vmem:[%s5 + $0x224] sm:$0xf]
    %v5842 = vld [vmem:[%s5 + $0x228] sm:$0xf]
    %v5843 = vld [vmem:[%s5 + $0x22c] sm:$0xf]
    %v5844 = vld [vmem:[%s5 + $0x230] sm:$0xf]
    %v5845 = vld [vmem:[%s5 + $0x234] sm:$0xf]
    %v5846 = vld [vmem:[%s5 + $0x238] sm:$0xf]
    %v5847 = vld [vmem:[%s5 + $0x23c] sm:$0xf]
    %v5848 = vld [vmem:[#allocation13] sm:$0x1]
    %v5850 = vlaneseq
    %v5851 = vshrl.u32 %v5850, 7
    %v5852 = vsub.s32 0, %v5851
    %v5853 = vrot.slane %v5848, %v5852
    %v5879 = vcombine.low %v5680, %v5683
    %v5880 = vcombine.high %v5680, %v5683
    %v5881 = vcombine.low %v5686, %v5689
    %v5882 = vcombine.high %v5686, %v5689
    %v5884 = vunpack.c.l.s4 1983009808
    %v5885 = vunpack.c.0.s8 %v5884
    %v5886 = vlaneseq
    %v5887 = vshrl.u32 %v5886, 7
    %v5888 = vsub.s32 %v5885, %v5887
    %v5889 = vrot.slane %v5879, %v5888
    %v5891 = vunpack.c.l.s4 1983009808
    %v5892 = vunpack.c.0.s8 %v5891
    %v5893 = vlaneseq
    %v5894 = vshrl.u32 %v5893, 7
    %v5895 = vsub.s32 %v5892, %v5894
    %v5896 = vrot.slane %v5880, %v5895
    %v5898 = vunpack.c.l.s4 1983009808
    %v5899 = vunpack.c.0.s8 %v5898
    %v5900 = vlaneseq
    %v5901 = vshrl.u32 %v5900, 7
    %v5902 = vsub.s32 %v5899, %v5901
    %v5903 = vrot.slane %v5881, %v5902
    %v5905 = vunpack.c.l.s4 1983009808
    %v5906 = vunpack.c.0.s8 %v5905
    %v5907 = vlaneseq
    %v5908 = vshrl.u32 %v5907, 7
    %v5909 = vsub.s32 %v5906, %v5908
    %v5910 = vrot.slane %v5882, %v5909
    %v5911 = vcombine.low %v5889, %v5903
    %v5912 = vcombine.high %v5889, %v5903
    %v5913 = vcombine.low %v5896, %v5910
    %v5914 = vcombine.high %v5896, %v5910
    %v5915 = vcombine.low %v5681, %v5684
    %v5916 = vcombine.high %v5681, %v5684
    %v5917 = vcombine.low %v5687, %v5690
    %v5918 = vcombine.high %v5687, %v5690
    %v5920 = vunpack.c.l.s4 1983009808
    %v5921 = vunpack.c.0.s8 %v5920
    %v5922 = vlaneseq
    %v5923 = vshrl.u32 %v5922, 7
    %v5924 = vsub.s32 %v5921, %v5923
    %v5925 = vrot.slane %v5915, %v5924
    %v5927 = vunpack.c.l.s4 1983009808
    %v5928 = vunpack.c.0.s8 %v5927
    %v5929 = vlaneseq
    %v5930 = vshrl.u32 %v5929, 7
    %v5931 = vsub.s32 %v5928, %v5930
    %v5932 = vrot.slane %v5916, %v5931
    %v5934 = vunpack.c.l.s4 1983009808
    %v5935 = vunpack.c.0.s8 %v5934
    %v5936 = vlaneseq
    %v5937 = vshrl.u32 %v5936, 7
    %v5938 = vsub.s32 %v5935, %v5937
    %v5939 = vrot.slane %v5917, %v5938
    %v5941 = vunpack.c.l.s4 1983009808
    %v5942 = vunpack.c.0.s8 %v5941
    %v5943 = vlaneseq
    %v5944 = vshrl.u32 %v5943, 7
    %v5945 = vsub.s32 %v5942, %v5944
    %v5946 = vrot.slane %v5918, %v5945
    %v5947 = vcombine.low %v5925, %v5939
    %v5948 = vcombine.high %v5925, %v5939
    %v5949 = vcombine.low %v5932, %v5946
    %v5950 = vcombine.high %v5932, %v5946
    %v5951 = vcombine.low %v5682, %v5685
    %v5952 = vcombine.low %v5688, %v5691
    %v5954 = vunpack.c.l.s4 1983009808
    %v5955 = vunpack.c.0.s8 %v5954
    %v5956 = vlaneseq
    %v5957 = vshrl.u32 %v5956, 7
    %v5958 = vsub.s32 %v5955, %v5957
    %v5959 = vrot.slane %v5951, %v5958
    %v5961 = vunpack.c.l.s4 1983009808
    %v5962 = vunpack.c.0.s8 %v5961
    %v5963 = vlaneseq
    %v5964 = vshrl.u32 %v5963, 7
    %v5965 = vsub.s32 %v5962, %v5964
    %v5966 = vrot.slane %v5952, %v5965
    %v5967 = vcombine.low %v5959, %v5966
    %v5968 = vcombine.low %v5692, %v5695
    %v5969 = vcombine.high %v5692, %v5695
    %v5970 = vcombine.low %v5698, %v5701
    %v5971 = vcombine.high %v5698, %v5701
    %v5973 = vunpack.c.l.s4 1983009808
    %v5974 = vunpack.c.0.s8 %v5973
    %v5975 = vlaneseq
    %v5976 = vshrl.u32 %v5975, 7
    %v5977 = vsub.s32 %v5974, %v5976
    %v5978 = vrot.slane %v5968, %v5977
    %v5980 = vunpack.c.l.s4 1983009808
    %v5981 = vunpack.c.0.s8 %v5980
    %v5982 = vlaneseq
    %v5983 = vshrl.u32 %v5982, 7
    %v5984 = vsub.s32 %v5981, %v5983
    %v5985 = vrot.slane %v5969, %v5984
    %v5987 = vunpack.c.l.s4 1983009808
    %v5988 = vunpack.c.0.s8 %v5987
    %v5989 = vlaneseq
    %v5990 = vshrl.u32 %v5989, 7
    %v5991 = vsub.s32 %v5988, %v5990
    %v5992 = vrot.slane %v5970, %v5991
    %v5994 = vunpack.c.l.s4 1983009808
    %v5995 = vunpack.c.0.s8 %v5994
    %v5996 = vlaneseq
    %v5997 = vshrl.u32 %v5996, 7
    %v5998 = vsub.s32 %v5995, %v5997
    %v5999 = vrot.slane %v5971, %v5998
    %v6000 = vcombine.low %v5978, %v5992
    %v6001 = vcombine.high %v5978, %v5992
    %v6002 = vcombine.low %v5985, %v5999
    %v6003 = vcombine.high %v5985, %v5999
    %v6004 = vcombine.low %v5693, %v5696
    %v6005 = vcombine.high %v5693, %v5696
    %v6006 = vcombine.low %v5699, %v5702
    %v6007 = vcombine.high %v5699, %v5702
    %v6009 = vunpack.c.l.s4 1983009808
    %v6010 = vunpack.c.0.s8 %v6009
    %v6011 = vlaneseq
    %v6012 = vshrl.u32 %v6011, 7
    %v6013 = vsub.s32 %v6010, %v6012
    %v6014 = vrot.slane %v6004, %v6013
    %v6016 = vunpack.c.l.s4 1983009808
    %v6017 = vunpack.c.0.s8 %v6016
    %v6018 = vlaneseq
    %v6019 = vshrl.u32 %v6018, 7
    %v6020 = vsub.s32 %v6017, %v6019
    %v6021 = vrot.slane %v6005, %v6020
    %v6023 = vunpack.c.l.s4 1983009808
    %v6024 = vunpack.c.0.s8 %v6023
    %v6025 = vlaneseq
    %v6026 = vshrl.u32 %v6025, 7
    %v6027 = vsub.s32 %v6024, %v6026
    %v6028 = vrot.slane %v6006, %v6027
    %v6030 = vunpack.c.l.s4 1983009808
    %v6031 = vunpack.c.0.s8 %v6030
    %v6032 = vlaneseq
    %v6033 = vshrl.u32 %v6032, 7
    %v6034 = vsub.s32 %v6031, %v6033
    %v6035 = vrot.slane %v6007, %v6034
    %v6036 = vcombine.low %v6014, %v6028
    %v6037 = vcombine.high %v6014, %v6028
    %v6038 = vcombine.low %v6021, %v6035
    %v6039 = vcombine.high %v6021, %v6035
    %v6040 = vcombine.low %v5694, %v5697
    %v6041 = vcombine.low %v5700, %v5703
    %v6043 = vunpack.c.l.s4 1983009808
    %v6044 = vunpack.c.0.s8 %v6043
    %v6045 = vlaneseq
    %v6046 = vshrl.u32 %v6045, 7
    %v6047 = vsub.s32 %v6044, %v6046
    %v6048 = vrot.slane %v6040, %v6047
    %v6050 = vunpack.c.l.s4 1983009808
    %v6051 = vunpack.c.0.s8 %v6050
    %v6052 = vlaneseq
    %v6053 = vshrl.u32 %v6052, 7
    %v6054 = vsub.s32 %v6051, %v6053
    %v6055 = vrot.slane %v6041, %v6054
    %v6056 = vcombine.low %v6048, %v6055
    %v6219 = vunpack.c.l.b16 %v5704
    %v6220 = vunpack.c.l.b16 %v5705
    %v6221 = vunpack.c.l.b16 %v5706
    %v6222 = vunpack.c.l.b16 %v5707
    %v6223 = vunpack.c.l.b16 %v5708
    %v6224 = vunpack.c.l.b16 %v5709
    %v6225 = vunpack.c.l.b16 %v5710
    %v6226 = vunpack.c.l.b16 %v5711
    %v6227 = vunpack.c.l.b16 %v5712
    %v6228 = vunpack.c.l.b16 %v5713
    %v6229 = vunpack.c.l.b16 %v5714
    %v6230 = vunpack.c.l.b16 %v5715
    %v6231 = vunpack.c.l.b16 %v5716
    %v6232 = vunpack.c.l.b16 %v5717
    %v6233 = vunpack.c.l.b16 %v5718
    %v6234 = vunpack.c.l.b16 %v5719
    %v6235 = vunpack.c.l.b16 %v5720
    %v6236 = vunpack.c.l.b16 %v5721
    %v6237 = vunpack.c.l.b16 %v5722
    %v6238 = vunpack.c.l.b16 %v5723
    %v6239 = vunpack.c.l.b16 %v5724
    %v6240 = vunpack.c.l.b16 %v5725
    %v6241 = vunpack.c.l.b16 %v5726
    %v6242 = vunpack.c.l.b16 %v5727
    %v6243 = vunpack.c.l.b16 %v5728
    %v6244 = vunpack.c.l.b16 %v5729
    %v6245 = vunpack.c.l.b16 %v5730
    %v6246 = vunpack.c.l.b16 %v5731
    %v6247 = vunpack.c.l.b16 %v5732
    %v6248 = vunpack.c.l.b16 %v5733
    %v6249 = vunpack.c.l.b16 %v5734
    %v6250 = vunpack.c.l.b16 %v5735
    %v6251 = vunpack.c.l.b16 %v5736
    %v6252 = vunpack.c.l.b16 %v5737
    %v6253 = vunpack.c.l.b16 %v5738
    %v6254 = vunpack.c.l.b16 %v5739
    %v6255 = vunpack.c.l.b16 %v5740
    %v6256 = vunpack.c.l.b16 %v5741
    %v6257 = vunpack.c.l.b16 %v5742
    %v6258 = vunpack.c.l.b16 %v5743
    %v6259 = vunpack.c.l.b16 %v5744
    %v6260 = vunpack.c.l.b16 %v5745
    %v6261 = vunpack.c.l.b16 %v5746
    %v6262 = vunpack.c.l.b16 %v5747
    %v6263 = vunpack.c.l.b16 %v5748
    %v6264 = vunpack.c.l.b16 %v5749
    %v6265 = vunpack.c.l.b16 %v5750
    %v6266 = vunpack.c.l.b16 %v5751
    %v6267 = vunpack.c.l.b16 %v5752
    %v6268 = vunpack.c.l.b16 %v5753
    %v6269 = vunpack.c.l.b16 %v5754
    %v6270 = vunpack.c.l.b16 %v5755
    %v6271 = vunpack.c.l.b16 %v5756
    %v6272 = vunpack.c.l.b16 %v5757
    %v6273 = vunpack.c.l.b16 %v5758
    %v6274 = vunpack.c.l.b16 %v5759
    %v6275 = vunpack.c.l.b16 %v5760
    %v6276 = vunpack.c.l.b16 %v5761
    %v6277 = vunpack.c.l.b16 %v5762
    %v6278 = vunpack.c.l.b16 %v5763
    %v6279 = vunpack.c.l.b16 %v5764
    %v6280 = vunpack.c.l.b16 %v5765
    %v6281 = vunpack.c.l.b16 %v5766
    %v6282 = vunpack.c.l.b16 %v5767
    %v6283 = vunpack.c.l.b16 %v5768
    %v6284 = vunpack.c.l.b16 %v5769
    %v6285 = vunpack.c.l.b16 %v5770
    %v6286 = vunpack.c.l.b16 %v5771
    %v6287 = vunpack.c.l.b16 %v5772
    %v6288 = vunpack.c.l.b16 %v5773
    %v6289 = vunpack.c.l.b16 %v5774
    %v6290 = vunpack.c.l.b16 %v5775
    %v6291 = vunpack.c.l.b16 %v5776
    %v6292 = vunpack.c.l.b16 %v5777
    %v6293 = vunpack.c.l.b16 %v5778
    %v6294 = vunpack.c.l.b16 %v5779
    %v6295 = vunpack.c.l.b16 %v5780
    %v6296 = vunpack.c.l.b16 %v5781
    %v6297 = vunpack.c.l.b16 %v5782
    %v6298 = vunpack.c.l.b16 %v5783
    %v6299 = vunpack.c.l.b16 %v5784
    %v6300 = vunpack.c.l.b16 %v5785
    %v6301 = vunpack.c.l.b16 %v5786
    %v6302 = vunpack.c.l.b16 %v5787
    %v6303 = vunpack.c.l.b16 %v5788
    %v6304 = vunpack.c.l.b16 %v5789
    %v6305 = vunpack.c.l.b16 %v5790
    %v6306 = vunpack.c.l.b16 %v5791
    %v6307 = vunpack.c.l.b16 %v5792
    %v6308 = vunpack.c.l.b16 %v5793
    %v6309 = vunpack.c.l.b16 %v5794
    %v6310 = vunpack.c.l.b16 %v5795
    %v6311 = vunpack.c.l.b16 %v5796
    %v6312 = vunpack.c.l.b16 %v5797
    %v6313 = vunpack.c.l.b16 %v5798
    %v6314 = vunpack.c.l.b16 %v5799
    %v6315 = vunpack.c.l.b16 %v5800
    %v6316 = vunpack.c.l.b16 %v5801
    %v6317 = vunpack.c.l.b16 %v5802
    %v6318 = vunpack.c.l.b16 %v5803
    %v6319 = vunpack.c.l.b16 %v5804
    %v6320 = vunpack.c.l.b16 %v5805
    %v6321 = vunpack.c.l.b16 %v5806
    %v6322 = vunpack.c.l.b16 %v5807
    %v6323 = vunpack.c.l.b16 %v5808
    %v6324 = vunpack.c.l.b16 %v5809
    %v6325 = vunpack.c.l.b16 %v5810
    %v6326 = vunpack.c.l.b16 %v5811
    %v6327 = vunpack.c.l.b16 %v5812
    %v6328 = vunpack.c.l.b16 %v5813
    %v6329 = vunpack.c.l.b16 %v5814
    %v6330 = vunpack.c.l.b16 %v5815
    %v6331 = vunpack.c.l.b16 %v5816
    %v6332 = vunpack.c.l.b16 %v5817
    %v6333 = vunpack.c.l.b16 %v5818
    %v6334 = vunpack.c.l.b16 %v5819
    %v6335 = vunpack.c.l.b16 %v5820
    %v6336 = vunpack.c.l.b16 %v5821
    %v6337 = vunpack.c.l.b16 %v5822
    %v6338 = vunpack.c.l.b16 %v5823
    %v6339 = vunpack.c.l.b16 %v5824
    %v6340 = vunpack.c.l.b16 %v5825
    %v6341 = vunpack.c.l.b16 %v5826
    %v6342 = vunpack.c.l.b16 %v5827
    %v6343 = vunpack.c.l.b16 %v5828
    %v6344 = vunpack.c.l.b16 %v5829
    %v6345 = vunpack.c.l.b16 %v5830
    %v6346 = vunpack.c.l.b16 %v5831
    %v6347 = vunpack.c.l.b16 %v5832
    %v6348 = vunpack.c.l.b16 %v5833
    %v6349 = vunpack.c.l.b16 %v5834
    %v6350 = vunpack.c.l.b16 %v5835
    %v6351 = vunpack.c.l.b16 %v5836
    %v6352 = vunpack.c.l.b16 %v5837
    %v6353 = vunpack.c.l.b16 %v5838
    %v6354 = vunpack.c.l.b16 %v5839
    %v6355 = vunpack.c.l.b16 %v5840
    %v6356 = vunpack.c.l.b16 %v5841
    %v6357 = vunpack.c.l.b16 %v5842
    %v6358 = vunpack.c.l.b16 %v5843
    %v6359 = vunpack.c.l.b16 %v5844
    %v6360 = vunpack.c.l.b16 %v5845
    %v6361 = vunpack.c.l.b16 %v5846
    %v6362 = vunpack.c.l.b16 %v5847
    %v6363 = vpack.c.b16 %v6220, %v6219
    %v6364 = vpack.c.b16 %v6222, %v6221
    %v6365 = vpack.c.b16 %v6224, %v6223
    %v6366 = vpack.c.b16 %v6226, %v6225
    %v6367 = vpack.c.b16 %v6228, %v6227
    %v6368 = vpack.c.b16 %v6230, %v6229
    %v6369 = vpack.c.b16 %v6232, %v6231
    %v6370 = vpack.c.b16 %v6234, %v6233
    %v6371 = vpack.c.b16 %v6236, %v6235
    %v6372 = vpack.c.b16 %v6238, %v6237
    %v6373 = vpack.c.b16 %v6240, %v6239
    %v6374 = vpack.c.b16 %v6242, %v6241
    %v6375 = vpack.c.b16 %v6244, %v6243
    %v6376 = vpack.c.b16 %v6246, %v6245
    %v6377 = vpack.c.b16 %v6248, %v6247
    %v6378 = vpack.c.b16 %v6250, %v6249
    %v6379 = vpack.c.b16 %v6252, %v6251
    %v6380 = vpack.c.b16 %v6254, %v6253
    %v6381 = vpack.c.b16 %v6256, %v6255
    %v6382 = vpack.c.b16 %v6258, %v6257
    %v6383 = vpack.c.b16 %v6260, %v6259
    %v6384 = vpack.c.b16 %v6262, %v6261
    %v6385 = vpack.c.b16 %v6264, %v6263
    %v6386 = vpack.c.b16 %v6266, %v6265
    %v6387 = vpack.c.b16 %v6268, %v6267
    %v6388 = vpack.c.b16 %v6270, %v6269
    %v6389 = vpack.c.b16 %v6272, %v6271
    %v6390 = vpack.c.b16 %v6274, %v6273
    %v6391 = vpack.c.b16 %v6276, %v6275
    %v6392 = vpack.c.b16 %v6278, %v6277
    %v6393 = vpack.c.b16 %v6280, %v6279
    %v6394 = vpack.c.b16 %v6282, %v6281
    %v6395 = vpack.c.b16 %v6284, %v6283
    %v6396 = vpack.c.b16 %v6286, %v6285
    %v6397 = vpack.c.b16 %v6288, %v6287
    %v6398 = vpack.c.b16 %v6290, %v6289
    %v6399 = vpack.c.b16 %v6292, %v6291
    %v6400 = vpack.c.b16 %v6294, %v6293
    %v6401 = vpack.c.b16 %v6296, %v6295
    %v6402 = vpack.c.b16 %v6298, %v6297
    %v6403 = vpack.c.b16 %v6300, %v6299
    %v6404 = vpack.c.b16 %v6302, %v6301
    %v6405 = vpack.c.b16 %v6304, %v6303
    %v6406 = vpack.c.b16 %v6306, %v6305
    %v6407 = vpack.c.b16 %v6308, %v6307
    %v6408 = vpack.c.b16 %v6310, %v6309
    %v6409 = vpack.c.b16 %v6312, %v6311
    %v6410 = vpack.c.b16 %v6314, %v6313
    %v6411 = vpack.c.b16 %v6316, %v6315
    %v6412 = vpack.c.b16 %v6318, %v6317
    %v6413 = vpack.c.b16 %v6320, %v6319
    %v6414 = vpack.c.b16 %v6322, %v6321
    %v6415 = vpack.c.b16 %v6324, %v6323
    %v6416 = vpack.c.b16 %v6326, %v6325
    %v6417 = vpack.c.b16 %v6328, %v6327
    %v6418 = vpack.c.b16 %v6330, %v6329
    %v6419 = vpack.c.b16 %v6332, %v6331
    %v6420 = vpack.c.b16 %v6334, %v6333
    %v6421 = vpack.c.b16 %v6336, %v6335
    %v6422 = vpack.c.b16 %v6338, %v6337
    %v6423 = vpack.c.b16 %v6340, %v6339
    %v6424 = vpack.c.b16 %v6342, %v6341
    %v6425 = vpack.c.b16 %v6344, %v6343
    %v6426 = vpack.c.b16 %v6346, %v6345
    %v6427 = vpack.c.b16 %v6348, %v6347
    %v6428 = vpack.c.b16 %v6350, %v6349
    %v6429 = vpack.c.b16 %v6352, %v6351
    %v6430 = vpack.c.b16 %v6354, %v6353
    %v6431 = vpack.c.b16 %v6356, %v6355
    %v6432 = vpack.c.b16 %v6358, %v6357
    %v6433 = vpack.c.b16 %v6360, %v6359
    %v6434 = vpack.c.b16 %v6362, %v6361
    %6507 = vmatprep.subr.bf16.mxu0 0
    %6508 = vmatpush1.bf16.msra.mxu0 %v6370
    %6509 = vmatprep.subr.bf16.mxu0 0
    %6510 = vmatpush1.bf16.msra.mxu0 %v6369
    %6511 = vmatprep.subr.bf16.mxu0 0
    %6512 = vmatpush1.bf16.msra.mxu0 %v6368
    %6513 = vmatprep.subr.bf16.mxu0 0
    %6514 = vmatpush1.bf16.msra.mxu0 %v6367
    %6515 = vmatprep.subr.bf16.mxu0 0
    %6516 = vmatpush1.bf16.msra.mxu0 %v6366
    %6517 = vmatprep.subr.bf16.mxu0 0
    %6518 = vmatpush1.bf16.msra.mxu0 %v6365
    %6519 = vmatprep.subr.bf16.mxu0 0
    %6520 = vmatpush1.bf16.msra.mxu0 %v6364
    %6521 = vmatprep.subr.bf16.mxu0 0
    %6522 = vmatpush1.bf16.msra.mxu0 %v6363
    %6523 = vmatprep.subr.bf16.mxu0 0
    %6524 = vmatpush2.bf16.msra.mxu0 %v6378
    %6525 = vmatprep.subr.bf16.mxu0 0
    %6526 = vmatpush2.bf16.msra.mxu0 %v6377
    %6527 = vmatprep.subr.bf16.mxu0 0
    %6528 = vmatpush2.bf16.msra.mxu0 %v6376
    %6529 = vmatprep.subr.bf16.mxu0 0
    %6530 = vmatpush2.bf16.msra.mxu0 %v6375
    %6531 = vmatprep.subr.bf16.mxu0 0
    %6532 = vmatpush2.bf16.msra.mxu0 %v6374
    %6533 = vmatprep.subr.bf16.mxu0 0
    %6534 = vmatpush2.bf16.msra.mxu0 %v6373
    %6535 = vmatprep.subr.bf16.mxu0 0
    %6536 = vmatpush2.bf16.msra.mxu0 %v6372
    %6537 = vmatprep.subr.bf16.mxu0 0
    %6538 = vmatpush2.bf16.msra.mxu0 %v6371
    %6539 = vmatprep.mubr.bf16.mxu0 %v5912
    %6540 = vmatmul.mubr.bf16.gmra.mxu0 %v5911
    %v6541 = vpop.f32.mrf.mxu0
    %v6542 = vadd.f32 %v5853, %v6541
    %v6543 = vpop.f32.mrf.mxu0
    %v6544 = vpop.f32.mrf.mxu0
    %v6545 = vadd.f32 %v5853, %v6544
    %v6546 = vpop.f32.mrf.mxu0
    %6547 = vmatprep.mubr.bf16.mxu0 %v6001
    %6548 = vmatmul.mubr.bf16.gmra.mxu0 %v6000
    %v6549 = vpop.f32.mrf.mxu0
    %v6550 = vadd.f32 %v5853, %v6549
    %v6551 = vpop.f32.mrf.mxu0
    %v6552 = vpop.f32.mrf.mxu0
    %v6553 = vadd.f32 %v5853, %v6552
    %v6554 = vpop.f32.mrf.mxu0
    %6555 = vdwg.mxu0
    %6556 = vmatprep.subr.bf16.mxu0 0
    %6557 = vmatpush1.bf16.msra.mxu0 %v6386
    %6558 = vmatprep.subr.bf16.mxu0 0
    %6559 = vmatpush1.bf16.msra.mxu0 %v6385
    %6560 = vmatprep.subr.bf16.mxu0 0
    %6561 = vmatpush1.bf16.msra.mxu0 %v6384
    %6562 = vmatprep.subr.bf16.mxu0 0
    %6563 = vmatpush1.bf16.msra.mxu0 %v6383
    %6564 = vmatprep.subr.bf16.mxu0 0
    %6565 = vmatpush1.bf16.msra.mxu0 %v6382
    %6566 = vmatprep.subr.bf16.mxu0 0
    %6567 = vmatpush1.bf16.msra.mxu0 %v6381
    %6568 = vmatprep.subr.bf16.mxu0 0
    %6569 = vmatpush1.bf16.msra.mxu0 %v6380
    %6570 = vmatprep.subr.bf16.mxu0 0
    %6571 = vmatpush1.bf16.msra.mxu0 %v6379
    %6572 = vmatprep.subr.bf16.mxu0 0
    %6573 = vmatpush2.bf16.msra.mxu0 %v6394
    %6574 = vmatprep.subr.bf16.mxu0 0
    %6575 = vmatpush2.bf16.msra.mxu0 %v6393
    %6576 = vmatprep.subr.bf16.mxu0 0
    %6577 = vmatpush2.bf16.msra.mxu0 %v6392
    %6578 = vmatprep.subr.bf16.mxu0 0
    %6579 = vmatpush2.bf16.msra.mxu0 %v6391
    %6580 = vmatprep.subr.bf16.mxu0 0
    %6581 = vmatpush2.bf16.msra.mxu0 %v6390
    %6582 = vmatprep.subr.bf16.mxu0 0
    %6583 = vmatpush2.bf16.msra.mxu0 %v6389
    %6584 = vmatprep.subr.bf16.mxu0 0
    %6585 = vmatpush2.bf16.msra.mxu0 %v6388
    %6586 = vmatprep.subr.bf16.mxu0 0
    %6587 = vmatpush2.bf16.msra.mxu0 %v6387
    %6588 = vmatprep.mubr.bf16.mxu0 %v5914
    %6589 = vmatmul.mubr.bf16.gmra.mxu0 %v5913
    %v6590 = vpop.f32.mrf.mxu0
    %v6591 = vadd.f32 %v6542, %v6590
    %v6592 = vpop.f32.mrf.mxu0
    %v6593 = vpop.f32.mrf.mxu0
    %v6594 = vadd.f32 %v6545, %v6593
    %v6595 = vpop.f32.mrf.mxu0
    %6596 = vmatprep.mubr.bf16.mxu0 %v6003
    %6597 = vmatmul.mubr.bf16.gmra.mxu0 %v6002
    %v6598 = vpop.f32.mrf.mxu0
    %v6599 = vadd.f32 %v6550, %v6598
    %v6600 = vpop.f32.mrf.mxu0
    %v6601 = vpop.f32.mrf.mxu0
    %v6602 = vadd.f32 %v6553, %v6601
    %v6603 = vpop.f32.mrf.mxu0
    %6604 = vdwg.mxu0
    %6605 = vmatprep.subr.bf16.mxu0 0
    %6606 = vmatpush1.bf16.msra.mxu0 %v6402
    %6607 = vmatprep.subr.bf16.mxu0 0
    %6608 = vmatpush1.bf16.msra.mxu0 %v6401
    %6609 = vmatprep.subr.bf16.mxu0 0
    %6610 = vmatpush1.bf16.msra.mxu0 %v6400
    %6611 = vmatprep.subr.bf16.mxu0 0
    %6612 = vmatpush1.bf16.msra.mxu0 %v6399
    %6613 = vmatprep.subr.bf16.mxu0 0
    %6614 = vmatpush1.bf16.msra.mxu0 %v6398
    %6615 = vmatprep.subr.bf16.mxu0 0
    %6616 = vmatpush1.bf16.msra.mxu0 %v6397
    %6617 = vmatprep.subr.bf16.mxu0 0
    %6618 = vmatpush1.bf16.msra.mxu0 %v6396
    %6619 = vmatprep.subr.bf16.mxu0 0
    %6620 = vmatpush1.bf16.msra.mxu0 %v6395
    %6621 = vmatprep.subr.bf16.mxu0 0
    %6622 = vmatpush2.bf16.msra.mxu0 %v6410
    %6623 = vmatprep.subr.bf16.mxu0 0
    %6624 = vmatpush2.bf16.msra.mxu0 %v6409
    %6625 = vmatprep.subr.bf16.mxu0 0
    %6626 = vmatpush2.bf16.msra.mxu0 %v6408
    %6627 = vmatprep.subr.bf16.mxu0 0
    %6628 = vmatpush2.bf16.msra.mxu0 %v6407
    %6629 = vmatprep.subr.bf16.mxu0 0
    %6630 = vmatpush2.bf16.msra.mxu0 %v6406
    %6631 = vmatprep.subr.bf16.mxu0 0
    %6632 = vmatpush2.bf16.msra.mxu0 %v6405
    %6633 = vmatprep.subr.bf16.mxu0 0
    %6634 = vmatpush2.bf16.msra.mxu0 %v6404
    %6635 = vmatprep.subr.bf16.mxu0 0
    %6636 = vmatpush2.bf16.msra.mxu0 %v6403
    %6637 = vmatprep.mubr.bf16.mxu0 %v5948
    %6638 = vmatmul.mubr.bf16.gmra.mxu0 %v5947
    %v6639 = vpop.f32.mrf.mxu0
    %v6640 = vadd.f32 %v6591, %v6639
    %v6641 = vpop.f32.mrf.mxu0
    %v6642 = vpop.f32.mrf.mxu0
    %v6643 = vadd.f32 %v6594, %v6642
    %v6644 = vpop.f32.mrf.mxu0
    %6645 = vmatprep.mubr.bf16.mxu0 %v6037
    %6646 = vmatmul.mubr.bf16.gmra.mxu0 %v6036
    %v6647 = vpop.f32.mrf.mxu0
    %v6648 = vadd.f32 %v6599, %v6647
    %v6649 = vpop.f32.mrf.mxu0
    %v6650 = vpop.f32.mrf.mxu0
    %v6651 = vadd.f32 %v6602, %v6650
    %v6652 = vpop.f32.mrf.mxu0
    %6653 = vdwg.mxu0
    %6654 = vmatprep.subr.bf16.mxu0 0
    %6655 = vmatpush1.bf16.msra.mxu0 %v6418
    %6656 = vmatprep.subr.bf16.mxu0 0
    %6657 = vmatpush1.bf16.msra.mxu0 %v6417
    %6658 = vmatprep.subr.bf16.mxu0 0
    %6659 = vmatpush1.bf16.msra.mxu0 %v6416
    %6660 = vmatprep.subr.bf16.mxu0 0
    %6661 = vmatpush1.bf16.msra.mxu0 %v6415
    %6662 = vmatprep.subr.bf16.mxu0 0
    %6663 = vmatpush1.bf16.msra.mxu0 %v6414
    %6664 = vmatprep.subr.bf16.mxu0 0
    %6665 = vmatpush1.bf16.msra.mxu0 %v6413
    %6666 = vmatprep.subr.bf16.mxu0 0
    %6667 = vmatpush1.bf16.msra.mxu0 %v6412
    %6668 = vmatprep.subr.bf16.mxu0 0
    %6669 = vmatpush1.bf16.msra.mxu0 %v6411
    %6670 = vmatprep.subr.bf16.mxu0 0
    %6671 = vmatpush2.bf16.msra.mxu0 %v6426
    %6672 = vmatprep.subr.bf16.mxu0 0
    %6673 = vmatpush2.bf16.msra.mxu0 %v6425
    %6674 = vmatprep.subr.bf16.mxu0 0
    %6675 = vmatpush2.bf16.msra.mxu0 %v6424
    %6676 = vmatprep.subr.bf16.mxu0 0
    %6677 = vmatpush2.bf16.msra.mxu0 %v6423
    %6678 = vmatprep.subr.bf16.mxu0 0
    %6679 = vmatpush2.bf16.msra.mxu0 %v6422
    %6680 = vmatprep.subr.bf16.mxu0 0
    %6681 = vmatpush2.bf16.msra.mxu0 %v6421
    %6682 = vmatprep.subr.bf16.mxu0 0
    %6683 = vmatpush2.bf16.msra.mxu0 %v6420
    %6684 = vmatprep.subr.bf16.mxu0 0
    %6685 = vmatpush2.bf16.msra.mxu0 %v6419
    %6686 = vmatprep.mubr.bf16.mxu0 %v5950
    %6687 = vmatmul.mubr.bf16.gmra.mxu0 %v5949
    %v6688 = vpop.f32.mrf.mxu0
    %v6689 = vadd.f32 %v6640, %v6688
    %v6690 = vpop.f32.mrf.mxu0
    %v6691 = vpop.f32.mrf.mxu0
    %v6692 = vadd.f32 %v6643, %v6691
    %v6693 = vpop.f32.mrf.mxu0
    %6694 = vmatprep.mubr.bf16.mxu0 %v6039
    %6695 = vmatmul.mubr.bf16.gmra.mxu0 %v6038
    %v6696 = vpop.f32.mrf.mxu0
    %v6697 = vadd.f32 %v6648, %v6696
    %v6698 = vpop.f32.mrf.mxu0
    %v6699 = vpop.f32.mrf.mxu0
    %v6700 = vadd.f32 %v6651, %v6699
    %v6701 = vpop.f32.mrf.mxu0
    %6702 = vdwg.mxu0
    %6703 = vmatprep.subr.bf16.mxu0 0
    %6704 = vmatpush1.bf16.msra.mxu0 %v6434
    %6705 = vmatprep.subr.bf16.mxu0 0
    %6706 = vmatpush1.bf16.msra.mxu0 %v6433
    %6707 = vmatprep.subr.bf16.mxu0 0
    %6708 = vmatpush1.bf16.msra.mxu0 %v6432
    %6709 = vmatprep.subr.bf16.mxu0 0
    %6710 = vmatpush1.bf16.msra.mxu0 %v6431
    %6711 = vmatprep.subr.bf16.mxu0 0
    %6712 = vmatpush1.bf16.msra.mxu0 %v6430
    %6713 = vmatprep.subr.bf16.mxu0 0
    %6714 = vmatpush1.bf16.msra.mxu0 %v6429
    %6715 = vmatprep.subr.bf16.mxu0 0
    %6716 = vmatpush1.bf16.msra.mxu0 %v6428
    %6717 = vmatprep.subr.bf16.mxu0 0
    %6718 = vmatpush1.bf16.msra.mxu0 %v6427
    %6719 = vmatprep.subr.bf16.mxu0 0
    %6720 = vmatpush2.bf16.msra.mxu0 0
    %6721 = vmatprep.subr.bf16.mxu0 0
    %6722 = vmatpush2.bf16.msra.mxu0 0
    %6723 = vmatprep.subr.bf16.mxu0 0
    %6724 = vmatpush2.bf16.msra.mxu0 0
    %6725 = vmatprep.subr.bf16.mxu0 0
    %6726 = vmatpush2.bf16.msra.mxu0 0
    %6727 = vmatprep.subr.bf16.mxu0 0
    %6728 = vmatpush2.bf16.msra.mxu0 0
    %6729 = vmatprep.subr.bf16.mxu0 0
    %6730 = vmatpush2.bf16.msra.mxu0 0
    %6731 = vmatprep.subr.bf16.mxu0 0
    %6732 = vmatpush2.bf16.msra.mxu0 0
    %6733 = vmatprep.subr.bf16.mxu0 0
    %6734 = vmatpush2.bf16.msra.mxu0 0
    %6735 = vmatprep.mubr.bf16.mxu0 0
    %6736 = vmatmul.mubr.bf16.gmra.mxu0 %v5967
    %v6737 = vpop.f32.mrf.mxu0
    %v6738 = vadd.f32 %v6689, %v6737
    %v6739 = vpop.f32.mrf.mxu0
    %v6740 = vpop.f32.mrf.mxu0
    %v6741 = vadd.f32 %v6692, %v6740
    %v6742 = vpop.f32.mrf.mxu0
    %6743 = vmatprep.mubr.bf16.mxu0 0
    %6744 = vmatmul.mubr.bf16.gmra.mxu0 %v6056
    %v6745 = vpop.f32.mrf.mxu0
    %v6746 = vadd.f32 %v6697, %v6745
    %v6747 = vpop.f32.mrf.mxu0
    %v6748 = vpop.f32.mrf.mxu0
    %v6749 = vadd.f32 %v6700, %v6748
    %v6750 = vpop.f32.mrf.mxu0
    %6751 = vdwg.mxu0
    %v6752 = vmax.f32 %v6738, 0.0
    %v6753 = vmax.f32 %v6741, 0.0
    %v6754 = vmax.f32 %v6746, 0.0
    %v6755 = vmax.f32 %v6749, 0.0
    %6756 = vst [vmem:[#allocation11] sm:$0xff] %v6752
    %6757 = vst [vmem:[#allocation11 + $0x8] sm:$0xff] %v6753
    %6758 = vst [vmem:[#allocation11 + $0x10] sm:$0xff] %v6754
    %6759 = vst [vmem:[#allocation11 + $0x18] sm:$0xff] %v6755
    %v6760 = vld [vmem:[#allocation11] ss:$2 sm:$0x3]
    %s6761 = scalar_lea.vmem [#allocation11], 1
    %v6762 = vld [vmem:[%s6761] ss:$2 sm:$0x3]
    %v6763 = vmax.f32 %v6760, %v6762
    %s6764 = scalar_lea.vmem [#allocation11], 4
    %v6765 = vld [vmem:[%s6764] ss:$2 sm:$0x3]
    %s6766 = scalar_lea.vmem [#allocation11], 5
    %v6767 = vld [vmem:[%s6766] ss:$2 sm:$0x3]
    %v6768 = vmax.f32 %v6765, %v6767
    %v6769 = vmax.f32 %v6763, %v6768
    %v6770 = vpack.c.bf16 %v6769, %v6769
    %v6773 = vunpack.c.l.s4 1983009808
    %v6774 = vunpack.c.0.s8 %v6773
    %v6775 = vlaneseq
    %v6776 = vshrl.u32 %v6775, 7
    %v6777 = vsub.s32 %v6774, %v6776
    %v6778 = vrot.slane %v6770, %v6777
    %v6780 = vshrl.u32 %v6778, 16
    %v6782 = vrot.slane %v6780, 7
    %v6783 = vshll.u32 %v6778, 16
    %v6785 = vor.u32 %v6782, %v6783
    %s6787 = scalar_lea.vmem [#allocation4], 2
    %vm6788 = vcmask 1041408
    %vm6789 = vsmask.f32 1282
    %vm6790 = vmand %vm6788, %vm6789
    %v6791 = vld [vmem:[%s6787] sm:$0x3]
    %v6792 = vsel %vm6790, %v6785, %v6791
    %6793 = vst [vmem:[%s6787] sm:$0x3] %v6792
    %s6794 = scalar_lea.vmem [#allocation11], 8
    %v6795 = vld [vmem:[%s6794] ss:$2 sm:$0x3]
    %s6796 = scalar_lea.vmem [#allocation11], 9
    %v6797 = vld [vmem:[%s6796] ss:$2 sm:$0x3]
    %v6798 = vmax.f32 %v6795, %v6797
    %s6799 = scalar_lea.vmem [#allocation11], 12
    %v6800 = vld [vmem:[%s6799] ss:$2 sm:$0x3]
    %s6801 = scalar_lea.vmem [#allocation11], 13
    %v6802 = vld [vmem:[%s6801] ss:$2 sm:$0x3]
    %v6803 = vmax.f32 %v6800, %v6802
    %v6804 = vmax.f32 %v6798, %v6803
    %v6805 = vpack.c.bf16 %v6804, %v6804
    %v6808 = vunpack.c.l.s4 1983009808
    %v6809 = vunpack.c.0.s8 %v6808
    %v6810 = vlaneseq
    %v6811 = vshrl.u32 %v6810, 7
    %v6812 = vsub.s32 %v6809, %v6811
    %v6813 = vrot.slane %v6805, %v6812
    %v6815 = vshrl.u32 %v6813, 16
    %v6817 = vrot.slane %v6815, 7
    %v6818 = vshll.u32 %v6813, 16
    %v6820 = vor.u32 %v6817, %v6818
    %s6822 = scalar_lea.vmem [#allocation4], 4
    %v6823 = vld [vmem:[%s6822] sm:$0x3]
    %v6824 = vsel %vm6790, %v6820, %v6823
    %6825 = vst [vmem:[%s6822] sm:$0x3] %v6824
    %s6826 = scalar_lea.vmem [#allocation11], 16
    %v6827 = vld [vmem:[%s6826] ss:$2 sm:$0x3]
    %s6828 = scalar_lea.vmem [#allocation11], 17
    %v6829 = vld [vmem:[%s6828] ss:$2 sm:$0x3]
    %v6830 = vmax.f32 %v6827, %v6829
    %s6831 = scalar_lea.vmem [#allocation11], 20
    %v6832 = vld [vmem:[%s6831] ss:$2 sm:$0x3]
    %s6833 = scalar_lea.vmem [#allocation11], 21
    %v6834 = vld [vmem:[%s6833] ss:$2 sm:$0x3]
    %v6835 = vmax.f32 %v6832, %v6834
    %v6836 = vmax.f32 %v6830, %v6835
    %v6837 = vpack.c.bf16 %v6836, %v6836
    %v6840 = vunpack.c.l.s4 1983009808
    %v6841 = vunpack.c.0.s8 %v6840
    %v6842 = vlaneseq
    %v6843 = vshrl.u32 %v6842, 7
    %v6844 = vsub.s32 %v6841, %v6843
    %v6845 = vrot.slane %v6837, %v6844
    %v6847 = vshrl.u32 %v6845, 16
    %v6849 = vrot.slane %v6847, 7
    %v6850 = vshll.u32 %v6845, 16
    %v6852 = vor.u32 %v6849, %v6850
    %s6854 = scalar_lea.vmem [#allocation4], 10
    %v6855 = vld [vmem:[%s6854] sm:$0x3]
    %v6856 = vsel %vm6790, %v6852, %v6855
    %6857 = vst [vmem:[%s6854] sm:$0x3] %v6856
    %s6858 = scalar_lea.vmem [#allocation11], 24
    %v6859 = vld [vmem:[%s6858] ss:$2 sm:$0x3]
    %s6860 = scalar_lea.vmem [#allocation11], 25
    %v6861 = vld [vmem:[%s6860] ss:$2 sm:$0x3]
    %v6862 = vmax.f32 %v6859, %v6861
    %s6863 = scalar_lea.vmem [#allocation11], 28
    %v6864 = vld [vmem:[%s6863] ss:$2 sm:$0x3]
    %s6865 = scalar_lea.vmem [#allocation11], 29
    %v6866 = vld [vmem:[%s6865] ss:$2 sm:$0x3]
    %v6867 = vmax.f32 %v6864, %v6866
    %v6868 = vmax.f32 %v6862, %v6867
    %v6869 = vpack.c.bf16 %v6868, %v6868
    %v6872 = vunpack.c.l.s4 1983009808
    %v6873 = vunpack.c.0.s8 %v6872
    %v6874 = vlaneseq
    %v6875 = vshrl.u32 %v6874, 7
    %v6876 = vsub.s32 %v6873, %v6875
    %v6877 = vrot.slane %v6869, %v6876
    %v6879 = vshrl.u32 %v6877, 16
    %v6881 = vrot.slane %v6879, 7
    %v6882 = vshll.u32 %v6877, 16
    %v6884 = vor.u32 %v6881, %v6882
    %s6886 = scalar_lea.vmem [#allocation4], 12
    %v6887 = vld [vmem:[%s6886] sm:$0x3]
    %v6888 = vsel %vm6790, %v6884, %v6887
    %6889 = vst [vmem:[%s6886] sm:$0x3] %v6888
    %v6890 = vld [vmem:[#allocation4] sm:$0x1]
    %v6891 = vld [vmem:[#allocation4 + $0x2] sm:$0x1]
    %6892 = vst [vmem:[#allocation8] sm:$0x1] %v6890
    %6893 = vst [vmem:[#allocation8 + $0x9] sm:$0x1] %v6891
    %v6894 = vld [vmem:[#allocation4] sm:$0x3]
    %v6895 = vld [vmem:[#allocation4 + $0x2] sm:$0x3]
    %v6899 = vunpack.c.l.s4 1966171168
    %v6900 = vunpack.c.0.s8 %v6899
    %v6901 = vlaneseq
    %v6902 = vshrl.u32 %v6901, 7
    %v6903 = vsub.s32 %v6900, %v6902
    %v6904 = vrot.slane %v6894, %v6903
    %v6905 = vcombine.high %v6904, %v6904
    %v6907 = vunpack.c.l.s4 1966171168
    %v6908 = vunpack.c.0.s8 %v6907
    %v6909 = vlaneseq
    %v6910 = vshrl.u32 %v6909, 7
    %v6911 = vsub.s32 %v6908, %v6910
    %v6912 = vrot.slane %v6895, %v6911
    %v6913 = vcombine.high %v6912, %v6912
    %vm6914 = vsmask.f32 1284
    %vm6915 = vmor %vm911, %vm6914
    %vm6916 = vsmask.f32 2312
    %vm6917 = vmor %vm6915, %vm6916
    %vm6918 = vsmask.f32 3340
    %vm6919 = vmor %vm6917, %vm6918
    %vm6920 = vsmask.f32 4368
    %vm6921 = vmor %vm6919, %vm6920
    %vm6922 = vsmask.f32 5396
    %vm6923 = vmor %vm6921, %vm6922
    %vm6924 = vsmask.f32 6424
    %vm6925 = vmor %vm6923, %vm6924
    %vm6926 = vsmask.f32 7452
    %vm6927 = vmor %vm6925, %vm6926
    %v6929 = vshrl.u32 %v6904, 16
    %v6931 = vrot.slane %v6929, 7
    %v6932 = vrot.slane %v6931, 1
    %v6934 = vshll.u32 %v6905, 16
    %v6936 = vsel %vm6927, %v6932, %v6934
    %v6938 = vshrl.u32 %v6912, 16
    %v6940 = vrot.slane %v6938, 7
    %v6941 = vrot.slane %v6940, 1
    %v6943 = vshll.u32 %v6913, 16
    %v6945 = vsel %vm6927, %v6941, %v6943
    %6948 = vst [vmem:[#allocation8 + $0x1] sm:$0x1] %v6936
    %6949 = vst [vmem:[#allocation8 + $0xa] sm:$0x1] %v6945
    %v6950 = vld [vmem:[#allocation4] sm:$0x2]
    %v6951 = vld [vmem:[#allocation4 + $0x2] sm:$0x2]
    %v6955 = vunpack.c.l.s4 1966171168
    %v6956 = vunpack.c.0.s8 %v6955
    %v6957 = vlaneseq
    %v6958 = vshrl.u32 %v6957, 7
    %v6959 = vsub.s32 %v6956, %v6958
    %v6960 = vrot.slane %v6950, %v6959
    %v6961 = vcombine.high %v6960, %v6960
    %v6963 = vunpack.c.l.s4 1966171168
    %v6964 = vunpack.c.0.s8 %v6963
    %v6965 = vlaneseq
    %v6966 = vshrl.u32 %v6965, 7
    %v6967 = vsub.s32 %v6964, %v6966
    %v6968 = vrot.slane %v6951, %v6967
    %v6969 = vcombine.high %v6968, %v6968
    %6972 = vst [vmem:[#allocation8 + $0x2] sm:$0x1] %v6961
    %6973 = vst [vmem:[#allocation8 + $0xb] sm:$0x1] %v6969
    %v6974 = vld [vmem:[%s6787] sm:$0x1]
    %v6975 = vld [vmem:[%s6787 + $0x2] sm:$0x1]
    %6976 = vst [vmem:[#allocation8 + $0x3] sm:$0x1] %v6974
    %6977 = vst [vmem:[#allocation8 + $0xc] sm:$0x1] %v6975
    %v6978 = vld [vmem:[%s6787] sm:$0x3]
    %v6979 = vld [vmem:[%s6787 + $0x2] sm:$0x3]
    %v6983 = vunpack.c.l.s4 1966171168
    %v6984 = vunpack.c.0.s8 %v6983
    %v6985 = vlaneseq
    %v6986 = vshrl.u32 %v6985, 7
    %v6987 = vsub.s32 %v6984, %v6986
    %v6988 = vrot.slane %v6978, %v6987
    %v6989 = vcombine.high %v6988, %v6988
    %v6991 = vunpack.c.l.s4 1966171168
    %v6992 = vunpack.c.0.s8 %v6991
    %v6993 = vlaneseq
    %v6994 = vshrl.u32 %v6993, 7
    %v6995 = vsub.s32 %v6992, %v6994
    %v6996 = vrot.slane %v6979, %v6995
    %v6997 = vcombine.high %v6996, %v6996
    %v6999 = vshrl.u32 %v6988, 16
    %v7001 = vrot.slane %v6999, 7
    %v7002 = vrot.slane %v7001, 1
    %v7004 = vshll.u32 %v6989, 16
    %v7006 = vsel %vm6927, %v7002, %v7004
    %v7008 = vshrl.u32 %v6996, 16
    %v7010 = vrot.slane %v7008, 7
    %v7011 = vrot.slane %v7010, 1
    %v7013 = vshll.u32 %v6997, 16
    %v7015 = vsel %vm6927, %v7011, %v7013
    %7018 = vst [vmem:[#allocation8 + $0x4] sm:$0x1] %v7006
    %7019 = vst [vmem:[#allocation8 + $0xd] sm:$0x1] %v7015
    %v7020 = vld [vmem:[%s6787] sm:$0x2]
    %v7021 = vld [vmem:[%s6787 + $0x2] sm:$0x2]
    %v7025 = vunpack.c.l.s4 1966171168
    %v7026 = vunpack.c.0.s8 %v7025
    %v7027 = vlaneseq
    %v7028 = vshrl.u32 %v7027, 7
    %v7029 = vsub.s32 %v7026, %v7028
    %v7030 = vrot.slane %v7020, %v7029
    %v7031 = vcombine.high %v7030, %v7030
    %v7033 = vunpack.c.l.s4 1966171168
    %v7034 = vunpack.c.0.s8 %v7033
    %v7035 = vlaneseq
    %v7036 = vshrl.u32 %v7035, 7
    %v7037 = vsub.s32 %v7034, %v7036
    %v7038 = vrot.slane %v7021, %v7037
    %v7039 = vcombine.high %v7038, %v7038
    %7042 = vst [vmem:[#allocation8 + $0x5] sm:$0x1] %v7031
    %7043 = vst [vmem:[#allocation8 + $0xe] sm:$0x1] %v7039
    %v7044 = vld [vmem:[%s6822] sm:$0x1]
    %v7045 = vld [vmem:[%s6822 + $0x2] sm:$0x1]
    %7046 = vst [vmem:[#allocation8 + $0x6] sm:$0x1] %v7044
    %7047 = vst [vmem:[#allocation8 + $0xf] sm:$0x1] %v7045
    %v7048 = vld [vmem:[%s6822] sm:$0x3]
    %v7049 = vld [vmem:[%s6822 + $0x2] sm:$0x3]
    %v7053 = vunpack.c.l.s4 1966171168
    %v7054 = vunpack.c.0.s8 %v7053
    %v7055 = vlaneseq
    %v7056 = vshrl.u32 %v7055, 7
    %v7057 = vsub.s32 %v7054, %v7056
    %v7058 = vrot.slane %v7048, %v7057
    %v7059 = vcombine.high %v7058, %v7058
    %v7061 = vunpack.c.l.s4 1966171168
    %v7062 = vunpack.c.0.s8 %v7061
    %v7063 = vlaneseq
    %v7064 = vshrl.u32 %v7063, 7
    %v7065 = vsub.s32 %v7062, %v7064
    %v7066 = vrot.slane %v7049, %v7065
    %v7067 = vcombine.high %v7066, %v7066
    %v7069 = vshrl.u32 %v7058, 16
    %v7071 = vrot.slane %v7069, 7
    %v7072 = vrot.slane %v7071, 1
    %v7074 = vshll.u32 %v7059, 16
    %v7076 = vsel %vm6927, %v7072, %v7074
    %v7078 = vshrl.u32 %v7066, 16
    %v7080 = vrot.slane %v7078, 7
    %v7081 = vrot.slane %v7080, 1
    %v7083 = vshll.u32 %v7067, 16
    %v7085 = vsel %vm6927, %v7081, %v7083
    %7088 = vst [vmem:[#allocation8 + $0x7] sm:$0x1] %v7076
    %7089 = vst [vmem:[#allocation8 + $0x10] sm:$0x1] %v7085
    %v7090 = vld [vmem:[%s6822] sm:$0x2]
    %v7091 = vld [vmem:[%s6822 + $0x2] sm:$0x2]
    %v7095 = vunpack.c.l.s4 1966171168
    %v7096 = vunpack.c.0.s8 %v7095
    %v7097 = vlaneseq
    %v7098 = vshrl.u32 %v7097, 7
    %v7099 = vsub.s32 %v7096, %v7098
    %v7100 = vrot.slane %v7090, %v7099
    %v7101 = vcombine.high %v7100, %v7100
    %v7103 = vunpack.c.l.s4 1966171168
    %v7104 = vunpack.c.0.s8 %v7103
    %v7105 = vlaneseq
    %v7106 = vshrl.u32 %v7105, 7
    %v7107 = vsub.s32 %v7104, %v7106
    %v7108 = vrot.slane %v7091, %v7107
    %v7109 = vcombine.high %v7108, %v7108
    %7112 = vst [vmem:[#allocation8 + $0x8] sm:$0x1] %v7101
    %7113 = vst [vmem:[#allocation8 + $0x11] sm:$0x1] %v7109
    %s7114 = scalar_lea.vmem [#allocation4], 8
    %v7115 = vld [vmem:[%s7114] sm:$0x1]
    %v7116 = vld [vmem:[%s7114 + $0x2] sm:$0x1]
    %s7117 = scalar_lea.vmem [#allocation8], 18
    %7118 = vst [vmem:[%s7117] sm:$0x1] %v7115
    %7119 = vst [vmem:[%s7117 + $0x9] sm:$0x1] %v7116
    %v7120 = vld [vmem:[%s7114] sm:$0x3]
    %v7121 = vld [vmem:[%s7114 + $0x2] sm:$0x3]
    %v7125 = vunpack.c.l.s4 1966171168
    %v7126 = vunpack.c.0.s8 %v7125
    %v7127 = vlaneseq
    %v7128 = vshrl.u32 %v7127, 7
    %v7129 = vsub.s32 %v7126, %v7128
    %v7130 = vrot.slane %v7120, %v7129
    %v7131 = vcombine.high %v7130, %v7130
    %v7133 = vunpack.c.l.s4 1966171168
    %v7134 = vunpack.c.0.s8 %v7133
    %v7135 = vlaneseq
    %v7136 = vshrl.u32 %v7135, 7
    %v7137 = vsub.s32 %v7134, %v7136
    %v7138 = vrot.slane %v7121, %v7137
    %v7139 = vcombine.high %v7138, %v7138
    %v7141 = vshrl.u32 %v7130, 16
    %v7143 = vrot.slane %v7141, 7
    %v7144 = vrot.slane %v7143, 1
    %v7146 = vshll.u32 %v7131, 16
    %v7148 = vsel %vm6927, %v7144, %v7146
    %v7150 = vshrl.u32 %v7138, 16
    %v7152 = vrot.slane %v7150, 7
    %v7153 = vrot.slane %v7152, 1
    %v7155 = vshll.u32 %v7139, 16
    %v7157 = vsel %vm6927, %v7153, %v7155
    %7160 = vst [vmem:[%s7117 + $0x1] sm:$0x1] %v7148
    %7161 = vst [vmem:[%s7117 + $0xa] sm:$0x1] %v7157
    %v7162 = vld [vmem:[%s7114] sm:$0x2]
    %v7163 = vld [vmem:[%s7114 + $0x2] sm:$0x2]
    %v7167 = vunpack.c.l.s4 1966171168
    %v7168 = vunpack.c.0.s8 %v7167
    %v7169 = vlaneseq
    %v7170 = vshrl.u32 %v7169, 7
    %v7171 = vsub.s32 %v7168, %v7170
    %v7172 = vrot.slane %v7162, %v7171
    %v7173 = vcombine.high %v7172, %v7172
    %v7175 = vunpack.c.l.s4 1966171168
    %v7176 = vunpack.c.0.s8 %v7175
    %v7177 = vlaneseq
    %v7178 = vshrl.u32 %v7177, 7
    %v7179 = vsub.s32 %v7176, %v7178
    %v7180 = vrot.slane %v7163, %v7179
    %v7181 = vcombine.high %v7180, %v7180
    %7184 = vst [vmem:[%s7117 + $0x2] sm:$0x1] %v7173
    %7185 = vst [vmem:[%s7117 + $0xb] sm:$0x1] %v7181
    %v7186 = vld [vmem:[%s6854] sm:$0x1]
    %v7187 = vld [vmem:[%s6854 + $0x2] sm:$0x1]
    %7188 = vst [vmem:[%s7117 + $0x3] sm:$0x1] %v7186
    %7189 = vst [vmem:[%s7117 + $0xc] sm:$0x1] %v7187
    %v7190 = vld [vmem:[%s6854] sm:$0x3]
    %v7191 = vld [vmem:[%s6854 + $0x2] sm:$0x3]
    %v7195 = vunpack.c.l.s4 1966171168
    %v7196 = vunpack.c.0.s8 %v7195
    %v7197 = vlaneseq
    %v7198 = vshrl.u32 %v7197, 7
    %v7199 = vsub.s32 %v7196, %v7198
    %v7200 = vrot.slane %v7190, %v7199
    %v7201 = vcombine.high %v7200, %v7200
    %v7203 = vunpack.c.l.s4 1966171168
    %v7204 = vunpack.c.0.s8 %v7203
    %v7205 = vlaneseq
    %v7206 = vshrl.u32 %v7205, 7
    %v7207 = vsub.s32 %v7204, %v7206
    %v7208 = vrot.slane %v7191, %v7207
    %v7209 = vcombine.high %v7208, %v7208
    %v7211 = vshrl.u32 %v7200, 16
    %v7213 = vrot.slane %v7211, 7
    %v7214 = vrot.slane %v7213, 1
    %v7216 = vshll.u32 %v7201, 16
    %v7218 = vsel %vm6927, %v7214, %v7216
    %v7220 = vshrl.u32 %v7208, 16
    %v7222 = vrot.slane %v7220, 7
    %v7223 = vrot.slane %v7222, 1
    %v7225 = vshll.u32 %v7209, 16
    %v7227 = vsel %vm6927, %v7223, %v7225
    %7230 = vst [vmem:[%s7117 + $0x4] sm:$0x1] %v7218
    %7231 = vst [vmem:[%s7117 + $0xd] sm:$0x1] %v7227
    %v7232 = vld [vmem:[%s6854] sm:$0x2]
    %v7233 = vld [vmem:[%s6854 + $0x2] sm:$0x2]
    %v7237 = vunpack.c.l.s4 1966171168
    %v7238 = vunpack.c.0.s8 %v7237
    %v7239 = vlaneseq
    %v7240 = vshrl.u32 %v7239, 7
    %v7241 = vsub.s32 %v7238, %v7240
    %v7242 = vrot.slane %v7232, %v7241
    %v7243 = vcombine.high %v7242, %v7242
    %v7245 = vunpack.c.l.s4 1966171168
    %v7246 = vunpack.c.0.s8 %v7245
    %v7247 = vlaneseq
    %v7248 = vshrl.u32 %v7247, 7
    %v7249 = vsub.s32 %v7246, %v7248
    %v7250 = vrot.slane %v7233, %v7249
    %v7251 = vcombine.high %v7250, %v7250
    %7254 = vst [vmem:[%s7117 + $0x5] sm:$0x1] %v7243
    %7255 = vst [vmem:[%s7117 + $0xe] sm:$0x1] %v7251
    %v7256 = vld [vmem:[%s6886] sm:$0x1]
    %v7257 = vld [vmem:[%s6886 + $0x2] sm:$0x1]
    %7258 = vst [vmem:[%s7117 + $0x6] sm:$0x1] %v7256
    %7259 = vst [vmem:[%s7117 + $0xf] sm:$0x1] %v7257
    %v7260 = vld [vmem:[%s6886] sm:$0x3]
    %v7261 = vld [vmem:[%s6886 + $0x2] sm:$0x3]
    %v7265 = vunpack.c.l.s4 1966171168
    %v7266 = vunpack.c.0.s8 %v7265
    %v7267 = vlaneseq
    %v7268 = vshrl.u32 %v7267, 7
    %v7269 = vsub.s32 %v7266, %v7268
    %v7270 = vrot.slane %v7260, %v7269
    %v7271 = vcombine.high %v7270, %v7270
    %v7273 = vunpack.c.l.s4 1966171168
    %v7274 = vunpack.c.0.s8 %v7273
    %v7275 = vlaneseq
    %v7276 = vshrl.u32 %v7275, 7
    %v7277 = vsub.s32 %v7274, %v7276
    %v7278 = vrot.slane %v7261, %v7277
    %v7279 = vcombine.high %v7278, %v7278
    %v7281 = vshrl.u32 %v7270, 16
    %v7283 = vrot.slane %v7281, 7
    %v7284 = vrot.slane %v7283, 1
    %v7286 = vshll.u32 %v7271, 16
    %v7288 = vsel %vm6927, %v7284, %v7286
    %v7290 = vshrl.u32 %v7278, 16
    %v7292 = vrot.slane %v7290, 7
    %v7293 = vrot.slane %v7292, 1
    %v7295 = vshll.u32 %v7279, 16
    %v7297 = vsel %vm6927, %v7293, %v7295
    %7300 = vst [vmem:[%s7117 + $0x7] sm:$0x1] %v7288
    %7301 = vst [vmem:[%s7117 + $0x10] sm:$0x1] %v7297
    %v7302 = vld [vmem:[%s6886] sm:$0x2]
    %v7303 = vld [vmem:[%s6886 + $0x2] sm:$0x2]
    %v7307 = vunpack.c.l.s4 1966171168
    %v7308 = vunpack.c.0.s8 %v7307
    %v7309 = vlaneseq
    %v7310 = vshrl.u32 %v7309, 7
    %v7311 = vsub.s32 %v7308, %v7310
    %v7312 = vrot.slane %v7302, %v7311
    %v7313 = vcombine.high %v7312, %v7312
    %v7315 = vunpack.c.l.s4 1966171168
    %v7316 = vunpack.c.0.s8 %v7315
    %v7317 = vlaneseq
    %v7318 = vshrl.u32 %v7317, 7
    %v7319 = vsub.s32 %v7316, %v7318
    %v7320 = vrot.slane %v7303, %v7319
    %v7321 = vcombine.high %v7320, %v7320
    %7324 = vst [vmem:[%s7117 + $0x8] sm:$0x1] %v7313
    %7325 = vst [vmem:[%s7117 + $0x11] sm:$0x1] %v7321
    %v7326 = vld [vmem:[#allocation8] sm:$0xff]
    %v7327 = vld [vmem:[#allocation8 + $0x8] sm:$0x1]
    %v7328 = vld [vmem:[#allocation8 + $0x9] sm:$0xff]
    %v7329 = vld [vmem:[#allocation8 + $0x11] sm:$0x1]
    %v7330 = vld [vmem:[#allocation8 + $0x12] sm:$0xff]
    %v7331 = vld [vmem:[#allocation8 + $0x1a] sm:$0x1]
    %v7332 = vld [vmem:[#allocation8 + $0x1b] sm:$0xff]
    %v7333 = vld [vmem:[#allocation8 + $0x23] sm:$0x1]
    %v7334 = vld [vmem:[%s7] sm:$0xff]
    %v7335 = vld [vmem:[%s7 + $0x8] sm:$0xff]
    %v7336 = vld [vmem:[%s7 + $0x10] sm:$0xff]
    %v7337 = vld [vmem:[%s7 + $0x18] sm:$0xff]
    %v7338 = vld [vmem:[%s7 + $0x20] sm:$0xff]
    %v7339 = vld [vmem:[%s7 + $0x28] sm:$0xff]
    %v7340 = vld [vmem:[%s7 + $0x30] sm:$0xff]
    %v7341 = vld [vmem:[%s7 + $0x38] sm:$0xff]
    %v7342 = vld [vmem:[%s7 + $0x40] sm:$0xff]
    %v7343 = vld [vmem:[%s7 + $0x48] sm:$0xff]
    %v7344 = vld [vmem:[%s7 + $0x50] sm:$0xff]
    %v7345 = vld [vmem:[%s7 + $0x58] sm:$0xff]
    %v7346 = vld [vmem:[%s7 + $0x60] sm:$0xff]
    %v7347 = vld [vmem:[%s7 + $0x68] sm:$0xff]
    %v7348 = vld [vmem:[%s7 + $0x70] sm:$0xff]
    %v7349 = vld [vmem:[%s7 + $0x78] sm:$0xff]
    %v7350 = vld [vmem:[%s7 + $0x80] sm:$0xff]
    %v7351 = vld [vmem:[%s7 + $0x88] sm:$0xff]
    %v7352 = vld [vmem:[%s7 + $0x90] sm:$0xff]
    %v7353 = vld [vmem:[%s7 + $0x98] sm:$0xff]
    %v7354 = vld [vmem:[%s7 + $0xa0] sm:$0xff]
    %v7355 = vld [vmem:[%s7 + $0xa8] sm:$0xff]
    %v7356 = vld [vmem:[%s7 + $0xb0] sm:$0xff]
    %v7357 = vld [vmem:[%s7 + $0xb8] sm:$0xff]
    %v7358 = vld [vmem:[%s7 + $0xc0] sm:$0xff]
    %v7359 = vld [vmem:[%s7 + $0xc8] sm:$0xff]
    %v7360 = vld [vmem:[%s7 + $0xd0] sm:$0xff]
    %v7361 = vld [vmem:[%s7 + $0xd8] sm:$0xff]
    %v7362 = vld [vmem:[%s7 + $0xe0] sm:$0xff]
    %v7363 = vld [vmem:[%s7 + $0xe8] sm:$0xff]
    %v7364 = vld [vmem:[%s7 + $0xf0] sm:$0xff]
    %v7365 = vld [vmem:[%s7 + $0xf8] sm:$0xff]
    %v7366 = vld [vmem:[%s7 + $0x100] sm:$0xff]
    %v7367 = vld [vmem:[%s7 + $0x108] sm:$0xff]
    %v7368 = vld [vmem:[%s7 + $0x110] sm:$0xff]
    %v7369 = vld [vmem:[%s7 + $0x118] sm:$0xff]
    %v7370 = vld [vmem:[%s7 + $0x120] sm:$0xff]
    %v7371 = vld [vmem:[%s7 + $0x128] sm:$0xff]
    %v7372 = vld [vmem:[%s7 + $0x130] sm:$0xff]
    %v7373 = vld [vmem:[%s7 + $0x138] sm:$0xff]
    %v7374 = vld [vmem:[%s7 + $0x140] sm:$0xff]
    %v7375 = vld [vmem:[%s7 + $0x148] sm:$0xff]
    %v7376 = vld [vmem:[%s7 + $0x150] sm:$0xff]
    %v7377 = vld [vmem:[%s7 + $0x158] sm:$0xff]
    %v7378 = vld [vmem:[%s7 + $0x160] sm:$0xff]
    %v7379 = vld [vmem:[%s7 + $0x168] sm:$0xff]
    %v7380 = vld [vmem:[%s7 + $0x170] sm:$0xff]
    %v7381 = vld [vmem:[%s7 + $0x178] sm:$0xff]
    %v7382 = vld [vmem:[%s7 + $0x180] sm:$0xff]
    %v7383 = vld [vmem:[%s7 + $0x188] sm:$0xff]
    %v7384 = vld [vmem:[%s7 + $0x190] sm:$0xff]
    %v7385 = vld [vmem:[%s7 + $0x198] sm:$0xff]
    %v7386 = vld [vmem:[%s7 + $0x1a0] sm:$0xff]
    %v7387 = vld [vmem:[%s7 + $0x1a8] sm:$0xff]
    %v7388 = vld [vmem:[%s7 + $0x1b0] sm:$0xff]
    %v7389 = vld [vmem:[%s7 + $0x1b8] sm:$0xff]
    %v7390 = vld [vmem:[%s7 + $0x1c0] sm:$0xff]
    %v7391 = vld [vmem:[%s7 + $0x1c8] sm:$0xff]
    %v7392 = vld [vmem:[%s7 + $0x1d0] sm:$0xff]
    %v7393 = vld [vmem:[%s7 + $0x1d8] sm:$0xff]
    %v7394 = vld [vmem:[%s7 + $0x1e0] sm:$0xff]
    %v7395 = vld [vmem:[%s7 + $0x1e8] sm:$0xff]
    %v7396 = vld [vmem:[%s7 + $0x1f0] sm:$0xff]
    %v7397 = vld [vmem:[%s7 + $0x1f8] sm:$0xff]
    %v7398 = vld [vmem:[%s7 + $0x200] sm:$0xff]
    %v7399 = vld [vmem:[%s7 + $0x208] sm:$0xff]
    %v7400 = vld [vmem:[%s7 + $0x210] sm:$0xff]
    %v7401 = vld [vmem:[%s7 + $0x218] sm:$0xff]
    %v7402 = vld [vmem:[%s7 + $0x220] sm:$0xff]
    %v7403 = vld [vmem:[%s7 + $0x228] sm:$0xff]
    %v7404 = vld [vmem:[%s7 + $0x230] sm:$0xff]
    %v7405 = vld [vmem:[%s7 + $0x238] sm:$0xff]
    %v7406 = vld [vmem:[%s7 + $0x240] sm:$0xff]
    %v7407 = vld [vmem:[%s7 + $0x248] sm:$0xff]
    %v7408 = vld [vmem:[%s7 + $0x250] sm:$0xff]
    %v7409 = vld [vmem:[%s7 + $0x258] sm:$0xff]
    %v7410 = vld [vmem:[%s7 + $0x260] sm:$0xff]
    %v7411 = vld [vmem:[%s7 + $0x268] sm:$0xff]
    %v7412 = vld [vmem:[%s7 + $0x270] sm:$0xff]
    %v7413 = vld [vmem:[%s7 + $0x278] sm:$0xff]
    %v7414 = vld [vmem:[%s7 + $0x280] sm:$0xff]
    %v7415 = vld [vmem:[%s7 + $0x288] sm:$0xff]
    %v7416 = vld [vmem:[%s7 + $0x290] sm:$0xff]
    %v7417 = vld [vmem:[%s7 + $0x298] sm:$0xff]
    %v7418 = vld [vmem:[%s7 + $0x2a0] sm:$0xff]
    %v7419 = vld [vmem:[%s7 + $0x2a8] sm:$0xff]
    %v7420 = vld [vmem:[%s7 + $0x2b0] sm:$0xff]
    %v7421 = vld [vmem:[%s7 + $0x2b8] sm:$0xff]
    %v7422 = vld [vmem:[%s7 + $0x2c0] sm:$0xff]
    %v7423 = vld [vmem:[%s7 + $0x2c8] sm:$0xff]
    %v7424 = vld [vmem:[%s7 + $0x2d0] sm:$0xff]
    %v7425 = vld [vmem:[%s7 + $0x2d8] sm:$0xff]
    %v7426 = vld [vmem:[%s7 + $0x2e0] sm:$0xff]
    %v7427 = vld [vmem:[%s7 + $0x2e8] sm:$0xff]
    %v7428 = vld [vmem:[%s7 + $0x2f0] sm:$0xff]
    %v7429 = vld [vmem:[%s7 + $0x2f8] sm:$0xff]
    %v7430 = vld [vmem:[%s7 + $0x300] sm:$0xff]
    %v7431 = vld [vmem:[%s7 + $0x308] sm:$0xff]
    %v7432 = vld [vmem:[%s7 + $0x310] sm:$0xff]
    %v7433 = vld [vmem:[%s7 + $0x318] sm:$0xff]
    %v7434 = vld [vmem:[%s7 + $0x320] sm:$0xff]
    %v7435 = vld [vmem:[%s7 + $0x328] sm:$0xff]
    %v7436 = vld [vmem:[%s7 + $0x330] sm:$0xff]
    %v7437 = vld [vmem:[%s7 + $0x338] sm:$0xff]
    %v7438 = vld [vmem:[%s7 + $0x340] sm:$0xff]
    %v7439 = vld [vmem:[%s7 + $0x348] sm:$0xff]
    %v7440 = vld [vmem:[%s7 + $0x350] sm:$0xff]
    %v7441 = vld [vmem:[%s7 + $0x358] sm:$0xff]
    %v7442 = vld [vmem:[%s7 + $0x360] sm:$0xff]
    %v7443 = vld [vmem:[%s7 + $0x368] sm:$0xff]
    %v7444 = vld [vmem:[%s7 + $0x370] sm:$0xff]
    %v7445 = vld [vmem:[%s7 + $0x378] sm:$0xff]
    %v7446 = vld [vmem:[%s7 + $0x380] sm:$0xff]
    %v7447 = vld [vmem:[%s7 + $0x388] sm:$0xff]
    %v7448 = vld [vmem:[%s7 + $0x390] sm:$0xff]
    %v7449 = vld [vmem:[%s7 + $0x398] sm:$0xff]
    %v7450 = vld [vmem:[%s7 + $0x3a0] sm:$0xff]
    %v7451 = vld [vmem:[%s7 + $0x3a8] sm:$0xff]
    %v7452 = vld [vmem:[%s7 + $0x3b0] sm:$0xff]
    %v7453 = vld [vmem:[%s7 + $0x3b8] sm:$0xff]
    %v7454 = vld [vmem:[%s7 + $0x3c0] sm:$0xff]
    %v7455 = vld [vmem:[%s7 + $0x3c8] sm:$0xff]
    %v7456 = vld [vmem:[%s7 + $0x3d0] sm:$0xff]
    %v7457 = vld [vmem:[%s7 + $0x3d8] sm:$0xff]
    %v7458 = vld [vmem:[%s7 + $0x3e0] sm:$0xff]
    %v7459 = vld [vmem:[%s7 + $0x3e8] sm:$0xff]
    %v7460 = vld [vmem:[%s7 + $0x3f0] sm:$0xff]
    %v7461 = vld [vmem:[%s7 + $0x3f8] sm:$0xff]
    %v7462 = vld [vmem:[%s7 + $0x400] sm:$0xff]
    %v7463 = vld [vmem:[%s7 + $0x408] sm:$0xff]
    %v7464 = vld [vmem:[%s7 + $0x410] sm:$0xff]
    %v7465 = vld [vmem:[%s7 + $0x418] sm:$0xff]
    %v7466 = vld [vmem:[%s7 + $0x420] sm:$0xff]
    %v7467 = vld [vmem:[%s7 + $0x428] sm:$0xff]
    %v7468 = vld [vmem:[%s7 + $0x430] sm:$0xff]
    %v7469 = vld [vmem:[%s7 + $0x438] sm:$0xff]
    %v7470 = vld [vmem:[%s7 + $0x440] sm:$0xff]
    %v7471 = vld [vmem:[%s7 + $0x448] sm:$0xff]
    %v7472 = vld [vmem:[%s7 + $0x450] sm:$0xff]
    %v7473 = vld [vmem:[%s7 + $0x458] sm:$0xff]
    %v7474 = vld [vmem:[%s7 + $0x460] sm:$0xff]
    %v7475 = vld [vmem:[%s7 + $0x468] sm:$0xff]
    %v7476 = vld [vmem:[%s7 + $0x470] sm:$0xff]
    %v7477 = vld [vmem:[%s7 + $0x478] sm:$0xff]
    %v7478 = vld [vmem:[#allocation16] sm:$0x3]
    %v7480 = vlaneseq
    %v7481 = vshrl.u32 %v7480, 7
    %v7482 = vsub.s32 0, %v7481
    %v7483 = vrot.slane %v7478, %v7482
    %v7484 = vlaneseq
    %v7485 = vshrl.u32 %v7484, 7
    %v7486 = vsub.s32 1, %v7485
    %v7487 = vrot.slane %v7478, %v7486
    %v7498 = vcombine.low %v7326, %v7328
    %v7499 = vcombine.high %v7326, %v7328
    %v7500 = vcombine.low %v7330, %v7332
    %v7501 = vcombine.high %v7330, %v7332
    %v7503 = vunpack.c.l.s4 1966171168
    %v7504 = vunpack.c.0.s8 %v7503
    %v7505 = vlaneseq
    %v7506 = vshrl.u32 %v7505, 7
    %v7507 = vsub.s32 %v7504, %v7506
    %v7508 = vrot.slane %v7498, %v7507
    %v7510 = vunpack.c.l.s4 1966171168
    %v7511 = vunpack.c.0.s8 %v7510
    %v7512 = vlaneseq
    %v7513 = vshrl.u32 %v7512, 7
    %v7514 = vsub.s32 %v7511, %v7513
    %v7515 = vrot.slane %v7499, %v7514
    %v7517 = vunpack.c.l.s4 1966171168
    %v7518 = vunpack.c.0.s8 %v7517
    %v7519 = vlaneseq
    %v7520 = vshrl.u32 %v7519, 7
    %v7521 = vsub.s32 %v7518, %v7520
    %v7522 = vrot.slane %v7500, %v7521
    %v7524 = vunpack.c.l.s4 1966171168
    %v7525 = vunpack.c.0.s8 %v7524
    %v7526 = vlaneseq
    %v7527 = vshrl.u32 %v7526, 7
    %v7528 = vsub.s32 %v7525, %v7527
    %v7529 = vrot.slane %v7501, %v7528
    %v7530 = vcombine.low %v7508, %v7522
    %v7531 = vcombine.high %v7508, %v7522
    %v7532 = vcombine.low %v7515, %v7529
    %v7533 = vcombine.high %v7515, %v7529
    %v7535 = vunpack.c.l.s4 1966171168
    %v7536 = vunpack.c.0.s8 %v7535
    %v7537 = vlaneseq
    %v7538 = vshrl.u32 %v7537, 7
    %v7539 = vsub.s32 %v7536, %v7538
    %v7540 = vrot.slane %v7530, %v7539
    %v7542 = vunpack.c.l.s4 1966171168
    %v7543 = vunpack.c.0.s8 %v7542
    %v7544 = vlaneseq
    %v7545 = vshrl.u32 %v7544, 7
    %v7546 = vsub.s32 %v7543, %v7545
    %v7547 = vrot.slane %v7532, %v7546
    %v7549 = vunpack.c.l.s4 1966171168
    %v7550 = vunpack.c.0.s8 %v7549
    %v7551 = vlaneseq
    %v7552 = vshrl.u32 %v7551, 7
    %v7553 = vsub.s32 %v7550, %v7552
    %v7554 = vrot.slane %v7531, %v7553
    %v7556 = vunpack.c.l.s4 1966171168
    %v7557 = vunpack.c.0.s8 %v7556
    %v7558 = vlaneseq
    %v7559 = vshrl.u32 %v7558, 7
    %v7560 = vsub.s32 %v7557, %v7559
    %v7561 = vrot.slane %v7533, %v7560
    %v7562 = vcombine.high %v7540, %v7540
    %v7563 = vcombine.high %v7547, %v7547
    %v7564 = vcombine.high %v7554, %v7554
    %v7565 = vcombine.high %v7561, %v7561
    %v7566 = vcombine.low %v7327, %v7329
    %v7567 = vcombine.low %v7331, %v7333
    %v7569 = vunpack.c.l.s4 1966171168
    %v7570 = vunpack.c.0.s8 %v7569
    %v7571 = vlaneseq
    %v7572 = vshrl.u32 %v7571, 7
    %v7573 = vsub.s32 %v7570, %v7572
    %v7574 = vrot.slane %v7566, %v7573
    %v7576 = vunpack.c.l.s4 1966171168
    %v7577 = vunpack.c.0.s8 %v7576
    %v7578 = vlaneseq
    %v7579 = vshrl.u32 %v7578, 7
    %v7580 = vsub.s32 %v7577, %v7579
    %v7581 = vrot.slane %v7567, %v7580
    %v7582 = vcombine.low %v7574, %v7581
    %v7584 = vunpack.c.l.s4 1966171168
    %v7585 = vunpack.c.0.s8 %v7584
    %v7586 = vlaneseq
    %v7587 = vshrl.u32 %v7586, 7
    %v7588 = vsub.s32 %v7585, %v7587
    %v7589 = vrot.slane %v7582, %v7588
    %v7743 = vunpack.c.l.b16 %v7334
    %v7744 = vunpack.c.h.b16 %v7334
    %v7745 = vunpack.c.l.b16 %v7335
    %v7746 = vunpack.c.h.b16 %v7335
    %v7747 = vunpack.c.l.b16 %v7336
    %v7748 = vunpack.c.h.b16 %v7336
    %v7749 = vunpack.c.l.b16 %v7337
    %v7750 = vunpack.c.h.b16 %v7337
    %v7751 = vunpack.c.l.b16 %v7338
    %v7752 = vunpack.c.h.b16 %v7338
    %v7753 = vunpack.c.l.b16 %v7339
    %v7754 = vunpack.c.h.b16 %v7339
    %v7755 = vunpack.c.l.b16 %v7340
    %v7756 = vunpack.c.h.b16 %v7340
    %v7757 = vunpack.c.l.b16 %v7341
    %v7758 = vunpack.c.h.b16 %v7341
    %v7759 = vunpack.c.l.b16 %v7342
    %v7760 = vunpack.c.h.b16 %v7342
    %v7761 = vunpack.c.l.b16 %v7343
    %v7762 = vunpack.c.h.b16 %v7343
    %v7763 = vunpack.c.l.b16 %v7344
    %v7764 = vunpack.c.h.b16 %v7344
    %v7765 = vunpack.c.l.b16 %v7345
    %v7766 = vunpack.c.h.b16 %v7345
    %v7767 = vunpack.c.l.b16 %v7346
    %v7768 = vunpack.c.h.b16 %v7346
    %v7769 = vunpack.c.l.b16 %v7347
    %v7770 = vunpack.c.h.b16 %v7347
    %v7771 = vunpack.c.l.b16 %v7348
    %v7772 = vunpack.c.h.b16 %v7348
    %v7773 = vunpack.c.l.b16 %v7349
    %v7774 = vunpack.c.h.b16 %v7349
    %v7775 = vunpack.c.l.b16 %v7350
    %v7776 = vunpack.c.h.b16 %v7350
    %v7777 = vunpack.c.l.b16 %v7351
    %v7778 = vunpack.c.h.b16 %v7351
    %v7779 = vunpack.c.l.b16 %v7352
    %v7780 = vunpack.c.h.b16 %v7352
    %v7781 = vunpack.c.l.b16 %v7353
    %v7782 = vunpack.c.h.b16 %v7353
    %v7783 = vunpack.c.l.b16 %v7354
    %v7784 = vunpack.c.h.b16 %v7354
    %v7785 = vunpack.c.l.b16 %v7355
    %v7786 = vunpack.c.h.b16 %v7355
    %v7787 = vunpack.c.l.b16 %v7356
    %v7788 = vunpack.c.h.b16 %v7356
    %v7789 = vunpack.c.l.b16 %v7357
    %v7790 = vunpack.c.h.b16 %v7357
    %v7791 = vunpack.c.l.b16 %v7358
    %v7792 = vunpack.c.h.b16 %v7358
    %v7793 = vunpack.c.l.b16 %v7359
    %v7794 = vunpack.c.h.b16 %v7359
    %v7795 = vunpack.c.l.b16 %v7360
    %v7796 = vunpack.c.h.b16 %v7360
    %v7797 = vunpack.c.l.b16 %v7361
    %v7798 = vunpack.c.h.b16 %v7361
    %v7799 = vunpack.c.l.b16 %v7362
    %v7800 = vunpack.c.h.b16 %v7362
    %v7801 = vunpack.c.l.b16 %v7363
    %v7802 = vunpack.c.h.b16 %v7363
    %v7803 = vunpack.c.l.b16 %v7364
    %v7804 = vunpack.c.h.b16 %v7364
    %v7805 = vunpack.c.l.b16 %v7365
    %v7806 = vunpack.c.h.b16 %v7365
    %v7807 = vunpack.c.l.b16 %v7366
    %v7808 = vunpack.c.h.b16 %v7366
    %v7809 = vunpack.c.l.b16 %v7367
    %v7810 = vunpack.c.h.b16 %v7367
    %v7811 = vunpack.c.l.b16 %v7368
    %v7812 = vunpack.c.h.b16 %v7368
    %v7813 = vunpack.c.l.b16 %v7369
    %v7814 = vunpack.c.h.b16 %v7369
    %v7815 = vunpack.c.l.b16 %v7370
    %v7816 = vunpack.c.h.b16 %v7370
    %v7817 = vunpack.c.l.b16 %v7371
    %v7818 = vunpack.c.h.b16 %v7371
    %v7819 = vunpack.c.l.b16 %v7372
    %v7820 = vunpack.c.h.b16 %v7372
    %v7821 = vunpack.c.l.b16 %v7373
    %v7822 = vunpack.c.h.b16 %v7373
    %v7823 = vunpack.c.l.b16 %v7374
    %v7824 = vunpack.c.h.b16 %v7374
    %v7825 = vunpack.c.l.b16 %v7375
    %v7826 = vunpack.c.h.b16 %v7375
    %v7827 = vunpack.c.l.b16 %v7376
    %v7828 = vunpack.c.h.b16 %v7376
    %v7829 = vunpack.c.l.b16 %v7377
    %v7830 = vunpack.c.h.b16 %v7377
    %v7831 = vunpack.c.l.b16 %v7378
    %v7832 = vunpack.c.h.b16 %v7378
    %v7833 = vunpack.c.l.b16 %v7379
    %v7834 = vunpack.c.h.b16 %v7379
    %v7835 = vunpack.c.l.b16 %v7380
    %v7836 = vunpack.c.h.b16 %v7380
    %v7837 = vunpack.c.l.b16 %v7381
    %v7838 = vunpack.c.h.b16 %v7381
    %v7839 = vunpack.c.l.b16 %v7382
    %v7840 = vunpack.c.h.b16 %v7382
    %v7841 = vunpack.c.l.b16 %v7383
    %v7842 = vunpack.c.h.b16 %v7383
    %v7843 = vunpack.c.l.b16 %v7384
    %v7844 = vunpack.c.h.b16 %v7384
    %v7845 = vunpack.c.l.b16 %v7385
    %v7846 = vunpack.c.h.b16 %v7385
    %v7847 = vunpack.c.l.b16 %v7386
    %v7848 = vunpack.c.h.b16 %v7386
    %v7849 = vunpack.c.l.b16 %v7387
    %v7850 = vunpack.c.h.b16 %v7387
    %v7851 = vunpack.c.l.b16 %v7388
    %v7852 = vunpack.c.h.b16 %v7388
    %v7853 = vunpack.c.l.b16 %v7389
    %v7854 = vunpack.c.h.b16 %v7389
    %v7855 = vunpack.c.l.b16 %v7390
    %v7856 = vunpack.c.h.b16 %v7390
    %v7857 = vunpack.c.l.b16 %v7391
    %v7858 = vunpack.c.h.b16 %v7391
    %v7859 = vunpack.c.l.b16 %v7392
    %v7860 = vunpack.c.h.b16 %v7392
    %v7861 = vunpack.c.l.b16 %v7393
    %v7862 = vunpack.c.h.b16 %v7393
    %v7863 = vunpack.c.l.b16 %v7394
    %v7864 = vunpack.c.h.b16 %v7394
    %v7865 = vunpack.c.l.b16 %v7395
    %v7866 = vunpack.c.h.b16 %v7395
    %v7867 = vunpack.c.l.b16 %v7396
    %v7868 = vunpack.c.h.b16 %v7396
    %v7869 = vunpack.c.l.b16 %v7397
    %v7870 = vunpack.c.h.b16 %v7397
    %v7871 = vunpack.c.l.b16 %v7398
    %v7872 = vunpack.c.h.b16 %v7398
    %v7873 = vunpack.c.l.b16 %v7399
    %v7874 = vunpack.c.h.b16 %v7399
    %v7875 = vunpack.c.l.b16 %v7400
    %v7876 = vunpack.c.h.b16 %v7400
    %v7877 = vunpack.c.l.b16 %v7401
    %v7878 = vunpack.c.h.b16 %v7401
    %v7879 = vunpack.c.l.b16 %v7402
    %v7880 = vunpack.c.h.b16 %v7402
    %v7881 = vunpack.c.l.b16 %v7403
    %v7882 = vunpack.c.h.b16 %v7403
    %v7883 = vunpack.c.l.b16 %v7404
    %v7884 = vunpack.c.h.b16 %v7404
    %v7885 = vunpack.c.l.b16 %v7405
    %v7886 = vunpack.c.h.b16 %v7405
    %v7887 = vunpack.c.l.b16 %v7406
    %v7888 = vunpack.c.h.b16 %v7406
    %v7889 = vunpack.c.l.b16 %v7407
    %v7890 = vunpack.c.h.b16 %v7407
    %v7891 = vunpack.c.l.b16 %v7408
    %v7892 = vunpack.c.h.b16 %v7408
    %v7893 = vunpack.c.l.b16 %v7409
    %v7894 = vunpack.c.h.b16 %v7409
    %v7895 = vunpack.c.l.b16 %v7410
    %v7896 = vunpack.c.h.b16 %v7410
    %v7897 = vunpack.c.l.b16 %v7411
    %v7898 = vunpack.c.h.b16 %v7411
    %v7899 = vunpack.c.l.b16 %v7412
    %v7900 = vunpack.c.h.b16 %v7412
    %v7901 = vunpack.c.l.b16 %v7413
    %v7902 = vunpack.c.h.b16 %v7413
    %v7903 = vunpack.c.l.b16 %v7414
    %v7904 = vunpack.c.h.b16 %v7414
    %v7905 = vunpack.c.l.b16 %v7415
    %v7906 = vunpack.c.h.b16 %v7415
    %v7907 = vunpack.c.l.b16 %v7416
    %v7908 = vunpack.c.h.b16 %v7416
    %v7909 = vunpack.c.l.b16 %v7417
    %v7910 = vunpack.c.h.b16 %v7417
    %v7911 = vunpack.c.l.b16 %v7418
    %v7912 = vunpack.c.h.b16 %v7418
    %v7913 = vunpack.c.l.b16 %v7419
    %v7914 = vunpack.c.h.b16 %v7419
    %v7915 = vunpack.c.l.b16 %v7420
    %v7916 = vunpack.c.h.b16 %v7420
    %v7917 = vunpack.c.l.b16 %v7421
    %v7918 = vunpack.c.h.b16 %v7421
    %v7919 = vunpack.c.l.b16 %v7422
    %v7920 = vunpack.c.h.b16 %v7422
    %v7921 = vunpack.c.l.b16 %v7423
    %v7922 = vunpack.c.h.b16 %v7423
    %v7923 = vunpack.c.l.b16 %v7424
    %v7924 = vunpack.c.h.b16 %v7424
    %v7925 = vunpack.c.l.b16 %v7425
    %v7926 = vunpack.c.h.b16 %v7425
    %v7927 = vunpack.c.l.b16 %v7426
    %v7928 = vunpack.c.h.b16 %v7426
    %v7929 = vunpack.c.l.b16 %v7427
    %v7930 = vunpack.c.h.b16 %v7427
    %v7931 = vunpack.c.l.b16 %v7428
    %v7932 = vunpack.c.h.b16 %v7428
    %v7933 = vunpack.c.l.b16 %v7429
    %v7934 = vunpack.c.h.b16 %v7429
    %v7935 = vunpack.c.l.b16 %v7430
    %v7936 = vunpack.c.h.b16 %v7430
    %v7937 = vunpack.c.l.b16 %v7431
    %v7938 = vunpack.c.h.b16 %v7431
    %v7939 = vunpack.c.l.b16 %v7432
    %v7940 = vunpack.c.h.b16 %v7432
    %v7941 = vunpack.c.l.b16 %v7433
    %v7942 = vunpack.c.h.b16 %v7433
    %v7943 = vunpack.c.l.b16 %v7434
    %v7944 = vunpack.c.h.b16 %v7434
    %v7945 = vunpack.c.l.b16 %v7435
    %v7946 = vunpack.c.h.b16 %v7435
    %v7947 = vunpack.c.l.b16 %v7436
    %v7948 = vunpack.c.h.b16 %v7436
    %v7949 = vunpack.c.l.b16 %v7437
    %v7950 = vunpack.c.h.b16 %v7437
    %v7951 = vunpack.c.l.b16 %v7438
    %v7952 = vunpack.c.h.b16 %v7438
    %v7953 = vunpack.c.l.b16 %v7439
    %v7954 = vunpack.c.h.b16 %v7439
    %v7955 = vunpack.c.l.b16 %v7440
    %v7956 = vunpack.c.h.b16 %v7440
    %v7957 = vunpack.c.l.b16 %v7441
    %v7958 = vunpack.c.h.b16 %v7441
    %v7959 = vunpack.c.l.b16 %v7442
    %v7960 = vunpack.c.h.b16 %v7442
    %v7961 = vunpack.c.l.b16 %v7443
    %v7962 = vunpack.c.h.b16 %v7443
    %v7963 = vunpack.c.l.b16 %v7444
    %v7964 = vunpack.c.h.b16 %v7444
    %v7965 = vunpack.c.l.b16 %v7445
    %v7966 = vunpack.c.h.b16 %v7445
    %v7967 = vunpack.c.l.b16 %v7446
    %v7968 = vunpack.c.h.b16 %v7446
    %v7969 = vunpack.c.l.b16 %v7447
    %v7970 = vunpack.c.h.b16 %v7447
    %v7971 = vunpack.c.l.b16 %v7448
    %v7972 = vunpack.c.h.b16 %v7448
    %v7973 = vunpack.c.l.b16 %v7449
    %v7974 = vunpack.c.h.b16 %v7449
    %v7975 = vunpack.c.l.b16 %v7450
    %v7976 = vunpack.c.h.b16 %v7450
    %v7977 = vunpack.c.l.b16 %v7451
    %v7978 = vunpack.c.h.b16 %v7451
    %v7979 = vunpack.c.l.b16 %v7452
    %v7980 = vunpack.c.h.b16 %v7452
    %v7981 = vunpack.c.l.b16 %v7453
    %v7982 = vunpack.c.h.b16 %v7453
    %v7983 = vunpack.c.l.b16 %v7454
    %v7984 = vunpack.c.h.b16 %v7454
    %v7985 = vunpack.c.l.b16 %v7455
    %v7986 = vunpack.c.h.b16 %v7455
    %v7987 = vunpack.c.l.b16 %v7456
    %v7988 = vunpack.c.h.b16 %v7456
    %v7989 = vunpack.c.l.b16 %v7457
    %v7990 = vunpack.c.h.b16 %v7457
    %v7991 = vunpack.c.l.b16 %v7458
    %v7992 = vunpack.c.h.b16 %v7458
    %v7993 = vunpack.c.l.b16 %v7459
    %v7994 = vunpack.c.h.b16 %v7459
    %v7995 = vunpack.c.l.b16 %v7460
    %v7996 = vunpack.c.h.b16 %v7460
    %v7997 = vunpack.c.l.b16 %v7461
    %v7998 = vunpack.c.h.b16 %v7461
    %v7999 = vunpack.c.l.b16 %v7462
    %v8000 = vunpack.c.h.b16 %v7462
    %v8001 = vunpack.c.l.b16 %v7463
    %v8002 = vunpack.c.h.b16 %v7463
    %v8003 = vunpack.c.l.b16 %v7464
    %v8004 = vunpack.c.h.b16 %v7464
    %v8005 = vunpack.c.l.b16 %v7465
    %v8006 = vunpack.c.h.b16 %v7465
    %v8007 = vunpack.c.l.b16 %v7466
    %v8008 = vunpack.c.h.b16 %v7466
    %v8009 = vunpack.c.l.b16 %v7467
    %v8010 = vunpack.c.h.b16 %v7467
    %v8011 = vunpack.c.l.b16 %v7468
    %v8012 = vunpack.c.h.b16 %v7468
    %v8013 = vunpack.c.l.b16 %v7469
    %v8014 = vunpack.c.h.b16 %v7469
    %v8015 = vunpack.c.l.b16 %v7470
    %v8016 = vunpack.c.h.b16 %v7470
    %v8017 = vunpack.c.l.b16 %v7471
    %v8018 = vunpack.c.h.b16 %v7471
    %v8019 = vunpack.c.l.b16 %v7472
    %v8020 = vunpack.c.h.b16 %v7472
    %v8021 = vunpack.c.l.b16 %v7473
    %v8022 = vunpack.c.h.b16 %v7473
    %v8023 = vunpack.c.l.b16 %v7474
    %v8024 = vunpack.c.h.b16 %v7474
    %v8025 = vunpack.c.l.b16 %v7475
    %v8026 = vunpack.c.h.b16 %v7475
    %v8027 = vunpack.c.l.b16 %v7476
    %v8028 = vunpack.c.h.b16 %v7476
    %v8029 = vunpack.c.l.b16 %v7477
    %v8030 = vunpack.c.h.b16 %v7477
    %v8031 = vpack.c.b16 %v7745, %v7743
    %v8032 = vpack.c.b16 %v7746, %v7744
    %v8033 = vpack.c.b16 %v7749, %v7747
    %v8034 = vpack.c.b16 %v7750, %v7748
    %v8035 = vpack.c.b16 %v7753, %v7751
    %v8036 = vpack.c.b16 %v7754, %v7752
    %v8037 = vpack.c.b16 %v7757, %v7755
    %v8038 = vpack.c.b16 %v7758, %v7756
    %v8039 = vpack.c.b16 %v7761, %v7759
    %v8040 = vpack.c.b16 %v7762, %v7760
    %v8041 = vpack.c.b16 %v7765, %v7763
    %v8042 = vpack.c.b16 %v7766, %v7764
    %v8043 = vpack.c.b16 %v7769, %v7767
    %v8044 = vpack.c.b16 %v7770, %v7768
    %v8045 = vpack.c.b16 %v7773, %v7771
    %v8046 = vpack.c.b16 %v7774, %v7772
    %v8047 = vpack.c.b16 %v7777, %v7775
    %v8048 = vpack.c.b16 %v7778, %v7776
    %v8049 = vpack.c.b16 %v7781, %v7779
    %v8050 = vpack.c.b16 %v7782, %v7780
    %v8051 = vpack.c.b16 %v7785, %v7783
    %v8052 = vpack.c.b16 %v7786, %v7784
    %v8053 = vpack.c.b16 %v7789, %v7787
    %v8054 = vpack.c.b16 %v7790, %v7788
    %v8055 = vpack.c.b16 %v7793, %v7791
    %v8056 = vpack.c.b16 %v7794, %v7792
    %v8057 = vpack.c.b16 %v7797, %v7795
    %v8058 = vpack.c.b16 %v7798, %v7796
    %v8059 = vpack.c.b16 %v7801, %v7799
    %v8060 = vpack.c.b16 %v7802, %v7800
    %v8061 = vpack.c.b16 %v7805, %v7803
    %v8062 = vpack.c.b16 %v7806, %v7804
    %v8063 = vpack.c.b16 %v7809, %v7807
    %v8064 = vpack.c.b16 %v7810, %v7808
    %v8065 = vpack.c.b16 %v7813, %v7811
    %v8066 = vpack.c.b16 %v7814, %v7812
    %v8067 = vpack.c.b16 %v7817, %v7815
    %v8068 = vpack.c.b16 %v7818, %v7816
    %v8069 = vpack.c.b16 %v7821, %v7819
    %v8070 = vpack.c.b16 %v7822, %v7820
    %v8071 = vpack.c.b16 %v7825, %v7823
    %v8072 = vpack.c.b16 %v7826, %v7824
    %v8073 = vpack.c.b16 %v7829, %v7827
    %v8074 = vpack.c.b16 %v7830, %v7828
    %v8075 = vpack.c.b16 %v7833, %v7831
    %v8076 = vpack.c.b16 %v7834, %v7832
    %v8077 = vpack.c.b16 %v7837, %v7835
    %v8078 = vpack.c.b16 %v7838, %v7836
    %v8079 = vpack.c.b16 %v7841, %v7839
    %v8080 = vpack.c.b16 %v7842, %v7840
    %v8081 = vpack.c.b16 %v7845, %v7843
    %v8082 = vpack.c.b16 %v7846, %v7844
    %v8083 = vpack.c.b16 %v7849, %v7847
    %v8084 = vpack.c.b16 %v7850, %v7848
    %v8085 = vpack.c.b16 %v7853, %v7851
    %v8086 = vpack.c.b16 %v7854, %v7852
    %v8087 = vpack.c.b16 %v7857, %v7855
    %v8088 = vpack.c.b16 %v7858, %v7856
    %v8089 = vpack.c.b16 %v7861, %v7859
    %v8090 = vpack.c.b16 %v7862, %v7860
    %v8091 = vpack.c.b16 %v7865, %v7863
    %v8092 = vpack.c.b16 %v7866, %v7864
    %v8093 = vpack.c.b16 %v7869, %v7867
    %v8094 = vpack.c.b16 %v7870, %v7868
    %v8095 = vpack.c.b16 %v7873, %v7871
    %v8096 = vpack.c.b16 %v7874, %v7872
    %v8097 = vpack.c.b16 %v7877, %v7875
    %v8098 = vpack.c.b16 %v7878, %v7876
    %v8099 = vpack.c.b16 %v7881, %v7879
    %v8100 = vpack.c.b16 %v7882, %v7880
    %v8101 = vpack.c.b16 %v7885, %v7883
    %v8102 = vpack.c.b16 %v7886, %v7884
    %v8103 = vpack.c.b16 %v7889, %v7887
    %v8104 = vpack.c.b16 %v7890, %v7888
    %v8105 = vpack.c.b16 %v7893, %v7891
    %v8106 = vpack.c.b16 %v7894, %v7892
    %v8107 = vpack.c.b16 %v7897, %v7895
    %v8108 = vpack.c.b16 %v7898, %v7896
    %v8109 = vpack.c.b16 %v7901, %v7899
    %v8110 = vpack.c.b16 %v7902, %v7900
    %v8111 = vpack.c.b16 %v7905, %v7903
    %v8112 = vpack.c.b16 %v7906, %v7904
    %v8113 = vpack.c.b16 %v7909, %v7907
    %v8114 = vpack.c.b16 %v7910, %v7908
    %v8115 = vpack.c.b16 %v7913, %v7911
    %v8116 = vpack.c.b16 %v7914, %v7912
    %v8117 = vpack.c.b16 %v7917, %v7915
    %v8118 = vpack.c.b16 %v7918, %v7916
    %v8119 = vpack.c.b16 %v7921, %v7919
    %v8120 = vpack.c.b16 %v7922, %v7920
    %v8121 = vpack.c.b16 %v7925, %v7923
    %v8122 = vpack.c.b16 %v7926, %v7924
    %v8123 = vpack.c.b16 %v7929, %v7927
    %v8124 = vpack.c.b16 %v7930, %v7928
    %v8125 = vpack.c.b16 %v7933, %v7931
    %v8126 = vpack.c.b16 %v7934, %v7932
    %v8127 = vpack.c.b16 %v7937, %v7935
    %v8128 = vpack.c.b16 %v7938, %v7936
    %v8129 = vpack.c.b16 %v7941, %v7939
    %v8130 = vpack.c.b16 %v7942, %v7940
    %v8131 = vpack.c.b16 %v7945, %v7943
    %v8132 = vpack.c.b16 %v7946, %v7944
    %v8133 = vpack.c.b16 %v7949, %v7947
    %v8134 = vpack.c.b16 %v7950, %v7948
    %v8135 = vpack.c.b16 %v7953, %v7951
    %v8136 = vpack.c.b16 %v7954, %v7952
    %v8137 = vpack.c.b16 %v7957, %v7955
    %v8138 = vpack.c.b16 %v7958, %v7956
    %v8139 = vpack.c.b16 %v7961, %v7959
    %v8140 = vpack.c.b16 %v7962, %v7960
    %v8141 = vpack.c.b16 %v7965, %v7963
    %v8142 = vpack.c.b16 %v7966, %v7964
    %v8143 = vpack.c.b16 %v7969, %v7967
    %v8144 = vpack.c.b16 %v7970, %v7968
    %v8145 = vpack.c.b16 %v7973, %v7971
    %v8146 = vpack.c.b16 %v7974, %v7972
    %v8147 = vpack.c.b16 %v7977, %v7975
    %v8148 = vpack.c.b16 %v7978, %v7976
    %v8149 = vpack.c.b16 %v7981, %v7979
    %v8150 = vpack.c.b16 %v7982, %v7980
    %v8151 = vpack.c.b16 %v7985, %v7983
    %v8152 = vpack.c.b16 %v7986, %v7984
    %v8153 = vpack.c.b16 %v7989, %v7987
    %v8154 = vpack.c.b16 %v7990, %v7988
    %v8155 = vpack.c.b16 %v7993, %v7991
    %v8156 = vpack.c.b16 %v7994, %v7992
    %v8157 = vpack.c.b16 %v7997, %v7995
    %v8158 = vpack.c.b16 %v7998, %v7996
    %v8159 = vpack.c.b16 %v8001, %v7999
    %v8160 = vpack.c.b16 %v8002, %v8000
    %v8161 = vpack.c.b16 %v8005, %v8003
    %v8162 = vpack.c.b16 %v8006, %v8004
    %v8163 = vpack.c.b16 %v8009, %v8007
    %v8164 = vpack.c.b16 %v8010, %v8008
    %v8165 = vpack.c.b16 %v8013, %v8011
    %v8166 = vpack.c.b16 %v8014, %v8012
    %v8167 = vpack.c.b16 %v8017, %v8015
    %v8168 = vpack.c.b16 %v8018, %v8016
    %v8169 = vpack.c.b16 %v8021, %v8019
    %v8170 = vpack.c.b16 %v8022, %v8020
    %v8171 = vpack.c.b16 %v8025, %v8023
    %v8172 = vpack.c.b16 %v8026, %v8024
    %v8173 = vpack.c.b16 %v8029, %v8027
    %v8174 = vpack.c.b16 %v8030, %v8028
    %8319 = vmatprep.subr.bf16.mxu0 %v8046
    %8320 = vmatpush1.bf16.msra.mxu0 %v8045
    %8321 = vmatprep.subr.bf16.mxu0 %v8044
    %8322 = vmatpush1.bf16.msra.mxu0 %v8043
    %8323 = vmatprep.subr.bf16.mxu0 %v8042
    %8324 = vmatpush1.bf16.msra.mxu0 %v8041
    %8325 = vmatprep.subr.bf16.mxu0 %v8040
    %8326 = vmatpush1.bf16.msra.mxu0 %v8039
    %8327 = vmatprep.subr.bf16.mxu0 %v8038
    %8328 = vmatpush1.bf16.msra.mxu0 %v8037
    %8329 = vmatprep.subr.bf16.mxu0 %v8036
    %8330 = vmatpush1.bf16.msra.mxu0 %v8035
    %8331 = vmatprep.subr.bf16.mxu0 %v8034
    %8332 = vmatpush1.bf16.msra.mxu0 %v8033
    %8333 = vmatprep.subr.bf16.mxu0 %v8032
    %8334 = vmatpush1.bf16.msra.mxu0 %v8031
    %8335 = vmatprep.subr.bf16.mxu0 %v8062
    %8336 = vmatpush2.bf16.msra.mxu0 %v8061
    %8337 = vmatprep.subr.bf16.mxu0 %v8060
    %8338 = vmatpush2.bf16.msra.mxu0 %v8059
    %8339 = vmatprep.subr.bf16.mxu0 %v8058
    %8340 = vmatpush2.bf16.msra.mxu0 %v8057
    %8341 = vmatprep.subr.bf16.mxu0 %v8056
    %8342 = vmatpush2.bf16.msra.mxu0 %v8055
    %8343 = vmatprep.subr.bf16.mxu0 %v8054
    %8344 = vmatpush2.bf16.msra.mxu0 %v8053
    %8345 = vmatprep.subr.bf16.mxu0 %v8052
    %8346 = vmatpush2.bf16.msra.mxu0 %v8051
    %8347 = vmatprep.subr.bf16.mxu0 %v8050
    %8348 = vmatpush2.bf16.msra.mxu0 %v8049
    %8349 = vmatprep.subr.bf16.mxu0 %v8048
    %8350 = vmatpush2.bf16.msra.mxu0 %v8047
    %8351 = vmatprep.mubr.bf16.mxu0 %v7554
    %8352 = vmatmul.mubr.bf16.gmra.mxu0 %v7540
    %v8353 = vpop.f32.mrf.mxu0
    %v8354 = vadd.f32 %v7483, %v8353
    %v8355 = vpop.f32.mrf.mxu0
    %v8356 = vadd.f32 %v7487, %v8355
    %v8357 = vpop.f32.mrf.mxu0
    %v8358 = vpop.f32.mrf.mxu0
    %8359 = vdwg.mxu0
    %8360 = vmatprep.subr.bf16.mxu0 %v8078
    %8361 = vmatpush1.bf16.msra.mxu0 %v8077
    %8362 = vmatprep.subr.bf16.mxu0 %v8076
    %8363 = vmatpush1.bf16.msra.mxu0 %v8075
    %8364 = vmatprep.subr.bf16.mxu0 %v8074
    %8365 = vmatpush1.bf16.msra.mxu0 %v8073
    %8366 = vmatprep.subr.bf16.mxu0 %v8072
    %8367 = vmatpush1.bf16.msra.mxu0 %v8071
    %8368 = vmatprep.subr.bf16.mxu0 %v8070
    %8369 = vmatpush1.bf16.msra.mxu0 %v8069
    %8370 = vmatprep.subr.bf16.mxu0 %v8068
    %8371 = vmatpush1.bf16.msra.mxu0 %v8067
    %8372 = vmatprep.subr.bf16.mxu0 %v8066
    %8373 = vmatpush1.bf16.msra.mxu0 %v8065
    %8374 = vmatprep.subr.bf16.mxu0 %v8064
    %8375 = vmatpush1.bf16.msra.mxu0 %v8063
    %8376 = vmatprep.subr.bf16.mxu0 %v8094
    %8377 = vmatpush2.bf16.msra.mxu0 %v8093
    %8378 = vmatprep.subr.bf16.mxu0 %v8092
    %8379 = vmatpush2.bf16.msra.mxu0 %v8091
    %8380 = vmatprep.subr.bf16.mxu0 %v8090
    %8381 = vmatpush2.bf16.msra.mxu0 %v8089
    %8382 = vmatprep.subr.bf16.mxu0 %v8088
    %8383 = vmatpush2.bf16.msra.mxu0 %v8087
    %8384 = vmatprep.subr.bf16.mxu0 %v8086
    %8385 = vmatpush2.bf16.msra.mxu0 %v8085
    %8386 = vmatprep.subr.bf16.mxu0 %v8084
    %8387 = vmatpush2.bf16.msra.mxu0 %v8083
    %8388 = vmatprep.subr.bf16.mxu0 %v8082
    %8389 = vmatpush2.bf16.msra.mxu0 %v8081
    %8390 = vmatprep.subr.bf16.mxu0 %v8080
    %8391 = vmatpush2.bf16.msra.mxu0 %v8079
    %8392 = vmatprep.mubr.bf16.mxu0 %v7564
    %8393 = vmatmul.mubr.bf16.gmra.mxu0 %v7562
    %v8394 = vpop.f32.mrf.mxu0
    %v8395 = vadd.f32 %v8354, %v8394
    %v8396 = vpop.f32.mrf.mxu0
    %v8397 = vadd.f32 %v8356, %v8396
    %v8398 = vpop.f32.mrf.mxu0
    %v8399 = vpop.f32.mrf.mxu0
    %8400 = vdwg.mxu0
    %8401 = vmatprep.subr.bf16.mxu0 %v8110
    %8402 = vmatpush1.bf16.msra.mxu0 %v8109
    %8403 = vmatprep.subr.bf16.mxu0 %v8108
    %8404 = vmatpush1.bf16.msra.mxu0 %v8107
    %8405 = vmatprep.subr.bf16.mxu0 %v8106
    %8406 = vmatpush1.bf16.msra.mxu0 %v8105
    %8407 = vmatprep.subr.bf16.mxu0 %v8104
    %8408 = vmatpush1.bf16.msra.mxu0 %v8103
    %8409 = vmatprep.subr.bf16.mxu0 %v8102
    %8410 = vmatpush1.bf16.msra.mxu0 %v8101
    %8411 = vmatprep.subr.bf16.mxu0 %v8100
    %8412 = vmatpush1.bf16.msra.mxu0 %v8099
    %8413 = vmatprep.subr.bf16.mxu0 %v8098
    %8414 = vmatpush1.bf16.msra.mxu0 %v8097
    %8415 = vmatprep.subr.bf16.mxu0 %v8096
    %8416 = vmatpush1.bf16.msra.mxu0 %v8095
    %8417 = vmatprep.subr.bf16.mxu0 %v8126
    %8418 = vmatpush2.bf16.msra.mxu0 %v8125
    %8419 = vmatprep.subr.bf16.mxu0 %v8124
    %8420 = vmatpush2.bf16.msra.mxu0 %v8123
    %8421 = vmatprep.subr.bf16.mxu0 %v8122
    %8422 = vmatpush2.bf16.msra.mxu0 %v8121
    %8423 = vmatprep.subr.bf16.mxu0 %v8120
    %8424 = vmatpush2.bf16.msra.mxu0 %v8119
    %8425 = vmatprep.subr.bf16.mxu0 %v8118
    %8426 = vmatpush2.bf16.msra.mxu0 %v8117
    %8427 = vmatprep.subr.bf16.mxu0 %v8116
    %8428 = vmatpush2.bf16.msra.mxu0 %v8115
    %8429 = vmatprep.subr.bf16.mxu0 %v8114
    %8430 = vmatpush2.bf16.msra.mxu0 %v8113
    %8431 = vmatprep.subr.bf16.mxu0 %v8112
    %8432 = vmatpush2.bf16.msra.mxu0 %v8111
    %8433 = vmatprep.mubr.bf16.mxu0 %v7561
    %8434 = vmatmul.mubr.bf16.gmra.mxu0 %v7547
    %v8435 = vpop.f32.mrf.mxu0
    %v8436 = vadd.f32 %v8395, %v8435
    %v8437 = vpop.f32.mrf.mxu0
    %v8438 = vadd.f32 %v8397, %v8437
    %v8439 = vpop.f32.mrf.mxu0
    %v8440 = vpop.f32.mrf.mxu0
    %8441 = vdwg.mxu0
    %8442 = vmatprep.subr.bf16.mxu0 %v8142
    %8443 = vmatpush1.bf16.msra.mxu0 %v8141
    %8444 = vmatprep.subr.bf16.mxu0 %v8140
    %8445 = vmatpush1.bf16.msra.mxu0 %v8139
    %8446 = vmatprep.subr.bf16.mxu0 %v8138
    %8447 = vmatpush1.bf16.msra.mxu0 %v8137
    %8448 = vmatprep.subr.bf16.mxu0 %v8136
    %8449 = vmatpush1.bf16.msra.mxu0 %v8135
    %8450 = vmatprep.subr.bf16.mxu0 %v8134
    %8451 = vmatpush1.bf16.msra.mxu0 %v8133
    %8452 = vmatprep.subr.bf16.mxu0 %v8132
    %8453 = vmatpush1.bf16.msra.mxu0 %v8131
    %8454 = vmatprep.subr.bf16.mxu0 %v8130
    %8455 = vmatpush1.bf16.msra.mxu0 %v8129
    %8456 = vmatprep.subr.bf16.mxu0 %v8128
    %8457 = vmatpush1.bf16.msra.mxu0 %v8127
    %8458 = vmatprep.subr.bf16.mxu0 %v8158
    %8459 = vmatpush2.bf16.msra.mxu0 %v8157
    %8460 = vmatprep.subr.bf16.mxu0 %v8156
    %8461 = vmatpush2.bf16.msra.mxu0 %v8155
    %8462 = vmatprep.subr.bf16.mxu0 %v8154
    %8463 = vmatpush2.bf16.msra.mxu0 %v8153
    %8464 = vmatprep.subr.bf16.mxu0 %v8152
    %8465 = vmatpush2.bf16.msra.mxu0 %v8151
    %8466 = vmatprep.subr.bf16.mxu0 %v8150
    %8467 = vmatpush2.bf16.msra.mxu0 %v8149
    %8468 = vmatprep.subr.bf16.mxu0 %v8148
    %8469 = vmatpush2.bf16.msra.mxu0 %v8147
    %8470 = vmatprep.subr.bf16.mxu0 %v8146
    %8471 = vmatpush2.bf16.msra.mxu0 %v8145
    %8472 = vmatprep.subr.bf16.mxu0 %v8144
    %8473 = vmatpush2.bf16.msra.mxu0 %v8143
    %8474 = vmatprep.mubr.bf16.mxu0 %v7565
    %8475 = vmatmul.mubr.bf16.gmra.mxu0 %v7563
    %v8476 = vpop.f32.mrf.mxu0
    %v8477 = vadd.f32 %v8436, %v8476
    %v8478 = vpop.f32.mrf.mxu0
    %v8479 = vadd.f32 %v8438, %v8478
    %v8480 = vpop.f32.mrf.mxu0
    %v8481 = vpop.f32.mrf.mxu0
    %8482 = vdwg.mxu0
    %8483 = vmatprep.subr.bf16.mxu0 %v8174
    %8484 = vmatpush1.bf16.msra.mxu0 %v8173
    %8485 = vmatprep.subr.bf16.mxu0 %v8172
    %8486 = vmatpush1.bf16.msra.mxu0 %v8171
    %8487 = vmatprep.subr.bf16.mxu0 %v8170
    %8488 = vmatpush1.bf16.msra.mxu0 %v8169
    %8489 = vmatprep.subr.bf16.mxu0 %v8168
    %8490 = vmatpush1.bf16.msra.mxu0 %v8167
    %8491 = vmatprep.subr.bf16.mxu0 %v8166
    %8492 = vmatpush1.bf16.msra.mxu0 %v8165
    %8493 = vmatprep.subr.bf16.mxu0 %v8164
    %8494 = vmatpush1.bf16.msra.mxu0 %v8163
    %8495 = vmatprep.subr.bf16.mxu0 %v8162
    %8496 = vmatpush1.bf16.msra.mxu0 %v8161
    %8497 = vmatprep.subr.bf16.mxu0 %v8160
    %8498 = vmatpush1.bf16.msra.mxu0 %v8159
    %8499 = vmatprep.subr.bf16.mxu0 0
    %8500 = vmatpush2.bf16.msra.mxu0 0
    %8501 = vmatprep.subr.bf16.mxu0 0
    %8502 = vmatpush2.bf16.msra.mxu0 0
    %8503 = vmatprep.subr.bf16.mxu0 0
    %8504 = vmatpush2.bf16.msra.mxu0 0
    %8505 = vmatprep.subr.bf16.mxu0 0
    %8506 = vmatpush2.bf16.msra.mxu0 0
    %8507 = vmatprep.subr.bf16.mxu0 0
    %8508 = vmatpush2.bf16.msra.mxu0 0
    %8509 = vmatprep.subr.bf16.mxu0 0
    %8510 = vmatpush2.bf16.msra.mxu0 0
    %8511 = vmatprep.subr.bf16.mxu0 0
    %8512 = vmatpush2.bf16.msra.mxu0 0
    %8513 = vmatprep.subr.bf16.mxu0 0
    %8514 = vmatpush2.bf16.msra.mxu0 0
    %8515 = vmatprep.mubr.bf16.mxu0 0
    %8516 = vmatmul.mubr.bf16.gmra.mxu0 %v7589
    %v8517 = vpop.f32.mrf.mxu0
    %v8518 = vadd.f32 %v8477, %v8517
    %v8519 = vpop.f32.mrf.mxu0
    %v8520 = vadd.f32 %v8479, %v8519
    %v8521 = vpop.f32.mrf.mxu0
    %v8522 = vpop.f32.mrf.mxu0
    %8523 = vdwg.mxu0
    %v8524 = vmax.f32 %v8518, 0.0
    %v8525 = vmax.f32 %v8520, 0.0
    %8526 = vst [vmem:[#allocation12] sm:$0xff] %v8524
    %8527 = vst [vmem:[#allocation12 + $0x8] sm:$0xff] %v8525
    %v8528 = vld [vmem:[#allocation12] ss:$8 sm:$0x3]
    %s8529 = scalar_lea.vmem [#allocation12], 1
    %v8530 = vld [vmem:[%s8529] ss:$8 sm:$0x3]
    %v8531 = vmax.f32 %v8528, %v8530
    %s8532 = scalar_lea.vmem [#allocation12], 2
    %v8533 = vld [vmem:[%s8532] ss:$8 sm:$0x3]
    %s8534 = scalar_lea.vmem [#allocation12], 3
    %v8535 = vld [vmem:[%s8534] ss:$8 sm:$0x3]
    %v8536 = vmax.f32 %v8533, %v8535
    %v8537 = vmax.f32 %v8531, %v8536
    %v8539 = vlaneseq
    %v8540 = vshrl.u32 %v8539, 7
    %v8541 = vsub.s32 0, %v8540
    %v8542 = vrot.slane %v8537, %v8541
    %v8543 = vlaneseq
    %v8544 = vshrl.u32 %v8543, 7
    %v8545 = vsub.s32 1, %v8544
    %v8546 = vrot.slane %v8537, %v8545
    %v8549 = vpack.c.bf16 %v8542, %v8542
    %v8550 = vpack.c.bf16 %v8546, %v8546
    %v8553 = vcombine.low %v8549, %v8550
    %v8555 = vunpack.c.l.s4 1966171168
    %v8556 = vunpack.c.0.s8 %v8555
    %v8557 = vlaneseq
    %v8558 = vshrl.u32 %v8557, 7
    %v8559 = vsub.s32 %v8556, %v8558
    %v8560 = vrot.slane %v8553, %v8559
    %v8562 = vunpack.c.l.s4 1966171168
    %v8563 = vunpack.c.0.s8 %v8562
    %v8564 = vlaneseq
    %v8565 = vshrl.u32 %v8564, 7
    %v8566 = vsub.s32 %v8563, %v8565
    %v8567 = vrot.slane %v8560, %v8566
    %vm8569 = vcmask 1041409
    %vm8570 = vmand %vm8569, %vm4657
    %vm8571 = vmor %vm8570, %vm912
    %v8572 = vld [vmem:[#allocation5] sm:$0x3]
    %v8573 = vsel %vm8571, %v8567, %v8572
    %8574 = vst [vmem:[#allocation5] sm:$0x3] %v8573
    %s8575 = scalar_lea.vmem [#allocation12], 4
    %v8576 = vld [vmem:[%s8575] ss:$8 sm:$0x3]
    %s8577 = scalar_lea.vmem [#allocation12], 5
    %v8578 = vld [vmem:[%s8577] ss:$8 sm:$0x3]
    %v8579 = vmax.f32 %v8576, %v8578
    %s8580 = scalar_lea.vmem [#allocation12], 6
    %v8581 = vld [vmem:[%s8580] ss:$8 sm:$0x3]
    %s8582 = scalar_lea.vmem [#allocation12], 7
    %v8583 = vld [vmem:[%s8582] ss:$8 sm:$0x3]
    %v8584 = vmax.f32 %v8581, %v8583
    %v8585 = vmax.f32 %v8579, %v8584
    %v8587 = vlaneseq
    %v8588 = vshrl.u32 %v8587, 7
    %v8589 = vsub.s32 0, %v8588
    %v8590 = vrot.slane %v8585, %v8589
    %v8591 = vlaneseq
    %v8592 = vshrl.u32 %v8591, 7
    %v8593 = vsub.s32 1, %v8592
    %v8594 = vrot.slane %v8585, %v8593
    %v8597 = vpack.c.bf16 %v8590, %v8590
    %v8598 = vpack.c.bf16 %v8594, %v8594
    %v8601 = vcombine.low %v8597, %v8598
    %v8603 = vunpack.c.l.s4 1966171168
    %v8604 = vunpack.c.0.s8 %v8603
    %v8605 = vlaneseq
    %v8606 = vshrl.u32 %v8605, 7
    %v8607 = vsub.s32 %v8604, %v8606
    %v8608 = vrot.slane %v8601, %v8607
    %v8610 = vunpack.c.l.s4 1966171168
    %v8611 = vunpack.c.0.s8 %v8610
    %v8612 = vlaneseq
    %v8613 = vshrl.u32 %v8612, 7
    %v8614 = vsub.s32 %v8611, %v8613
    %v8615 = vrot.slane %v8608, %v8614
    %v8617 = vshll.u32 %v8615, 16
    %vm8620 = vmand %vm910, %vm905
    %vm8621 = vsmask.f32 7942
    %vm8622 = vmand %vm8569, %vm8621
    %vm8623 = vmor %vm8622, %vm8620
    %v8624 = vld [vmem:[#allocation5] sm:$0x3]
    %v8625 = vsel %vm8623, %v8617, %v8624
    %8626 = vst [vmem:[#allocation5] sm:$0x3] %v8625
    %v8627 = vld [vmem:[#allocation5] sm:$0x3]
    %v8628 = vld [vmem:[%s9] sm:$0xff]
    %v8629 = vld [vmem:[%s9 + $0x8] sm:$0xff]
    %v8630 = vld [vmem:[%s9 + $0x10] sm:$0xff]
    %v8631 = vld [vmem:[%s9 + $0x18] sm:$0xff]
    %v8632 = vld [vmem:[%s9 + $0x20] sm:$0xff]
    %v8633 = vld [vmem:[%s9 + $0x28] sm:$0xff]
    %v8634 = vld [vmem:[%s9 + $0x30] sm:$0xff]
    %v8635 = vld [vmem:[%s9 + $0x38] sm:$0xff]
    %v8636 = vld [vmem:[%s9 + $0x40] sm:$0xff]
    %v8637 = vld [vmem:[%s9 + $0x48] sm:$0xff]
    %v8638 = vld [vmem:[%s9 + $0x50] sm:$0xff]
    %v8639 = vld [vmem:[%s9 + $0x58] sm:$0xff]
    %v8640 = vld [vmem:[%s9 + $0x60] sm:$0xff]
    %v8641 = vld [vmem:[%s9 + $0x68] sm:$0xff]
    %v8642 = vld [vmem:[%s9 + $0x70] sm:$0xff]
    %v8643 = vld [vmem:[%s9 + $0x78] sm:$0xff]
    %v8644 = vld [vmem:[%s9 + $0x80] sm:$0xff]
    %v8645 = vld [vmem:[%s9 + $0x88] sm:$0xff]
    %v8646 = vld [vmem:[%s9 + $0x90] sm:$0xff]
    %v8647 = vld [vmem:[%s9 + $0x98] sm:$0xff]
    %v8648 = vld [vmem:[%s9 + $0xa0] sm:$0xff]
    %v8649 = vld [vmem:[%s9 + $0xa8] sm:$0xff]
    %v8650 = vld [vmem:[%s9 + $0xb0] sm:$0xff]
    %v8651 = vld [vmem:[%s9 + $0xb8] sm:$0xff]
    %v8652 = vld [vmem:[%s9 + $0xc0] sm:$0xff]
    %v8653 = vld [vmem:[%s9 + $0xc8] sm:$0xff]
    %v8654 = vld [vmem:[%s9 + $0xd0] sm:$0xff]
    %v8655 = vld [vmem:[%s9 + $0xd8] sm:$0xff]
    %v8656 = vld [vmem:[%s9 + $0xe0] sm:$0xff]
    %v8657 = vld [vmem:[%s9 + $0xe8] sm:$0xff]
    %v8658 = vld [vmem:[%s9 + $0xf0] sm:$0xff]
    %v8659 = vld [vmem:[%s9 + $0xf8] sm:$0xff]
    %v8660 = vld [vmem:[%s9 + $0x100] sm:$0xff]
    %v8661 = vld [vmem:[%s9 + $0x108] sm:$0xff]
    %v8662 = vld [vmem:[%s9 + $0x110] sm:$0xff]
    %v8663 = vld [vmem:[%s9 + $0x118] sm:$0xff]
    %v8664 = vld [vmem:[%s9 + $0x120] sm:$0xff]
    %v8665 = vld [vmem:[%s9 + $0x128] sm:$0xff]
    %v8666 = vld [vmem:[%s9 + $0x130] sm:$0xff]
    %v8667 = vld [vmem:[%s9 + $0x138] sm:$0xff]
    %v8668 = vld [vmem:[%s9 + $0x140] sm:$0xff]
    %v8669 = vld [vmem:[%s9 + $0x148] sm:$0xff]
    %v8670 = vld [vmem:[%s9 + $0x150] sm:$0xff]
    %v8671 = vld [vmem:[%s9 + $0x158] sm:$0xff]
    %v8672 = vld [vmem:[%s9 + $0x160] sm:$0xff]
    %v8673 = vld [vmem:[%s9 + $0x168] sm:$0xff]
    %v8674 = vld [vmem:[%s9 + $0x170] sm:$0xff]
    %v8675 = vld [vmem:[%s9 + $0x178] sm:$0xff]
    %v8676 = vld [vmem:[%s9 + $0x180] sm:$0xff]
    %v8677 = vld [vmem:[%s9 + $0x188] sm:$0xff]
    %v8678 = vld [vmem:[%s9 + $0x190] sm:$0xff]
    %v8679 = vld [vmem:[%s9 + $0x198] sm:$0xff]
    %v8680 = vld [vmem:[%s9 + $0x1a0] sm:$0xff]
    %v8681 = vld [vmem:[%s9 + $0x1a8] sm:$0xff]
    %v8682 = vld [vmem:[%s9 + $0x1b0] sm:$0xff]
    %v8683 = vld [vmem:[%s9 + $0x1b8] sm:$0xff]
    %v8684 = vld [vmem:[%s9 + $0x1c0] sm:$0xff]
    %v8685 = vld [vmem:[%s9 + $0x1c8] sm:$0xff]
    %v8686 = vld [vmem:[%s9 + $0x1d0] sm:$0xff]
    %v8687 = vld [vmem:[%s9 + $0x1d8] sm:$0xff]
    %v8688 = vld [vmem:[%s9 + $0x1e0] sm:$0xff]
    %v8689 = vld [vmem:[%s9 + $0x1e8] sm:$0xff]
    %v8690 = vld [vmem:[%s9 + $0x1f0] sm:$0xff]
    %v8691 = vld [vmem:[%s9 + $0x1f8] sm:$0xff]
    %v8692 = vld [vmem:[#allocation18] sm:$0xf]
    %v8694 = vlaneseq
    %v8695 = vshrl.u32 %v8694, 7
    %v8696 = vsub.s32 0, %v8695
    %v8697 = vrot.slane %v8692, %v8696
    %v8698 = vlaneseq
    %v8699 = vshrl.u32 %v8698, 7
    %v8700 = vsub.s32 1, %v8699
    %v8701 = vrot.slane %v8692, %v8700
    %v8702 = vlaneseq
    %v8703 = vshrl.u32 %v8702, 7
    %v8704 = vsub.s32 2, %v8703
    %v8705 = vrot.slane %v8692, %v8704
    %v8706 = vlaneseq
    %v8707 = vshrl.u32 %v8706, 7
    %v8708 = vsub.s32 3, %v8707
    %v8709 = vrot.slane %v8692, %v8708
    %v8716 = vunpack.c.l.s4 1966171168
    %v8717 = vunpack.c.0.s8 %v8716
    %v8718 = vlaneseq
    %v8719 = vshrl.u32 %v8718, 7
    %v8720 = vsub.s32 %v8717, %v8719
    %v8721 = vrot.slane %v8627, %v8720
    %v8722 = vcombine.high %v8721, %v8721
    %v8724 = vunpack.c.l.s4 1966171168
    %v8725 = vunpack.c.0.s8 %v8724
    %v8726 = vlaneseq
    %v8727 = vshrl.u32 %v8726, 7
    %v8728 = vsub.s32 %v8725, %v8727
    %v8729 = vrot.slane %v8721, %v8728
    %v8731 = vunpack.c.l.s4 1966171168
    %v8732 = vunpack.c.0.s8 %v8731
    %v8733 = vlaneseq
    %v8734 = vshrl.u32 %v8733, 7
    %v8735 = vsub.s32 %v8732, %v8734
    %v8736 = vrot.slane %v8722, %v8735
    %v8803 = vunpack.c.l.b16 %v8628
    %v8804 = vunpack.c.h.b16 %v8628
    %v8805 = vunpack.c.l.b16 %v8629
    %v8806 = vunpack.c.h.b16 %v8629
    %v8807 = vunpack.c.l.b16 %v8630
    %v8808 = vunpack.c.h.b16 %v8630
    %v8809 = vunpack.c.l.b16 %v8631
    %v8810 = vunpack.c.h.b16 %v8631
    %v8811 = vunpack.c.l.b16 %v8632
    %v8812 = vunpack.c.h.b16 %v8632
    %v8813 = vunpack.c.l.b16 %v8633
    %v8814 = vunpack.c.h.b16 %v8633
    %v8815 = vunpack.c.l.b16 %v8634
    %v8816 = vunpack.c.h.b16 %v8634
    %v8817 = vunpack.c.l.b16 %v8635
    %v8818 = vunpack.c.h.b16 %v8635
    %v8819 = vunpack.c.l.b16 %v8636
    %v8820 = vunpack.c.h.b16 %v8636
    %v8821 = vunpack.c.l.b16 %v8637
    %v8822 = vunpack.c.h.b16 %v8637
    %v8823 = vunpack.c.l.b16 %v8638
    %v8824 = vunpack.c.h.b16 %v8638
    %v8825 = vunpack.c.l.b16 %v8639
    %v8826 = vunpack.c.h.b16 %v8639
    %v8827 = vunpack.c.l.b16 %v8640
    %v8828 = vunpack.c.h.b16 %v8640
    %v8829 = vunpack.c.l.b16 %v8641
    %v8830 = vunpack.c.h.b16 %v8641
    %v8831 = vunpack.c.l.b16 %v8642
    %v8832 = vunpack.c.h.b16 %v8642
    %v8833 = vunpack.c.l.b16 %v8643
    %v8834 = vunpack.c.h.b16 %v8643
    %v8835 = vunpack.c.l.b16 %v8644
    %v8836 = vunpack.c.h.b16 %v8644
    %v8837 = vunpack.c.l.b16 %v8645
    %v8838 = vunpack.c.h.b16 %v8645
    %v8839 = vunpack.c.l.b16 %v8646
    %v8840 = vunpack.c.h.b16 %v8646
    %v8841 = vunpack.c.l.b16 %v8647
    %v8842 = vunpack.c.h.b16 %v8647
    %v8843 = vunpack.c.l.b16 %v8648
    %v8844 = vunpack.c.h.b16 %v8648
    %v8845 = vunpack.c.l.b16 %v8649
    %v8846 = vunpack.c.h.b16 %v8649
    %v8847 = vunpack.c.l.b16 %v8650
    %v8848 = vunpack.c.h.b16 %v8650
    %v8849 = vunpack.c.l.b16 %v8651
    %v8850 = vunpack.c.h.b16 %v8651
    %v8851 = vunpack.c.l.b16 %v8652
    %v8852 = vunpack.c.h.b16 %v8652
    %v8853 = vunpack.c.l.b16 %v8653
    %v8854 = vunpack.c.h.b16 %v8653
    %v8855 = vunpack.c.l.b16 %v8654
    %v8856 = vunpack.c.h.b16 %v8654
    %v8857 = vunpack.c.l.b16 %v8655
    %v8858 = vunpack.c.h.b16 %v8655
    %v8859 = vunpack.c.l.b16 %v8656
    %v8860 = vunpack.c.h.b16 %v8656
    %v8861 = vunpack.c.l.b16 %v8657
    %v8862 = vunpack.c.h.b16 %v8657
    %v8863 = vunpack.c.l.b16 %v8658
    %v8864 = vunpack.c.h.b16 %v8658
    %v8865 = vunpack.c.l.b16 %v8659
    %v8866 = vunpack.c.h.b16 %v8659
    %v8867 = vunpack.c.l.b16 %v8660
    %v8868 = vunpack.c.h.b16 %v8660
    %v8869 = vunpack.c.l.b16 %v8661
    %v8870 = vunpack.c.h.b16 %v8661
    %v8871 = vunpack.c.l.b16 %v8662
    %v8872 = vunpack.c.h.b16 %v8662
    %v8873 = vunpack.c.l.b16 %v8663
    %v8874 = vunpack.c.h.b16 %v8663
    %v8875 = vunpack.c.l.b16 %v8664
    %v8876 = vunpack.c.h.b16 %v8664
    %v8877 = vunpack.c.l.b16 %v8665
    %v8878 = vunpack.c.h.b16 %v8665
    %v8879 = vunpack.c.l.b16 %v8666
    %v8880 = vunpack.c.h.b16 %v8666
    %v8881 = vunpack.c.l.b16 %v8667
    %v8882 = vunpack.c.h.b16 %v8667
    %v8883 = vunpack.c.l.b16 %v8668
    %v8884 = vunpack.c.h.b16 %v8668
    %v8885 = vunpack.c.l.b16 %v8669
    %v8886 = vunpack.c.h.b16 %v8669
    %v8887 = vunpack.c.l.b16 %v8670
    %v8888 = vunpack.c.h.b16 %v8670
    %v8889 = vunpack.c.l.b16 %v8671
    %v8890 = vunpack.c.h.b16 %v8671
    %v8891 = vunpack.c.l.b16 %v8672
    %v8892 = vunpack.c.h.b16 %v8672
    %v8893 = vunpack.c.l.b16 %v8673
    %v8894 = vunpack.c.h.b16 %v8673
    %v8895 = vunpack.c.l.b16 %v8674
    %v8896 = vunpack.c.h.b16 %v8674
    %v8897 = vunpack.c.l.b16 %v8675
    %v8898 = vunpack.c.h.b16 %v8675
    %v8899 = vunpack.c.l.b16 %v8676
    %v8900 = vunpack.c.h.b16 %v8676
    %v8901 = vunpack.c.l.b16 %v8677
    %v8902 = vunpack.c.h.b16 %v8677
    %v8903 = vunpack.c.l.b16 %v8678
    %v8904 = vunpack.c.h.b16 %v8678
    %v8905 = vunpack.c.l.b16 %v8679
    %v8906 = vunpack.c.h.b16 %v8679
    %v8907 = vunpack.c.l.b16 %v8680
    %v8908 = vunpack.c.h.b16 %v8680
    %v8909 = vunpack.c.l.b16 %v8681
    %v8910 = vunpack.c.h.b16 %v8681
    %v8911 = vunpack.c.l.b16 %v8682
    %v8912 = vunpack.c.h.b16 %v8682
    %v8913 = vunpack.c.l.b16 %v8683
    %v8914 = vunpack.c.h.b16 %v8683
    %v8915 = vunpack.c.l.b16 %v8684
    %v8916 = vunpack.c.h.b16 %v8684
    %v8917 = vunpack.c.l.b16 %v8685
    %v8918 = vunpack.c.h.b16 %v8685
    %v8919 = vunpack.c.l.b16 %v8686
    %v8920 = vunpack.c.h.b16 %v8686
    %v8921 = vunpack.c.l.b16 %v8687
    %v8922 = vunpack.c.h.b16 %v8687
    %v8923 = vunpack.c.l.b16 %v8688
    %v8924 = vunpack.c.h.b16 %v8688
    %v8925 = vunpack.c.l.b16 %v8689
    %v8926 = vunpack.c.h.b16 %v8689
    %v8927 = vunpack.c.l.b16 %v8690
    %v8928 = vunpack.c.h.b16 %v8690
    %v8929 = vunpack.c.l.b16 %v8691
    %v8930 = vunpack.c.h.b16 %v8691
    %v8931 = vpack.c.b16 %v8807, %v8803
    %v8932 = vpack.c.b16 %v8808, %v8804
    %v8933 = vpack.c.b16 %v8809, %v8805
    %v8934 = vpack.c.b16 %v8810, %v8806
    %v8935 = vpack.c.b16 %v8815, %v8811
    %v8936 = vpack.c.b16 %v8816, %v8812
    %v8937 = vpack.c.b16 %v8817, %v8813
    %v8938 = vpack.c.b16 %v8818, %v8814
    %v8939 = vpack.c.b16 %v8823, %v8819
    %v8940 = vpack.c.b16 %v8824, %v8820
    %v8941 = vpack.c.b16 %v8825, %v8821
    %v8942 = vpack.c.b16 %v8826, %v8822
    %v8943 = vpack.c.b16 %v8831, %v8827
    %v8944 = vpack.c.b16 %v8832, %v8828
    %v8945 = vpack.c.b16 %v8833, %v8829
    %v8946 = vpack.c.b16 %v8834, %v8830
    %v8947 = vpack.c.b16 %v8839, %v8835
    %v8948 = vpack.c.b16 %v8840, %v8836
    %v8949 = vpack.c.b16 %v8841, %v8837
    %v8950 = vpack.c.b16 %v8842, %v8838
    %v8951 = vpack.c.b16 %v8847, %v8843
    %v8952 = vpack.c.b16 %v8848, %v8844
    %v8953 = vpack.c.b16 %v8849, %v8845
    %v8954 = vpack.c.b16 %v8850, %v8846
    %v8955 = vpack.c.b16 %v8855, %v8851
    %v8956 = vpack.c.b16 %v8856, %v8852
    %v8957 = vpack.c.b16 %v8857, %v8853
    %v8958 = vpack.c.b16 %v8858, %v8854
    %v8959 = vpack.c.b16 %v8863, %v8859
    %v8960 = vpack.c.b16 %v8864, %v8860
    %v8961 = vpack.c.b16 %v8865, %v8861
    %v8962 = vpack.c.b16 %v8866, %v8862
    %v8963 = vpack.c.b16 %v8871, %v8867
    %v8964 = vpack.c.b16 %v8872, %v8868
    %v8965 = vpack.c.b16 %v8873, %v8869
    %v8966 = vpack.c.b16 %v8874, %v8870
    %v8967 = vpack.c.b16 %v8879, %v8875
    %v8968 = vpack.c.b16 %v8880, %v8876
    %v8969 = vpack.c.b16 %v8881, %v8877
    %v8970 = vpack.c.b16 %v8882, %v8878
    %v8971 = vpack.c.b16 %v8887, %v8883
    %v8972 = vpack.c.b16 %v8888, %v8884
    %v8973 = vpack.c.b16 %v8889, %v8885
    %v8974 = vpack.c.b16 %v8890, %v8886
    %v8975 = vpack.c.b16 %v8895, %v8891
    %v8976 = vpack.c.b16 %v8896, %v8892
    %v8977 = vpack.c.b16 %v8897, %v8893
    %v8978 = vpack.c.b16 %v8898, %v8894
    %v8979 = vpack.c.b16 %v8903, %v8899
    %v8980 = vpack.c.b16 %v8904, %v8900
    %v8981 = vpack.c.b16 %v8905, %v8901
    %v8982 = vpack.c.b16 %v8906, %v8902
    %v8983 = vpack.c.b16 %v8911, %v8907
    %v8984 = vpack.c.b16 %v8912, %v8908
    %v8985 = vpack.c.b16 %v8913, %v8909
    %v8986 = vpack.c.b16 %v8914, %v8910
    %v8987 = vpack.c.b16 %v8919, %v8915
    %v8988 = vpack.c.b16 %v8920, %v8916
    %v8989 = vpack.c.b16 %v8921, %v8917
    %v8990 = vpack.c.b16 %v8922, %v8918
    %v8991 = vpack.c.b16 %v8927, %v8923
    %v8992 = vpack.c.b16 %v8928, %v8924
    %v8993 = vpack.c.b16 %v8929, %v8925
    %v8994 = vpack.c.b16 %v8930, %v8926
    %9059 = vmatprep.subr.bf16.mxu0 %v8960
    %9060 = vmatpush1.bf16.msra.mxu0 %v8959
    %9061 = vmatprep.subr.bf16.mxu0 %v8956
    %9062 = vmatpush1.bf16.msra.mxu0 %v8955
    %9063 = vmatprep.subr.bf16.mxu0 %v8952
    %9064 = vmatpush1.bf16.msra.mxu0 %v8951
    %9065 = vmatprep.subr.bf16.mxu0 %v8948
    %9066 = vmatpush1.bf16.msra.mxu0 %v8947
    %9067 = vmatprep.subr.bf16.mxu0 %v8944
    %9068 = vmatpush1.bf16.msra.mxu0 %v8943
    %9069 = vmatprep.subr.bf16.mxu0 %v8940
    %9070 = vmatpush1.bf16.msra.mxu0 %v8939
    %9071 = vmatprep.subr.bf16.mxu0 %v8936
    %9072 = vmatpush1.bf16.msra.mxu0 %v8935
    %9073 = vmatprep.subr.bf16.mxu0 %v8932
    %9074 = vmatpush1.bf16.msra.mxu0 %v8931
    %9075 = vmatprep.subr.bf16.mxu0 %v8992
    %9076 = vmatpush2.bf16.msra.mxu0 %v8991
    %9077 = vmatprep.subr.bf16.mxu0 %v8988
    %9078 = vmatpush2.bf16.msra.mxu0 %v8987
    %9079 = vmatprep.subr.bf16.mxu0 %v8984
    %9080 = vmatpush2.bf16.msra.mxu0 %v8983
    %9081 = vmatprep.subr.bf16.mxu0 %v8980
    %9082 = vmatpush2.bf16.msra.mxu0 %v8979
    %9083 = vmatprep.subr.bf16.mxu0 %v8976
    %9084 = vmatpush2.bf16.msra.mxu0 %v8975
    %9085 = vmatprep.subr.bf16.mxu0 %v8972
    %9086 = vmatpush2.bf16.msra.mxu0 %v8971
    %9087 = vmatprep.subr.bf16.mxu0 %v8968
    %9088 = vmatpush2.bf16.msra.mxu0 %v8967
    %9089 = vmatprep.subr.bf16.mxu0 %v8964
    %9090 = vmatpush2.bf16.msra.mxu0 %v8963
    %9091 = vmatprep.mubr.bf16.mxu0 %v8736
    %9092 = vmatmul.mubr.bf16.gmra.mxu0 %v8729
    %v9093 = vpop.f32.mrf.mxu0
    %v9094 = vadd.f32 %v8697, %v9093
    %v9095 = vpop.f32.mrf.mxu0
    %v9096 = vadd.f32 %v8701, %v9095
    %v9097 = vpop.f32.mrf.mxu0
    %v9098 = vpop.f32.mrf.mxu0
    %9099 = vdwg.mxu0
    %9100 = vmatprep.subr.bf16.mxu0 %v8962
    %9101 = vmatpush1.bf16.msra.mxu0 %v8961
    %9102 = vmatprep.subr.bf16.mxu0 %v8958
    %9103 = vmatpush1.bf16.msra.mxu0 %v8957
    %9104 = vmatprep.subr.bf16.mxu0 %v8954
    %9105 = vmatpush1.bf16.msra.mxu0 %v8953
    %9106 = vmatprep.subr.bf16.mxu0 %v8950
    %9107 = vmatpush1.bf16.msra.mxu0 %v8949
    %9108 = vmatprep.subr.bf16.mxu0 %v8946
    %9109 = vmatpush1.bf16.msra.mxu0 %v8945
    %9110 = vmatprep.subr.bf16.mxu0 %v8942
    %9111 = vmatpush1.bf16.msra.mxu0 %v8941
    %9112 = vmatprep.subr.bf16.mxu0 %v8938
    %9113 = vmatpush1.bf16.msra.mxu0 %v8937
    %9114 = vmatprep.subr.bf16.mxu0 %v8934
    %9115 = vmatpush1.bf16.msra.mxu0 %v8933
    %9116 = vmatprep.subr.bf16.mxu0 %v8994
    %9117 = vmatpush2.bf16.msra.mxu0 %v8993
    %9118 = vmatprep.subr.bf16.mxu0 %v8990
    %9119 = vmatpush2.bf16.msra.mxu0 %v8989
    %9120 = vmatprep.subr.bf16.mxu0 %v8986
    %9121 = vmatpush2.bf16.msra.mxu0 %v8985
    %9122 = vmatprep.subr.bf16.mxu0 %v8982
    %9123 = vmatpush2.bf16.msra.mxu0 %v8981
    %9124 = vmatprep.subr.bf16.mxu0 %v8978
    %9125 = vmatpush2.bf16.msra.mxu0 %v8977
    %9126 = vmatprep.subr.bf16.mxu0 %v8974
    %9127 = vmatpush2.bf16.msra.mxu0 %v8973
    %9128 = vmatprep.subr.bf16.mxu0 %v8970
    %9129 = vmatpush2.bf16.msra.mxu0 %v8969
    %9130 = vmatprep.subr.bf16.mxu0 %v8966
    %9131 = vmatpush2.bf16.msra.mxu0 %v8965
    %9132 = vmatprep.mubr.bf16.mxu0 %v8736
    %9133 = vmatmul.mubr.bf16.gmra.mxu0 %v8729
    %v9134 = vpop.f32.mrf.mxu0
    %v9135 = vadd.f32 %v8705, %v9134
    %v9136 = vpop.f32.mrf.mxu0
    %v9137 = vadd.f32 %v8709, %v9136
    %v9138 = vpop.f32.mrf.mxu0
    %v9139 = vpop.f32.mrf.mxu0
    %9140 = vdwg.mxu0
    %v9141 = vmax.f32 %v9094, 0.0
    %v9142 = vmax.f32 %v9096, 0.0
    %v9143 = vmax.f32 %v9135, 0.0
    %v9144 = vmax.f32 %v9137, 0.0
    %v9149 = vcombine.low %v9141, %v9142
    %v9150 = vcombine.low %v9143, %v9144
    %v9152 = vunpack.c.l.s4 1983009808
    %v9153 = vunpack.c.0.s8 %v9152
    %v9154 = vlaneseq
    %v9155 = vshrl.u32 %v9154, 7
    %v9156 = vsub.s32 %v9153, %v9155
    %v9157 = vrot.slane %v9149, %v9156
    %v9159 = vunpack.c.l.s4 1983009808
    %v9160 = vunpack.c.0.s8 %v9159
    %v9161 = vlaneseq
    %v9162 = vshrl.u32 %v9161, 7
    %v9163 = vsub.s32 %v9160, %v9162
    %v9164 = vrot.slane %v9150, %v9163
    %v9165 = vcombine.low %v9157, %v9164
    %9167 = vst [vmem:[#allocation19] sm:$0xff] %v9165
    // Predicated region
    $region58: #{five_layer_cnn_forward.1} parent=1 // pred_check
      _
    $region59: #{five_layer_cnn_forward.1} parent=1 // pred_check_branch
      %9169 = sbr.rel (0) target = $region61
    $region60: #{five_layer_cnn_forward.1} parent=1 // pred_region
      %s9171 = ssub.s32 128, 128
      %9172 = vsyncadd [#allocation15], %s9171
      %s9174 = sshll.u32 [#allocation19], 4
      %s9175 = int_to_ptr.vmem [resolvable:$true] %s9174
      %9177 = dma.vmem_to_hbm [thread:$0]  %s9175, 128, %s11, [#allocation15]
    $region61: #{five_layer_cnn_forward.1} parent=1 // pred_fallthru
      _
    // Predicated region
    $region62: #{five_layer_cnn_forward.1} parent=1 // pred_check
      _
    $region63: #{five_layer_cnn_forward.1} parent=1 // pred_check_branch
      %9179 = sbr.rel (0) target = $region65
    $region64: #{five_layer_cnn_forward.1} parent=1 // pred_region
      %9180 = dma.done [#allocation15], 128
    $region65: #{five_layer_cnn_forward.1} parent=1 // pred_fallthru
      _
    %9181 = vsyncpa [#allocation14], 1
    %9182 = vsyncpa [#allocation17], 1
    %9183 = vsyncpa [#allocation15], 1

</llo_original>
